<compile_context>
chip_gen: v6e
topology: v6e:2x2x1
jax: 0.10.0
libtpu: 0.0.40
codegen_flags: <defaults>
</compile_context>

<pallas_src>
import functools
import math

import jax
import jax.numpy as jnp
from jax import lax
from jax.experimental import pallas as pl
from jax.experimental.pallas import tpu as pltpu

# --- module-consistent hyperparameters (scaled down from the original) ---
EMBED = 256            # EMBED_SIZE (orig 1024)
NUM_HEADS = 2          # orig 8  (DK = EMBED // NUM_HEADS preserved)
DK = EMBED // NUM_HEADS    # = 128  -> lane-aligned head slices
DV = EMBED // NUM_HEADS
FFN_D = 2 * EMBED      # orig 2048 = 2 * EMBED
NUM_DEC_LAYERS = 5     # same as module
VOCAB = 512
PAD_IDX = 0
LN_EPS = 1e-5          # nn.LayerNorm default
MAXLEN = 64            # pos_encoder maxlen (orig 200), >= demo seq len


# ------------------------- packed-parameter layouts -------------------------

def _offsets(segments):
    off, table = 0, {}
    for name, n in segments:
        table[name] = (off, n)
        off += n
    return table, off

# 13 per-layer 1-row params packed along lanes (all offsets multiples of 128).
_ROW_SEGS = [
    ("a1_bqkv", 3 * EMBED), ("a1_bo", EMBED), ("a1_g", EMBED), ("a1_b", EMBED),
    ("a2_bq", EMBED), ("a2_bkv", 2 * EMBED), ("a2_bo", EMBED),
    ("a2_g", EMBED), ("a2_b", EMBED),
    ("f_b1", FFN_D), ("f_b2", EMBED), ("f_g", EMBED), ("f_b", EMBED),
]
ROW_OFF, ROW_TOTAL = _offsets(_ROW_SEGS)          # ROW_TOTAL = 4352

# 6 per-layer K=EMBED weight matrices packed along lanes into one (E, 10E) slab.
_SLAB_SEGS = [
    ("a1_wqkv", 3 * EMBED), ("a1_wo", EMBED), ("a2_wq", EMBED),
    ("a2_wkv", 2 * EMBED), ("a2_wo", EMBED), ("f_w1", FFN_D),
]
SLAB_OFF, SLAB_TOTAL = _offsets(_SLAB_SEGS)       # SLAB_TOTAL = 2560


# ------------------------------- in-kernel helpers -------------------------------

def _row(row_ref, name):
    """(1, n) f32 slice of the packed per-layer row (static lane offsets)."""
    o, n = ROW_OFF[name]
    return row_ref[0, :, o:o + n]


def _slab(slab_ref, name):
    """(EMBED, n) bf16 slice of the packed per-layer weight slab."""
    o, n = SLAB_OFF[name]
    return slab_ref[0, :, o:o + n]


def _layer_norm(s, g, b):
    """LayerNorm over the lane (embed) axis in f32; g/b are (1, E)."""
    mu = jnp.mean(s, axis=-1, keepdims=True)
    d = s - mu
    var = jnp.mean(d * d, axis=-1, keepdims=True)
    return d * lax.rsqrt(var + LN_EPS) * g + b


def _mha_proj(q, k, v, keep, fill, slab_ref, wo_name, bo):
    """Multi-head SDPA with the Wo projection accumulated per head (no concatenate).

    q: (Tq, E) f32, k/v: (Tk, E) f32; keep/fill: (Tq, Tk) f32 so that
    s*keep + fill == masked_fill(mask == 0, -1e9) exactly. Head slices are
    DK=128-lane aligned; the head loop is unrolled (Python for).
    Returns (Tq, E) f32 = sum_h softmax(qh kh^T / sqrt(DK)) vh @ Wo[h] + bo.
    """
    scale = 1.0 / math.sqrt(DK)
    wo_off, _ = SLAB_OFF[wo_name]
    acc = None
    for h in range(NUM_HEADS):
        qh = q[:, h * DK:(h + 1) * DK]
        kh = k[:, h * DK:(h + 1) * DK]
        vh = v[:, h * DV:(h + 1) * DV]
        s = lax.dot_general(qh, kh, (((1,), (1,)), ((), ())),
                            preferred_element_type=jnp.float32) * scale
        s = s * keep + fill
        s = s - jnp.max(s, axis=-1, keepdims=True)
        p = jnp.exp(s)
        p = p * pl.reciprocal(jnp.sum(p, axis=-1, keepdims=True), approx=True)
        oh = jnp.dot(p, vh, preferred_element_type=jnp.float32)        # (Tq, DV)
        wo_h = slab_ref[0, h * DV:(h + 1) * DV, wo_off:wo_off + EMBED]  # (DV, E) bf16
        zh = jnp.dot(oh.astype(jnp.bfloat16), wo_h,
                     preferred_element_type=jnp.float32)               # (Tq, E)
        acc = zh if acc is None else acc + zh
    return acc + bo


# ------------------------------- fused decoder kernel -------------------------------

def _decoder_kernel(
    # shared (fetched once; block index never changes)
    x0_ref, enc_ref, keep1_ref, fill1_ref, keep2_ref, fill2_ref,
    # per-layer packed weights (leading layer axis blocked by the grid)
    slab_ref,    # (1, EMBED, SLAB_TOTAL) bf16
    w2_ref,      # (1, FFN_D, EMBED)      bf16
    row_ref,     # (1, 1, ROW_TOTAL)      f32
    # output head (fetched once)
    out_w_ref,   # (EMBED, V) bf16
    out_b_ref,   # (1, V)     f32
    # output
    y_ref,
    # scratch: activation carried across layers
    h_ref,
):
    layer = pl.program_id(0)

    @pl.when(layer == 0)
    def _():
        h_ref[...] = x0_ref[...]

    h = h_ref[...]                                   # (T, E) f32

    # ---- attn1: self-attention (fused QKV) + per-head Wo + residual + LayerNorm ----
    hb = h.astype(jnp.bfloat16)
    qkv = jnp.dot(hb, _slab(slab_ref, "a1_wqkv"),
                  preferred_element_type=jnp.float32) + _row(row_ref, "a1_bqkv")
    q = qkv[:, 0 * EMBED:1 * EMBED]
    k = qkv[:, 1 * EMBED:2 * EMBED]
    v = qkv[:, 2 * EMBED:3 * EMBED]
    z = _mha_proj(q, k, v, keep1_ref[...], fill1_ref[...],
                  slab_ref, "a1_wo", _row(row_ref, "a1_bo"))
    h = _layer_norm(h + z, _row(row_ref, "a1_g"), _row(row_ref, "a1_b"))  # dropout=id

    # ---- attn2: cross-attention (fused KV over enc) + per-head Wo + res + LN ----
    hb = h.astype(jnp.bfloat16)
    q = jnp.dot(hb, _slab(slab_ref, "a2_wq"),
                preferred_element_type=jnp.float32) + _row(row_ref, "a2_bq")
    encb = enc_ref[...].astype(jnp.bfloat16)
    kv = jnp.dot(encb, _slab(slab_ref, "a2_wkv"),
                 preferred_element_type=jnp.float32) + _row(row_ref, "a2_bkv")
    k = kv[:, 0:EMBED]
    v = kv[:, EMBED:2 * EMBED]
    z = _mha_proj(q, k, v, keep2_ref[...], fill2_ref[...],
                  slab_ref, "a2_wo", _row(row_ref, "a2_bo"))
    h = _layer_norm(h + z, _row(row_ref, "a2_g"), _row(row_ref, "a2_b"))

    # ---- ffn: Linear -> ReLU -> Linear + residual + LayerNorm ----
    hb = h.astype(jnp.bfloat16)
    a = jnp.maximum(
        jnp.dot(hb, _slab(slab_ref, "f_w1"),
                preferred_element_type=jnp.float32) + _row(row_ref, "f_b1"), 0.0)
    z = jnp.dot(a.astype(jnp.bfloat16), w2_ref[0],
                preferred_element_type=jnp.float32) + _row(row_ref, "f_b2")
    h = _layer_norm(h + z, _row(row_ref, "f_g"), _row(row_ref, "f_b"))

    h_ref[...] = h

    # ---- final vocab projection + LogSoftmax(dim=1), fused into the last step ----
    @pl.when(layer == pl.num_programs(0) - 1)
    def _():
        last = h[-1:, :].astype(jnp.bfloat16)            # h[:, -1] with batch = 1
        logits = jnp.dot(last, out_w_ref[...],
                         preferred_element_type=jnp.float32) + out_b_ref[...]
        m = jnp.max(logits, axis=-1, keepdims=True)
        e = jnp.exp(logits - m)
        y_ref[...] = logits - (jnp.log(jnp.sum(e, axis=-1, keepdims=True)) + m)


# ------------------------------- wrapper -------------------------------

@functools.partial(jax.jit, static_argnames=("single_buffer_shared",))
def decoder_forward(params, enc_out, dec_in, src_mask, *, single_buffer_shared=True):
    """enc_out: (1, S, EMBED) f32, dec_in: (1, T) int32, src_mask: (1,1,1,S) int32."""
    T = dec_in.shape[1]
    S = enc_out.shape[1]
    V = params["out_b"].shape[1]
    L = params["w_slab"].shape[0]

    # TODO(synk): embedding gather stays as wrapper glue (a tiny XLA gather); the
    # positional-encoding table is precomputed once in init_params.
    x0 = params["embed"][dec_in[0]] + params["pe"][:T]            # (T, E) f32
    enc = enc_out[0]                                              # (S, E) f32

    # Masks as (keep, fill) f32 pairs -> exact masked_fill(mask == 0, -1e9).
    # Reference tgt_tril_mask pads along *query rows*: (x != pad).unsqueeze(1).unsqueeze(3) & tril.
    pad_q = (dec_in[0] != PAD_IDX).astype(jnp.float32)[:, None]   # (T, 1)
    tril = jnp.tril(jnp.ones((T, T), jnp.float32))
    keep1 = pad_q * tril
    fill1 = (1.0 - keep1) * jnp.float32(-1e9)
    keep2 = jnp.broadcast_to(
        src_mask[0, 0, 0].astype(jnp.float32)[None, :], (T, S))
    fill2 = (1.0 - keep2) * jnp.float32(-1e9)

    shared = (x0, enc, keep1, fill1, keep2, fill2)
    layered = (params["w_slab"], params["w2"], params["rows"])
    tail = (params["out_w"], params["out_b"])

    def shared_spec(a):
        # Constant block index -> a second pipeline buffer is dead weight.
        if single_buffer_shared:
            return pl.BlockSpec(a.shape, lambda l: (0,) * a.ndim,
                                pipeline_mode=pl.Buffered(1))
        return pl.BlockSpec(a.shape, lambda l: (0,) * a.ndim)

    def layer_spec(a):
        return pl.BlockSpec((1,) + a.shape[1:],
                            lambda l: (l,) + (0,) * (a.ndim - 1))

    in_specs = ([shared_spec(a) for a in shared]
                + [layer_spec(a) for a in layered]
                + [shared_spec(a) for a in tail])

    # Advisory cost estimate so XLA schedules the gather / mask prep around the call.
    mm = lambda m, k, n: 2 * m * k * n
    per_layer = (mm(T, EMBED, 3 * EMBED) + mm(T, EMBED, EMBED)
                 + NUM_HEADS * (mm(T, DK, T) + mm(T, T, DV))
                 + mm(T, EMBED, EMBED) + mm(S, EMBED, 2 * EMBED) + mm(T, EMBED, EMBED)
                 + NUM_HEADS * (mm(T, DK, S) + mm(T, S, DV))
                 + mm(T, EMBED, FFN_D) + mm(T, FFN_D, EMBED))
    flops = L * per_layer + mm(1, EMBED, V)
    transcendentals = L * NUM_HEADS * (T * T + T * S) + V
    bytes_accessed = (sum(int(a.size) * a.dtype.itemsize
                          for a in (shared + layered + tail)) + V * 4)

    # TODO(synk): GroupAttention is dead code w.r.t. the decoder output (group_prob
    # stays 0.0 and its outputs never feed attn1/attn2/ffn), so it is skipped.
    # TODO(synk): for a real greedy-decode loop, keep the ~4 MiB bf16 weight set
    # resident in VMEM across tokens instead of re-streaming it per call.
    return pl.pallas_call(
        _decoder_kernel,
        grid=(L,),
        out_shape=jax.ShapeDtypeStruct((1, V), jnp.float32),
        in_specs=in_specs,
        out_specs=pl.BlockSpec((1, V), lambda l: (0, 0)),
        scratch_shapes=[pltpu.VMEM((T, EMBED), jnp.float32)],
        compiler_params=pltpu.CompilerParams(
            # layers are a serial carry through the VMEM scratch -> must be arbitrary
            dimension_semantics=("arbitrary",)),
        cost_estimate=pl.CostEstimate(flops=flops,
                                      transcendentals=transcendentals,
                                      bytes_accessed=bytes_accessed),
    )(*shared, *layered, *tail)


# ------------------------------- parameters -------------------------------

def positional_encoding(n, d):
    pos = jnp.arange(n, dtype=jnp.float32)[:, None]
    k = jnp.exp(math.log(10000.0) * -jnp.arange(0, d, 2, dtype=jnp.float32) / d)
    pe = jnp.zeros((n, d), jnp.float32)
    pe = pe.at[:, 0::2].set(jnp.sin(pos * k))
    pe = pe.at[:, 1::2].set(jnp.cos(pos * k))
    return pe


def _dense(key, fan_in, fan_out):
    kw, kb = jax.random.split(key)
    w = jax.random.normal(kw, (fan_in, fan_out), jnp.float32) / math.sqrt(fan_in)
    b = 0.01 * jax.random.normal(kb, (fan_out,), jnp.float32)
    return w, b


def init_params(key, vocab_size):
    keys = iter(jax.random.split(key, 64))
    embed = 0.02 * jax.random.normal(next(keys), (vocab_size, EMBED), jnp.float32)
    embed = embed.at[PAD_IDX].set(0.0)                    # padding_idx row is zero

    ones = jnp.ones((EMBED,), jnp.float32)
    zeros = jnp.zeros((EMBED,), jnp.float32)

    slabs, w2s, rows = [], [], []
    for _ in range(NUM_DEC_LAYERS):
        wq1, bq1 = _dense(next(keys), EMBED, EMBED)
        wk1, bk1 = _dense(next(keys), EMBED, EMBED)
        wv1, bv1 = _dense(next(keys), EMBED, EMBED)
        wo1, bo1 = _dense(next(keys), EMBED, EMBED)
        wq2, bq2 = _dense(next(keys), EMBED, EMBED)
        wk2, bk2 = _dense(next(keys), EMBED, EMBED)
        wv2, bv2 = _dense(next(keys), EMBED, EMBED)
        wo2, bo2 = _dense(next(keys), EMBED, EMBED)
        fw1, fb1 = _dense(next(keys), EMBED, FFN_D)
        fw2, fb2 = _dense(next(keys), FFN_D, EMBED)

        # Matches _SLAB_SEGS order: a1_wqkv | a1_wo | a2_wq | a2_wkv | a2_wo | f_w1
        slabs.append(jnp.concatenate(
            [wq1, wk1, wv1, wo1, wq2, wk2, wv2, wo2, fw1], axis=1))   # (E, 10E)
        w2s.append(fw2)                                               # (FFN_D, E)
        # Matches _ROW_SEGS order.
        rows.append(jnp.concatenate(
            [bq1, bk1, bv1, bo1, ones, zeros,
             bq2, bk2, bv2, bo2, ones, zeros,
             fb1, fb2, ones, zeros], axis=0))                         # (ROW_TOTAL,)

    out_w, out_b = _dense(next(keys), EMBED, vocab_size)

    return dict(
        embed=embed,
        pe=positional_encoding(MAXLEN, EMBED),
        w_slab=jnp.stack(slabs).astype(jnp.bfloat16),        # (L, E, 10E)  bf16
        w2=jnp.stack(w2s).astype(jnp.bfloat16),               # (L, FFN_D, E) bf16
        rows=jnp.stack(rows)[:, None, :],                     # (L, 1, ROW_TOTAL) f32
        out_w=out_w.astype(jnp.bfloat16),                     # (E, V) bf16
        out_b=out_b[None, :],                                 # (1, V) f32
    )


# ------------------------------- demo -------------------------------

if __name__ == "__main__":
    key = jax.random.PRNGKey(0)
    k_p, k_enc, k_tok = jax.random.split(key, 3)

    B, T, S = 1, 8, 16          # module hardcodes BATCH_SIZE = 1
    params = init_params(k_p, VOCAB)

    enc_out = jax.random.normal(k_enc, (B, S, EMBED), jnp.float32)
    dec_in = jax.random.randint(k_tok, (B, T), 1, VOCAB).astype(jnp.int32)
    dec_in = dec_in.at[0, 3].set(PAD_IDX)                 # exercise the pad mask
    src_mask = jnp.ones((B, 1, 1, S), jnp.int32)
    src_mask = src_mask.at[0, 0, 0, S - 2:].set(0)        # two padded src positions

    try:
        y = decoder_forward(params, enc_out, dec_in, src_mask,
                            single_buffer_shared=True)
        y = jax.block_until_ready(y)
    except Exception:
        # TODO(synk): pl.Buffered(1) single-buffering unavailable on this jax build;
        # fall back to default double-buffered shared inputs (correctness identical).
        y = decoder_forward(params, enc_out, dec_in, src_mask,
                            single_buffer_shared=False)
        y = jax.block_until_ready(y)

    assert y.shape == (1, VOCAB), y.shape
    assert bool(jnp.all(jnp.isfinite(y)))
    print("KERNEL_OK")
</pallas_src>

<mosaic_0001>
module attributes {stable_mosaic.version = 11 : i64} {
  func.func @_decoder_kernel(%arg0: i32, %arg1: memref<8x256xf32, #tpu.memory_space<vmem>>, %arg2: memref<16x256xf32, #tpu.memory_space<vmem>>, %arg3: memref<8x8xf32, #tpu.memory_space<vmem>>, %arg4: memref<8x8xf32, #tpu.memory_space<vmem>>, %arg5: memref<8x16xf32, #tpu.memory_space<vmem>>, %arg6: memref<8x16xf32, #tpu.memory_space<vmem>>, %arg7: memref<1x256x2560xbf16, #tpu.memory_space<vmem>>, %arg8: memref<1x512x256xbf16, #tpu.memory_space<vmem>>, %arg9: memref<1x1x4352xf32, #tpu.memory_space<vmem>>, %arg10: memref<256x512xbf16, #tpu.memory_space<vmem>>, %arg11: memref<1x512xf32, #tpu.memory_space<vmem>>, %arg12: memref<1x512xf32, #tpu.memory_space<vmem>>, %arg13: memref<8x256xf32, #tpu.memory_space<vmem>>) attributes {dimension_semantics = [#tpu.dimension_semantics<arbitrary>], iteration_bounds = array<i64: 5>, scalar_prefetch = 0 : i64, scratch_operands = 1 : i64, tpu.core_type = #tpu.core_type<tc>, window_params = [{pipeline_mode = #tpu.pipeline_mode<synchronous>, transform_indices = @transform_0, window_bounds = array<i64: 8, 256>}, {pipeline_mode = #tpu.pipeline_mode<synchronous>, transform_indices = @transform_1, window_bounds = array<i64: 16, 256>}, {pipeline_mode = #tpu.pipeline_mode<synchronous>, transform_indices = @transform_2, window_bounds = array<i64: 8, 8>}, {pipeline_mode = #tpu.pipeline_mode<synchronous>, transform_indices = @transform_3, window_bounds = array<i64: 8, 8>}, {pipeline_mode = #tpu.pipeline_mode<synchronous>, transform_indices = @transform_4, window_bounds = array<i64: 8, 16>}, {pipeline_mode = #tpu.pipeline_mode<synchronous>, transform_indices = @transform_5, window_bounds = array<i64: 8, 16>}, {transform_indices = @transform_6, window_bounds = array<i64: 1, 256, 2560>}, {transform_indices = @transform_7, window_bounds = array<i64: 1, 512, 256>}, {transform_indices = @transform_8, window_bounds = array<i64: 1, 1, 4352>}, {pipeline_mode = #tpu.pipeline_mode<synchronous>, transform_indices = @transform_9, window_bounds = array<i64: 256, 512>}, {pipeline_mode = #tpu.pipeline_mode<synchronous>, transform_indices = @transform_10, window_bounds = array<i64: 1, 512>}, {pipeline_mode = #tpu.pipeline_mode<synchronous>, transform_indices = @transform_11, window_bounds = array<i64: 1, 512>}]} {
    %c0_i32 = arith.constant 0 : i32
    %0 = arith.cmpi eq, %arg0, %c0_i32 : i32
    %1 = arith.extui %0 : i1 to i32
    %c0_i32_0 = arith.constant 0 : i32
    %2 = arith.cmpi ne, %1, %c0_i32_0 : i32
    scf.if %2 {
      %c0_111 = arith.constant 0 : index
      %c0_112 = arith.constant 0 : index
      %237 = vector.load %arg1[%c0_111, %c0_112] : memref<8x256xf32, #tpu.memory_space<vmem>>, vector<8x256xf32>
      %c0_113 = arith.constant 0 : index
      %c0_114 = arith.constant 0 : index
      %238 = vector.load %arg13[%c0_113, %c0_114] : memref<8x256xf32, #tpu.memory_space<vmem>>, vector<8x256xf32>
      tpu.vector_store %arg13[%c0_113, %c0_114], %237 {strides = array<i32>} : memref<8x256xf32, #tpu.memory_space<vmem>>, vector<8x256xf32>,
    } else {
    }
    %c0 = arith.constant 0 : index
    %c0_1 = arith.constant 0 : index
    %3 = vector.load %arg13[%c0, %c0_1] : memref<8x256xf32, #tpu.memory_space<vmem>>, vector<8x256xf32>
    %4 = arith.truncf %3 : vector<8x256xf32> to vector<8x256xbf16>
    %c0_2 = arith.constant 0 : index
    %c0_3 = arith.constant 0 : index
    %c0_4 = arith.constant 0 : index
    %5 = vector.load %arg7[%c0_2, %c0_3, %c0_4] : memref<1x256x2560xbf16, #tpu.memory_space<vmem>>, vector<1x256x768xbf16>
    %6 = vector.shape_cast %5 : vector<1x256x768xbf16> to vector<256x768xbf16>
    %cst = arith.constant dense<0.000000e+00> : vector<8x768xf32>
    %7 = tpu.matmul %4, %6, %cst {dimension_numbers = #tpu.dot_dimension_numbers<[1], [0], [0], [1], [0, 0, 1, 1], [], []>} : vector<8x256xbf16>, vector<256x768xbf16>, vector<8x768xf32> -> vector<8x768xf32>
    %c0_5 = arith.constant 0 : index
    %c0_6 = arith.constant 0 : index
    %c0_7 = arith.constant 0 : index
    %8 = vector.load %arg9[%c0_5, %c0_6, %c0_7] : memref<1x1x4352xf32, #tpu.memory_space<vmem>>, vector<1x1x768xf32>
    %9 = vector.shape_cast %8 : vector<1x1x768xf32> to vector<1x768xf32>
    %10 = vector.broadcast %9 : vector<1x768xf32> to vector<8x768xf32>
    %11 = arith.addf %7, %10 : vector<8x768xf32>
    %12 = vector.extract_strided_slice %11 {offsets = [0, 0], sizes = [8, 256], strides = [1, 1]} : vector<8x768xf32> to vector<8x256xf32>
    %13 = vector.extract_strided_slice %11 {offsets = [0, 256], sizes = [8, 256], strides = [1, 1]} : vector<8x768xf32> to vector<8x256xf32>
    %14 = vector.extract_strided_slice %11 {offsets = [0, 512], sizes = [8, 256], strides = [1, 1]} : vector<8x768xf32> to vector<8x256xf32>
    %c0_8 = arith.constant 0 : index
    %c0_9 = arith.constant 0 : index
    %15 = vector.load %arg3[%c0_8, %c0_9] : memref<8x8xf32, #tpu.memory_space<vmem>>, vector<8x8xf32>
    %c0_10 = arith.constant 0 : index
    %c0_11 = arith.constant 0 : index
    %16 = vector.load %arg4[%c0_10, %c0_11] : memref<8x8xf32, #tpu.memory_space<vmem>>, vector<8x8xf32>
    %c0_12 = arith.constant 0 : index
    %c0_13 = arith.constant 0 : index
    %c768 = arith.constant 768 : index
    %17 = vector.load %arg9[%c0_12, %c0_13, %c768] : memref<1x1x4352xf32, #tpu.memory_space<vmem>>, vector<1x1x256xf32>
    %18 = vector.shape_cast %17 : vector<1x1x256xf32> to vector<1x256xf32>
    %19 = vector.extract_strided_slice %12 {offsets = [0, 0], sizes = [8, 128], strides = [1, 1]} : vector<8x256xf32> to vector<8x128xf32>
    %20 = vector.extract_strided_slice %13 {offsets = [0, 0], sizes = [8, 128], strides = [1, 1]} : vector<8x256xf32> to vector<8x128xf32>
    %21 = vector.extract_strided_slice %14 {offsets = [0, 0], sizes = [8, 128], strides = [1, 1]} : vector<8x256xf32> to vector<8x128xf32>
    %cst_14 = arith.constant dense<0.000000e+00> : vector<8x8xf32>
    %22 = tpu.matmul %19, %20, %cst_14 {dimension_numbers = #tpu.dot_dimension_numbers<[1], [1], [0], [0], [0, 0, 1, 0], [], []>} : vector<8x128xf32>, vector<8x128xf32>, vector<8x8xf32> -> vector<8x8xf32>
    %cst_15 = arith.constant 0.0883883461 : f32
    %23 = vector.broadcast %cst_15 : f32 to vector<8x8xf32>
    %24 = arith.mulf %22, %23 : vector<8x8xf32>
    %25 = arith.mulf %24, %15 : vector<8x8xf32>
    %26 = arith.addf %25, %16 : vector<8x8xf32>
    %cst_16 = arith.constant dense<0xFF800000> : vector<8xf32>
    %27 = vector.multi_reduction <maximumf>, %26, %cst_16 [1] : vector<8x8xf32> to vector<8xf32>
    %28 = vector.shape_cast %27 : vector<8xf32> to vector<8x1xf32>
    %29 = vector.broadcast %28 : vector<8x1xf32> to vector<8x8xf32>
    %30 = arith.subf %26, %29 : vector<8x8xf32>
    %31 = math.exp %30 : vector<8x8xf32>
    %cst_17 = arith.constant dense<0.000000e+00> : vector<8xf32>
    %32 = vector.multi_reduction <add>, %31, %cst_17 [1] : vector<8x8xf32> to vector<8xf32>
    %33 = vector.shape_cast %32 : vector<8xf32> to vector<8x1xf32>
    %34 = tpu.reciprocal %33 {approx = true} : vector<8x1xf32> -> vector<8x1xf32>
    %35 = vector.broadcast %34 : vector<8x1xf32> to vector<8x8xf32>
    %36 = arith.mulf %31, %35 : vector<8x8xf32>
    %cst_18 = arith.constant dense<0.000000e+00> : vector<8x128xf32>
    %37 = tpu.matmul %36, %21, %cst_18 {dimension_numbers = #tpu.dot_dimension_numbers<[1], [0], [0], [1], [0, 0, 1, 1], [], []>} : vector<8x8xf32>, vector<8x128xf32>, vector<8x128xf32> -> vector<8x128xf32>
    %c0_19 = arith.constant 0 : index
    %c0_20 = arith.constant 0 : index
    %c768_21 = arith.constant 768 : index
    %38 = vector.load %arg7[%c0_19, %c0_20, %c768_21] : memref<1x256x2560xbf16, #tpu.memory_space<vmem>>, vector<1x128x256xbf16>
    %39 = vector.shape_cast %38 : vector<1x128x256xbf16> to vector<128x256xbf16>
    %40 = arith.truncf %37 : vector<8x128xf32> to vector<8x128xbf16>
    %cst_22 = arith.constant dense<0.000000e+00> : vector<8x256xf32>
    %41 = tpu.matmul %40, %39, %cst_22 {dimension_numbers = #tpu.dot_dimension_numbers<[1], [0], [0], [1], [0, 0, 1, 1], [], []>} : vector<8x128xbf16>, vector<128x256xbf16>, vector<8x256xf32> -> vector<8x256xf32>
    %42 = vector.extract_strided_slice %12 {offsets = [0, 128], sizes = [8, 128], strides = [1, 1]} : vector<8x256xf32> to vector<8x128xf32>
    %43 = vector.extract_strided_slice %13 {offsets = [0, 128], sizes = [8, 128], strides = [1, 1]} : vector<8x256xf32> to vector<8x128xf32>
    %44 = vector.extract_strided_slice %14 {offsets = [0, 128], sizes = [8, 128], strides = [1, 1]} : vector<8x256xf32> to vector<8x128xf32>
    %cst_23 = arith.constant dense<0.000000e+00> : vector<8x8xf32>
    %45 = tpu.matmul %42, %43, %cst_23 {dimension_numbers = #tpu.dot_dimension_numbers<[1], [1], [0], [0], [0, 0, 1, 0], [], []>} : vector<8x128xf32>, vector<8x128xf32>, vector<8x8xf32> -> vector<8x8xf32>
    %cst_24 = arith.constant 0.0883883461 : f32
    %46 = vector.broadcast %cst_24 : f32 to vector<8x8xf32>
    %47 = arith.mulf %45, %46 : vector<8x8xf32>
    %48 = arith.mulf %47, %15 : vector<8x8xf32>
    %49 = arith.addf %48, %16 : vector<8x8xf32>
    %cst_25 = arith.constant dense<0xFF800000> : vector<8xf32>
    %50 = vector.multi_reduction <maximumf>, %49, %cst_25 [1] : vector<8x8xf32> to vector<8xf32>
    %51 = vector.shape_cast %50 : vector<8xf32> to vector<8x1xf32>
    %52 = vector.broadcast %51 : vector<8x1xf32> to vector<8x8xf32>
    %53 = arith.subf %49, %52 : vector<8x8xf32>
    %54 = math.exp %53 : vector<8x8xf32>
    %cst_26 = arith.constant dense<0.000000e+00> : vector<8xf32>
    %55 = vector.multi_reduction <add>, %54, %cst_26 [1] : vector<8x8xf32> to vector<8xf32>
    %56 = vector.shape_cast %55 : vector<8xf32> to vector<8x1xf32>
    %57 = tpu.reciprocal %56 {approx = true} : vector<8x1xf32> -> vector<8x1xf32>
    %58 = vector.broadcast %57 : vector<8x1xf32> to vector<8x8xf32>
    %59 = arith.mulf %54, %58 : vector<8x8xf32>
    %cst_27 = arith.constant dense<0.000000e+00> : vector<8x128xf32>
    %60 = tpu.matmul %59, %44, %cst_27 {dimension_numbers = #tpu.dot_dimension_numbers<[1], [0], [0], [1], [0, 0, 1, 1], [], []>} : vector<8x8xf32>, vector<8x128xf32>, vector<8x128xf32> -> vector<8x128xf32>
    %c0_28 = arith.constant 0 : index
    %c128 = arith.constant 128 : index
    %c768_29 = arith.constant 768 : index
    %61 = vector.load %arg7[%c0_28, %c128, %c768_29] : memref<1x256x2560xbf16, #tpu.memory_space<vmem>>, vector<1x128x256xbf16>
    %62 = vector.shape_cast %61 : vector<1x128x256xbf16> to vector<128x256xbf16>
    %63 = arith.truncf %60 : vector<8x128xf32> to vector<8x128xbf16>
    %cst_30 = arith.constant dense<0.000000e+00> : vector<8x256xf32>
    %64 = tpu.matmul %63, %62, %cst_30 {dimension_numbers = #tpu.dot_dimension_numbers<[1], [0], [0], [1], [0, 0, 1, 1], [], []>} : vector<8x128xbf16>, vector<128x256xbf16>, vector<8x256xf32> -> vector<8x256xf32>
    %65 = arith.addf %41, %64 : vector<8x256xf32>
    %66 = vector.broadcast %18 : vector<1x256xf32> to vector<8x256xf32>
    %67 = arith.addf %65, %66 : vector<8x256xf32>
    %68 = arith.addf %3, %67 : vector<8x256xf32>
    %c0_31 = arith.constant 0 : index
    %c0_32 = arith.constant 0 : index
    %c1024 = arith.constant 1024 : index
    %69 = vector.load %arg9[%c0_31, %c0_32, %c1024] : memref<1x1x4352xf32, #tpu.memory_space<vmem>>, vector<1x1x256xf32>
    %70 = vector.shape_cast %69 : vector<1x1x256xf32> to vector<1x256xf32>
    %c0_33 = arith.constant 0 : index
    %c0_34 = arith.constant 0 : index
    %c1280 = arith.constant 1280 : index
    %71 = vector.load %arg9[%c0_33, %c0_34, %c1280] : memref<1x1x4352xf32, #tpu.memory_space<vmem>>, vector<1x1x256xf32>
    %72 = vector.shape_cast %71 : vector<1x1x256xf32> to vector<1x256xf32>
    %cst_35 = arith.constant dense<0.000000e+00> : vector<8xf32>
    %73 = vector.multi_reduction <add>, %68, %cst_35 [1] : vector<8x256xf32> to vector<8xf32>
    %74 = vector.shape_cast %73 : vector<8xf32> to vector<8x1xf32>
    %cst_36 = arith.constant 2.560000e+02 : f32
    %75 = vector.broadcast %cst_36 : f32 to vector<8x1xf32>
    %76 = arith.divf %74, %75 : vector<8x1xf32>
    %77 = vector.broadcast %76 : vector<8x1xf32> to vector<8x256xf32>
    %78 = arith.subf %68, %77 : vector<8x256xf32>
    %79 = arith.mulf %78, %78 : vector<8x256xf32>
    %cst_37 = arith.constant dense<0.000000e+00> : vector<8xf32>
    %80 = vector.multi_reduction <add>, %79, %cst_37 [1] : vector<8x256xf32> to vector<8xf32>
    %81 = vector.shape_cast %80 : vector<8xf32> to vector<8x1xf32>
    %cst_38 = arith.constant 2.560000e+02 : f32
    %82 = vector.broadcast %cst_38 : f32 to vector<8x1xf32>
    %83 = arith.divf %81, %82 : vector<8x1xf32>
    %cst_39 = arith.constant 9.99999974E-6 : f32
    %84 = vector.broadcast %cst_39 : f32 to vector<8x1xf32>
    %85 = arith.addf %83, %84 : vector<8x1xf32>
    %86 = math.rsqrt %85 : vector<8x1xf32>
    %87 = vector.broadcast %86 : vector<8x1xf32> to vector<8x256xf32>
    %88 = arith.mulf %78, %87 : vector<8x256xf32>
    %89 = vector.broadcast %70 : vector<1x256xf32> to vector<8x256xf32>
    %90 = arith.mulf %88, %89 : vector<8x256xf32>
    %91 = vector.broadcast %72 : vector<1x256xf32> to vector<8x256xf32>
    %92 = arith.addf %90, %91 : vector<8x256xf32>
    %93 = arith.truncf %92 : vector<8x256xf32> to vector<8x256xbf16>
    %c0_40 = arith.constant 0 : index
    %c0_41 = arith.constant 0 : index
    %c1024_42 = arith.constant 1024 : index
    %94 = vector.load %arg7[%c0_40, %c0_41, %c1024_42] : memref<1x256x2560xbf16, #tpu.memory_space<vmem>>, vector<1x256x256xbf16>
    %95 = vector.shape_cast %94 : vector<1x256x256xbf16> to vector<256x256xbf16>
    %cst_43 = arith.constant dense<0.000000e+00> : vector<8x256xf32>
    %96 = tpu.matmul %93, %95, %cst_43 {dimension_numbers = #tpu.dot_dimension_numbers<[1], [0], [0], [1], [0, 0, 1, 1], [], []>} : vector<8x256xbf16>, vector<256x256xbf16>, vector<8x256xf32> -> vector<8x256xf32>
    %c0_44 = arith.constant 0 : index
    %c0_45 = arith.constant 0 : index
    %c1536 = arith.constant 1536 : index
    %97 = vector.load %arg9[%c0_44, %c0_45, %c1536] : memref<1x1x4352xf32, #tpu.memory_space<vmem>>, vector<1x1x256xf32>
    %98 = vector.shape_cast %97 : vector<1x1x256xf32> to vector<1x256xf32>
    %99 = vector.broadcast %98 : vector<1x256xf32> to vector<8x256xf32>
    %100 = arith.addf %96, %99 : vector<8x256xf32>
    %c0_46 = arith.constant 0 : index
    %c0_47 = arith.constant 0 : index
    %101 = vector.load %arg2[%c0_46, %c0_47] : memref<16x256xf32, #tpu.memory_space<vmem>>, vector<16x256xf32>
    %102 = arith.truncf %101 : vector<16x256xf32> to vector<16x256xbf16>
    %c0_48 = arith.constant 0 : index
    %c0_49 = arith.constant 0 : index
    %c1280_50 = arith.constant 1280 : index
    %103 = vector.load %arg7[%c0_48, %c0_49, %c1280_50] : memref<1x256x2560xbf16, #tpu.memory_space<vmem>>, vector<1x256x512xbf16>
    %104 = vector.shape_cast %103 : vector<1x256x512xbf16> to vector<256x512xbf16>
    %cst_51 = arith.constant dense<0.000000e+00> : vector<16x512xf32>
    %105 = tpu.matmul %102, %104, %cst_51 {dimension_numbers = #tpu.dot_dimension_numbers<[1], [0], [0], [1], [0, 0, 1, 1], [], []>} : vector<16x256xbf16>, vector<256x512xbf16>, vector<16x512xf32> -> vector<16x512xf32>
    %c0_52 = arith.constant 0 : index
    %c0_53 = arith.constant 0 : index
    %c1792 = arith.constant 1792 : index
    %106 = vector.load %arg9[%c0_52, %c0_53, %c1792] : memref<1x1x4352xf32, #tpu.memory_space<vmem>>, vector<1x1x512xf32>
    %107 = vector.shape_cast %106 : vector<1x1x512xf32> to vector<1x512xf32>
    %108 = vector.broadcast %107 : vector<1x512xf32> to vector<16x512xf32>
    %109 = arith.addf %105, %108 : vector<16x512xf32>
    %110 = vector.extract_strided_slice %109 {offsets = [0, 0], sizes = [16, 256], strides = [1, 1]} : vector<16x512xf32> to vector<16x256xf32>
    %111 = vector.extract_strided_slice %109 {offsets = [0, 256], sizes = [16, 256], strides = [1, 1]} : vector<16x512xf32> to vector<16x256xf32>
    %c0_54 = arith.constant 0 : index
    %c0_55 = arith.constant 0 : index
    %112 = vector.load %arg5[%c0_54, %c0_55] : memref<8x16xf32, #tpu.memory_space<vmem>>, vector<8x16xf32>
    %c0_56 = arith.constant 0 : index
    %c0_57 = arith.constant 0 : index
    %113 = vector.load %arg6[%c0_56, %c0_57] : memref<8x16xf32, #tpu.memory_space<vmem>>, vector<8x16xf32>
    %c0_58 = arith.constant 0 : index
    %c0_59 = arith.constant 0 : index
    %c2304 = arith.constant 2304 : index
    %114 = vector.load %arg9[%c0_58, %c0_59, %c2304] : memref<1x1x4352xf32, #tpu.memory_space<vmem>>, vector<1x1x256xf32>
    %115 = vector.shape_cast %114 : vector<1x1x256xf32> to vector<1x256xf32>
    %116 = vector.extract_strided_slice %100 {offsets = [0, 0], sizes = [8, 128], strides = [1, 1]} : vector<8x256xf32> to vector<8x128xf32>
    %117 = vector.extract_strided_slice %110 {offsets = [0, 0], sizes = [16, 128], strides = [1, 1]} : vector<16x256xf32> to vector<16x128xf32>
    %118 = vector.extract_strided_slice %111 {offsets = [0, 0], sizes = [16, 128], strides = [1, 1]} : vector<16x256xf32> to vector<16x128xf32>
    %cst_60 = arith.constant dense<0.000000e+00> : vector<8x16xf32>
    %119 = tpu.matmul %116, %117, %cst_60 {dimension_numbers = #tpu.dot_dimension_numbers<[1], [1], [0], [0], [0, 0, 1, 0], [], []>} : vector<8x128xf32>, vector<16x128xf32>, vector<8x16xf32> -> vector<8x16xf32>
    %cst_61 = arith.constant 0.0883883461 : f32
    %120 = vector.broadcast %cst_61 : f32 to vector<8x16xf32>
    %121 = arith.mulf %119, %120 : vector<8x16xf32>
    %122 = arith.mulf %121, %112 : vector<8x16xf32>
    %123 = arith.addf %122, %113 : vector<8x16xf32>
    %cst_62 = arith.constant dense<0xFF800000> : vector<8xf32>
    %124 = vector.multi_reduction <maximumf>, %123, %cst_62 [1] : vector<8x16xf32> to vector<8xf32>
    %125 = vector.shape_cast %124 : vector<8xf32> to vector<8x1xf32>
    %126 = vector.broadcast %125 : vector<8x1xf32> to vector<8x16xf32>
    %127 = arith.subf %123, %126 : vector<8x16xf32>
    %128 = math.exp %127 : vector<8x16xf32>
    %cst_63 = arith.constant dense<0.000000e+00> : vector<8xf32>
    %129 = vector.multi_reduction <add>, %128, %cst_63 [1] : vector<8x16xf32> to vector<8xf32>
    %130 = vector.shape_cast %129 : vector<8xf32> to vector<8x1xf32>
    %131 = tpu.reciprocal %130 {approx = true} : vector<8x1xf32> -> vector<8x1xf32>
    %132 = vector.broadcast %131 : vector<8x1xf32> to vector<8x16xf32>
    %133 = arith.mulf %128, %132 : vector<8x16xf32>
    %cst_64 = arith.constant dense<0.000000e+00> : vector<8x128xf32>
    %134 = tpu.matmul %133, %118, %cst_64 {dimension_numbers = #tpu.dot_dimension_numbers<[1], [0], [0], [1], [0, 0, 1, 1], [], []>} : vector<8x16xf32>, vector<16x128xf32>, vector<8x128xf32> -> vector<8x128xf32>
    %c0_65 = arith.constant 0 : index
    %c0_66 = arith.constant 0 : index
    %c1792_67 = arith.constant 1792 : index
    %135 = vector.load %arg7[%c0_65, %c0_66, %c1792_67] : memref<1x256x2560xbf16, #tpu.memory_space<vmem>>, vector<1x128x256xbf16>
    %136 = vector.shape_cast %135 : vector<1x128x256xbf16> to vector<128x256xbf16>
    %137 = arith.truncf %134 : vector<8x128xf32> to vector<8x128xbf16>
    %cst_68 = arith.constant dense<0.000000e+00> : vector<8x256xf32>
    %138 = tpu.matmul %137, %136, %cst_68 {dimension_numbers = #tpu.dot_dimension_numbers<[1], [0], [0], [1], [0, 0, 1, 1], [], []>} : vector<8x128xbf16>, vector<128x256xbf16>, vector<8x256xf32> -> vector<8x256xf32>
    %139 = vector.extract_strided_slice %100 {offsets = [0, 128], sizes = [8, 128], strides = [1, 1]} : vector<8x256xf32> to vector<8x128xf32>
    %140 = vector.extract_strided_slice %110 {offsets = [0, 128], sizes = [16, 128], strides = [1, 1]} : vector<16x256xf32> to vector<16x128xf32>
    %141 = vector.extract_strided_slice %111 {offsets = [0, 128], sizes = [16, 128], strides = [1, 1]} : vector<16x256xf32> to vector<16x128xf32>
    %cst_69 = arith.constant dense<0.000000e+00> : vector<8x16xf32>
    %142 = tpu.matmul %139, %140, %cst_69 {dimension_numbers = #tpu.dot_dimension_numbers<[1], [1], [0], [0], [0, 0, 1, 0], [], []>} : vector<8x128xf32>, vector<16x128xf32>, vector<8x16xf32> -> vector<8x16xf32>
    %cst_70 = arith.constant 0.0883883461 : f32
    %143 = vector.broadcast %cst_70 : f32 to vector<8x16xf32>
    %144 = arith.mulf %142, %143 : vector<8x16xf32>
    %145 = arith.mulf %144, %112 : vector<8x16xf32>
    %146 = arith.addf %145, %113 : vector<8x16xf32>
    %cst_71 = arith.constant dense<0xFF800000> : vector<8xf32>
    %147 = vector.multi_reduction <maximumf>, %146, %cst_71 [1] : vector<8x16xf32> to vector<8xf32>
    %148 = vector.shape_cast %147 : vector<8xf32> to vector<8x1xf32>
    %149 = vector.broadcast %148 : vector<8x1xf32> to vector<8x16xf32>
    %150 = arith.subf %146, %149 : vector<8x16xf32>
    %151 = math.exp %150 : vector<8x16xf32>
    %cst_72 = arith.constant dense<0.000000e+00> : vector<8xf32>
    %152 = vector.multi_reduction <add>, %151, %cst_72 [1] : vector<8x16xf32> to vector<8xf32>
    %153 = vector.shape_cast %152 : vector<8xf32> to vector<8x1xf32>
    %154 = tpu.reciprocal %153 {approx = true} : vector<8x1xf32> -> vector<8x1xf32>
    %155 = vector.broadcast %154 : vector<8x1xf32> to vector<8x16xf32>
    %156 = arith.mulf %151, %155 : vector<8x16xf32>
    %cst_73 = arith.constant dense<0.000000e+00> : vector<8x128xf32>
    %157 = tpu.matmul %156, %141, %cst_73 {dimension_numbers = #tpu.dot_dimension_numbers<[1], [0], [0], [1], [0, 0, 1, 1], [], []>} : vector<8x16xf32>, vector<16x128xf32>, vector<8x128xf32> -> vector<8x128xf32>
    %c0_74 = arith.constant 0 : index
    %c128_75 = arith.constant 128 : index
    %c1792_76 = arith.constant 1792 : index
    %158 = vector.load %arg7[%c0_74, %c128_75, %c1792_76] : memref<1x256x2560xbf16, #tpu.memory_space<vmem>>, vector<1x128x256xbf16>
    %159 = vector.shape_cast %158 : vector<1x128x256xbf16> to vector<128x256xbf16>
    %160 = arith.truncf %157 : vector<8x128xf32> to vector<8x128xbf16>
    %cst_77 = arith.constant dense<0.000000e+00> : vector<8x256xf32>
    %161 = tpu.matmul %160, %159, %cst_77 {dimension_numbers = #tpu.dot_dimension_numbers<[1], [0], [0], [1], [0, 0, 1, 1], [], []>} : vector<8x128xbf16>, vector<128x256xbf16>, vector<8x256xf32> -> vector<8x256xf32>
    %162 = arith.addf %138, %161 : vector<8x256xf32>
    %163 = vector.broadcast %115 : vector<1x256xf32> to vector<8x256xf32>
    %164 = arith.addf %162, %163 : vector<8x256xf32>
    %165 = arith.addf %92, %164 : vector<8x256xf32>
    %c0_78 = arith.constant 0 : index
    %c0_79 = arith.constant 0 : index
    %c2560 = arith.constant 2560 : index
    %166 = vector.load %arg9[%c0_78, %c0_79, %c2560] : memref<1x1x4352xf32, #tpu.memory_space<vmem>>, vector<1x1x256xf32>
    %167 = vector.shape_cast %166 : vector<1x1x256xf32> to vector<1x256xf32>
    %c0_80 = arith.constant 0 : index
    %c0_81 = arith.constant 0 : index
    %c2816 = arith.constant 2816 : index
    %168 = vector.load %arg9[%c0_80, %c0_81, %c2816] : memref<1x1x4352xf32, #tpu.memory_space<vmem>>, vector<1x1x256xf32>
    %169 = vector.shape_cast %168 : vector<1x1x256xf32> to vector<1x256xf32>
    %cst_82 = arith.constant dense<0.000000e+00> : vector<8xf32>
    %170 = vector.multi_reduction <add>, %165, %cst_82 [1] : vector<8x256xf32> to vector<8xf32>
    %171 = vector.shape_cast %170 : vector<8xf32> to vector<8x1xf32>
    %cst_83 = arith.constant 2.560000e+02 : f32
    %172 = vector.broadcast %cst_83 : f32 to vector<8x1xf32>
    %173 = arith.divf %171, %172 : vector<8x1xf32>
    %174 = vector.broadcast %173 : vector<8x1xf32> to vector<8x256xf32>
    %175 = arith.subf %165, %174 : vector<8x256xf32>
    %176 = arith.mulf %175, %175 : vector<8x256xf32>
    %cst_84 = arith.constant dense<0.000000e+00> : vector<8xf32>
    %177 = vector.multi_reduction <add>, %176, %cst_84 [1] : vector<8x256xf32> to vector<8xf32>
    %178 = vector.shape_cast %177 : vector<8xf32> to vector<8x1xf32>
    %cst_85 = arith.constant 2.560000e+02 : f32
    %179 = vector.broadcast %cst_85 : f32 to vector<8x1xf32>
    %180 = arith.divf %178, %179 : vector<8x1xf32>
    %cst_86 = arith.constant 9.99999974E-6 : f32
    %181 = vector.broadcast %cst_86 : f32 to vector<8x1xf32>
    %182 = arith.addf %180, %181 : vector<8x1xf32>
    %183 = math.rsqrt %182 : vector<8x1xf32>
    %184 = vector.broadcast %183 : vector<8x1xf32> to vector<8x256xf32>
    %185 = arith.mulf %175, %184 : vector<8x256xf32>
    %186 = vector.broadcast %167 : vector<1x256xf32> to vector<8x256xf32>
    %187 = arith.mulf %185, %186 : vector<8x256xf32>
    %188 = vector.broadcast %169 : vector<1x256xf32> to vector<8x256xf32>
    %189 = arith.addf %187, %188 : vector<8x256xf32>
    %190 = arith.truncf %189 : vector<8x256xf32> to vector<8x256xbf16>
    %c0_87 = arith.constant 0 : index
    %c0_88 = arith.constant 0 : index
    %c2048 = arith.constant 2048 : index
    %191 = vector.load %arg7[%c0_87, %c0_88, %c2048] : memref<1x256x2560xbf16, #tpu.memory_space<vmem>>, vector<1x256x512xbf16>
    %192 = vector.shape_cast %191 : vector<1x256x512xbf16> to vector<256x512xbf16>
    %cst_89 = arith.constant dense<0.000000e+00> : vector<8x512xf32>
    %193 = tpu.matmul %190, %192, %cst_89 {dimension_numbers = #tpu.dot_dimension_numbers<[1], [0], [0], [1], [0, 0, 1, 1], [], []>} : vector<8x256xbf16>, vector<256x512xbf16>, vector<8x512xf32> -> vector<8x512xf32>
    %c0_90 = arith.constant 0 : index
    %c0_91 = arith.constant 0 : index
    %c3072 = arith.constant 3072 : index
    %194 = vector.load %arg9[%c0_90, %c0_91, %c3072] : memref<1x1x4352xf32, #tpu.memory_space<vmem>>, vector<1x1x512xf32>
    %195 = vector.shape_cast %194 : vector<1x1x512xf32> to vector<1x512xf32>
    %196 = vector.broadcast %195 : vector<1x512xf32> to vector<8x512xf32>
    %197 = arith.addf %193, %196 : vector<8x512xf32>
    %cst_92 = arith.constant 0.000000e+00 : f32
    %198 = vector.broadcast %cst_92 : f32 to vector<8x512xf32>
    %199 = arith.maximumf %197, %198 : vector<8x512xf32>
    %200 = arith.truncf %199 : vector<8x512xf32> to vector<8x512xbf16>
    %c0_93 = arith.constant 0 : index
    %c0_94 = arith.constant 0 : index
    %c0_95 = arith.constant 0 : index
    %201 = vector.load %arg8[%c0_93, %c0_94, %c0_95] : memref<1x512x256xbf16, #tpu.memory_space<vmem>>, vector<1x512x256xbf16>
    %202 = vector.shape_cast %201 : vector<1x512x256xbf16> to vector<512x256xbf16>
    %cst_96 = arith.constant dense<0.000000e+00> : vector<8x256xf32>
    %203 = tpu.matmul %200, %202, %cst_96 {dimension_numbers = #tpu.dot_dimension_numbers<[1], [0], [0], [1], [0, 0, 1, 1], [], []>} : vector<8x512xbf16>, vector<512x256xbf16>, vector<8x256xf32> -> vector<8x256xf32>
    %c0_97 = arith.constant 0 : index
    %c0_98 = arith.constant 0 : index
    %c3584 = arith.constant 3584 : index
    %204 = vector.load %arg9[%c0_97, %c0_98, %c3584] : memref<1x1x4352xf32, #tpu.memory_space<vmem>>, vector<1x1x256xf32>
    %205 = vector.shape_cast %204 : vector<1x1x256xf32> to vector<1x256xf32>
    %206 = vector.broadcast %205 : vector<1x256xf32> to vector<8x256xf32>
    %207 = arith.addf %203, %206 : vector<8x256xf32>
    %208 = arith.addf %189, %207 : vector<8x256xf32>
    %c0_99 = arith.constant 0 : index
    %c0_100 = arith.constant 0 : index
    %c3840 = arith.constant 3840 : index
    %209 = vector.load %arg9[%c0_99, %c0_100, %c3840] : memref<1x1x4352xf32, #tpu.memory_space<vmem>>, vector<1x1x256xf32>
    %210 = vector.shape_cast %209 : vector<1x1x256xf32> to vector<1x256xf32>
    %c0_101 = arith.constant 0 : index
    %c0_102 = arith.constant 0 : index
    %c4096 = arith.constant 4096 : index
    %211 = vector.load %arg9[%c0_101, %c0_102, %c4096] : memref<1x1x4352xf32, #tpu.memory_space<vmem>>, vector<1x1x256xf32>
    %212 = vector.shape_cast %211 : vector<1x1x256xf32> to vector<1x256xf32>
    %cst_103 = arith.constant dense<0.000000e+00> : vector<8xf32>
    %213 = vector.multi_reduction <add>, %208, %cst_103 [1] : vector<8x256xf32> to vector<8xf32>
    %214 = vector.shape_cast %213 : vector<8xf32> to vector<8x1xf32>
    %cst_104 = arith.constant 2.560000e+02 : f32
    %215 = vector.broadcast %cst_104 : f32 to vector<8x1xf32>
    %216 = arith.divf %214, %215 : vector<8x1xf32>
    %217 = vector.broadcast %216 : vector<8x1xf32> to vector<8x256xf32>
    %218 = arith.subf %208, %217 : vector<8x256xf32>
    %219 = arith.mulf %218, %218 : vector<8x256xf32>
    %cst_105 = arith.constant dense<0.000000e+00> : vector<8xf32>
    %220 = vector.multi_reduction <add>, %219, %cst_105 [1] : vector<8x256xf32> to vector<8xf32>
    %221 = vector.shape_cast %220 : vector<8xf32> to vector<8x1xf32>
    %cst_106 = arith.constant 2.560000e+02 : f32
    %222 = vector.broadcast %cst_106 : f32 to vector<8x1xf32>
    %223 = arith.divf %221, %222 : vector<8x1xf32>
    %cst_107 = arith.constant 9.99999974E-6 : f32
    %224 = vector.broadcast %cst_107 : f32 to vector<8x1xf32>
    %225 = arith.addf %223, %224 : vector<8x1xf32>
    %226 = math.rsqrt %225 : vector<8x1xf32>
    %227 = vector.broadcast %226 : vector<8x1xf32> to vector<8x256xf32>
    %228 = arith.mulf %218, %227 : vector<8x256xf32>
    %229 = vector.broadcast %210 : vector<1x256xf32> to vector<8x256xf32>
    %230 = arith.mulf %228, %229 : vector<8x256xf32>
    %231 = vector.broadcast %212 : vector<1x256xf32> to vector<8x256xf32>
    %232 = arith.addf %230, %231 : vector<8x256xf32>
    %c0_108 = arith.constant 0 : index
    %c0_109 = arith.constant 0 : index
    %233 = vector.load %arg13[%c0_108, %c0_109] : memref<8x256xf32, #tpu.memory_space<vmem>>, vector<8x256xf32>
    tpu.vector_store %arg13[%c0_108, %c0_109], %232 {strides = array<i32>} : memref<8x256xf32, #tpu.memory_space<vmem>>, vector<8x256xf32>,
    %c4_i32 = arith.constant 4 : i32
    %234 = arith.cmpi eq, %arg0, %c4_i32 : i32
    %235 = arith.extui %234 : i1 to i32
    %c0_i32_110 = arith.constant 0 : i32
    %236 = arith.cmpi ne, %235, %c0_i32_110 : i32
    scf.if %236 {
      %237 = vector.extract_strided_slice %232 {offsets = [7, 0], sizes = [1, 256], strides = [1, 1]} : vector<8x256xf32> to vector<1x256xf32>
      %238 = arith.truncf %237 : vector<1x256xf32> to vector<1x256xbf16>
      %c0_111 = arith.constant 0 : index
      %c0_112 = arith.constant 0 : index
      %239 = vector.load %arg10[%c0_111, %c0_112] : memref<256x512xbf16, #tpu.memory_space<vmem>>, vector<256x512xbf16>
      %cst_113 = arith.constant dense<0.000000e+00> : vector<1x512xf32>
      %240 = tpu.matmul %238, %239, %cst_113 {dimension_numbers = #tpu.dot_dimension_numbers<[1], [0], [0], [1], [0, 0, 1, 1], [], []>} : vector<1x256xbf16>, vector<256x512xbf16>, vector<1x512xf32> -> vector<1x512xf32>
      %c0_114 = arith.constant 0 : index
      %c0_115 = arith.constant 0 : index
      %241 = vector.load %arg11[%c0_114, %c0_115] : memref<1x512xf32, #tpu.memory_space<vmem>>, vector<1x512xf32>
      %242 = arith.addf %240, %241 : vector<1x512xf32>
      %cst_116 = arith.constant dense<0xFF800000> : vector<1xf32>
      %243 = vector.multi_reduction <maximumf>, %242, %cst_116 [1] : vector<1x512xf32> to vector<1xf32>
      %244 = vector.shape_cast %243 : vector<1xf32> to vector<1x1xf32>
      %245 = vector.broadcast %244 : vector<1x1xf32> to vector<1x512xf32>
      %246 = arith.subf %242, %245 : vector<1x512xf32>
      %247 = math.exp %246 : vector<1x512xf32>
      %cst_117 = arith.constant dense<0.000000e+00> : vector<1xf32>
      %248 = vector.multi_reduction <add>, %247, %cst_117 [1] : vector<1x512xf32> to vector<1xf32>
      %249 = vector.shape_cast %248 : vector<1xf32> to vector<1x1xf32>
      %250 = math.log %249 : vector<1x1xf32>
      %251 = arith.addf %250, %244 : vector<1x1xf32>
      %252 = vector.broadcast %251 : vector<1x1xf32> to vector<1x512xf32>
      %253 = arith.subf %242, %252 : vector<1x512xf32>
      %c0_118 = arith.constant 0 : index
      %c0_119 = arith.constant 0 : index
      %254 = vector.load %arg12[%c0_118, %c0_119] : memref<1x512xf32, #tpu.memory_space<vmem>>, vector<1x512xf32>
      tpu.vector_store %arg12[%c0_118, %c0_119], %253 {strides = array<i32>} : memref<1x512xf32, #tpu.memory_space<vmem>>, vector<1x512xf32>,
    } else {
    }
    return
  }
  func.func @transform_0(%arg0: i32) -> (i32, i32) {
    %c0_i32 = arith.constant 0 : i32
    %c0_i32_0 = arith.constant 0 : i32
    %c0_i32_1 = arith.constant 0 : i32
    return %c0_i32, %c0_i32_0 : i32, i32
  }
  func.func @transform_1(%arg0: i32) -> (i32, i32) {
    %c0_i32 = arith.constant 0 : i32
    %c0_i32_0 = arith.constant 0 : i32
    %c0_i32_1 = arith.constant 0 : i32
    return %c0_i32, %c0_i32_0 : i32, i32
  }
  func.func @transform_2(%arg0: i32) -> (i32, i32) {
    %c0_i32 = arith.constant 0 : i32
    %c0_i32_0 = arith.constant 0 : i32
    %c0_i32_1 = arith.constant 0 : i32
    return %c0_i32, %c0_i32_0 : i32, i32
  }
  func.func @transform_3(%arg0: i32) -> (i32, i32) {
    %c0_i32 = arith.constant 0 : i32
    %c0_i32_0 = arith.constant 0 : i32
    %c0_i32_1 = arith.constant 0 : i32
    return %c0_i32, %c0_i32_0 : i32, i32
  }
  func.func @transform_4(%arg0: i32) -> (i32, i32) {
    %c0_i32 = arith.constant 0 : i32
    %c0_i32_0 = arith.constant 0 : i32
    %c0_i32_1 = arith.constant 0 : i32
    return %c0_i32, %c0_i32_0 : i32, i32
  }
  func.func @transform_5(%arg0: i32) -> (i32, i32) {
    %c0_i32 = arith.constant 0 : i32
    %c0_i32_0 = arith.constant 0 : i32
    %c0_i32_1 = arith.constant 0 : i32
    return %c0_i32, %c0_i32_0 : i32, i32
  }
  func.func @transform_6(%arg0: i32) -> (i32, i32, i32) {
    %c0_i32 = arith.constant 0 : i32
    %c0_i32_0 = arith.constant 0 : i32
    %c0_i32_1 = arith.constant 0 : i32
    return %arg0, %c0_i32, %c0_i32_0 : i32, i32, i32
  }
  func.func @transform_7(%arg0: i32) -> (i32, i32, i32) {
    %c0_i32 = arith.constant 0 : i32
    %c0_i32_0 = arith.constant 0 : i32
    %c0_i32_1 = arith.constant 0 : i32
    return %arg0, %c0_i32, %c0_i32_0 : i32, i32, i32
  }
  func.func @transform_8(%arg0: i32) -> (i32, i32, i32) {
    %c0_i32 = arith.constant 0 : i32
    %c0_i32_0 = arith.constant 0 : i32
    %c0_i32_1 = arith.constant 0 : i32
    return %arg0, %c0_i32, %c0_i32_0 : i32, i32, i32
  }
  func.func @transform_9(%arg0: i32) -> (i32, i32) {
    %c0_i32 = arith.constant 0 : i32
    %c0_i32_0 = arith.constant 0 : i32
    %c0_i32_1 = arith.constant 0 : i32
    return %c0_i32, %c0_i32_0 : i32, i32
  }
  func.func @transform_10(%arg0: i32) -> (i32, i32) {
    %c0_i32 = arith.constant 0 : i32
    %c0_i32_0 = arith.constant 0 : i32
    %c0_i32_1 = arith.constant 0 : i32
    return %c0_i32, %c0_i32_0 : i32, i32
  }
  func.func @transform_11(%arg0: i32) -> (i32, i32) {
    %c0_i32 = arith.constant 0 : i32
    %c0_i32_0 = arith.constant 0 : i32
    %c0_i32_1 = arith.constant 0 : i32
    return %c0_i32, %c0_i32_0 : i32, i32
  }
}

module attributes {stable_mosaic.version = 11 : i64} {
  func.func @_decoder_kernel(%arg0: i32, %arg1: memref<8x256xf32, #tpu.memory_space<vmem>>, %arg2: memref<16x256xf32, #tpu.memory_space<vmem>>, %arg3: memref<8x8xf32, #tpu.memory_space<vmem>>, %arg4: memref<8x8xf32, #tpu.memory_space<vmem>>, %arg5: memref<8x16xf32, #tpu.memory_space<vmem>>, %arg6: memref<8x16xf32, #tpu.memory_space<vmem>>, %arg7: memref<1x256x2560xbf16, #tpu.memory_space<vmem>>, %arg8: memref<1x512x256xbf16, #tpu.memory_space<vmem>>, %arg9: memref<1x1x4352xf32, #tpu.memory_space<vmem>>, %arg10: memref<256x512xbf16, #tpu.memory_space<vmem>>, %arg11: memref<1x512xf32, #tpu.memory_space<vmem>>, %arg12: memref<1x512xf32, #tpu.memory_space<vmem>>, %arg13: memref<8x256xf32, #tpu.memory_space<vmem>>) attributes {dimension_semantics = [#tpu.dimension_semantics<arbitrary>], iteration_bounds = array<i64: 5>, scalar_prefetch = 0 : i64, scratch_operands = 1 : i64, tpu.core_type = #tpu.core_type<tc>, window_params = [{pipeline_mode = #tpu.pipeline_mode<synchronous>, transform_indices = @transform_0, window_bounds = array<i64: 8, 256>}, {pipeline_mode = #tpu.pipeline_mode<synchronous>, transform_indices = @transform_1, window_bounds = array<i64: 16, 256>}, {pipeline_mode = #tpu.pipeline_mode<synchronous>, transform_indices = @transform_2, window_bounds = array<i64: 8, 8>}, {pipeline_mode = #tpu.pipeline_mode<synchronous>, transform_indices = @transform_3, window_bounds = array<i64: 8, 8>}, {pipeline_mode = #tpu.pipeline_mode<synchronous>, transform_indices = @transform_4, window_bounds = array<i64: 8, 16>}, {pipeline_mode = #tpu.pipeline_mode<synchronous>, transform_indices = @transform_5, window_bounds = array<i64: 8, 16>}, {transform_indices = @transform_6, window_bounds = array<i64: 1, 256, 2560>}, {transform_indices = @transform_7, window_bounds = array<i64: 1, 512, 256>}, {transform_indices = @transform_8, window_bounds = array<i64: 1, 1, 4352>}, {pipeline_mode = #tpu.pipeline_mode<synchronous>, transform_indices = @transform_9, window_bounds = array<i64: 256, 512>}, {pipeline_mode = #tpu.pipeline_mode<synchronous>, transform_indices = @transform_10, window_bounds = array<i64: 1, 512>}, {pipeline_mode = #tpu.pipeline_mode<synchronous>, transform_indices = @transform_11, window_bounds = array<i64: 1, 512>}]} {
    %c0_i32 = arith.constant 0 : i32
    %0 = arith.cmpi eq, %arg0, %c0_i32 : i32
    %1 = arith.extui %0 : i1 to i32
    %c0_i32_0 = arith.constant 0 : i32
    %2 = arith.cmpi ne, %1, %c0_i32_0 : i32
    scf.if %2 {
      %c0_111 = arith.constant 0 : index
      %c0_112 = arith.constant 0 : index
      %237 = vector.load %arg1[%c0_111, %c0_112] : memref<8x256xf32, #tpu.memory_space<vmem>>, vector<8x256xf32>
      %c0_113 = arith.constant 0 : index
      %c0_114 = arith.constant 0 : index
      %238 = vector.load %arg13[%c0_113, %c0_114] : memref<8x256xf32, #tpu.memory_space<vmem>>, vector<8x256xf32>
      tpu.vector_store %arg13[%c0_113, %c0_114], %237 {strides = array<i32>} : memref<8x256xf32, #tpu.memory_space<vmem>>, vector<8x256xf32>,
    } else {
    }
    %c0 = arith.constant 0 : index
    %c0_1 = arith.constant 0 : index
    %3 = vector.load %arg13[%c0, %c0_1] : memref<8x256xf32, #tpu.memory_space<vmem>>, vector<8x256xf32>
    %4 = arith.truncf %3 : vector<8x256xf32> to vector<8x256xbf16>
    %c0_2 = arith.constant 0 : index
    %c0_3 = arith.constant 0 : index
    %c0_4 = arith.constant 0 : index
    %5 = vector.load %arg7[%c0_2, %c0_3, %c0_4] : memref<1x256x2560xbf16, #tpu.memory_space<vmem>>, vector<1x256x768xbf16>
    %6 = vector.shape_cast %5 : vector<1x256x768xbf16> to vector<256x768xbf16>
    %cst = arith.constant dense<0.000000e+00> : vector<8x768xf32>
    %7 = tpu.matmul %4, %6, %cst {dimension_numbers = #tpu.dot_dimension_numbers<[1], [0], [0], [1], [0, 0, 1, 1], [], []>} : vector<8x256xbf16>, vector<256x768xbf16>, vector<8x768xf32> -> vector<8x768xf32>
    %c0_5 = arith.constant 0 : index
    %c0_6 = arith.constant 0 : index
    %c0_7 = arith.constant 0 : index
    %8 = vector.load %arg9[%c0_5, %c0_6, %c0_7] : memref<1x1x4352xf32, #tpu.memory_space<vmem>>, vector<1x1x768xf32>
    %9 = vector.shape_cast %8 : vector<1x1x768xf32> to vector<1x768xf32>
    %10 = vector.broadcast %9 : vector<1x768xf32> to vector<8x768xf32>
    %11 = arith.addf %7, %10 : vector<8x768xf32>
    %12 = vector.extract_strided_slice %11 {offsets = [0, 0], sizes = [8, 256], strides = [1, 1]} : vector<8x768xf32> to vector<8x256xf32>
    %13 = vector.extract_strided_slice %11 {offsets = [0, 256], sizes = [8, 256], strides = [1, 1]} : vector<8x768xf32> to vector<8x256xf32>
    %14 = vector.extract_strided_slice %11 {offsets = [0, 512], sizes = [8, 256], strides = [1, 1]} : vector<8x768xf32> to vector<8x256xf32>
    %c0_8 = arith.constant 0 : index
    %c0_9 = arith.constant 0 : index
    %15 = vector.load %arg3[%c0_8, %c0_9] : memref<8x8xf32, #tpu.memory_space<vmem>>, vector<8x8xf32>
    %c0_10 = arith.constant 0 : index
    %c0_11 = arith.constant 0 : index
    %16 = vector.load %arg4[%c0_10, %c0_11] : memref<8x8xf32, #tpu.memory_space<vmem>>, vector<8x8xf32>
    %c0_12 = arith.constant 0 : index
    %c0_13 = arith.constant 0 : index
    %c768 = arith.constant 768 : index
    %17 = vector.load %arg9[%c0_12, %c0_13, %c768] : memref<1x1x4352xf32, #tpu.memory_space<vmem>>, vector<1x1x256xf32>
    %18 = vector.shape_cast %17 : vector<1x1x256xf32> to vector<1x256xf32>
    %19 = vector.extract_strided_slice %12 {offsets = [0, 0], sizes = [8, 128], strides = [1, 1]} : vector<8x256xf32> to vector<8x128xf32>
    %20 = vector.extract_strided_slice %13 {offsets = [0, 0], sizes = [8, 128], strides = [1, 1]} : vector<8x256xf32> to vector<8x128xf32>
    %21 = vector.extract_strided_slice %14 {offsets = [0, 0], sizes = [8, 128], strides = [1, 1]} : vector<8x256xf32> to vector<8x128xf32>
    %cst_14 = arith.constant dense<0.000000e+00> : vector<8x8xf32>
    %22 = tpu.matmul %19, %20, %cst_14 {dimension_numbers = #tpu.dot_dimension_numbers<[1], [1], [0], [0], [0, 0, 1, 0], [], []>} : vector<8x128xf32>, vector<8x128xf32>, vector<8x8xf32> -> vector<8x8xf32>
    %cst_15 = arith.constant 0.0883883461 : f32
    %23 = vector.broadcast %cst_15 : f32 to vector<8x8xf32>
    %24 = arith.mulf %22, %23 : vector<8x8xf32>
    %25 = arith.mulf %24, %15 : vector<8x8xf32>
    %26 = arith.addf %25, %16 : vector<8x8xf32>
    %cst_16 = arith.constant dense<0xFF800000> : vector<8xf32>
    %27 = vector.multi_reduction <maximumf>, %26, %cst_16 [1] : vector<8x8xf32> to vector<8xf32>
    %28 = vector.shape_cast %27 : vector<8xf32> to vector<8x1xf32>
    %29 = vector.broadcast %28 : vector<8x1xf32> to vector<8x8xf32>
    %30 = arith.subf %26, %29 : vector<8x8xf32>
    %31 = math.exp %30 : vector<8x8xf32>
    %cst_17 = arith.constant dense<0.000000e+00> : vector<8xf32>
    %32 = vector.multi_reduction <add>, %31, %cst_17 [1] : vector<8x8xf32> to vector<8xf32>
    %33 = vector.shape_cast %32 : vector<8xf32> to vector<8x1xf32>
    %34 = tpu.reciprocal %33 {approx = true} : vector<8x1xf32> -> vector<8x1xf32>
    %35 = vector.broadcast %34 : vector<8x1xf32> to vector<8x8xf32>
    %36 = arith.mulf %31, %35 : vector<8x8xf32>
    %cst_18 = arith.constant dense<0.000000e+00> : vector<8x128xf32>
    %37 = tpu.matmul %36, %21, %cst_18 {dimension_numbers = #tpu.dot_dimension_numbers<[1], [0], [0], [1], [0, 0, 1, 1], [], []>} : vector<8x8xf32>, vector<8x128xf32>, vector<8x128xf32> -> vector<8x128xf32>
    %c0_19 = arith.constant 0 : index
    %c0_20 = arith.constant 0 : index
    %c768_21 = arith.constant 768 : index
    %38 = vector.load %arg7[%c0_19, %c0_20, %c768_21] : memref<1x256x2560xbf16, #tpu.memory_space<vmem>>, vector<1x128x256xbf16>
    %39 = vector.shape_cast %38 : vector<1x128x256xbf16> to vector<128x256xbf16>
    %40 = arith.truncf %37 : vector<8x128xf32> to vector<8x128xbf16>
    %cst_22 = arith.constant dense<0.000000e+00> : vector<8x256xf32>
    %41 = tpu.matmul %40, %39, %cst_22 {dimension_numbers = #tpu.dot_dimension_numbers<[1], [0], [0], [1], [0, 0, 1, 1], [], []>} : vector<8x128xbf16>, vector<128x256xbf16>, vector<8x256xf32> -> vector<8x256xf32>
    %42 = vector.extract_strided_slice %12 {offsets = [0, 128], sizes = [8, 128], strides = [1, 1]} : vector<8x256xf32> to vector<8x128xf32>
    %43 = vector.extract_strided_slice %13 {offsets = [0, 128], sizes = [8, 128], strides = [1, 1]} : vector<8x256xf32> to vector<8x128xf32>
    %44 = vector.extract_strided_slice %14 {offsets = [0, 128], sizes = [8, 128], strides = [1, 1]} : vector<8x256xf32> to vector<8x128xf32>
    %cst_23 = arith.constant dense<0.000000e+00> : vector<8x8xf32>
    %45 = tpu.matmul %42, %43, %cst_23 {dimension_numbers = #tpu.dot_dimension_numbers<[1], [1], [0], [0], [0, 0, 1, 0], [], []>} : vector<8x128xf32>, vector<8x128xf32>, vector<8x8xf32> -> vector<8x8xf32>
    %cst_24 = arith.constant 0.0883883461 : f32
    %46 = vector.broadcast %cst_24 : f32 to vector<8x8xf32>
    %47 = arith.mulf %45, %46 : vector<8x8xf32>
    %48 = arith.mulf %47, %15 : vector<8x8xf32>
    %49 = arith.addf %48, %16 : vector<8x8xf32>
    %cst_25 = arith.constant dense<0xFF800000> : vector<8xf32>
    %50 = vector.multi_reduction <maximumf>, %49, %cst_25 [1] : vector<8x8xf32> to vector<8xf32>
    %51 = vector.shape_cast %50 : vector<8xf32> to vector<8x1xf32>
    %52 = vector.broadcast %51 : vector<8x1xf32> to vector<8x8xf32>
    %53 = arith.subf %49, %52 : vector<8x8xf32>
    %54 = math.exp %53 : vector<8x8xf32>
    %cst_26 = arith.constant dense<0.000000e+00> : vector<8xf32>
    %55 = vector.multi_reduction <add>, %54, %cst_26 [1] : vector<8x8xf32> to vector<8xf32>
    %56 = vector.shape_cast %55 : vector<8xf32> to vector<8x1xf32>
    %57 = tpu.reciprocal %56 {approx = true} : vector<8x1xf32> -> vector<8x1xf32>
    %58 = vector.broadcast %57 : vector<8x1xf32> to vector<8x8xf32>
    %59 = arith.mulf %54, %58 : vector<8x8xf32>
    %cst_27 = arith.constant dense<0.000000e+00> : vector<8x128xf32>
    %60 = tpu.matmul %59, %44, %cst_27 {dimension_numbers = #tpu.dot_dimension_numbers<[1], [0], [0], [1], [0, 0, 1, 1], [], []>} : vector<8x8xf32>, vector<8x128xf32>, vector<8x128xf32> -> vector<8x128xf32>
    %c0_28 = arith.constant 0 : index
    %c128 = arith.constant 128 : index
    %c768_29 = arith.constant 768 : index
    %61 = vector.load %arg7[%c0_28, %c128, %c768_29] : memref<1x256x2560xbf16, #tpu.memory_space<vmem>>, vector<1x128x256xbf16>
    %62 = vector.shape_cast %61 : vector<1x128x256xbf16> to vector<128x256xbf16>
    %63 = arith.truncf %60 : vector<8x128xf32> to vector<8x128xbf16>
    %cst_30 = arith.constant dense<0.000000e+00> : vector<8x256xf32>
    %64 = tpu.matmul %63, %62, %cst_30 {dimension_numbers = #tpu.dot_dimension_numbers<[1], [0], [0], [1], [0, 0, 1, 1], [], []>} : vector<8x128xbf16>, vector<128x256xbf16>, vector<8x256xf32> -> vector<8x256xf32>
    %65 = arith.addf %41, %64 : vector<8x256xf32>
    %66 = vector.broadcast %18 : vector<1x256xf32> to vector<8x256xf32>
    %67 = arith.addf %65, %66 : vector<8x256xf32>
    %68 = arith.addf %3, %67 : vector<8x256xf32>
    %c0_31 = arith.constant 0 : index
    %c0_32 = arith.constant 0 : index
    %c1024 = arith.constant 1024 : index
    %69 = vector.load %arg9[%c0_31, %c0_32, %c1024] : memref<1x1x4352xf32, #tpu.memory_space<vmem>>, vector<1x1x256xf32>
    %70 = vector.shape_cast %69 : vector<1x1x256xf32> to vector<1x256xf32>
    %c0_33 = arith.constant 0 : index
    %c0_34 = arith.constant 0 : index
    %c1280 = arith.constant 1280 : index
    %71 = vector.load %arg9[%c0_33, %c0_34, %c1280] : memref<1x1x4352xf32, #tpu.memory_space<vmem>>, vector<1x1x256xf32>
    %72 = vector.shape_cast %71 : vector<1x1x256xf32> to vector<1x256xf32>
    %cst_35 = arith.constant dense<0.000000e+00> : vector<8xf32>
    %73 = vector.multi_reduction <add>, %68, %cst_35 [1] : vector<8x256xf32> to vector<8xf32>
    %74 = vector.shape_cast %73 : vector<8xf32> to vector<8x1xf32>
    %cst_36 = arith.constant 2.560000e+02 : f32
    %75 = vector.broadcast %cst_36 : f32 to vector<8x1xf32>
    %76 = arith.divf %74, %75 : vector<8x1xf32>
    %77 = vector.broadcast %76 : vector<8x1xf32> to vector<8x256xf32>
    %78 = arith.subf %68, %77 : vector<8x256xf32>
    %79 = arith.mulf %78, %78 : vector<8x256xf32>
    %cst_37 = arith.constant dense<0.000000e+00> : vector<8xf32>
    %80 = vector.multi_reduction <add>, %79, %cst_37 [1] : vector<8x256xf32> to vector<8xf32>
    %81 = vector.shape_cast %80 : vector<8xf32> to vector<8x1xf32>
    %cst_38 = arith.constant 2.560000e+02 : f32
    %82 = vector.broadcast %cst_38 : f32 to vector<8x1xf32>
    %83 = arith.divf %81, %82 : vector<8x1xf32>
    %cst_39 = arith.constant 9.99999974E-6 : f32
    %84 = vector.broadcast %cst_39 : f32 to vector<8x1xf32>
    %85 = arith.addf %83, %84 : vector<8x1xf32>
    %86 = math.rsqrt %85 : vector<8x1xf32>
    %87 = vector.broadcast %86 : vector<8x1xf32> to vector<8x256xf32>
    %88 = arith.mulf %78, %87 : vector<8x256xf32>
    %89 = vector.broadcast %70 : vector<1x256xf32> to vector<8x256xf32>
    %90 = arith.mulf %88, %89 : vector<8x256xf32>
    %91 = vector.broadcast %72 : vector<1x256xf32> to vector<8x256xf32>
    %92 = arith.addf %90, %91 : vector<8x256xf32>
    %93 = arith.truncf %92 : vector<8x256xf32> to vector<8x256xbf16>
    %c0_40 = arith.constant 0 : index
    %c0_41 = arith.constant 0 : index
    %c1024_42 = arith.constant 1024 : index
    %94 = vector.load %arg7[%c0_40, %c0_41, %c1024_42] : memref<1x256x2560xbf16, #tpu.memory_space<vmem>>, vector<1x256x256xbf16>
    %95 = vector.shape_cast %94 : vector<1x256x256xbf16> to vector<256x256xbf16>
    %cst_43 = arith.constant dense<0.000000e+00> : vector<8x256xf32>
    %96 = tpu.matmul %93, %95, %cst_43 {dimension_numbers = #tpu.dot_dimension_numbers<[1], [0], [0], [1], [0, 0, 1, 1], [], []>} : vector<8x256xbf16>, vector<256x256xbf16>, vector<8x256xf32> -> vector<8x256xf32>
    %c0_44 = arith.constant 0 : index
    %c0_45 = arith.constant 0 : index
    %c1536 = arith.constant 1536 : index
    %97 = vector.load %arg9[%c0_44, %c0_45, %c1536] : memref<1x1x4352xf32, #tpu.memory_space<vmem>>, vector<1x1x256xf32>
    %98 = vector.shape_cast %97 : vector<1x1x256xf32> to vector<1x256xf32>
    %99 = vector.broadcast %98 : vector<1x256xf32> to vector<8x256xf32>
    %100 = arith.addf %96, %99 : vector<8x256xf32>
    %c0_46 = arith.constant 0 : index
    %c0_47 = arith.constant 0 : index
    %101 = vector.load %arg2[%c0_46, %c0_47] : memref<16x256xf32, #tpu.memory_space<vmem>>, vector<16x256xf32>
    %102 = arith.truncf %101 : vector<16x256xf32> to vector<16x256xbf16>
    %c0_48 = arith.constant 0 : index
    %c0_49 = arith.constant 0 : index
    %c1280_50 = arith.constant 1280 : index
    %103 = vector.load %arg7[%c0_48, %c0_49, %c1280_50] : memref<1x256x2560xbf16, #tpu.memory_space<vmem>>, vector<1x256x512xbf16>
    %104 = vector.shape_cast %103 : vector<1x256x512xbf16> to vector<256x512xbf16>
    %cst_51 = arith.constant dense<0.000000e+00> : vector<16x512xf32>
    %105 = tpu.matmul %102, %104, %cst_51 {dimension_numbers = #tpu.dot_dimension_numbers<[1], [0], [0], [1], [0, 0, 1, 1], [], []>} : vector<16x256xbf16>, vector<256x512xbf16>, vector<16x512xf32> -> vector<16x512xf32>
    %c0_52 = arith.constant 0 : index
    %c0_53 = arith.constant 0 : index
    %c1792 = arith.constant 1792 : index
    %106 = vector.load %arg9[%c0_52, %c0_53, %c1792] : memref<1x1x4352xf32, #tpu.memory_space<vmem>>, vector<1x1x512xf32>
    %107 = vector.shape_cast %106 : vector<1x1x512xf32> to vector<1x512xf32>
    %108 = vector.broadcast %107 : vector<1x512xf32> to vector<16x512xf32>
    %109 = arith.addf %105, %108 : vector<16x512xf32>
    %110 = vector.extract_strided_slice %109 {offsets = [0, 0], sizes = [16, 256], strides = [1, 1]} : vector<16x512xf32> to vector<16x256xf32>
    %111 = vector.extract_strided_slice %109 {offsets = [0, 256], sizes = [16, 256], strides = [1, 1]} : vector<16x512xf32> to vector<16x256xf32>
    %c0_54 = arith.constant 0 : index
    %c0_55 = arith.constant 0 : index
    %112 = vector.load %arg5[%c0_54, %c0_55] : memref<8x16xf32, #tpu.memory_space<vmem>>, vector<8x16xf32>
    %c0_56 = arith.constant 0 : index
    %c0_57 = arith.constant 0 : index
    %113 = vector.load %arg6[%c0_56, %c0_57] : memref<8x16xf32, #tpu.memory_space<vmem>>, vector<8x16xf32>
    %c0_58 = arith.constant 0 : index
    %c0_59 = arith.constant 0 : index
    %c2304 = arith.constant 2304 : index
    %114 = vector.load %arg9[%c0_58, %c0_59, %c2304] : memref<1x1x4352xf32, #tpu.memory_space<vmem>>, vector<1x1x256xf32>
    %115 = vector.shape_cast %114 : vector<1x1x256xf32> to vector<1x256xf32>
    %116 = vector.extract_strided_slice %100 {offsets = [0, 0], sizes = [8, 128], strides = [1, 1]} : vector<8x256xf32> to vector<8x128xf32>
    %117 = vector.extract_strided_slice %110 {offsets = [0, 0], sizes = [16, 128], strides = [1, 1]} : vector<16x256xf32> to vector<16x128xf32>
    %118 = vector.extract_strided_slice %111 {offsets = [0, 0], sizes = [16, 128], strides = [1, 1]} : vector<16x256xf32> to vector<16x128xf32>
    %cst_60 = arith.constant dense<0.000000e+00> : vector<8x16xf32>
    %119 = tpu.matmul %116, %117, %cst_60 {dimension_numbers = #tpu.dot_dimension_numbers<[1], [1], [0], [0], [0, 0, 1, 0], [], []>} : vector<8x128xf32>, vector<16x128xf32>, vector<8x16xf32> -> vector<8x16xf32>
    %cst_61 = arith.constant 0.0883883461 : f32
    %120 = vector.broadcast %cst_61 : f32 to vector<8x16xf32>
    %121 = arith.mulf %119, %120 : vector<8x16xf32>
    %122 = arith.mulf %121, %112 : vector<8x16xf32>
    %123 = arith.addf %122, %113 : vector<8x16xf32>
    %cst_62 = arith.constant dense<0xFF800000> : vector<8xf32>
    %124 = vector.multi_reduction <maximumf>, %123, %cst_62 [1] : vector<8x16xf32> to vector<8xf32>
    %125 = vector.shape_cast %124 : vector<8xf32> to vector<8x1xf32>
    %126 = vector.broadcast %125 : vector<8x1xf32> to vector<8x16xf32>
    %127 = arith.subf %123, %126 : vector<8x16xf32>
    %128 = math.exp %127 : vector<8x16xf32>
    %cst_63 = arith.constant dense<0.000000e+00> : vector<8xf32>
    %129 = vector.multi_reduction <add>, %128, %cst_63 [1] : vector<8x16xf32> to vector<8xf32>
    %130 = vector.shape_cast %129 : vector<8xf32> to vector<8x1xf32>
    %131 = tpu.reciprocal %130 {approx = true} : vector<8x1xf32> -> vector<8x1xf32>
    %132 = vector.broadcast %131 : vector<8x1xf32> to vector<8x16xf32>
    %133 = arith.mulf %128, %132 : vector<8x16xf32>
    %cst_64 = arith.constant dense<0.000000e+00> : vector<8x128xf32>
    %134 = tpu.matmul %133, %118, %cst_64 {dimension_numbers = #tpu.dot_dimension_numbers<[1], [0], [0], [1], [0, 0, 1, 1], [], []>} : vector<8x16xf32>, vector<16x128xf32>, vector<8x128xf32> -> vector<8x128xf32>
    %c0_65 = arith.constant 0 : index
    %c0_66 = arith.constant 0 : index
    %c1792_67 = arith.constant 1792 : index
    %135 = vector.load %arg7[%c0_65, %c0_66, %c1792_67] : memref<1x256x2560xbf16, #tpu.memory_space<vmem>>, vector<1x128x256xbf16>
    %136 = vector.shape_cast %135 : vector<1x128x256xbf16> to vector<128x256xbf16>
    %137 = arith.truncf %134 : vector<8x128xf32> to vector<8x128xbf16>
    %cst_68 = arith.constant dense<0.000000e+00> : vector<8x256xf32>
    %138 = tpu.matmul %137, %136, %cst_68 {dimension_numbers = #tpu.dot_dimension_numbers<[1], [0], [0], [1], [0, 0, 1, 1], [], []>} : vector<8x128xbf16>, vector<128x256xbf16>, vector<8x256xf32> -> vector<8x256xf32>
    %139 = vector.extract_strided_slice %100 {offsets = [0, 128], sizes = [8, 128], strides = [1, 1]} : vector<8x256xf32> to vector<8x128xf32>
    %140 = vector.extract_strided_slice %110 {offsets = [0, 128], sizes = [16, 128], strides = [1, 1]} : vector<16x256xf32> to vector<16x128xf32>
    %141 = vector.extract_strided_slice %111 {offsets = [0, 128], sizes = [16, 128], strides = [1, 1]} : vector<16x256xf32> to vector<16x128xf32>
    %cst_69 = arith.constant dense<0.000000e+00> : vector<8x16xf32>
    %142 = tpu.matmul %139, %140, %cst_69 {dimension_numbers = #tpu.dot_dimension_numbers<[1], [1], [0], [0], [0, 0, 1, 0], [], []>} : vector<8x128xf32>, vector<16x128xf32>, vector<8x16xf32> -> vector<8x16xf32>
    %cst_70 = arith.constant 0.0883883461 : f32
    %143 = vector.broadcast %cst_70 : f32 to vector<8x16xf32>
    %144 = arith.mulf %142, %143 : vector<8x16xf32>
    %145 = arith.mulf %144, %112 : vector<8x16xf32>
    %146 = arith.addf %145, %113 : vector<8x16xf32>
    %cst_71 = arith.constant dense<0xFF800000> : vector<8xf32>
    %147 = vector.multi_reduction <maximumf>, %146, %cst_71 [1] : vector<8x16xf32> to vector<8xf32>
    %148 = vector.shape_cast %147 : vector<8xf32> to vector<8x1xf32>
    %149 = vector.broadcast %148 : vector<8x1xf32> to vector<8x16xf32>
    %150 = arith.subf %146, %149 : vector<8x16xf32>
    %151 = math.exp %150 : vector<8x16xf32>
    %cst_72 = arith.constant dense<0.000000e+00> : vector<8xf32>
    %152 = vector.multi_reduction <add>, %151, %cst_72 [1] : vector<8x16xf32> to vector<8xf32>
    %153 = vector.shape_cast %152 : vector<8xf32> to vector<8x1xf32>
    %154 = tpu.reciprocal %153 {approx = true} : vector<8x1xf32> -> vector<8x1xf32>
    %155 = vector.broadcast %154 : vector<8x1xf32> to vector<8x16xf32>
    %156 = arith.mulf %151, %155 : vector<8x16xf32>
    %cst_73 = arith.constant dense<0.000000e+00> : vector<8x128xf32>
    %157 = tpu.matmul %156, %141, %cst_73 {dimension_numbers = #tpu.dot_dimension_numbers<[1], [0], [0], [1], [0, 0, 1, 1], [], []>} : vector<8x16xf32>, vector<16x128xf32>, vector<8x128xf32> -> vector<8x128xf32>
    %c0_74 = arith.constant 0 : index
    %c128_75 = arith.constant 128 : index
    %c1792_76 = arith.constant 1792 : index
    %158 = vector.load %arg7[%c0_74, %c128_75, %c1792_76] : memref<1x256x2560xbf16, #tpu.memory_space<vmem>>, vector<1x128x256xbf16>
    %159 = vector.shape_cast %158 : vector<1x128x256xbf16> to vector<128x256xbf16>
    %160 = arith.truncf %157 : vector<8x128xf32> to vector<8x128xbf16>
    %cst_77 = arith.constant dense<0.000000e+00> : vector<8x256xf32>
    %161 = tpu.matmul %160, %159, %cst_77 {dimension_numbers = #tpu.dot_dimension_numbers<[1], [0], [0], [1], [0, 0, 1, 1], [], []>} : vector<8x128xbf16>, vector<128x256xbf16>, vector<8x256xf32> -> vector<8x256xf32>
    %162 = arith.addf %138, %161 : vector<8x256xf32>
    %163 = vector.broadcast %115 : vector<1x256xf32> to vector<8x256xf32>
    %164 = arith.addf %162, %163 : vector<8x256xf32>
    %165 = arith.addf %92, %164 : vector<8x256xf32>
    %c0_78 = arith.constant 0 : index
    %c0_79 = arith.constant 0 : index
    %c2560 = arith.constant 2560 : index
    %166 = vector.load %arg9[%c0_78, %c0_79, %c2560] : memref<1x1x4352xf32, #tpu.memory_space<vmem>>, vector<1x1x256xf32>
    %167 = vector.shape_cast %166 : vector<1x1x256xf32> to vector<1x256xf32>
    %c0_80 = arith.constant 0 : index
    %c0_81 = arith.constant 0 : index
    %c2816 = arith.constant 2816 : index
    %168 = vector.load %arg9[%c0_80, %c0_81, %c2816] : memref<1x1x4352xf32, #tpu.memory_space<vmem>>, vector<1x1x256xf32>
    %169 = vector.shape_cast %168 : vector<1x1x256xf32> to vector<1x256xf32>
    %cst_82 = arith.constant dense<0.000000e+00> : vector<8xf32>
    %170 = vector.multi_reduction <add>, %165, %cst_82 [1] : vector<8x256xf32> to vector<8xf32>
    %171 = vector.shape_cast %170 : vector<8xf32> to vector<8x1xf32>
    %cst_83 = arith.constant 2.560000e+02 : f32
    %172 = vector.broadcast %cst_83 : f32 to vector<8x1xf32>
    %173 = arith.divf %171, %172 : vector<8x1xf32>
    %174 = vector.broadcast %173 : vector<8x1xf32> to vector<8x256xf32>
    %175 = arith.subf %165, %174 : vector<8x256xf32>
    %176 = arith.mulf %175, %175 : vector<8x256xf32>
    %cst_84 = arith.constant dense<0.000000e+00> : vector<8xf32>
    %177 = vector.multi_reduction <add>, %176, %cst_84 [1] : vector<8x256xf32> to vector<8xf32>
    %178 = vector.shape_cast %177 : vector<8xf32> to vector<8x1xf32>
    %cst_85 = arith.constant 2.560000e+02 : f32
    %179 = vector.broadcast %cst_85 : f32 to vector<8x1xf32>
    %180 = arith.divf %178, %179 : vector<8x1xf32>
    %cst_86 = arith.constant 9.99999974E-6 : f32
    %181 = vector.broadcast %cst_86 : f32 to vector<8x1xf32>
    %182 = arith.addf %180, %181 : vector<8x1xf32>
    %183 = math.rsqrt %182 : vector<8x1xf32>
    %184 = vector.broadcast %183 : vector<8x1xf32> to vector<8x256xf32>
    %185 = arith.mulf %175, %184 : vector<8x256xf32>
    %186 = vector.broadcast %167 : vector<1x256xf32> to vector<8x256xf32>
    %187 = arith.mulf %185, %186 : vector<8x256xf32>
    %188 = vector.broadcast %169 : vector<1x256xf32> to vector<8x256xf32>
    %189 = arith.addf %187, %188 : vector<8x256xf32>
    %190 = arith.truncf %189 : vector<8x256xf32> to vector<8x256xbf16>
    %c0_87 = arith.constant 0 : index
    %c0_88 = arith.constant 0 : index
    %c2048 = arith.constant 2048 : index
    %191 = vector.load %arg7[%c0_87, %c0_88, %c2048] : memref<1x256x2560xbf16, #tpu.memory_space<vmem>>, vector<1x256x512xbf16>
    %192 = vector.shape_cast %191 : vector<1x256x512xbf16> to vector<256x512xbf16>
    %cst_89 = arith.constant dense<0.000000e+00> : vector<8x512xf32>
    %193 = tpu.matmul %190, %192, %cst_89 {dimension_numbers = #tpu.dot_dimension_numbers<[1], [0], [0], [1], [0, 0, 1, 1], [], []>} : vector<8x256xbf16>, vector<256x512xbf16>, vector<8x512xf32> -> vector<8x512xf32>
    %c0_90 = arith.constant 0 : index
    %c0_91 = arith.constant 0 : index
    %c3072 = arith.constant 3072 : index
    %194 = vector.load %arg9[%c0_90, %c0_91, %c3072] : memref<1x1x4352xf32, #tpu.memory_space<vmem>>, vector<1x1x512xf32>
    %195 = vector.shape_cast %194 : vector<1x1x512xf32> to vector<1x512xf32>
    %196 = vector.broadcast %195 : vector<1x512xf32> to vector<8x512xf32>
    %197 = arith.addf %193, %196 : vector<8x512xf32>
    %cst_92 = arith.constant 0.000000e+00 : f32
    %198 = vector.broadcast %cst_92 : f32 to vector<8x512xf32>
    %199 = arith.maximumf %197, %198 : vector<8x512xf32>
    %200 = arith.truncf %199 : vector<8x512xf32> to vector<8x512xbf16>
    %c0_93 = arith.constant 0 : index
    %c0_94 = arith.constant 0 : index
    %c0_95 = arith.constant 0 : index
    %201 = vector.load %arg8[%c0_93, %c0_94, %c0_95] : memref<1x512x256xbf16, #tpu.memory_space<vmem>>, vector<1x512x256xbf16>
    %202 = vector.shape_cast %201 : vector<1x512x256xbf16> to vector<512x256xbf16>
    %cst_96 = arith.constant dense<0.000000e+00> : vector<8x256xf32>
    %203 = tpu.matmul %200, %202, %cst_96 {dimension_numbers = #tpu.dot_dimension_numbers<[1], [0], [0], [1], [0, 0, 1, 1], [], []>} : vector<8x512xbf16>, vector<512x256xbf16>, vector<8x256xf32> -> vector<8x256xf32>
    %c0_97 = arith.constant 0 : index
    %c0_98 = arith.constant 0 : index
    %c3584 = arith.constant 3584 : index
    %204 = vector.load %arg9[%c0_97, %c0_98, %c3584] : memref<1x1x4352xf32, #tpu.memory_space<vmem>>, vector<1x1x256xf32>
    %205 = vector.shape_cast %204 : vector<1x1x256xf32> to vector<1x256xf32>
    %206 = vector.broadcast %205 : vector<1x256xf32> to vector<8x256xf32>
    %207 = arith.addf %203, %206 : vector<8x256xf32>
    %208 = arith.addf %189, %207 : vector<8x256xf32>
    %c0_99 = arith.constant 0 : index
    %c0_100 = arith.constant 0 : index
    %c3840 = arith.constant 3840 : index
    %209 = vector.load %arg9[%c0_99, %c0_100, %c3840] : memref<1x1x4352xf32, #tpu.memory_space<vmem>>, vector<1x1x256xf32>
    %210 = vector.shape_cast %209 : vector<1x1x256xf32> to vector<1x256xf32>
    %c0_101 = arith.constant 0 : index
    %c0_102 = arith.constant 0 : index
    %c4096 = arith.constant 4096 : index
    %211 = vector.load %arg9[%c0_101, %c0_102, %c4096] : memref<1x1x4352xf32, #tpu.memory_space<vmem>>, vector<1x1x256xf32>
    %212 = vector.shape_cast %211 : vector<1x1x256xf32> to vector<1x256xf32>
    %cst_103 = arith.constant dense<0.000000e+00> : vector<8xf32>
    %213 = vector.multi_reduction <add>, %208, %cst_103 [1] : vector<8x256xf32> to vector<8xf32>
    %214 = vector.shape_cast %213 : vector<8xf32> to vector<8x1xf32>
    %cst_104 = arith.constant 2.560000e+02 : f32
    %215 = vector.broadcast %cst_104 : f32 to vector<8x1xf32>
    %216 = arith.divf %214, %215 : vector<8x1xf32>
    %217 = vector.broadcast %216 : vector<8x1xf32> to vector<8x256xf32>
    %218 = arith.subf %208, %217 : vector<8x256xf32>
    %219 = arith.mulf %218, %218 : vector<8x256xf32>
    %cst_105 = arith.constant dense<0.000000e+00> : vector<8xf32>
    %220 = vector.multi_reduction <add>, %219, %cst_105 [1] : vector<8x256xf32> to vector<8xf32>
    %221 = vector.shape_cast %220 : vector<8xf32> to vector<8x1xf32>
    %cst_106 = arith.constant 2.560000e+02 : f32
    %222 = vector.broadcast %cst_106 : f32 to vector<8x1xf32>
    %223 = arith.divf %221, %222 : vector<8x1xf32>
    %cst_107 = arith.constant 9.99999974E-6 : f32
    %224 = vector.broadcast %cst_107 : f32 to vector<8x1xf32>
    %225 = arith.addf %223, %224 : vector<8x1xf32>
    %226 = math.rsqrt %225 : vector<8x1xf32>
    %227 = vector.broadcast %226 : vector<8x1xf32> to vector<8x256xf32>
    %228 = arith.mulf %218, %227 : vector<8x256xf32>
    %229 = vector.broadcast %210 : vector<1x256xf32> to vector<8x256xf32>
    %230 = arith.mulf %228, %229 : vector<8x256xf32>
    %231 = vector.broadcast %212 : vector<1x256xf32> to vector<8x256xf32>
    %232 = arith.addf %230, %231 : vector<8x256xf32>
    %c0_108 = arith.constant 0 : index
    %c0_109 = arith.constant 0 : index
    %233 = vector.load %arg13[%c0_108, %c0_109] : memref<8x256xf32, #tpu.memory_space<vmem>>, vector<8x256xf32>
    tpu.vector_store %arg13[%c0_108, %c0_109], %232 {strides = array<i32>} : memref<8x256xf32, #tpu.memory_space<vmem>>, vector<8x256xf32>,
    %c4_i32 = arith.constant 4 : i32
    %234 = arith.cmpi eq, %arg0, %c4_i32 : i32
    %235 = arith.extui %234 : i1 to i32
    %c0_i32_110 = arith.constant 0 : i32
    %236 = arith.cmpi ne, %235, %c0_i32_110 : i32
    scf.if %236 {
      %237 = vector.extract_strided_slice %232 {offsets = [7, 0], sizes = [1, 256], strides = [1, 1]} : vector<8x256xf32> to vector<1x256xf32>
      %238 = arith.truncf %237 : vector<1x256xf32> to vector<1x256xbf16>
      %c0_111 = arith.constant 0 : index
      %c0_112 = arith.constant 0 : index
      %239 = vector.load %arg10[%c0_111, %c0_112] : memref<256x512xbf16, #tpu.memory_space<vmem>>, vector<256x512xbf16>
      %cst_113 = arith.constant dense<0.000000e+00> : vector<1x512xf32>
      %240 = tpu.matmul %238, %239, %cst_113 {dimension_numbers = #tpu.dot_dimension_numbers<[1], [0], [0], [1], [0, 0, 1, 1], [], []>} : vector<1x256xbf16>, vector<256x512xbf16>, vector<1x512xf32> -> vector<1x512xf32>
      %c0_114 = arith.constant 0 : index
      %c0_115 = arith.constant 0 : index
      %241 = vector.load %arg11[%c0_114, %c0_115] : memref<1x512xf32, #tpu.memory_space<vmem>>, vector<1x512xf32>
      %242 = arith.addf %240, %241 : vector<1x512xf32>
      %cst_116 = arith.constant dense<0xFF800000> : vector<1xf32>
      %243 = vector.multi_reduction <maximumf>, %242, %cst_116 [1] : vector<1x512xf32> to vector<1xf32>
      %244 = vector.shape_cast %243 : vector<1xf32> to vector<1x1xf32>
      %245 = vector.broadcast %244 : vector<1x1xf32> to vector<1x512xf32>
      %246 = arith.subf %242, %245 : vector<1x512xf32>
      %247 = math.exp %246 : vector<1x512xf32>
      %cst_117 = arith.constant dense<0.000000e+00> : vector<1xf32>
      %248 = vector.multi_reduction <add>, %247, %cst_117 [1] : vector<1x512xf32> to vector<1xf32>
      %249 = vector.shape_cast %248 : vector<1xf32> to vector<1x1xf32>
      %250 = math.log %249 : vector<1x1xf32>
      %251 = arith.addf %250, %244 : vector<1x1xf32>
      %252 = vector.broadcast %251 : vector<1x1xf32> to vector<1x512xf32>
      %253 = arith.subf %242, %252 : vector<1x512xf32>
      %c0_118 = arith.constant 0 : index
      %c0_119 = arith.constant 0 : index
      %254 = vector.load %arg12[%c0_118, %c0_119] : memref<1x512xf32, #tpu.memory_space<vmem>>, vector<1x512xf32>
      tpu.vector_store %arg12[%c0_118, %c0_119], %253 {strides = array<i32>} : memref<1x512xf32, #tpu.memory_space<vmem>>, vector<1x512xf32>,
    } else {
    }
    return
  }
  func.func @transform_0(%arg0: i32) -> (i32, i32) {
    %c0_i32 = arith.constant 0 : i32
    %c0_i32_0 = arith.constant 0 : i32
    %c0_i32_1 = arith.constant 0 : i32
    return %c0_i32, %c0_i32_0 : i32, i32
  }
  func.func @transform_1(%arg0: i32) -> (i32, i32) {
    %c0_i32 = arith.constant 0 : i32
    %c0_i32_0 = arith.constant 0 : i32
    %c0_i32_1 = arith.constant 0 : i32
    return %c0_i32, %c0_i32_0 : i32, i32
  }
  func.func @transform_2(%arg0: i32) -> (i32, i32) {
    %c0_i32 = arith.constant 0 : i32
    %c0_i32_0 = arith.constant 0 : i32
    %c0_i32_1 = arith.constant 0 : i32
    return %c0_i32, %c0_i32_0 : i32, i32
  }
  func.func @transform_3(%arg0: i32) -> (i32, i32) {
    %c0_i32 = arith.constant 0 : i32
    %c0_i32_0 = arith.constant 0 : i32
    %c0_i32_1 = arith.constant 0 : i32
    return %c0_i32, %c0_i32_0 : i32, i32
  }
  func.func @transform_4(%arg0: i32) -> (i32, i32) {
    %c0_i32 = arith.constant 0 : i32
    %c0_i32_0 = arith.constant 0 : i32
    %c0_i32_1 = arith.constant 0 : i32
    return %c0_i32, %c0_i32_0 : i32, i32
  }
  func.func @transform_5(%arg0: i32) -> (i32, i32) {
    %c0_i32 = arith.constant 0 : i32
    %c0_i32_0 = arith.constant 0 : i32
    %c0_i32_1 = arith.constant 0 : i32
    return %c0_i32, %c0_i32_0 : i32, i32
  }
  func.func @transform_6(%arg0: i32) -> (i32, i32, i32) {
    %c0_i32 = arith.constant 0 : i32
    %c0_i32_0 = arith.constant 0 : i32
    %c0_i32_1 = arith.constant 0 : i32
    return %arg0, %c0_i32, %c0_i32_0 : i32, i32, i32
  }
  func.func @transform_7(%arg0: i32) -> (i32, i32, i32) {
    %c0_i32 = arith.constant 0 : i32
    %c0_i32_0 = arith.constant 0 : i32
    %c0_i32_1 = arith.constant 0 : i32
    return %arg0, %c0_i32, %c0_i32_0 : i32, i32, i32
  }
  func.func @transform_8(%arg0: i32) -> (i32, i32, i32) {
    %c0_i32 = arith.constant 0 : i32
    %c0_i32_0 = arith.constant 0 : i32
    %c0_i32_1 = arith.constant 0 : i32
    return %arg0, %c0_i32, %c0_i32_0 : i32, i32, i32
  }
  func.func @transform_9(%arg0: i32) -> (i32, i32) {
    %c0_i32 = arith.constant 0 : i32
    %c0_i32_0 = arith.constant 0 : i32
    %c0_i32_1 = arith.constant 0 : i32
    return %c0_i32, %c0_i32_0 : i32, i32
  }
  func.func @transform_10(%arg0: i32) -> (i32, i32) {
    %c0_i32 = arith.constant 0 : i32
    %c0_i32_0 = arith.constant 0 : i32
    %c0_i32_1 = arith.constant 0 : i32
    return %c0_i32, %c0_i32_0 : i32, i32
  }
  func.func @transform_11(%arg0: i32) -> (i32, i32) {
    %c0_i32 = arith.constant 0 : i32
    %c0_i32_0 = arith.constant 0 : i32
    %c0_i32_1 = arith.constant 0 : i32
    return %c0_i32, %c0_i32_0 : i32, i32
  }
}

</mosaic_0001>

<llo_original>
// kernel: decoder_forward.1
$region0: #{decoder_forward.1}
  #allocation0 [shape = 'u32[]', space=smem, size = 0x4, offset = 0x4, fixed_abs, tag = 'smem constant byte address 0x4 - core index']
  #allocation1 [shape = 'u32[144,128]{1,0:T(1,128)}', space=vmem, size = 0x12000, scoped, tag = 'internal scratch']
  #allocation2 [shape = 'f32[8,256]{1,0:T(8,128)}', space=vmem, size = 0x2000, scoped, tag = 'scratch operand']
  %s0 = inlined_call_operand.vmem [shape: f32[8,256], index: 0, kind: input, shape index: {}]
  %s1 = inlined_call_operand.hbm [shape: f32[16,256], index: 1, kind: input, shape index: {}]
  %s2 = inlined_call_operand.vmem [shape: f32[8,8], index: 2, kind: input, shape index: {}]
  %s3 = inlined_call_operand.vmem [shape: f32[8,8], index: 3, kind: input, shape index: {}]
  %s4 = inlined_call_operand.vmem [shape: f32[8,16], index: 4, kind: input, shape index: {}]
  %s5 = inlined_call_operand.vmem [shape: f32[8,16], index: 5, kind: input, shape index: {}]
  %s6 = inlined_call_operand.hbm [shape: bf16[5,256,2560], index: 6, kind: input, shape index: {}]
  %s7 = inlined_call_operand.hbm [shape: bf16[5,512,256], index: 7, kind: input, shape index: {}]
  %s8 = inlined_call_operand.hbm [shape: f32[5,1,4352], index: 8, kind: input, shape index: {}]
  %s9 = inlined_call_operand.hbm [shape: bf16[256,512], index: 9, kind: input, shape index: {}]
  %s10 = inlined_call_operand.hbm [shape: f32[1,512], index: 10, kind: input, shape index: {}]
  %s11 = inlined_call_operand.hbm [shape: f32[1,512], index: 11, kind: output, shape index: {}]
  %s12 = sld [smem:[#allocation0]]
  $region109: #{decoder_forward.1} parent=0
    _
  %s14 = ssub.s32 1, %s12
  %s15 = scalar_select 0, %s14, %s12
  $region1: #{decoder_forward.1} parent=0
    #allocation3 [shape = 'u8[16384]{0}', space=vmem, size = 0x4000, scoped, tag = 'input window, operand 1, single buffered']
    #allocation4 [shape = 's32[2]{0}', space=sflag, size = 0x8, scoped, tag = 'scoped memory for decoder_forward.1']
    #allocation5 [shape = 's32[2]{0}', space=sflag, size = 0x8, scoped, tag = 'scoped memory for decoder_forward.1']
    #allocation6 [shape = 'u8[2621440]{0}', space=vmem, size = 0x280000, scoped, tag = 'input window, operand 6']
    #allocation7 [shape = 's32[2]{0}', space=sflag, size = 0x8, scoped, tag = 'scoped memory for decoder_forward.1']
    #allocation8 [shape = 'u8[524288]{0}', space=vmem, size = 0x80000, scoped, tag = 'input window, operand 7']
    #allocation9 [shape = 'u8[34816]{0}', space=vmem, size = 0x8800, scoped, tag = 'input window, operand 8']
    #allocation10 [shape = 's32[2]{0}', space=sflag, size = 0x8, scoped, tag = 'scoped memory for decoder_forward.1']
    #allocation11 [shape = 'u8[262144]{0}', space=vmem, size = 0x40000, scoped, tag = 'input window, operand 9, single buffered']
    #allocation12 [shape = 'u8[2048]{0}', space=vmem, size = 0x800, scoped, tag = 'input window, operand 10, single buffered']
    #allocation13 [shape = 's32[1]{0}', space=sflag, size = 0x4, scoped, tag = 'scoped memory for decoder_forward.1']
    #allocation14 [shape = 'u8[2048]{0}', space=vmem, size = 0x800, scoped, tag = 'output window, operand 0, single buffered']
    %16 = vsyncpa [#allocation4], 0
    %17 = vsyncpa [#allocation7], 0
    %s18 = scalar_lea.sflag [#allocation7], 1
    %19 = vsyncpa %s18, 0
    %20 = vsyncpa [#allocation10], 0
    %s21 = scalar_lea.sflag [#allocation10], 1
    %22 = vsyncpa %s21, 0
    %23 = vsyncpa [#allocation13], 0
    %24 = vsyncpa [#allocation5], 0
    loop: start=0, step=1, limit=7
    $region2: #{decoder_forward.1} parent=1 // loop_pre_header
      _
    $region3: #{decoder_forward.1} parent=1 // loop_header
      %s26 = sphi 0, %s30
      %p27 = scmp.ge.s32.totalorder %s26, 7
      %s34 = sphi 0, %s34
      %s36 = sphi 0, %s34
      %s37 = sphi 0, %s36
      %s51 = sphi 0, %s37
      %s55 = sphi 0, %s55
      %s57 = sphi 0, %s55
      %s58 = sphi 0, %s57
      %s72 = sphi 0, %s58
      %s76 = sphi 0, %s76
      %s78 = sphi 0, %s76
      %s79 = sphi 0, %s78
      %s93 = sphi 0, %s79
      %s97 = sphi 0, %s97
      %s99 = sphi 0, %s97
      %s100 = sphi 0, %s99
      %s114 = sphi 0, %s100
      %s118 = sphi 0, %s118
      %s120 = sphi 0, %s118
      %s121 = sphi 0, %s120
      %s135 = sphi 0, %s121
      %s139 = sphi 0, %s139
      %s141 = sphi 0, %s139
      %s142 = sphi 0, %s141
      %s156 = sphi 0, %s142
      %s162 = sphi 0, %s164
      %s165 = sphi 0, %s162
      %s166 = sphi 0, %s165
      %s182 = sphi 0, %s166
      %s188 = sphi 0, %s190
      %s191 = sphi 0, %s188
      %s192 = sphi 0, %s191
      %s208 = sphi 0, %s192
      %s214 = sphi 0, %s216
      %s217 = sphi 0, %s214
      %s218 = sphi 0, %s217
      %s234 = sphi 0, %s218
      %s238 = sphi 0, %s238
      %s240 = sphi 0, %s238
      %s241 = sphi 0, %s240
      %s255 = sphi 0, %s241
      %s259 = sphi 0, %s259
      %s261 = sphi 0, %s259
      %s262 = sphi 0, %s261
      %s276 = sphi 0, %s262
      %s280 = sphi 0, %s280
      %s282 = sphi 0, %s280
      %s283 = sphi 0, %s282
      %s297 = sphi 0, %s283
    $region4: #{decoder_forward.1} parent=1 // loop_header_branch
      %29 = sbr.rel (%p27) target = $region8
    $region5: #{decoder_forward.1} parent=1 // loop_body
      %s31 = ssub.s32 %s26, 1
      %s32 = ssub.s32 %s26, 2
      %s33 = sadd.s32 %s26, 1
      %s35 = sadd.s32 %s34, 1
      %p38 = scmp.eq.s32.totalorder %s26, 4
      %p39 = scmp.ne.s32.totalorder %s34, %s36
      %p40 = scmp.eq.s32.totalorder %s26, 0
      %p41 = por %p39, %p40
      %p42 = scmp.ne.s32.totalorder %s34, %s36
      %p43 = scmp.eq.s32.totalorder %s31, 4
      %p44 = por %p42, %p43
      %p45 = scmp.ne.s32.totalorder %s36, %s37
      %p46 = scmp.eq.s32.totalorder %s31, 0
      %p47 = por %p45, %p46
      %p48 = scmp.ne.s32.totalorder %s36, %s37
      %p49 = scmp.eq.s32.totalorder %s32, 4
      %p50 = por %p48, %p49
      %p52 = scmp.ne.s32.totalorder %s37, %s51
      %p53 = scmp.eq.s32.totalorder %s32, 0
      %p54 = por %p52, %p53
      %s56 = sadd.s32 %s55, 1
      %p59 = scmp.eq.s32.totalorder %s26, 4
      %p60 = scmp.ne.s32.totalorder %s55, %s57
      %p61 = scmp.eq.s32.totalorder %s26, 0
      %p62 = por %p60, %p61
      %p63 = scmp.ne.s32.totalorder %s55, %s57
      %p64 = scmp.eq.s32.totalorder %s31, 4
      %p65 = por %p63, %p64
      %p66 = scmp.ne.s32.totalorder %s57, %s58
      %p67 = scmp.eq.s32.totalorder %s31, 0
      %p68 = por %p66, %p67
      %p69 = scmp.ne.s32.totalorder %s57, %s58
      %p70 = scmp.eq.s32.totalorder %s32, 4
      %p71 = por %p69, %p70
      %p73 = scmp.ne.s32.totalorder %s58, %s72
      %p74 = scmp.eq.s32.totalorder %s32, 0
      %p75 = por %p73, %p74
      %s77 = sadd.s32 %s76, 1
      %p80 = scmp.eq.s32.totalorder %s26, 4
      %p81 = scmp.ne.s32.totalorder %s76, %s78
      %p82 = scmp.eq.s32.totalorder %s26, 0
      %p83 = por %p81, %p82
      %p84 = scmp.ne.s32.totalorder %s76, %s78
      %p85 = scmp.eq.s32.totalorder %s31, 4
      %p86 = por %p84, %p85
      %p87 = scmp.ne.s32.totalorder %s78, %s79
      %p88 = scmp.eq.s32.totalorder %s31, 0
      %p89 = por %p87, %p88
      %p90 = scmp.ne.s32.totalorder %s78, %s79
      %p91 = scmp.eq.s32.totalorder %s32, 4
      %p92 = por %p90, %p91
      %p94 = scmp.ne.s32.totalorder %s79, %s93
      %p95 = scmp.eq.s32.totalorder %s32, 0
      %p96 = por %p94, %p95
      %s98 = sadd.s32 %s97, 1
      %p101 = scmp.eq.s32.totalorder %s26, 4
      %p102 = scmp.ne.s32.totalorder %s97, %s99
      %p103 = scmp.eq.s32.totalorder %s26, 0
      %p104 = por %p102, %p103
      %p105 = scmp.ne.s32.totalorder %s97, %s99
      %p106 = scmp.eq.s32.totalorder %s31, 4
      %p107 = por %p105, %p106
      %p108 = scmp.ne.s32.totalorder %s99, %s100
      %p109 = scmp.eq.s32.totalorder %s31, 0
      %p110 = por %p108, %p109
      %p111 = scmp.ne.s32.totalorder %s99, %s100
      %p112 = scmp.eq.s32.totalorder %s32, 4
      %p113 = por %p111, %p112
      %p115 = scmp.ne.s32.totalorder %s100, %s114
      %p116 = scmp.eq.s32.totalorder %s32, 0
      %p117 = por %p115, %p116
      %s119 = sadd.s32 %s118, 1
      %p122 = scmp.eq.s32.totalorder %s26, 4
      %p123 = scmp.ne.s32.totalorder %s118, %s120
      %p124 = scmp.eq.s32.totalorder %s26, 0
      %p125 = por %p123, %p124
      %p126 = scmp.ne.s32.totalorder %s118, %s120
      %p127 = scmp.eq.s32.totalorder %s31, 4
      %p128 = por %p126, %p127
      %p129 = scmp.ne.s32.totalorder %s120, %s121
      %p130 = scmp.eq.s32.totalorder %s31, 0
      %p131 = por %p129, %p130
      %p132 = scmp.ne.s32.totalorder %s120, %s121
      %p133 = scmp.eq.s32.totalorder %s32, 4
      %p134 = por %p132, %p133
      %p136 = scmp.ne.s32.totalorder %s121, %s135
      %p137 = scmp.eq.s32.totalorder %s32, 0
      %p138 = por %p136, %p137
      %s140 = sadd.s32 %s139, 1
      %p143 = scmp.eq.s32.totalorder %s26, 4
      %p144 = scmp.ne.s32.totalorder %s139, %s141
      %p145 = scmp.eq.s32.totalorder %s26, 0
      %p146 = por %p144, %p145
      %p147 = scmp.ne.s32.totalorder %s139, %s141
      %p148 = scmp.eq.s32.totalorder %s31, 4
      %p149 = por %p147, %p148
      %p150 = scmp.ne.s32.totalorder %s141, %s142
      %p151 = scmp.eq.s32.totalorder %s31, 0
      %p152 = por %p150, %p151
      %p153 = scmp.ne.s32.totalorder %s141, %s142
      %p154 = scmp.eq.s32.totalorder %s32, 4
      %p155 = por %p153, %p154
      %p157 = scmp.ne.s32.totalorder %s142, %s156
      %p158 = scmp.eq.s32.totalorder %s32, 0
      %p159 = por %p157, %p158
      %s160 = ssub.s32 %s26, %s33
      %p161 = scmp.eq.s32.totalorder %s160, 0
      %s163 = sadd.s32 %s162, 1
      %s164 = scalar_select %p161, %s162, %s163
      %p167 = pneg %p161
      %p168 = scmp.eq.s32.totalorder %s26, 4
      %p169 = por %p167, %p168
      %p170 = scmp.ne.s32.totalorder %s162, %s165
      %p171 = scmp.eq.s32.totalorder %s26, 0
      %p172 = por %p170, %p171
      %p173 = scmp.ne.s32.totalorder %s162, %s165
      %p174 = scmp.eq.s32.totalorder %s31, 4
      %p175 = por %p173, %p174
      %p176 = scmp.ne.s32.totalorder %s165, %s166
      %p177 = scmp.eq.s32.totalorder %s31, 0
      %p178 = por %p176, %p177
      %p179 = scmp.ne.s32.totalorder %s165, %s166
      %p180 = scmp.eq.s32.totalorder %s32, 4
      %p181 = por %p179, %p180
      %p183 = scmp.ne.s32.totalorder %s166, %s182
      %p184 = scmp.eq.s32.totalorder %s32, 0
      %p185 = por %p183, %p184
      %s186 = ssub.s32 %s26, %s33
      %p187 = scmp.eq.s32.totalorder %s186, 0
      %s189 = sadd.s32 %s188, 1
      %s190 = scalar_select %p187, %s188, %s189
      %p193 = pneg %p187
      %p194 = scmp.eq.s32.totalorder %s26, 4
      %p195 = por %p193, %p194
      %p196 = scmp.ne.s32.totalorder %s188, %s191
      %p197 = scmp.eq.s32.totalorder %s26, 0
      %p198 = por %p196, %p197
      %p199 = scmp.ne.s32.totalorder %s188, %s191
      %p200 = scmp.eq.s32.totalorder %s31, 4
      %p201 = por %p199, %p200
      %p202 = scmp.ne.s32.totalorder %s191, %s192
      %p203 = scmp.eq.s32.totalorder %s31, 0
      %p204 = por %p202, %p203
      %p205 = scmp.ne.s32.totalorder %s191, %s192
      %p206 = scmp.eq.s32.totalorder %s32, 4
      %p207 = por %p205, %p206
      %p209 = scmp.ne.s32.totalorder %s192, %s208
      %p210 = scmp.eq.s32.totalorder %s32, 0
      %p211 = por %p209, %p210
      %s212 = ssub.s32 %s26, %s33
      %p213 = scmp.eq.s32.totalorder %s212, 0
      %s215 = sadd.s32 %s214, 1
      %s216 = scalar_select %p213, %s214, %s215
      %p219 = pneg %p213
      %p220 = scmp.eq.s32.totalorder %s26, 4
      %p221 = por %p219, %p220
      %p222 = scmp.ne.s32.totalorder %s214, %s217
      %p223 = scmp.eq.s32.totalorder %s26, 0
      %p224 = por %p222, %p223
      %p225 = scmp.ne.s32.totalorder %s214, %s217
      %p226 = scmp.eq.s32.totalorder %s31, 4
      %p227 = por %p225, %p226
      %p228 = scmp.ne.s32.totalorder %s217, %s218
      %p229 = scmp.eq.s32.totalorder %s31, 0
      %p230 = por %p228, %p229
      %p231 = scmp.ne.s32.totalorder %s217, %s218
      %p232 = scmp.eq.s32.totalorder %s32, 4
      %p233 = por %p231, %p232
      %p235 = scmp.ne.s32.totalorder %s218, %s234
      %p236 = scmp.eq.s32.totalorder %s32, 0
      %p237 = por %p235, %p236
      %s239 = sadd.s32 %s238, 1
      %p242 = scmp.eq.s32.totalorder %s26, 4
      %p243 = scmp.ne.s32.totalorder %s238, %s240
      %p244 = scmp.eq.s32.totalorder %s26, 0
      %p245 = por %p243, %p244
      %p246 = scmp.ne.s32.totalorder %s238, %s240
      %p247 = scmp.eq.s32.totalorder %s31, 4
      %p248 = por %p246, %p247
      %p249 = scmp.ne.s32.totalorder %s240, %s241
      %p250 = scmp.eq.s32.totalorder %s31, 0
      %p251 = por %p249, %p250
      %p252 = scmp.ne.s32.totalorder %s240, %s241
      %p253 = scmp.eq.s32.totalorder %s32, 4
      %p254 = por %p252, %p253
      %p256 = scmp.ne.s32.totalorder %s241, %s255
      %p257 = scmp.eq.s32.totalorder %s32, 0
      %p258 = por %p256, %p257
      %s260 = sadd.s32 %s259, 1
      %p263 = scmp.eq.s32.totalorder %s26, 4
      %p264 = scmp.ne.s32.totalorder %s259, %s261
      %p265 = scmp.eq.s32.totalorder %s26, 0
      %p266 = por %p264, %p265
      %p267 = scmp.ne.s32.totalorder %s259, %s261
      %p268 = scmp.eq.s32.totalorder %s31, 4
      %p269 = por %p267, %p268
      %p270 = scmp.ne.s32.totalorder %s261, %s262
      %p271 = scmp.eq.s32.totalorder %s31, 0
      %p272 = por %p270, %p271
      %p273 = scmp.ne.s32.totalorder %s261, %s262
      %p274 = scmp.eq.s32.totalorder %s32, 4
      %p275 = por %p273, %p274
      %p277 = scmp.ne.s32.totalorder %s262, %s276
      %p278 = scmp.eq.s32.totalorder %s32, 0
      %p279 = por %p277, %p278
      %s281 = sadd.s32 %s280, 1
      %p284 = scmp.eq.s32.totalorder %s26, 4
      %p285 = scmp.ne.s32.totalorder %s280, %s282
      %p286 = scmp.eq.s32.totalorder %s26, 0
      %p287 = por %p285, %p286
      %p288 = scmp.ne.s32.totalorder %s280, %s282
      %p289 = scmp.eq.s32.totalorder %s31, 4
      %p290 = por %p288, %p289
      %p291 = scmp.ne.s32.totalorder %s282, %s283
      %p292 = scmp.eq.s32.totalorder %s31, 0
      %p293 = por %p291, %p292
      %p294 = scmp.ne.s32.totalorder %s282, %s283
      %p295 = scmp.eq.s32.totalorder %s32, 4
      %p296 = por %p294, %p295
      %p298 = scmp.ne.s32.totalorder %s283, %s297
      %p299 = scmp.eq.s32.totalorder %s32, 0
      %p300 = por %p298, %p299
      %p301 = scmp.le.s32.totalorder 1, %s26
      %p302 = scmp.lt.s32.totalorder %s26, 6
      %p303 = pnand %p301, %p302
      %p304 = pneg %p303
      // Predicated region
      $region9: #{decoder_forward.1} parent=5 // pred_check
        _
      $region10: #{decoder_forward.1} parent=5 // pred_check_branch
        %306 = sbr.rel (%p303) target = $region12
      $region11: #{decoder_forward.1} parent=5 // pred_region
        %s307 = ssub.s32 %s26, 1
        // Predicated region
        $region13: #{decoder_forward.1} parent=11 // pred_check
          %p308 = pneg %p47
        $region14: #{decoder_forward.1} parent=11 // pred_check_branch
          %310 = sbr.rel (%p308) target = $region16
        $region15: #{decoder_forward.1} parent=11 // pred_region
          _
        $region16: #{decoder_forward.1} parent=11 // pred_fallthru
          _
        // Predicated region
        $region17: #{decoder_forward.1} parent=11 // pred_check
          %p311 = pneg %p68
        $region18: #{decoder_forward.1} parent=11 // pred_check_branch
          %313 = sbr.rel (%p311) target = $region20
        $region19: #{decoder_forward.1} parent=11 // pred_region
          %s315 = ssub.s32 512, 512
          %316 = vsyncadd [#allocation4], %s315
          %s317 = sshll.u32 [#allocation3], 4
          %s318 = int_to_ptr.vmem [resolvable:$true] %s317
          %323 = dma.hbm_to_vmem [thread:$0]  %s1, 512, %s318, [#allocation4], 256, 256, 16
        $region20: #{decoder_forward.1} parent=11 // pred_fallthru
          _
        // Predicated region
        $region21: #{decoder_forward.1} parent=11 // pred_check
          %p324 = pneg %p89
        $region22: #{decoder_forward.1} parent=11 // pred_check_branch
          %326 = sbr.rel (%p324) target = $region24
        $region23: #{decoder_forward.1} parent=11 // pred_region
          _
        $region24: #{decoder_forward.1} parent=11 // pred_fallthru
          _
        // Predicated region
        $region25: #{decoder_forward.1} parent=11 // pred_check
          %p327 = pneg %p110
        $region26: #{decoder_forward.1} parent=11 // pred_check_branch
          %329 = sbr.rel (%p327) target = $region28
        $region27: #{decoder_forward.1} parent=11 // pred_region
          _
        $region28: #{decoder_forward.1} parent=11 // pred_fallthru
          _
        // Predicated region
        $region29: #{decoder_forward.1} parent=11 // pred_check
          %p330 = pneg %p131
        $region30: #{decoder_forward.1} parent=11 // pred_check_branch
          %332 = sbr.rel (%p330) target = $region32
        $region31: #{decoder_forward.1} parent=11 // pred_region
          _
        $region32: #{decoder_forward.1} parent=11 // pred_fallthru
          _
        // Predicated region
        $region33: #{decoder_forward.1} parent=11 // pred_check
          %p333 = pneg %p152
        $region34: #{decoder_forward.1} parent=11 // pred_check_branch
          %335 = sbr.rel (%p333) target = $region36
        $region35: #{decoder_forward.1} parent=11 // pred_region
          _
        $region36: #{decoder_forward.1} parent=11 // pred_fallthru
          _
        // Predicated region
        $region37: #{decoder_forward.1} parent=11 // pred_check
          %p336 = pneg %p251
        $region38: #{decoder_forward.1} parent=11 // pred_check_branch
          %338 = sbr.rel (%p336) target = $region40
        $region39: #{decoder_forward.1} parent=11 // pred_region
          %s340 = ssub.s32 8192, 8192
          %341 = vsyncadd [#allocation10], %s340
          %s342 = sshll.u32 [#allocation11], 4
          %s343 = int_to_ptr.vmem [resolvable:$true] %s342
          %348 = dma.hbm_to_vmem [thread:$0]  %s9, 8192, %s343, [#allocation10], 256, 256, 16
        $region40: #{decoder_forward.1} parent=11 // pred_fallthru
          _
        // Predicated region
        $region41: #{decoder_forward.1} parent=11 // pred_check
          %p349 = pneg %p272
        $region42: #{decoder_forward.1} parent=11 // pred_check_branch
          %351 = sbr.rel (%p349) target = $region44
        $region43: #{decoder_forward.1} parent=11 // pred_region
          %s353 = ssub.s32 64, 64
          %354 = vsyncadd [#allocation13], %s353
          %s356 = sshll.u32 [#allocation12], 4
          %s357 = int_to_ptr.vmem [resolvable:$true] %s356
          %359 = dma.hbm_to_vmem [thread:$0]  %s10, 64, %s357, [#allocation13]
        $region44: #{decoder_forward.1} parent=11 // pred_fallthru
          _
      $region12: #{decoder_forward.1} parent=5 // pred_fallthru
        _
      %p360 = scmp.lt.s32.totalorder %s26, 5
      // Predicated region
      $region45: #{decoder_forward.1} parent=5 // pred_check
        %p361 = pneg %p360
      $region46: #{decoder_forward.1} parent=5 // pred_check_branch
        %363 = sbr.rel (%p361) target = $region48
      $region47: #{decoder_forward.1} parent=5 // pred_region
        // Predicated region
        $region49: #{decoder_forward.1} parent=47 // pred_check
          %p364 = pneg %p172
        $region50: #{decoder_forward.1} parent=47 // pred_check_branch
          %366 = sbr.rel (%p364) target = $region52
        $region51: #{decoder_forward.1} parent=47 // pred_region
          %s367 = sand.u32 %s26, 1
          %s368 = scalar_lea.sflag [#allocation7], %s367
          %s369 = sand.u32 %s162, 1
          %s370 = smul.addr %s369, 2560
          %s371 = scalar_lea.vmem [#allocation6], %s370
          %s373 = ssub.s32 40960, 40960
          %374 = vsyncadd %s368, %s373
          %s375 = smul.addr %s26, 640
          %s376 = smul.addr %s375, 64
          %s377 = scalar_lea.hbm %s6, %s376
          %s378 = sshll.u32 %s371, 4
          %s379 = int_to_ptr.vmem [resolvable:$true] %s378
          %384 = dma.hbm_to_vmem [thread:$0]  %s377, 40960, %s379, %s368, 1280, 1280, 80
        $region52: #{decoder_forward.1} parent=47 // pred_fallthru
          _
        // Predicated region
        $region53: #{decoder_forward.1} parent=47 // pred_check
          %p385 = pneg %p198
        $region54: #{decoder_forward.1} parent=47 // pred_check_branch
          %387 = sbr.rel (%p385) target = $region56
        $region55: #{decoder_forward.1} parent=47 // pred_region
          %s388 = sand.u32 %s26, 1
          %s389 = scalar_lea.sflag [#allocation7], %s388
          %s390 = sand.u32 %s188, 1
          %s391 = smul.addr %s390, 512
          %s392 = scalar_lea.vmem [#allocation8], %s391
          %s394 = ssub.s32 8192, 8192
          %395 = vsyncadd %s389, %s394
          %s396 = smul.addr %s26, 128
          %s397 = smul.addr %s396, 64
          %s398 = scalar_lea.hbm %s7, %s397
          %s399 = sshll.u32 %s392, 4
          %s400 = int_to_ptr.vmem [resolvable:$true] %s399
          %405 = dma.hbm_to_vmem [thread:$0]  %s398, 8192, %s400, %s389, 128, 128, 8
        $region56: #{decoder_forward.1} parent=47 // pred_fallthru
          _
        // Predicated region
        $region57: #{decoder_forward.1} parent=47 // pred_check
          %p406 = pneg %p224
        $region58: #{decoder_forward.1} parent=47 // pred_check_branch
          %408 = sbr.rel (%p406) target = $region60
        $region59: #{decoder_forward.1} parent=47 // pred_region
          %s409 = sand.u32 %s26, 1
          %s410 = scalar_lea.sflag [#allocation10], %s409
          %s411 = sand.u32 %s214, 1
          %s412 = smul.addr %s411, 34
          %s413 = scalar_lea.vmem [#allocation9], %s412
          %s415 = ssub.s32 544, 544
          %416 = vsyncadd %s410, %s415
          %s417 = smul.addr %s26, 34
          %s418 = smul.addr %s417, 16
          %s419 = scalar_lea.hbm %s8, %s418
          %s421 = sshll.u32 %s413, 4
          %s422 = int_to_ptr.vmem [resolvable:$true] %s421
          %424 = dma.hbm_to_vmem [thread:$0]  %s419, 544, %s422, %s410
        $region60: #{decoder_forward.1} parent=47 // pred_fallthru
          _
      $region48: #{decoder_forward.1} parent=5 // pred_fallthru
        _
      %p425 = scmp.le.s32.totalorder 1, %s26
      %p426 = scmp.lt.s32.totalorder %s26, 6
      %p427 = pnand %p425, %p426
      %p428 = pneg %p427
      // Predicated region
      $region61: #{decoder_forward.1} parent=5 // pred_check
        _
      $region62: #{decoder_forward.1} parent=5 // pred_check_branch
        %430 = sbr.rel (%p427) target = $region64
      $region63: #{decoder_forward.1} parent=5 // pred_region
        %s431 = ssub.s32 %s26, 1
        // Predicated region
        $region65: #{decoder_forward.1} parent=63 // pred_check
          %p432 = pneg %p68
        $region66: #{decoder_forward.1} parent=63 // pred_check_branch
          %434 = sbr.rel (%p432) target = $region68
        $region67: #{decoder_forward.1} parent=63 // pred_region
          %435 = dma.done [#allocation4], 512
        $region68: #{decoder_forward.1} parent=63 // pred_fallthru
          _
        %s436 = sand.u32 %s31, 1
        %s437 = scalar_lea.sflag [#allocation7], %s436
        %s438 = sand.u32 %s165, 1
        %s439 = smul.addr %s438, 2560
        %s440 = scalar_lea.vmem [#allocation6], %s439
        // Predicated region
        $region69: #{decoder_forward.1} parent=63 // pred_check
          %p441 = pneg %p178
        $region70: #{decoder_forward.1} parent=63 // pred_check_branch
          %443 = sbr.rel (%p441) target = $region72
        $region71: #{decoder_forward.1} parent=63 // pred_region
          %444 = dma.done %s437, 40960
        $region72: #{decoder_forward.1} parent=63 // pred_fallthru
          _
        %s445 = sand.u32 %s31, 1
        %s446 = scalar_lea.sflag [#allocation7], %s445
        %s447 = sand.u32 %s191, 1
        %s448 = smul.addr %s447, 512
        %s449 = scalar_lea.vmem [#allocation8], %s448
        // Predicated region
        $region73: #{decoder_forward.1} parent=63 // pred_check
          %p450 = pneg %p204
        $region74: #{decoder_forward.1} parent=63 // pred_check_branch
          %452 = sbr.rel (%p450) target = $region76
        $region75: #{decoder_forward.1} parent=63 // pred_region
          %453 = dma.done %s446, 8192
        $region76: #{decoder_forward.1} parent=63 // pred_fallthru
          _
        %s454 = sand.u32 %s31, 1
        %s455 = scalar_lea.sflag [#allocation10], %s454
        %s456 = sand.u32 %s217, 1
        %s457 = smul.addr %s456, 34
        %s458 = scalar_lea.vmem [#allocation9], %s457
        // Predicated region
        $region77: #{decoder_forward.1} parent=63 // pred_check
          %p459 = pneg %p230
        $region78: #{decoder_forward.1} parent=63 // pred_check_branch
          %461 = sbr.rel (%p459) target = $region80
        $region79: #{decoder_forward.1} parent=63 // pred_region
          %462 = dma.done %s455, 544
        $region80: #{decoder_forward.1} parent=63 // pred_fallthru
          _
        // Predicated region
        $region81: #{decoder_forward.1} parent=63 // pred_check
          %p463 = pneg %p251
        $region82: #{decoder_forward.1} parent=63 // pred_check_branch
          %465 = sbr.rel (%p463) target = $region84
        $region83: #{decoder_forward.1} parent=63 // pred_region
          %466 = dma.done [#allocation10], 8192
        $region84: #{decoder_forward.1} parent=63 // pred_fallthru
          _
        // Predicated region
        $region85: #{decoder_forward.1} parent=63 // pred_check
          %p467 = pneg %p272
        $region86: #{decoder_forward.1} parent=63 // pred_check_branch
          %469 = sbr.rel (%p467) target = $region88
        $region87: #{decoder_forward.1} parent=63 // pred_region
          %470 = dma.done [#allocation13], 64
        $region88: #{decoder_forward.1} parent=63 // pred_fallthru
          _
        %p471 = pneg %p47
        %p472 = pneg %p44
        %p473 = pneg %p68
        %p474 = pneg %p65
        %p475 = pneg %p89
        %p476 = pneg %p86
        %p477 = pneg %p110
        %p478 = pneg %p107
        %p479 = pneg %p131
        %p480 = pneg %p128
        %p481 = pneg %p152
        %p482 = pneg %p149
        %s483 = sand.u32 %s31, 1
        %s484 = scalar_lea.sflag [#allocation7], %s483
        %s485 = sand.u32 %s165, 1
        %s486 = smul.addr %s485, 2560
        %s487 = scalar_lea.vmem [#allocation6], %s486
        %p488 = pneg %p178
        %p489 = pneg %p175
        %s490 = sand.u32 %s31, 1
        %s491 = scalar_lea.sflag [#allocation7], %s490
        %s492 = sand.u32 %s191, 1
        %s493 = smul.addr %s492, 512
        %s494 = scalar_lea.vmem [#allocation8], %s493
        %p495 = pneg %p204
        %p496 = pneg %p201
        %s497 = sand.u32 %s31, 1
        %s498 = scalar_lea.sflag [#allocation10], %s497
        %s499 = sand.u32 %s217, 1
        %s500 = smul.addr %s499, 34
        %s501 = scalar_lea.vmem [#allocation9], %s500
        %p502 = pneg %p230
        %p503 = pneg %p227
        %p504 = pneg %p251
        %p505 = pneg %p248
        %p506 = pneg %p272
        %p507 = pneg %p269
        %p508 = pneg %p293
        %p509 = pneg %p290
        %p511 = scmp.eq.s32.totalorder %s31, 0
        // Predicated region
        $region89: #{decoder_forward.1} parent=63 // pred_check
          %p512 = pneg %p511
        $region90: #{decoder_forward.1} parent=63 // pred_check_branch
          %514 = sbr.rel (%p512) target = $region92
        $region91: #{decoder_forward.1} parent=63 // pred_region
          %v515 = vld [vmem:[%s0] sm:$0xff]
          %v516 = vld [vmem:[%s0 + $0x8] sm:$0xff]
          %517 = vst [vmem:[#allocation2] sm:$0xff] %v515
          %518 = vst [vmem:[#allocation2 + $0x8] sm:$0xff] %v516
        $region92: #{decoder_forward.1} parent=63 // pred_fallthru
          _
        %v519 = vld [vmem:[#allocation2] sm:$0xff]
        %v520 = vld [vmem:[#allocation2 + $0x8] sm:$0xff]
        %v521 = vpack.c.bf16 %v519, %v519
        %v522 = vpack.c.bf16 %v520, %v520
        %v523 = vld [vmem:[%s440] sm:$0xff]
        %v524 = vld [vmem:[%s440 + $0x8] sm:$0xff]
        %v525 = vld [vmem:[%s440 + $0x10] sm:$0xff]
        %v526 = vld [vmem:[%s440 + $0x50] sm:$0xff]
        %v527 = vld [vmem:[%s440 + $0x58] sm:$0xff]
        %v528 = vld [vmem:[%s440 + $0x60] sm:$0xff]
        %v529 = vld [vmem:[%s440 + $0xa0] sm:$0xff]
        %v530 = vld [vmem:[%s440 + $0xa8] sm:$0xff]
        %v531 = vld [vmem:[%s440 + $0xb0] sm:$0xff]
        %v532 = vld [vmem:[%s440 + $0xf0] sm:$0xff]
        %v533 = vld [vmem:[%s440 + $0xf8] sm:$0xff]
        %v534 = vld [vmem:[%s440 + $0x100] sm:$0xff]
        %v535 = vld [vmem:[%s440 + $0x140] sm:$0xff]
        %v536 = vld [vmem:[%s440 + $0x148] sm:$0xff]
        %v537 = vld [vmem:[%s440 + $0x150] sm:$0xff]
        %v538 = vld [vmem:[%s440 + $0x190] sm:$0xff]
        %v539 = vld [vmem:[%s440 + $0x198] sm:$0xff]
        %v540 = vld [vmem:[%s440 + $0x1a0] sm:$0xff]
        %v541 = vld [vmem:[%s440 + $0x1e0] sm:$0xff]
        %v542 = vld [vmem:[%s440 + $0x1e8] sm:$0xff]
        %v543 = vld [vmem:[%s440 + $0x1f0] sm:$0xff]
        %v544 = vld [vmem:[%s440 + $0x230] sm:$0xff]
        %v545 = vld [vmem:[%s440 + $0x238] sm:$0xff]
        %v546 = vld [vmem:[%s440 + $0x240] sm:$0xff]
        %v547 = vld [vmem:[%s440 + $0x280] sm:$0xff]
        %v548 = vld [vmem:[%s440 + $0x288] sm:$0xff]
        %v549 = vld [vmem:[%s440 + $0x290] sm:$0xff]
        %v550 = vld [vmem:[%s440 + $0x2d0] sm:$0xff]
        %v551 = vld [vmem:[%s440 + $0x2d8] sm:$0xff]
        %v552 = vld [vmem:[%s440 + $0x2e0] sm:$0xff]
        %v553 = vld [vmem:[%s440 + $0x320] sm:$0xff]
        %v554 = vld [vmem:[%s440 + $0x328] sm:$0xff]
        %v555 = vld [vmem:[%s440 + $0x330] sm:$0xff]
        %v556 = vld [vmem:[%s440 + $0x370] sm:$0xff]
        %v557 = vld [vmem:[%s440 + $0x378] sm:$0xff]
        %v558 = vld [vmem:[%s440 + $0x380] sm:$0xff]
        %v559 = vld [vmem:[%s440 + $0x3c0] sm:$0xff]
        %v560 = vld [vmem:[%s440 + $0x3c8] sm:$0xff]
        %v561 = vld [vmem:[%s440 + $0x3d0] sm:$0xff]
        %v562 = vld [vmem:[%s440 + $0x410] sm:$0xff]
        %v563 = vld [vmem:[%s440 + $0x418] sm:$0xff]
        %v564 = vld [vmem:[%s440 + $0x420] sm:$0xff]
        %v565 = vld [vmem:[%s440 + $0x460] sm:$0xff]
        %v566 = vld [vmem:[%s440 + $0x468] sm:$0xff]
        %v567 = vld [vmem:[%s440 + $0x470] sm:$0xff]
        %v568 = vld [vmem:[%s440 + $0x4b0] sm:$0xff]
        %v569 = vld [vmem:[%s440 + $0x4b8] sm:$0xff]
        %v570 = vld [vmem:[%s440 + $0x4c0] sm:$0xff]
        %v571 = vld [vmem:[%s440 + $0x500] sm:$0xff]
        %v572 = vld [vmem:[%s440 + $0x508] sm:$0xff]
        %v573 = vld [vmem:[%s440 + $0x510] sm:$0xff]
        %v574 = vld [vmem:[%s440 + $0x550] sm:$0xff]
        %v575 = vld [vmem:[%s440 + $0x558] sm:$0xff]
        %v576 = vld [vmem:[%s440 + $0x560] sm:$0xff]
        %v577 = vld [vmem:[%s440 + $0x5a0] sm:$0xff]
        %v578 = vld [vmem:[%s440 + $0x5a8] sm:$0xff]
        %v579 = vld [vmem:[%s440 + $0x5b0] sm:$0xff]
        %v580 = vld [vmem:[%s440 + $0x5f0] sm:$0xff]
        %v581 = vld [vmem:[%s440 + $0x5f8] sm:$0xff]
        %v582 = vld [vmem:[%s440 + $0x600] sm:$0xff]
        %v583 = vld [vmem:[%s440 + $0x640] sm:$0xff]
        %v584 = vld [vmem:[%s440 + $0x648] sm:$0xff]
        %v585 = vld [vmem:[%s440 + $0x650] sm:$0xff]
        %v586 = vld [vmem:[%s440 + $0x690] sm:$0xff]
        %v587 = vld [vmem:[%s440 + $0x698] sm:$0xff]
        %v588 = vld [vmem:[%s440 + $0x6a0] sm:$0xff]
        %v589 = vld [vmem:[%s440 + $0x6e0] sm:$0xff]
        %v590 = vld [vmem:[%s440 + $0x6e8] sm:$0xff]
        %v591 = vld [vmem:[%s440 + $0x6f0] sm:$0xff]
        %v592 = vld [vmem:[%s440 + $0x730] sm:$0xff]
        %v593 = vld [vmem:[%s440 + $0x738] sm:$0xff]
        %v594 = vld [vmem:[%s440 + $0x740] sm:$0xff]
        %v595 = vld [vmem:[%s440 + $0x780] sm:$0xff]
        %v596 = vld [vmem:[%s440 + $0x788] sm:$0xff]
        %v597 = vld [vmem:[%s440 + $0x790] sm:$0xff]
        %v598 = vld [vmem:[%s440 + $0x7d0] sm:$0xff]
        %v599 = vld [vmem:[%s440 + $0x7d8] sm:$0xff]
        %v600 = vld [vmem:[%s440 + $0x7e0] sm:$0xff]
        %v601 = vld [vmem:[%s440 + $0x820] sm:$0xff]
        %v602 = vld [vmem:[%s440 + $0x828] sm:$0xff]
        %v603 = vld [vmem:[%s440 + $0x830] sm:$0xff]
        %v604 = vld [vmem:[%s440 + $0x870] sm:$0xff]
        %v605 = vld [vmem:[%s440 + $0x878] sm:$0xff]
        %v606 = vld [vmem:[%s440 + $0x880] sm:$0xff]
        %v607 = vld [vmem:[%s440 + $0x8c0] sm:$0xff]
        %v608 = vld [vmem:[%s440 + $0x8c8] sm:$0xff]
        %v609 = vld [vmem:[%s440 + $0x8d0] sm:$0xff]
        %v610 = vld [vmem:[%s440 + $0x910] sm:$0xff]
        %v611 = vld [vmem:[%s440 + $0x918] sm:$0xff]
        %v612 = vld [vmem:[%s440 + $0x920] sm:$0xff]
        %v613 = vld [vmem:[%s440 + $0x960] sm:$0xff]
        %v614 = vld [vmem:[%s440 + $0x968] sm:$0xff]
        %v615 = vld [vmem:[%s440 + $0x970] sm:$0xff]
        %v616 = vld [vmem:[%s440 + $0x9b0] sm:$0xff]
        %v617 = vld [vmem:[%s440 + $0x9b8] sm:$0xff]
        %v618 = vld [vmem:[%s440 + $0x9c0] sm:$0xff]
        %v619 = vld [vmem:[%s458] sm:$0x3f]
        %v621 = vlaneseq
        %v622 = vshrl.u32 %v621, 7
        %v623 = vsub.s32 0, %v622
        %v624 = vrot.slane %v619, %v623
        %v625 = vlaneseq
        %v626 = vshrl.u32 %v625, 7
        %v627 = vsub.s32 1, %v626
        %v628 = vrot.slane %v619, %v627
        %v629 = vlaneseq
        %v630 = vshrl.u32 %v629, 7
        %v631 = vsub.s32 2, %v630
        %v632 = vrot.slane %v619, %v631
        %v633 = vlaneseq
        %v634 = vshrl.u32 %v633, 7
        %v635 = vsub.s32 3, %v634
        %v636 = vrot.slane %v619, %v635
        %v637 = vlaneseq
        %v638 = vshrl.u32 %v637, 7
        %v639 = vsub.s32 4, %v638
        %v640 = vrot.slane %v619, %v639
        %v641 = vlaneseq
        %v642 = vshrl.u32 %v641, 7
        %v643 = vsub.s32 5, %v642
        %v644 = vrot.slane %v619, %v643
        %v747 = vunpack.c.l.b16 %v523
        %v748 = vunpack.c.h.b16 %v523
        %v749 = vunpack.c.l.b16 %v524
        %v750 = vunpack.c.h.b16 %v524
        %v751 = vunpack.c.l.b16 %v525
        %v752 = vunpack.c.h.b16 %v525
        %v753 = vunpack.c.l.b16 %v526
        %v754 = vunpack.c.h.b16 %v526
        %v755 = vunpack.c.l.b16 %v527
        %v756 = vunpack.c.h.b16 %v527
        %v757 = vunpack.c.l.b16 %v528
        %v758 = vunpack.c.h.b16 %v528
        %v759 = vunpack.c.l.b16 %v529
        %v760 = vunpack.c.h.b16 %v529
        %v761 = vunpack.c.l.b16 %v530
        %v762 = vunpack.c.h.b16 %v530
        %v763 = vunpack.c.l.b16 %v531
        %v764 = vunpack.c.h.b16 %v531
        %v765 = vunpack.c.l.b16 %v532
        %v766 = vunpack.c.h.b16 %v532
        %v767 = vunpack.c.l.b16 %v533
        %v768 = vunpack.c.h.b16 %v533
        %v769 = vunpack.c.l.b16 %v534
        %v770 = vunpack.c.h.b16 %v534
        %v771 = vunpack.c.l.b16 %v535
        %v772 = vunpack.c.h.b16 %v535
        %v773 = vunpack.c.l.b16 %v536
        %v774 = vunpack.c.h.b16 %v536
        %v775 = vunpack.c.l.b16 %v537
        %v776 = vunpack.c.h.b16 %v537
        %v777 = vunpack.c.l.b16 %v538
        %v778 = vunpack.c.h.b16 %v538
        %v779 = vunpack.c.l.b16 %v539
        %v780 = vunpack.c.h.b16 %v539
        %v781 = vunpack.c.l.b16 %v540
        %v782 = vunpack.c.h.b16 %v540
        %v783 = vunpack.c.l.b16 %v541
        %v784 = vunpack.c.h.b16 %v541
        %v785 = vunpack.c.l.b16 %v542
        %v786 = vunpack.c.h.b16 %v542
        %v787 = vunpack.c.l.b16 %v543
        %v788 = vunpack.c.h.b16 %v543
        %v789 = vunpack.c.l.b16 %v544
        %v790 = vunpack.c.h.b16 %v544
        %v791 = vunpack.c.l.b16 %v545
        %v792 = vunpack.c.h.b16 %v545
        %v793 = vunpack.c.l.b16 %v546
        %v794 = vunpack.c.h.b16 %v546
        %v795 = vunpack.c.l.b16 %v547
        %v796 = vunpack.c.h.b16 %v547
        %v797 = vunpack.c.l.b16 %v548
        %v798 = vunpack.c.h.b16 %v548
        %v799 = vunpack.c.l.b16 %v549
        %v800 = vunpack.c.h.b16 %v549
        %v801 = vunpack.c.l.b16 %v550
        %v802 = vunpack.c.h.b16 %v550
        %v803 = vunpack.c.l.b16 %v551
        %v804 = vunpack.c.h.b16 %v551
        %v805 = vunpack.c.l.b16 %v552
        %v806 = vunpack.c.h.b16 %v552
        %v807 = vunpack.c.l.b16 %v553
        %v808 = vunpack.c.h.b16 %v553
        %v809 = vunpack.c.l.b16 %v554
        %v810 = vunpack.c.h.b16 %v554
        %v811 = vunpack.c.l.b16 %v555
        %v812 = vunpack.c.h.b16 %v555
        %v813 = vunpack.c.l.b16 %v556
        %v814 = vunpack.c.h.b16 %v556
        %v815 = vunpack.c.l.b16 %v557
        %v816 = vunpack.c.h.b16 %v557
        %v817 = vunpack.c.l.b16 %v558
        %v818 = vunpack.c.h.b16 %v558
        %v819 = vunpack.c.l.b16 %v559
        %v820 = vunpack.c.h.b16 %v559
        %v821 = vunpack.c.l.b16 %v560
        %v822 = vunpack.c.h.b16 %v560
        %v823 = vunpack.c.l.b16 %v561
        %v824 = vunpack.c.h.b16 %v561
        %v825 = vunpack.c.l.b16 %v562
        %v826 = vunpack.c.h.b16 %v562
        %v827 = vunpack.c.l.b16 %v563
        %v828 = vunpack.c.h.b16 %v563
        %v829 = vunpack.c.l.b16 %v564
        %v830 = vunpack.c.h.b16 %v564
        %v831 = vunpack.c.l.b16 %v565
        %v832 = vunpack.c.h.b16 %v565
        %v833 = vunpack.c.l.b16 %v566
        %v834 = vunpack.c.h.b16 %v566
        %v835 = vunpack.c.l.b16 %v567
        %v836 = vunpack.c.h.b16 %v567
        %v837 = vunpack.c.l.b16 %v568
        %v838 = vunpack.c.h.b16 %v568
        %v839 = vunpack.c.l.b16 %v569
        %v840 = vunpack.c.h.b16 %v569
        %v841 = vunpack.c.l.b16 %v570
        %v842 = vunpack.c.h.b16 %v570
        %v843 = vunpack.c.l.b16 %v571
        %v844 = vunpack.c.h.b16 %v571
        %v845 = vunpack.c.l.b16 %v572
        %v846 = vunpack.c.h.b16 %v572
        %v847 = vunpack.c.l.b16 %v573
        %v848 = vunpack.c.h.b16 %v573
        %v849 = vunpack.c.l.b16 %v574
        %v850 = vunpack.c.h.b16 %v574
        %v851 = vunpack.c.l.b16 %v575
        %v852 = vunpack.c.h.b16 %v575
        %v853 = vunpack.c.l.b16 %v576
        %v854 = vunpack.c.h.b16 %v576
        %v855 = vunpack.c.l.b16 %v577
        %v856 = vunpack.c.h.b16 %v577
        %v857 = vunpack.c.l.b16 %v578
        %v858 = vunpack.c.h.b16 %v578
        %v859 = vunpack.c.l.b16 %v579
        %v860 = vunpack.c.h.b16 %v579
        %v861 = vunpack.c.l.b16 %v580
        %v862 = vunpack.c.h.b16 %v580
        %v863 = vunpack.c.l.b16 %v581
        %v864 = vunpack.c.h.b16 %v581
        %v865 = vunpack.c.l.b16 %v582
        %v866 = vunpack.c.h.b16 %v582
        %v867 = vunpack.c.l.b16 %v583
        %v868 = vunpack.c.h.b16 %v583
        %v869 = vunpack.c.l.b16 %v584
        %v870 = vunpack.c.h.b16 %v584
        %v871 = vunpack.c.l.b16 %v585
        %v872 = vunpack.c.h.b16 %v585
        %v873 = vunpack.c.l.b16 %v586
        %v874 = vunpack.c.h.b16 %v586
        %v875 = vunpack.c.l.b16 %v587
        %v876 = vunpack.c.h.b16 %v587
        %v877 = vunpack.c.l.b16 %v588
        %v878 = vunpack.c.h.b16 %v588
        %v879 = vunpack.c.l.b16 %v589
        %v880 = vunpack.c.h.b16 %v589
        %v881 = vunpack.c.l.b16 %v590
        %v882 = vunpack.c.h.b16 %v590
        %v883 = vunpack.c.l.b16 %v591
        %v884 = vunpack.c.h.b16 %v591
        %v885 = vunpack.c.l.b16 %v592
        %v886 = vunpack.c.h.b16 %v592
        %v887 = vunpack.c.l.b16 %v593
        %v888 = vunpack.c.h.b16 %v593
        %v889 = vunpack.c.l.b16 %v594
        %v890 = vunpack.c.h.b16 %v594
        %v891 = vunpack.c.l.b16 %v595
        %v892 = vunpack.c.h.b16 %v595
        %v893 = vunpack.c.l.b16 %v596
        %v894 = vunpack.c.h.b16 %v596
        %v895 = vunpack.c.l.b16 %v597
        %v896 = vunpack.c.h.b16 %v597
        %v897 = vunpack.c.l.b16 %v598
        %v898 = vunpack.c.h.b16 %v598
        %v899 = vunpack.c.l.b16 %v599
        %v900 = vunpack.c.h.b16 %v599
        %v901 = vunpack.c.l.b16 %v600
        %v902 = vunpack.c.h.b16 %v600
        %v903 = vunpack.c.l.b16 %v601
        %v904 = vunpack.c.h.b16 %v601
        %v905 = vunpack.c.l.b16 %v602
        %v906 = vunpack.c.h.b16 %v602
        %v907 = vunpack.c.l.b16 %v603
        %v908 = vunpack.c.h.b16 %v603
        %v909 = vunpack.c.l.b16 %v604
        %v910 = vunpack.c.h.b16 %v604
        %v911 = vunpack.c.l.b16 %v605
        %v912 = vunpack.c.h.b16 %v605
        %v913 = vunpack.c.l.b16 %v606
        %v914 = vunpack.c.h.b16 %v606
        %v915 = vunpack.c.l.b16 %v607
        %v916 = vunpack.c.h.b16 %v607
        %v917 = vunpack.c.l.b16 %v608
        %v918 = vunpack.c.h.b16 %v608
        %v919 = vunpack.c.l.b16 %v609
        %v920 = vunpack.c.h.b16 %v609
        %v921 = vunpack.c.l.b16 %v610
        %v922 = vunpack.c.h.b16 %v610
        %v923 = vunpack.c.l.b16 %v611
        %v924 = vunpack.c.h.b16 %v611
        %v925 = vunpack.c.l.b16 %v612
        %v926 = vunpack.c.h.b16 %v612
        %v927 = vunpack.c.l.b16 %v613
        %v928 = vunpack.c.h.b16 %v613
        %v929 = vunpack.c.l.b16 %v614
        %v930 = vunpack.c.h.b16 %v614
        %v931 = vunpack.c.l.b16 %v615
        %v932 = vunpack.c.h.b16 %v615
        %v933 = vunpack.c.l.b16 %v616
        %v934 = vunpack.c.h.b16 %v616
        %v935 = vunpack.c.l.b16 %v617
        %v936 = vunpack.c.h.b16 %v617
        %v937 = vunpack.c.l.b16 %v618
        %v938 = vunpack.c.h.b16 %v618
        %v939 = vpack.c.b16 %v753, %v747
        %v940 = vpack.c.b16 %v754, %v748
        %v941 = vpack.c.b16 %v755, %v749
        %v942 = vpack.c.b16 %v756, %v750
        %v943 = vpack.c.b16 %v757, %v751
        %v944 = vpack.c.b16 %v758, %v752
        %v945 = vpack.c.b16 %v765, %v759
        %v946 = vpack.c.b16 %v766, %v760
        %v947 = vpack.c.b16 %v767, %v761
        %v948 = vpack.c.b16 %v768, %v762
        %v949 = vpack.c.b16 %v769, %v763
        %v950 = vpack.c.b16 %v770, %v764
        %v951 = vpack.c.b16 %v777, %v771
        %v952 = vpack.c.b16 %v778, %v772
        %v953 = vpack.c.b16 %v779, %v773
        %v954 = vpack.c.b16 %v780, %v774
        %v955 = vpack.c.b16 %v781, %v775
        %v956 = vpack.c.b16 %v782, %v776
        %v957 = vpack.c.b16 %v789, %v783
        %v958 = vpack.c.b16 %v790, %v784
        %v959 = vpack.c.b16 %v791, %v785
        %v960 = vpack.c.b16 %v792, %v786
        %v961 = vpack.c.b16 %v793, %v787
        %v962 = vpack.c.b16 %v794, %v788
        %v963 = vpack.c.b16 %v801, %v795
        %v964 = vpack.c.b16 %v802, %v796
        %v965 = vpack.c.b16 %v803, %v797
        %v966 = vpack.c.b16 %v804, %v798
        %v967 = vpack.c.b16 %v805, %v799
        %v968 = vpack.c.b16 %v806, %v800
        %v969 = vpack.c.b16 %v813, %v807
        %v970 = vpack.c.b16 %v814, %v808
        %v971 = vpack.c.b16 %v815, %v809
        %v972 = vpack.c.b16 %v816, %v810
        %v973 = vpack.c.b16 %v817, %v811
        %v974 = vpack.c.b16 %v818, %v812
        %v975 = vpack.c.b16 %v825, %v819
        %v976 = vpack.c.b16 %v826, %v820
        %v977 = vpack.c.b16 %v827, %v821
        %v978 = vpack.c.b16 %v828, %v822
        %v979 = vpack.c.b16 %v829, %v823
        %v980 = vpack.c.b16 %v830, %v824
        %v981 = vpack.c.b16 %v837, %v831
        %v982 = vpack.c.b16 %v838, %v832
        %v983 = vpack.c.b16 %v839, %v833
        %v984 = vpack.c.b16 %v840, %v834
        %v985 = vpack.c.b16 %v841, %v835
        %v986 = vpack.c.b16 %v842, %v836
        %v987 = vpack.c.b16 %v849, %v843
        %v988 = vpack.c.b16 %v850, %v844
        %v989 = vpack.c.b16 %v851, %v845
        %v990 = vpack.c.b16 %v852, %v846
        %v991 = vpack.c.b16 %v853, %v847
        %v992 = vpack.c.b16 %v854, %v848
        %v993 = vpack.c.b16 %v861, %v855
        %v994 = vpack.c.b16 %v862, %v856
        %v995 = vpack.c.b16 %v863, %v857
        %v996 = vpack.c.b16 %v864, %v858
        %v997 = vpack.c.b16 %v865, %v859
        %v998 = vpack.c.b16 %v866, %v860
        %v999 = vpack.c.b16 %v873, %v867
        %v1000 = vpack.c.b16 %v874, %v868
        %v1001 = vpack.c.b16 %v875, %v869
        %v1002 = vpack.c.b16 %v876, %v870
        %v1003 = vpack.c.b16 %v877, %v871
        %v1004 = vpack.c.b16 %v878, %v872
        %v1005 = vpack.c.b16 %v885, %v879
        %v1006 = vpack.c.b16 %v886, %v880
        %v1007 = vpack.c.b16 %v887, %v881
        %v1008 = vpack.c.b16 %v888, %v882
        %v1009 = vpack.c.b16 %v889, %v883
        %v1010 = vpack.c.b16 %v890, %v884
        %v1011 = vpack.c.b16 %v897, %v891
        %v1012 = vpack.c.b16 %v898, %v892
        %v1013 = vpack.c.b16 %v899, %v893
        %v1014 = vpack.c.b16 %v900, %v894
        %v1015 = vpack.c.b16 %v901, %v895
        %v1016 = vpack.c.b16 %v902, %v896
        %v1017 = vpack.c.b16 %v909, %v903
        %v1018 = vpack.c.b16 %v910, %v904
        %v1019 = vpack.c.b16 %v911, %v905
        %v1020 = vpack.c.b16 %v912, %v906
        %v1021 = vpack.c.b16 %v913, %v907
        %v1022 = vpack.c.b16 %v914, %v908
        %v1023 = vpack.c.b16 %v921, %v915
        %v1024 = vpack.c.b16 %v922, %v916
        %v1025 = vpack.c.b16 %v923, %v917
        %v1026 = vpack.c.b16 %v924, %v918
        %v1027 = vpack.c.b16 %v925, %v919
        %v1028 = vpack.c.b16 %v926, %v920
        %v1029 = vpack.c.b16 %v933, %v927
        %v1030 = vpack.c.b16 %v934, %v928
        %v1031 = vpack.c.b16 %v935, %v929
        %v1032 = vpack.c.b16 %v936, %v930
        %v1033 = vpack.c.b16 %v937, %v931
        %v1034 = vpack.c.b16 %v938, %v932
        %1131 = vmatprep.subr.bf16.mxu0 %v982
        %1132 = vmatpush1.bf16.msra.mxu0 %v981
        %1133 = vmatprep.subr.bf16.mxu0 %v976
        %1134 = vmatpush1.bf16.msra.mxu0 %v975
        %1135 = vmatprep.subr.bf16.mxu0 %v970
        %1136 = vmatpush1.bf16.msra.mxu0 %v969
        %1137 = vmatprep.subr.bf16.mxu0 %v964
        %1138 = vmatpush1.bf16.msra.mxu0 %v963
        %1139 = vmatprep.subr.bf16.mxu0 %v958
        %1140 = vmatpush1.bf16.msra.mxu0 %v957
        %1141 = vmatprep.subr.bf16.mxu0 %v952
        %1142 = vmatpush1.bf16.msra.mxu0 %v951
        %1143 = vmatprep.subr.bf16.mxu0 %v946
        %1144 = vmatpush1.bf16.msra.mxu0 %v945
        %1145 = vmatprep.subr.bf16.mxu0 %v940
        %1146 = vmatpush1.bf16.msra.mxu0 %v939
        %1147 = vmatprep.subr.bf16.mxu0 %v1030
        %1148 = vmatpush2.bf16.msra.mxu0 %v1029
        %1149 = vmatprep.subr.bf16.mxu0 %v1024
        %1150 = vmatpush2.bf16.msra.mxu0 %v1023
        %1151 = vmatprep.subr.bf16.mxu0 %v1018
        %1152 = vmatpush2.bf16.msra.mxu0 %v1017
        %1153 = vmatprep.subr.bf16.mxu0 %v1012
        %1154 = vmatpush2.bf16.msra.mxu0 %v1011
        %1155 = vmatprep.subr.bf16.mxu0 %v1006
        %1156 = vmatpush2.bf16.msra.mxu0 %v1005
        %1157 = vmatprep.subr.bf16.mxu0 %v1000
        %1158 = vmatpush2.bf16.msra.mxu0 %v999
        %1159 = vmatprep.subr.bf16.mxu0 %v994
        %1160 = vmatpush2.bf16.msra.mxu0 %v993
        %1161 = vmatprep.subr.bf16.mxu0 %v988
        %1162 = vmatpush2.bf16.msra.mxu0 %v987
        %1163 = vmatprep.mubr.bf16.mxu0 %v522
        %1164 = vmatmul.mubr.bf16.gmra.mxu0 %v521
        %v1165 = vpop.f32.mrf.mxu0
        %v1166 = vadd.f32 %v624, %v1165
        %v1167 = vpop.f32.mrf.mxu0
        %v1168 = vadd.f32 %v628, %v1167
        %v1169 = vpop.f32.mrf.mxu0
        %v1170 = vpop.f32.mrf.mxu0
        %1171 = vdwg.mxu0
        %1172 = vmatprep.subr.bf16.mxu0 %v984
        %1173 = vmatpush1.bf16.msra.mxu0 %v983
        %1174 = vmatprep.subr.bf16.mxu0 %v978
        %1175 = vmatpush1.bf16.msra.mxu0 %v977
        %1176 = vmatprep.subr.bf16.mxu0 %v972
        %1177 = vmatpush1.bf16.msra.mxu0 %v971
        %1178 = vmatprep.subr.bf16.mxu0 %v966
        %1179 = vmatpush1.bf16.msra.mxu0 %v965
        %1180 = vmatprep.subr.bf16.mxu0 %v960
        %1181 = vmatpush1.bf16.msra.mxu0 %v959
        %1182 = vmatprep.subr.bf16.mxu0 %v954
        %1183 = vmatpush1.bf16.msra.mxu0 %v953
        %1184 = vmatprep.subr.bf16.mxu0 %v948
        %1185 = vmatpush1.bf16.msra.mxu0 %v947
        %1186 = vmatprep.subr.bf16.mxu0 %v942
        %1187 = vmatpush1.bf16.msra.mxu0 %v941
        %1188 = vmatprep.subr.bf16.mxu0 %v1032
        %1189 = vmatpush2.bf16.msra.mxu0 %v1031
        %1190 = vmatprep.subr.bf16.mxu0 %v1026
        %1191 = vmatpush2.bf16.msra.mxu0 %v1025
        %1192 = vmatprep.subr.bf16.mxu0 %v1020
        %1193 = vmatpush2.bf16.msra.mxu0 %v1019
        %1194 = vmatprep.subr.bf16.mxu0 %v1014
        %1195 = vmatpush2.bf16.msra.mxu0 %v1013
        %1196 = vmatprep.subr.bf16.mxu0 %v1008
        %1197 = vmatpush2.bf16.msra.mxu0 %v1007
        %1198 = vmatprep.subr.bf16.mxu0 %v1002
        %1199 = vmatpush2.bf16.msra.mxu0 %v1001
        %1200 = vmatprep.subr.bf16.mxu0 %v996
        %1201 = vmatpush2.bf16.msra.mxu0 %v995
        %1202 = vmatprep.subr.bf16.mxu0 %v990
        %1203 = vmatpush2.bf16.msra.mxu0 %v989
        %1204 = vmatprep.mubr.bf16.mxu0 %v522
        %1205 = vmatmul.mubr.bf16.gmra.mxu0 %v521
        %v1206 = vpop.f32.mrf.mxu0
        %v1207 = vadd.f32 %v632, %v1206
        %v1208 = vpop.f32.mrf.mxu0
        %v1209 = vadd.f32 %v636, %v1208
        %v1210 = vpop.f32.mrf.mxu0
        %v1211 = vpop.f32.mrf.mxu0
        %1212 = vdwg.mxu0
        %1213 = vmatprep.subr.bf16.mxu0 %v986
        %1214 = vmatpush1.bf16.msra.mxu0 %v985
        %1215 = vmatprep.subr.bf16.mxu0 %v980
        %1216 = vmatpush1.bf16.msra.mxu0 %v979
        %1217 = vmatprep.subr.bf16.mxu0 %v974
        %1218 = vmatpush1.bf16.msra.mxu0 %v973
        %1219 = vmatprep.subr.bf16.mxu0 %v968
        %1220 = vmatpush1.bf16.msra.mxu0 %v967
        %1221 = vmatprep.subr.bf16.mxu0 %v962
        %1222 = vmatpush1.bf16.msra.mxu0 %v961
        %1223 = vmatprep.subr.bf16.mxu0 %v956
        %1224 = vmatpush1.bf16.msra.mxu0 %v955
        %1225 = vmatprep.subr.bf16.mxu0 %v950
        %1226 = vmatpush1.bf16.msra.mxu0 %v949
        %1227 = vmatprep.subr.bf16.mxu0 %v944
        %1228 = vmatpush1.bf16.msra.mxu0 %v943
        %1229 = vmatprep.subr.bf16.mxu0 %v1034
        %1230 = vmatpush2.bf16.msra.mxu0 %v1033
        %1231 = vmatprep.subr.bf16.mxu0 %v1028
        %1232 = vmatpush2.bf16.msra.mxu0 %v1027
        %1233 = vmatprep.subr.bf16.mxu0 %v1022
        %1234 = vmatpush2.bf16.msra.mxu0 %v1021
        %1235 = vmatprep.subr.bf16.mxu0 %v1016
        %1236 = vmatpush2.bf16.msra.mxu0 %v1015
        %1237 = vmatprep.subr.bf16.mxu0 %v1010
        %1238 = vmatpush2.bf16.msra.mxu0 %v1009
        %1239 = vmatprep.subr.bf16.mxu0 %v1004
        %1240 = vmatpush2.bf16.msra.mxu0 %v1003
        %1241 = vmatprep.subr.bf16.mxu0 %v998
        %1242 = vmatpush2.bf16.msra.mxu0 %v997
        %1243 = vmatprep.subr.bf16.mxu0 %v992
        %1244 = vmatpush2.bf16.msra.mxu0 %v991
        %1245 = vmatprep.mubr.bf16.mxu0 %v522
        %1246 = vmatmul.mubr.bf16.gmra.mxu0 %v521
        %v1247 = vpop.f32.mrf.mxu0
        %v1248 = vadd.f32 %v640, %v1247
        %v1249 = vpop.f32.mrf.mxu0
        %v1250 = vadd.f32 %v644, %v1249
        %v1251 = vpop.f32.mrf.mxu0
        %v1252 = vpop.f32.mrf.mxu0
        %1253 = vdwg.mxu0
        %v1254 = vld [vmem:[%s2] sm:$0xff]
        %v1255 = vld [vmem:[%s3] sm:$0xff]
        %v1256 = vld [vmem:[%s458 + $0x6] sm:$0x3]
        %1257 = vmatprep.subr.mxu0 0.0
        %1258 = vmatpush1.xpose.msra.mxu0 0.0
        %1259 = vmatprep.subr.mxu0 0.0
        %1260 = vmatpush1.xpose.msra.mxu0 0.0
        %1261 = vmatprep.subr.mxu0 0.0
        %1262 = vmatpush1.xpose.msra.mxu0 0.0
        %1263 = vmatprep.subr.mxu0 0.0
        %1264 = vmatpush1.xpose.msra.mxu0 0.0
        %1265 = vmatprep.subr.mxu0 0.0
        %1266 = vmatpush1.xpose.msra.mxu0 0.0
        %1267 = vmatprep.subr.mxu0 0.0
        %1268 = vmatpush1.xpose.msra.mxu0 0.0
        %1269 = vmatprep.subr.mxu0 0.0
        %1270 = vmatpush1.xpose.msra.mxu0 0.0
        %1271 = vmatprep.subr.mxu0 0.0
        %1272 = vmatpush1.xpose.msra.mxu0 0.0
        %1273 = vmatprep.subr.mxu0 0.0
        %1274 = vmatpush1.xpose.msra.mxu0 0.0
        %1275 = vmatprep.subr.mxu0 0.0
        %1276 = vmatpush1.xpose.msra.mxu0 0.0
        %1277 = vmatprep.subr.mxu0 0.0
        %1278 = vmatpush1.xpose.msra.mxu0 0.0
        %1279 = vmatprep.subr.mxu0 0.0
        %1280 = vmatpush1.xpose.msra.mxu0 0.0
        %1281 = vmatprep.subr.mxu0 0.0
        %1282 = vmatpush1.xpose.msra.mxu0 0.0
        %1283 = vmatprep.subr.mxu0 0.0
        %1284 = vmatpush1.xpose.msra.mxu0 0.0
        %1285 = vmatprep.subr.mxu0 0.0
        %1286 = vmatpush1.xpose.msra.mxu0 0.0
        %1287 = vmatprep.subr.mxu0 0.0
        %1288 = vmatpush1.xpose.msra.mxu0 %v1207
        %1289 = vmatprep.subr.mxu0 0.0
        %1290 = vmatpush2.xpose.msra.mxu0 0.0
        %1291 = vmatprep.subr.mxu0 0.0
        %1292 = vmatpush2.xpose.msra.mxu0 0.0
        %1293 = vmatprep.subr.mxu0 0.0
        %1294 = vmatpush2.xpose.msra.mxu0 0.0
        %1295 = vmatprep.subr.mxu0 0.0
        %1296 = vmatpush2.xpose.msra.mxu0 0.0
        %1297 = vmatprep.subr.mxu0 0.0
        %1298 = vmatpush2.xpose.msra.mxu0 0.0
        %1299 = vmatprep.subr.mxu0 0.0
        %1300 = vmatpush2.xpose.msra.mxu0 0.0
        %1301 = vmatprep.subr.mxu0 0.0
        %1302 = vmatpush2.xpose.msra.mxu0 0.0
        %1303 = vmatprep.subr.mxu0 0.0
        %1304 = vmatpush2.xpose.msra.mxu0 0.0
        %1305 = vmatprep.subr.mxu0 0.0
        %1306 = vmatpush2.xpose.msra.mxu0 0.0
        %1307 = vmatprep.subr.mxu0 0.0
        %1308 = vmatpush2.xpose.msra.mxu0 0.0
        %1309 = vmatprep.subr.mxu0 0.0
        %1310 = vmatpush2.xpose.msra.mxu0 0.0
        %1311 = vmatprep.subr.mxu0 0.0
        %1312 = vmatpush2.xpose.msra.mxu0 0.0
        %1313 = vmatprep.subr.mxu0 0.0
        %1314 = vmatpush2.xpose.msra.mxu0 0.0
        %1315 = vmatprep.subr.mxu0 0.0
        %1316 = vmatpush2.xpose.msra.mxu0 0.0
        %1317 = vmatprep.subr.mxu0 0.0
        %1318 = vmatpush2.xpose.msra.mxu0 0.0
        %1319 = vmatprep.subr.mxu0 0.0
        %1320 = vmatpush2.xpose.msra.mxu0 0.0
        %1321 = vmatprep.mubr.f32.mxu0 0.0
        %1322 = vmatmul.mubr.f32.gmra.mxu0 %v1166
        %v1323 = vpop.f32.mrf.mxu0
        %v1324 = vadd.f32 0.0, %v1323
        %v1325 = vpop.f32.mrf.mxu0
        %1326 = vdwg.mxu0
        %v1327 = vmul.f32 %v1324, 0.088388346
        %v1328 = vmul.f32 %v1327, %v1254
        %v1329 = vadd.f32 %v1328, %v1255
        %vm1330 = vcmask 64512
        %v1331 = vsel %vm1330, %v1329, -inf
        %1332 = vmax.xlane.f32.xlu0 %v1331
        %v1333 = vpop.xlane.xlu0 %1332
        %v1334 = vsub.f32 %v1329, %v1333
        %v1335 = vmul.f32 %v1334, 1.442695
        %v1336 = vpow.pop %v1335
        %v1337 = vsel %vm1330, %v1336, 0.0
        %1338 = vadd.xlane.f32.xlu0 %v1337
        %v1339 = vpop.xlane.xlu0 %1338
        %v1340 = vrcp.pop %v1339
        %v1341 = vmul.f32 %v1336, %v1340
        %v1343 = vsel %vm1330, %v1341, 0
        %1345 = vmatprep.subr.mxu0 0.0
        %1346 = vmatpush1.msra.mxu0 0.0
        %1347 = vmatprep.subr.mxu0 0.0
        %1348 = vmatpush1.msra.mxu0 0.0
        %1349 = vmatprep.subr.mxu0 0.0
        %1350 = vmatpush1.msra.mxu0 0.0
        %1351 = vmatprep.subr.mxu0 0.0
        %1352 = vmatpush1.msra.mxu0 0.0
        %1353 = vmatprep.subr.mxu0 0.0
        %1354 = vmatpush1.msra.mxu0 0.0
        %1355 = vmatprep.subr.mxu0 0.0
        %1356 = vmatpush1.msra.mxu0 0.0
        %1357 = vmatprep.subr.mxu0 0.0
        %1358 = vmatpush1.msra.mxu0 0.0
        %1359 = vmatprep.subr.mxu0 0.0
        %1360 = vmatpush1.msra.mxu0 0.0
        %1361 = vmatprep.subr.mxu0 0.0
        %1362 = vmatpush1.msra.mxu0 0.0
        %1363 = vmatprep.subr.mxu0 0.0
        %1364 = vmatpush1.msra.mxu0 0.0
        %1365 = vmatprep.subr.mxu0 0.0
        %1366 = vmatpush1.msra.mxu0 0.0
        %1367 = vmatprep.subr.mxu0 0.0
        %1368 = vmatpush1.msra.mxu0 0.0
        %1369 = vmatprep.subr.mxu0 0.0
        %1370 = vmatpush1.msra.mxu0 0.0
        %1371 = vmatprep.subr.mxu0 0.0
        %1372 = vmatpush1.msra.mxu0 0.0
        %1373 = vmatprep.subr.mxu0 0.0
        %1374 = vmatpush1.msra.mxu0 0.0
        %1375 = vmatprep.subr.mxu0 0.0
        %1376 = vmatpush1.msra.mxu0 %v1248
        %1377 = vmatprep.subr.mxu0 0.0
        %1378 = vmatpush2.msra.mxu0 0.0
        %1379 = vmatprep.subr.mxu0 0.0
        %1380 = vmatpush2.msra.mxu0 0.0
        %1381 = vmatprep.subr.mxu0 0.0
        %1382 = vmatpush2.msra.mxu0 0.0
        %1383 = vmatprep.subr.mxu0 0.0
        %1384 = vmatpush2.msra.mxu0 0.0
        %1385 = vmatprep.subr.mxu0 0.0
        %1386 = vmatpush2.msra.mxu0 0.0
        %1387 = vmatprep.subr.mxu0 0.0
        %1388 = vmatpush2.msra.mxu0 0.0
        %1389 = vmatprep.subr.mxu0 0.0
        %1390 = vmatpush2.msra.mxu0 0.0
        %1391 = vmatprep.subr.mxu0 0.0
        %1392 = vmatpush2.msra.mxu0 0.0
        %1393 = vmatprep.subr.mxu0 0.0
        %1394 = vmatpush2.msra.mxu0 0.0
        %1395 = vmatprep.subr.mxu0 0.0
        %1396 = vmatpush2.msra.mxu0 0.0
        %1397 = vmatprep.subr.mxu0 0.0
        %1398 = vmatpush2.msra.mxu0 0.0
        %1399 = vmatprep.subr.mxu0 0.0
        %1400 = vmatpush2.msra.mxu0 0.0
        %1401 = vmatprep.subr.mxu0 0.0
        %1402 = vmatpush2.msra.mxu0 0.0
        %1403 = vmatprep.subr.mxu0 0.0
        %1404 = vmatpush2.msra.mxu0 0.0
        %1405 = vmatprep.subr.mxu0 0.0
        %1406 = vmatpush2.msra.mxu0 0.0
        %1407 = vmatprep.subr.mxu0 0.0
        %1408 = vmatpush2.msra.mxu0 0.0
        %1409 = vmatprep.mubr.f32.mxu0 0.0
        %1410 = vmatmul.mubr.f32.gmra.mxu0 %v1343
        %v1411 = vpop.f32.mrf.mxu0
        %v1412 = vadd.f32 0.0, %v1411
        %v1413 = vpop.f32.mrf.mxu0
        %1414 = vdwg.mxu0
        %v1415 = vld [vmem:[%s440 + $0x18] sm:$0xff]
        %v1416 = vld [vmem:[%s440 + $0x68] sm:$0xff]
        %v1417 = vld [vmem:[%s440 + $0xb8] sm:$0xff]
        %v1418 = vld [vmem:[%s440 + $0x108] sm:$0xff]
        %v1419 = vld [vmem:[%s440 + $0x158] sm:$0xff]
        %v1420 = vld [vmem:[%s440 + $0x1a8] sm:$0xff]
        %v1421 = vld [vmem:[%s440 + $0x1f8] sm:$0xff]
        %v1422 = vld [vmem:[%s440 + $0x248] sm:$0xff]
        %v1423 = vld [vmem:[%s440 + $0x298] sm:$0xff]
        %v1424 = vld [vmem:[%s440 + $0x2e8] sm:$0xff]
        %v1425 = vld [vmem:[%s440 + $0x338] sm:$0xff]
        %v1426 = vld [vmem:[%s440 + $0x388] sm:$0xff]
        %v1427 = vld [vmem:[%s440 + $0x3d8] sm:$0xff]
        %v1428 = vld [vmem:[%s440 + $0x428] sm:$0xff]
        %v1429 = vld [vmem:[%s440 + $0x478] sm:$0xff]
        %v1430 = vld [vmem:[%s440 + $0x4c8] sm:$0xff]
        %v1431 = vpack.c.bf16 %v1412, %v1412
        %1432 = vmatprep.subr.mxu0 0.0
        %1433 = vmatpush1.xpose.msra.mxu0 0.0
        %1434 = vmatprep.subr.mxu0 0.0
        %1435 = vmatpush1.xpose.msra.mxu0 0.0
        %1436 = vmatprep.subr.mxu0 0.0
        %1437 = vmatpush1.xpose.msra.mxu0 0.0
        %1438 = vmatprep.subr.mxu0 0.0
        %1439 = vmatpush1.xpose.msra.mxu0 0.0
        %1440 = vmatprep.subr.mxu0 0.0
        %1441 = vmatpush1.xpose.msra.mxu0 0.0
        %1442 = vmatprep.subr.mxu0 0.0
        %1443 = vmatpush1.xpose.msra.mxu0 0.0
        %1444 = vmatprep.subr.mxu0 0.0
        %1445 = vmatpush1.xpose.msra.mxu0 0.0
        %1446 = vmatprep.subr.mxu0 0.0
        %1447 = vmatpush1.xpose.msra.mxu0 0.0
        %1448 = vmatprep.subr.mxu0 0.0
        %1449 = vmatpush1.xpose.msra.mxu0 0.0
        %1450 = vmatprep.subr.mxu0 0.0
        %1451 = vmatpush1.xpose.msra.mxu0 0.0
        %1452 = vmatprep.subr.mxu0 0.0
        %1453 = vmatpush1.xpose.msra.mxu0 0.0
        %1454 = vmatprep.subr.mxu0 0.0
        %1455 = vmatpush1.xpose.msra.mxu0 0.0
        %1456 = vmatprep.subr.mxu0 0.0
        %1457 = vmatpush1.xpose.msra.mxu0 0.0
        %1458 = vmatprep.subr.mxu0 0.0
        %1459 = vmatpush1.xpose.msra.mxu0 0.0
        %1460 = vmatprep.subr.mxu0 0.0
        %1461 = vmatpush1.xpose.msra.mxu0 0.0
        %1462 = vmatprep.subr.mxu0 0.0
        %1463 = vmatpush1.xpose.msra.mxu0 %v1209
        %1464 = vmatprep.subr.mxu0 0.0
        %1465 = vmatpush2.xpose.msra.mxu0 0.0
        %1466 = vmatprep.subr.mxu0 0.0
        %1467 = vmatpush2.xpose.msra.mxu0 0.0
        %1468 = vmatprep.subr.mxu0 0.0
        %1469 = vmatpush2.xpose.msra.mxu0 0.0
        %1470 = vmatprep.subr.mxu0 0.0
        %1471 = vmatpush2.xpose.msra.mxu0 0.0
        %1472 = vmatprep.subr.mxu0 0.0
        %1473 = vmatpush2.xpose.msra.mxu0 0.0
        %1474 = vmatprep.subr.mxu0 0.0
        %1475 = vmatpush2.xpose.msra.mxu0 0.0
        %1476 = vmatprep.subr.mxu0 0.0
        %1477 = vmatpush2.xpose.msra.mxu0 0.0
        %1478 = vmatprep.subr.mxu0 0.0
        %1479 = vmatpush2.xpose.msra.mxu0 0.0
        %1480 = vmatprep.subr.mxu0 0.0
        %1481 = vmatpush2.xpose.msra.mxu0 0.0
        %1482 = vmatprep.subr.mxu0 0.0
        %1483 = vmatpush2.xpose.msra.mxu0 0.0
        %1484 = vmatprep.subr.mxu0 0.0
        %1485 = vmatpush2.xpose.msra.mxu0 0.0
        %1486 = vmatprep.subr.mxu0 0.0
        %1487 = vmatpush2.xpose.msra.mxu0 0.0
        %1488 = vmatprep.subr.mxu0 0.0
        %1489 = vmatpush2.xpose.msra.mxu0 0.0
        %1490 = vmatprep.subr.mxu0 0.0
        %1491 = vmatpush2.xpose.msra.mxu0 0.0
        %1492 = vmatprep.subr.mxu0 0.0
        %1493 = vmatpush2.xpose.msra.mxu0 0.0
        %1494 = vmatprep.subr.mxu0 0.0
        %1495 = vmatpush2.xpose.msra.mxu0 0.0
        %1496 = vmatprep.mubr.f32.mxu0 0.0
        %1497 = vmatmul.mubr.f32.gmra.mxu0 %v1168
        %v1498 = vpop.f32.mrf.mxu0
        %v1499 = vadd.f32 0.0, %v1498
        %v1500 = vpop.f32.mrf.mxu0
        %1501 = vdwg.mxu0
        %v1502 = vmul.f32 %v1499, 0.088388346
        %v1503 = vmul.f32 %v1502, %v1254
        %v1504 = vadd.f32 %v1503, %v1255
        %v1505 = vsel %vm1330, %v1504, -inf
        %1506 = vmax.xlane.f32.xlu0 %v1505
        %v1507 = vpop.xlane.xlu0 %1506
        %v1508 = vsub.f32 %v1504, %v1507
        %v1509 = vmul.f32 %v1508, 1.442695
        %v1510 = vpow.pop %v1509
        %v1511 = vsel %vm1330, %v1510, 0.0
        %1512 = vadd.xlane.f32.xlu0 %v1511
        %v1513 = vpop.xlane.xlu0 %1512
        %v1514 = vrcp.pop %v1513
        %v1515 = vmul.f32 %v1510, %v1514
        %v1517 = vsel %vm1330, %v1515, 0
        %1519 = vmatprep.subr.mxu0 0.0
        %1520 = vmatpush1.msra.mxu0 0.0
        %1521 = vmatprep.subr.mxu0 0.0
        %1522 = vmatpush1.msra.mxu0 0.0
        %1523 = vmatprep.subr.mxu0 0.0
        %1524 = vmatpush1.msra.mxu0 0.0
        %1525 = vmatprep.subr.mxu0 0.0
        %1526 = vmatpush1.msra.mxu0 0.0
        %1527 = vmatprep.subr.mxu0 0.0
        %1528 = vmatpush1.msra.mxu0 0.0
        %1529 = vmatprep.subr.mxu0 0.0
        %1530 = vmatpush1.msra.mxu0 0.0
        %1531 = vmatprep.subr.mxu0 0.0
        %1532 = vmatpush1.msra.mxu0 0.0
        %1533 = vmatprep.subr.mxu0 0.0
        %1534 = vmatpush1.msra.mxu0 0.0
        %1535 = vmatprep.subr.mxu0 0.0
        %1536 = vmatpush1.msra.mxu0 0.0
        %1537 = vmatprep.subr.mxu0 0.0
        %1538 = vmatpush1.msra.mxu0 0.0
        %1539 = vmatprep.subr.mxu0 0.0
        %1540 = vmatpush1.msra.mxu0 0.0
        %1541 = vmatprep.subr.mxu0 0.0
        %1542 = vmatpush1.msra.mxu0 0.0
        %1543 = vmatprep.subr.mxu0 0.0
        %1544 = vmatpush1.msra.mxu0 0.0
        %1545 = vmatprep.subr.mxu0 0.0
        %1546 = vmatpush1.msra.mxu0 0.0
        %1547 = vmatprep.subr.mxu0 0.0
        %1548 = vmatpush1.msra.mxu0 0.0
        %1549 = vmatprep.subr.mxu0 0.0
        %1550 = vmatpush1.msra.mxu0 %v1250
        %1551 = vmatprep.subr.mxu0 0.0
        %1552 = vmatpush2.msra.mxu0 0.0
        %1553 = vmatprep.subr.mxu0 0.0
        %1554 = vmatpush2.msra.mxu0 0.0
        %1555 = vmatprep.subr.mxu0 0.0
        %1556 = vmatpush2.msra.mxu0 0.0
        %1557 = vmatprep.subr.mxu0 0.0
        %1558 = vmatpush2.msra.mxu0 0.0
        %1559 = vmatprep.subr.mxu0 0.0
        %1560 = vmatpush2.msra.mxu0 0.0
        %1561 = vmatprep.subr.mxu0 0.0
        %1562 = vmatpush2.msra.mxu0 0.0
        %1563 = vmatprep.subr.mxu0 0.0
        %1564 = vmatpush2.msra.mxu0 0.0
        %1565 = vmatprep.subr.mxu0 0.0
        %1566 = vmatpush2.msra.mxu0 0.0
        %1567 = vmatprep.subr.mxu0 0.0
        %1568 = vmatpush2.msra.mxu0 0.0
        %1569 = vmatprep.subr.mxu0 0.0
        %1570 = vmatpush2.msra.mxu0 0.0
        %1571 = vmatprep.subr.mxu0 0.0
        %1572 = vmatpush2.msra.mxu0 0.0
        %1573 = vmatprep.subr.mxu0 0.0
        %1574 = vmatpush2.msra.mxu0 0.0
        %1575 = vmatprep.subr.mxu0 0.0
        %1576 = vmatpush2.msra.mxu0 0.0
        %1577 = vmatprep.subr.mxu0 0.0
        %1578 = vmatpush2.msra.mxu0 0.0
        %1579 = vmatprep.subr.mxu0 0.0
        %1580 = vmatpush2.msra.mxu0 0.0
        %1581 = vmatprep.subr.mxu0 0.0
        %1582 = vmatpush2.msra.mxu0 0.0
        %1583 = vmatprep.mubr.f32.mxu0 0.0
        %1584 = vmatmul.mubr.f32.gmra.mxu0 %v1517
        %v1585 = vpop.f32.mrf.mxu0
        %v1586 = vadd.f32 0.0, %v1585
        %v1587 = vpop.f32.mrf.mxu0
        %1588 = vdwg.mxu0
        %v1589 = vld [vmem:[%s440 + $0x518] sm:$0xff]
        %v1590 = vld [vmem:[%s440 + $0x568] sm:$0xff]
        %v1591 = vld [vmem:[%s440 + $0x5b8] sm:$0xff]
        %v1592 = vld [vmem:[%s440 + $0x608] sm:$0xff]
        %v1593 = vld [vmem:[%s440 + $0x658] sm:$0xff]
        %v1594 = vld [vmem:[%s440 + $0x6a8] sm:$0xff]
        %v1595 = vld [vmem:[%s440 + $0x6f8] sm:$0xff]
        %v1596 = vld [vmem:[%s440 + $0x748] sm:$0xff]
        %v1597 = vld [vmem:[%s440 + $0x798] sm:$0xff]
        %v1598 = vld [vmem:[%s440 + $0x7e8] sm:$0xff]
        %v1599 = vld [vmem:[%s440 + $0x838] sm:$0xff]
        %v1600 = vld [vmem:[%s440 + $0x888] sm:$0xff]
        %v1601 = vld [vmem:[%s440 + $0x8d8] sm:$0xff]
        %v1602 = vld [vmem:[%s440 + $0x928] sm:$0xff]
        %v1603 = vld [vmem:[%s440 + $0x978] sm:$0xff]
        %v1604 = vld [vmem:[%s440 + $0x9c8] sm:$0xff]
        %v1605 = vpack.c.bf16 %v1586, %v1586
        %v1622 = vunpack.c.l.b16 %v1589
        %v1623 = vunpack.c.h.b16 %v1589
        %v1624 = vunpack.c.l.b16 %v1590
        %v1625 = vunpack.c.h.b16 %v1590
        %v1626 = vunpack.c.l.b16 %v1591
        %v1627 = vunpack.c.h.b16 %v1591
        %v1628 = vunpack.c.l.b16 %v1592
        %v1629 = vunpack.c.h.b16 %v1592
        %v1630 = vunpack.c.l.b16 %v1593
        %v1631 = vunpack.c.h.b16 %v1593
        %v1632 = vunpack.c.l.b16 %v1594
        %v1633 = vunpack.c.h.b16 %v1594
        %v1634 = vunpack.c.l.b16 %v1595
        %v1635 = vunpack.c.h.b16 %v1595
        %v1636 = vunpack.c.l.b16 %v1596
        %v1637 = vunpack.c.h.b16 %v1596
        %v1638 = vunpack.c.l.b16 %v1597
        %v1639 = vunpack.c.h.b16 %v1597
        %v1640 = vunpack.c.l.b16 %v1598
        %v1641 = vunpack.c.h.b16 %v1598
        %v1642 = vunpack.c.l.b16 %v1599
        %v1643 = vunpack.c.h.b16 %v1599
        %v1644 = vunpack.c.l.b16 %v1600
        %v1645 = vunpack.c.h.b16 %v1600
        %v1646 = vunpack.c.l.b16 %v1601
        %v1647 = vunpack.c.h.b16 %v1601
        %v1648 = vunpack.c.l.b16 %v1602
        %v1649 = vunpack.c.h.b16 %v1602
        %v1650 = vunpack.c.l.b16 %v1603
        %v1651 = vunpack.c.h.b16 %v1603
        %v1652 = vunpack.c.l.b16 %v1604
        %v1653 = vunpack.c.h.b16 %v1604
        %v1654 = vpack.c.b16 %v1624, %v1622
        %v1655 = vpack.c.b16 %v1625, %v1623
        %v1656 = vpack.c.b16 %v1628, %v1626
        %v1657 = vpack.c.b16 %v1629, %v1627
        %v1658 = vpack.c.b16 %v1632, %v1630
        %v1659 = vpack.c.b16 %v1633, %v1631
        %v1660 = vpack.c.b16 %v1636, %v1634
        %v1661 = vpack.c.b16 %v1637, %v1635
        %v1662 = vpack.c.b16 %v1640, %v1638
        %v1663 = vpack.c.b16 %v1641, %v1639
        %v1664 = vpack.c.b16 %v1644, %v1642
        %v1665 = vpack.c.b16 %v1645, %v1643
        %v1666 = vpack.c.b16 %v1648, %v1646
        %v1667 = vpack.c.b16 %v1649, %v1647
        %v1668 = vpack.c.b16 %v1652, %v1650
        %v1669 = vpack.c.b16 %v1653, %v1651
        %1686 = vmatprep.subr.bf16.mxu0 %v1669
        %1687 = vmatpush1.bf16.msra.mxu0 %v1668
        %1688 = vmatprep.subr.bf16.mxu0 %v1667
        %1689 = vmatpush1.bf16.msra.mxu0 %v1666
        %1690 = vmatprep.subr.bf16.mxu0 %v1665
        %1691 = vmatpush1.bf16.msra.mxu0 %v1664
        %1692 = vmatprep.subr.bf16.mxu0 %v1663
        %1693 = vmatpush1.bf16.msra.mxu0 %v1662
        %1694 = vmatprep.subr.bf16.mxu0 %v1661
        %1695 = vmatpush1.bf16.msra.mxu0 %v1660
        %1696 = vmatprep.subr.bf16.mxu0 %v1659
        %1697 = vmatpush1.bf16.msra.mxu0 %v1658
        %1698 = vmatprep.subr.bf16.mxu0 %v1657
        %1699 = vmatpush1.bf16.msra.mxu0 %v1656
        %1700 = vmatprep.subr.bf16.mxu0 %v1655
        %1701 = vmatpush1.bf16.msra.mxu0 %v1654
        %1702 = vmatprep.subr.bf16.mxu0 0
        %1703 = vmatpush2.bf16.msra.mxu0 0
        %1704 = vmatprep.subr.bf16.mxu0 0
        %1705 = vmatpush2.bf16.msra.mxu0 0
        %1706 = vmatprep.subr.bf16.mxu0 0
        %1707 = vmatpush2.bf16.msra.mxu0 0
        %1708 = vmatprep.subr.bf16.mxu0 0
        %1709 = vmatpush2.bf16.msra.mxu0 0
        %1710 = vmatprep.subr.bf16.mxu0 0
        %1711 = vmatpush2.bf16.msra.mxu0 0
        %1712 = vmatprep.subr.bf16.mxu0 0
        %1713 = vmatpush2.bf16.msra.mxu0 0
        %1714 = vmatprep.subr.bf16.mxu0 0
        %1715 = vmatpush2.bf16.msra.mxu0 0
        %1716 = vmatprep.subr.bf16.mxu0 0
        %1717 = vmatpush2.bf16.msra.mxu0 0
        %1718 = vmatprep.mubr.bf16.mxu0 0
        %1719 = vmatmul.mubr.bf16.gmra.mxu0 %v1605
        %v1720 = vpop.f32.mrf.mxu0
        %v1721 = vadd.f32 0.0, %v1720
        %v1722 = vpop.f32.mrf.mxu0
        %v1723 = vadd.f32 0.0, %v1722
        %v1724 = vpop.f32.mrf.mxu0
        %v1725 = vpop.f32.mrf.mxu0
        %1726 = vdwg.mxu0
        %v1743 = vunpack.c.l.b16 %v1415
        %v1744 = vunpack.c.h.b16 %v1415
        %v1745 = vunpack.c.l.b16 %v1416
        %v1746 = vunpack.c.h.b16 %v1416
        %v1747 = vunpack.c.l.b16 %v1417
        %v1748 = vunpack.c.h.b16 %v1417
        %v1749 = vunpack.c.l.b16 %v1418
        %v1750 = vunpack.c.h.b16 %v1418
        %v1751 = vunpack.c.l.b16 %v1419
        %v1752 = vunpack.c.h.b16 %v1419
        %v1753 = vunpack.c.l.b16 %v1420
        %v1754 = vunpack.c.h.b16 %v1420
        %v1755 = vunpack.c.l.b16 %v1421
        %v1756 = vunpack.c.h.b16 %v1421
        %v1757 = vunpack.c.l.b16 %v1422
        %v1758 = vunpack.c.h.b16 %v1422
        %v1759 = vunpack.c.l.b16 %v1423
        %v1760 = vunpack.c.h.b16 %v1423
        %v1761 = vunpack.c.l.b16 %v1424
        %v1762 = vunpack.c.h.b16 %v1424
        %v1763 = vunpack.c.l.b16 %v1425
        %v1764 = vunpack.c.h.b16 %v1425
        %v1765 = vunpack.c.l.b16 %v1426
        %v1766 = vunpack.c.h.b16 %v1426
        %v1767 = vunpack.c.l.b16 %v1427
        %v1768 = vunpack.c.h.b16 %v1427
        %v1769 = vunpack.c.l.b16 %v1428
        %v1770 = vunpack.c.h.b16 %v1428
        %v1771 = vunpack.c.l.b16 %v1429
        %v1772 = vunpack.c.h.b16 %v1429
        %v1773 = vunpack.c.l.b16 %v1430
        %v1774 = vunpack.c.h.b16 %v1430
        %v1775 = vpack.c.b16 %v1745, %v1743
        %v1776 = vpack.c.b16 %v1746, %v1744
        %v1777 = vpack.c.b16 %v1749, %v1747
        %v1778 = vpack.c.b16 %v1750, %v1748
        %v1779 = vpack.c.b16 %v1753, %v1751
        %v1780 = vpack.c.b16 %v1754, %v1752
        %v1781 = vpack.c.b16 %v1757, %v1755
        %v1782 = vpack.c.b16 %v1758, %v1756
        %v1783 = vpack.c.b16 %v1761, %v1759
        %v1784 = vpack.c.b16 %v1762, %v1760
        %v1785 = vpack.c.b16 %v1765, %v1763
        %v1786 = vpack.c.b16 %v1766, %v1764
        %v1787 = vpack.c.b16 %v1769, %v1767
        %v1788 = vpack.c.b16 %v1770, %v1768
        %v1789 = vpack.c.b16 %v1773, %v1771
        %v1790 = vpack.c.b16 %v1774, %v1772
        %1807 = vmatprep.subr.bf16.mxu0 %v1790
        %1808 = vmatpush1.bf16.msra.mxu0 %v1789
        %1809 = vmatprep.subr.bf16.mxu0 %v1788
        %1810 = vmatpush1.bf16.msra.mxu0 %v1787
        %1811 = vmatprep.subr.bf16.mxu0 %v1786
        %1812 = vmatpush1.bf16.msra.mxu0 %v1785
        %1813 = vmatprep.subr.bf16.mxu0 %v1784
        %1814 = vmatpush1.bf16.msra.mxu0 %v1783
        %1815 = vmatprep.subr.bf16.mxu0 %v1782
        %1816 = vmatpush1.bf16.msra.mxu0 %v1781
        %1817 = vmatprep.subr.bf16.mxu0 %v1780
        %1818 = vmatpush1.bf16.msra.mxu0 %v1779
        %1819 = vmatprep.subr.bf16.mxu0 %v1778
        %1820 = vmatpush1.bf16.msra.mxu0 %v1777
        %1821 = vmatprep.subr.bf16.mxu0 %v1776
        %1822 = vmatpush1.bf16.msra.mxu0 %v1775
        %1823 = vmatprep.subr.bf16.mxu0 0
        %1824 = vmatpush2.bf16.msra.mxu0 0
        %1825 = vmatprep.subr.bf16.mxu0 0
        %1826 = vmatpush2.bf16.msra.mxu0 0
        %1827 = vmatprep.subr.bf16.mxu0 0
        %1828 = vmatpush2.bf16.msra.mxu0 0
        %1829 = vmatprep.subr.bf16.mxu0 0
        %1830 = vmatpush2.bf16.msra.mxu0 0
        %1831 = vmatprep.subr.bf16.mxu0 0
        %1832 = vmatpush2.bf16.msra.mxu0 0
        %1833 = vmatprep.subr.bf16.mxu0 0
        %1834 = vmatpush2.bf16.msra.mxu0 0
        %1835 = vmatprep.subr.bf16.mxu0 0
        %1836 = vmatpush2.bf16.msra.mxu0 0
        %1837 = vmatprep.subr.bf16.mxu0 0
        %1838 = vmatpush2.bf16.msra.mxu0 0
        %1839 = vmatprep.mubr.bf16.mxu0 0
        %1840 = vmatmul.mubr.bf16.gmra.mxu0 %v1431
        %v1841 = vpop.f32.mrf.mxu0
        %v1842 = vadd.f32 %v1721, %v1841
        %v1843 = vpop.f32.mrf.mxu0
        %v1844 = vadd.f32 %v1723, %v1843
        %v1845 = vpop.f32.mrf.mxu0
        %v1846 = vpop.f32.mrf.mxu0
        %1847 = vdwg.mxu0
        %v1849 = vlaneseq
        %v1850 = vshrl.u32 %v1849, 7
        %v1851 = vsub.s32 0, %v1850
        %v1852 = vrot.slane %v1256, %v1851
        %v1853 = vlaneseq
        %v1854 = vshrl.u32 %v1853, 7
        %v1855 = vsub.s32 1, %v1854
        %v1856 = vrot.slane %v1256, %v1855
        %v1859 = vadd.f32 %v1842, %v1852
        %v1860 = vadd.f32 %v1844, %v1856
        %v1861 = vadd.f32 %v519, %v1859
        %v1862 = vadd.f32 %v520, %v1860
        %v1863 = vld [vmem:[%s458 + $0x8] sm:$0x3]
        %v1864 = vld [vmem:[%s458 + $0xa] sm:$0x3]
        %v1865 = vadd.f32 %v1861, %v1862
        %1866 = vadd.xlane.f32.xlu0 %v1865
        %v1867 = vpop.xlane.xlu0 %1866
        %v1868 = vrcp.pop 256.0
        %v1869 = vmul.f32 %v1867, %v1868
        %v1870 = vsub.f32 %v1861, %v1869
        %v1871 = vsub.f32 %v1862, %v1869
        %v1872 = vmul.f32 %v1870, %v1870
        %v1873 = vmul.f32 %v1871, %v1871
        %v1874 = vadd.f32 %v1872, %v1873
        %1875 = vadd.xlane.f32.xlu0 %v1874
        %v1876 = vpop.xlane.xlu0 %1875
        %v1877 = vmul.f32 %v1876, %v1868
        %v1878 = vadd.f32 %v1877, 1e-05
        %v1879 = vrsqrt.pop %v1878
        %v1880 = vmul.f32 %v1870, %v1879
        %v1881 = vmul.f32 %v1871, %v1879
        %v1883 = vlaneseq
        %v1884 = vshrl.u32 %v1883, 7
        %v1885 = vsub.s32 0, %v1884
        %v1886 = vrot.slane %v1863, %v1885
        %v1887 = vlaneseq
        %v1888 = vshrl.u32 %v1887, 7
        %v1889 = vsub.s32 1, %v1888
        %v1890 = vrot.slane %v1863, %v1889
        %v1893 = vmul.f32 %v1880, %v1886
        %v1894 = vmul.f32 %v1881, %v1890
        %v1896 = vlaneseq
        %v1897 = vshrl.u32 %v1896, 7
        %v1898 = vsub.s32 0, %v1897
        %v1899 = vrot.slane %v1864, %v1898
        %v1900 = vlaneseq
        %v1901 = vshrl.u32 %v1900, 7
        %v1902 = vsub.s32 1, %v1901
        %v1903 = vrot.slane %v1864, %v1902
        %v1906 = vadd.f32 %v1893, %v1899
        %v1907 = vadd.f32 %v1894, %v1903
        %v1908 = vpack.c.bf16 %v1906, %v1906
        %v1909 = vpack.c.bf16 %v1907, %v1907
        %v1910 = vld [vmem:[%s440 + $0x20] sm:$0xff]
        %v1911 = vld [vmem:[%s440 + $0x70] sm:$0xff]
        %v1912 = vld [vmem:[%s440 + $0xc0] sm:$0xff]
        %v1913 = vld [vmem:[%s440 + $0x110] sm:$0xff]
        %v1914 = vld [vmem:[%s440 + $0x160] sm:$0xff]
        %v1915 = vld [vmem:[%s440 + $0x1b0] sm:$0xff]
        %v1916 = vld [vmem:[%s440 + $0x200] sm:$0xff]
        %v1917 = vld [vmem:[%s440 + $0x250] sm:$0xff]
        %v1918 = vld [vmem:[%s440 + $0x2a0] sm:$0xff]
        %v1919 = vld [vmem:[%s440 + $0x2f0] sm:$0xff]
        %v1920 = vld [vmem:[%s440 + $0x340] sm:$0xff]
        %v1921 = vld [vmem:[%s440 + $0x390] sm:$0xff]
        %v1922 = vld [vmem:[%s440 + $0x3e0] sm:$0xff]
        %v1923 = vld [vmem:[%s440 + $0x430] sm:$0xff]
        %v1924 = vld [vmem:[%s440 + $0x480] sm:$0xff]
        %v1925 = vld [vmem:[%s440 + $0x4d0] sm:$0xff]
        %v1926 = vld [vmem:[%s440 + $0x520] sm:$0xff]
        %v1927 = vld [vmem:[%s440 + $0x570] sm:$0xff]
        %v1928 = vld [vmem:[%s440 + $0x5c0] sm:$0xff]
        %v1929 = vld [vmem:[%s440 + $0x610] sm:$0xff]
        %v1930 = vld [vmem:[%s440 + $0x660] sm:$0xff]
        %v1931 = vld [vmem:[%s440 + $0x6b0] sm:$0xff]
        %v1932 = vld [vmem:[%s440 + $0x700] sm:$0xff]
        %v1933 = vld [vmem:[%s440 + $0x750] sm:$0xff]
        %v1934 = vld [vmem:[%s440 + $0x7a0] sm:$0xff]
        %v1935 = vld [vmem:[%s440 + $0x7f0] sm:$0xff]
        %v1936 = vld [vmem:[%s440 + $0x840] sm:$0xff]
        %v1937 = vld [vmem:[%s440 + $0x890] sm:$0xff]
        %v1938 = vld [vmem:[%s440 + $0x8e0] sm:$0xff]
        %v1939 = vld [vmem:[%s440 + $0x930] sm:$0xff]
        %v1940 = vld [vmem:[%s440 + $0x980] sm:$0xff]
        %v1941 = vld [vmem:[%s440 + $0x9d0] sm:$0xff]
        %v1942 = vld [vmem:[%s458 + $0xc] sm:$0x3]
        %v1944 = vlaneseq
        %v1945 = vshrl.u32 %v1944, 7
        %v1946 = vsub.s32 0, %v1945
        %v1947 = vrot.slane %v1942, %v1946
        %v1948 = vlaneseq
        %v1949 = vshrl.u32 %v1948, 7
        %v1950 = vsub.s32 1, %v1949
        %v1951 = vrot.slane %v1942, %v1950
        %v1986 = vunpack.c.l.b16 %v1910
        %v1987 = vunpack.c.h.b16 %v1910
        %v1988 = vunpack.c.l.b16 %v1911
        %v1989 = vunpack.c.h.b16 %v1911
        %v1990 = vunpack.c.l.b16 %v1912
        %v1991 = vunpack.c.h.b16 %v1912
        %v1992 = vunpack.c.l.b16 %v1913
        %v1993 = vunpack.c.h.b16 %v1913
        %v1994 = vunpack.c.l.b16 %v1914
        %v1995 = vunpack.c.h.b16 %v1914
        %v1996 = vunpack.c.l.b16 %v1915
        %v1997 = vunpack.c.h.b16 %v1915
        %v1998 = vunpack.c.l.b16 %v1916
        %v1999 = vunpack.c.h.b16 %v1916
        %v2000 = vunpack.c.l.b16 %v1917
        %v2001 = vunpack.c.h.b16 %v1917
        %v2002 = vunpack.c.l.b16 %v1918
        %v2003 = vunpack.c.h.b16 %v1918
        %v2004 = vunpack.c.l.b16 %v1919
        %v2005 = vunpack.c.h.b16 %v1919
        %v2006 = vunpack.c.l.b16 %v1920
        %v2007 = vunpack.c.h.b16 %v1920
        %v2008 = vunpack.c.l.b16 %v1921
        %v2009 = vunpack.c.h.b16 %v1921
        %v2010 = vunpack.c.l.b16 %v1922
        %v2011 = vunpack.c.h.b16 %v1922
        %v2012 = vunpack.c.l.b16 %v1923
        %v2013 = vunpack.c.h.b16 %v1923
        %v2014 = vunpack.c.l.b16 %v1924
        %v2015 = vunpack.c.h.b16 %v1924
        %v2016 = vunpack.c.l.b16 %v1925
        %v2017 = vunpack.c.h.b16 %v1925
        %v2018 = vunpack.c.l.b16 %v1926
        %v2019 = vunpack.c.h.b16 %v1926
        %v2020 = vunpack.c.l.b16 %v1927
        %v2021 = vunpack.c.h.b16 %v1927
        %v2022 = vunpack.c.l.b16 %v1928
        %v2023 = vunpack.c.h.b16 %v1928
        %v2024 = vunpack.c.l.b16 %v1929
        %v2025 = vunpack.c.h.b16 %v1929
        %v2026 = vunpack.c.l.b16 %v1930
        %v2027 = vunpack.c.h.b16 %v1930
        %v2028 = vunpack.c.l.b16 %v1931
        %v2029 = vunpack.c.h.b16 %v1931
        %v2030 = vunpack.c.l.b16 %v1932
        %v2031 = vunpack.c.h.b16 %v1932
        %v2032 = vunpack.c.l.b16 %v1933
        %v2033 = vunpack.c.h.b16 %v1933
        %v2034 = vunpack.c.l.b16 %v1934
        %v2035 = vunpack.c.h.b16 %v1934
        %v2036 = vunpack.c.l.b16 %v1935
        %v2037 = vunpack.c.h.b16 %v1935
        %v2038 = vunpack.c.l.b16 %v1936
        %v2039 = vunpack.c.h.b16 %v1936
        %v2040 = vunpack.c.l.b16 %v1937
        %v2041 = vunpack.c.h.b16 %v1937
        %v2042 = vunpack.c.l.b16 %v1938
        %v2043 = vunpack.c.h.b16 %v1938
        %v2044 = vunpack.c.l.b16 %v1939
        %v2045 = vunpack.c.h.b16 %v1939
        %v2046 = vunpack.c.l.b16 %v1940
        %v2047 = vunpack.c.h.b16 %v1940
        %v2048 = vunpack.c.l.b16 %v1941
        %v2049 = vunpack.c.h.b16 %v1941
        %v2050 = vpack.c.b16 %v1988, %v1986
        %v2051 = vpack.c.b16 %v1989, %v1987
        %v2052 = vpack.c.b16 %v1992, %v1990
        %v2053 = vpack.c.b16 %v1993, %v1991
        %v2054 = vpack.c.b16 %v1996, %v1994
        %v2055 = vpack.c.b16 %v1997, %v1995
        %v2056 = vpack.c.b16 %v2000, %v1998
        %v2057 = vpack.c.b16 %v2001, %v1999
        %v2058 = vpack.c.b16 %v2004, %v2002
        %v2059 = vpack.c.b16 %v2005, %v2003
        %v2060 = vpack.c.b16 %v2008, %v2006
        %v2061 = vpack.c.b16 %v2009, %v2007
        %v2062 = vpack.c.b16 %v2012, %v2010
        %v2063 = vpack.c.b16 %v2013, %v2011
        %v2064 = vpack.c.b16 %v2016, %v2014
        %v2065 = vpack.c.b16 %v2017, %v2015
        %v2066 = vpack.c.b16 %v2020, %v2018
        %v2067 = vpack.c.b16 %v2021, %v2019
        %v2068 = vpack.c.b16 %v2024, %v2022
        %v2069 = vpack.c.b16 %v2025, %v2023
        %v2070 = vpack.c.b16 %v2028, %v2026
        %v2071 = vpack.c.b16 %v2029, %v2027
        %v2072 = vpack.c.b16 %v2032, %v2030
        %v2073 = vpack.c.b16 %v2033, %v2031
        %v2074 = vpack.c.b16 %v2036, %v2034
        %v2075 = vpack.c.b16 %v2037, %v2035
        %v2076 = vpack.c.b16 %v2040, %v2038
        %v2077 = vpack.c.b16 %v2041, %v2039
        %v2078 = vpack.c.b16 %v2044, %v2042
        %v2079 = vpack.c.b16 %v2045, %v2043
        %v2080 = vpack.c.b16 %v2048, %v2046
        %v2081 = vpack.c.b16 %v2049, %v2047
        %2114 = vmatprep.subr.bf16.mxu0 %v2065
        %2115 = vmatpush1.bf16.msra.mxu0 %v2064
        %2116 = vmatprep.subr.bf16.mxu0 %v2063
        %2117 = vmatpush1.bf16.msra.mxu0 %v2062
        %2118 = vmatprep.subr.bf16.mxu0 %v2061
        %2119 = vmatpush1.bf16.msra.mxu0 %v2060
        %2120 = vmatprep.subr.bf16.mxu0 %v2059
        %2121 = vmatpush1.bf16.msra.mxu0 %v2058
        %2122 = vmatprep.subr.bf16.mxu0 %v2057
        %2123 = vmatpush1.bf16.msra.mxu0 %v2056
        %2124 = vmatprep.subr.bf16.mxu0 %v2055
        %2125 = vmatpush1.bf16.msra.mxu0 %v2054
        %2126 = vmatprep.subr.bf16.mxu0 %v2053
        %2127 = vmatpush1.bf16.msra.mxu0 %v2052
        %2128 = vmatprep.subr.bf16.mxu0 %v2051
        %2129 = vmatpush1.bf16.msra.mxu0 %v2050
        %2130 = vmatprep.subr.bf16.mxu0 %v2081
        %2131 = vmatpush2.bf16.msra.mxu0 %v2080
        %2132 = vmatprep.subr.bf16.mxu0 %v2079
        %2133 = vmatpush2.bf16.msra.mxu0 %v2078
        %2134 = vmatprep.subr.bf16.mxu0 %v2077
        %2135 = vmatpush2.bf16.msra.mxu0 %v2076
        %2136 = vmatprep.subr.bf16.mxu0 %v2075
        %2137 = vmatpush2.bf16.msra.mxu0 %v2074
        %2138 = vmatprep.subr.bf16.mxu0 %v2073
        %2139 = vmatpush2.bf16.msra.mxu0 %v2072
        %2140 = vmatprep.subr.bf16.mxu0 %v2071
        %2141 = vmatpush2.bf16.msra.mxu0 %v2070
        %2142 = vmatprep.subr.bf16.mxu0 %v2069
        %2143 = vmatpush2.bf16.msra.mxu0 %v2068
        %2144 = vmatprep.subr.bf16.mxu0 %v2067
        %2145 = vmatpush2.bf16.msra.mxu0 %v2066
        %2146 = vmatprep.mubr.bf16.mxu0 %v1909
        %2147 = vmatmul.mubr.bf16.gmra.mxu0 %v1908
        %v2148 = vpop.f32.mrf.mxu0
        %v2149 = vadd.f32 %v1947, %v2148
        %v2150 = vpop.f32.mrf.mxu0
        %v2151 = vadd.f32 %v1951, %v2150
        %v2152 = vpop.f32.mrf.mxu0
        %v2153 = vpop.f32.mrf.mxu0
        %2154 = vdwg.mxu0
        %v2155 = vld [vmem:[#allocation3] sm:$0xff]
        %v2156 = vld [vmem:[#allocation3 + $0x8] sm:$0xff]
        %v2157 = vld [vmem:[#allocation3 + $0x10] sm:$0xff]
        %v2158 = vld [vmem:[#allocation3 + $0x18] sm:$0xff]
        %v2159 = vpack.c.bf16 %v2157, %v2155
        %v2160 = vpack.c.bf16 %v2158, %v2156
        %v2161 = vld [vmem:[%s440 + $0x28] sm:$0xff]
        %v2162 = vld [vmem:[%s440 + $0x30] sm:$0xff]
        %v2163 = vld [vmem:[%s440 + $0x78] sm:$0xff]
        %v2164 = vld [vmem:[%s440 + $0x80] sm:$0xff]
        %v2165 = vld [vmem:[%s440 + $0xc8] sm:$0xff]
        %v2166 = vld [vmem:[%s440 + $0xd0] sm:$0xff]
        %v2167 = vld [vmem:[%s440 + $0x118] sm:$0xff]
        %v2168 = vld [vmem:[%s440 + $0x120] sm:$0xff]
        %v2169 = vld [vmem:[%s440 + $0x168] sm:$0xff]
        %v2170 = vld [vmem:[%s440 + $0x170] sm:$0xff]
        %v2171 = vld [vmem:[%s440 + $0x1b8] sm:$0xff]
        %v2172 = vld [vmem:[%s440 + $0x1c0] sm:$0xff]
        %v2173 = vld [vmem:[%s440 + $0x208] sm:$0xff]
        %v2174 = vld [vmem:[%s440 + $0x210] sm:$0xff]
        %v2175 = vld [vmem:[%s440 + $0x258] sm:$0xff]
        %v2176 = vld [vmem:[%s440 + $0x260] sm:$0xff]
        %v2177 = vld [vmem:[%s440 + $0x2a8] sm:$0xff]
        %v2178 = vld [vmem:[%s440 + $0x2b0] sm:$0xff]
        %v2179 = vld [vmem:[%s440 + $0x2f8] sm:$0xff]
        %v2180 = vld [vmem:[%s440 + $0x300] sm:$0xff]
        %v2181 = vld [vmem:[%s440 + $0x348] sm:$0xff]
        %v2182 = vld [vmem:[%s440 + $0x350] sm:$0xff]
        %v2183 = vld [vmem:[%s440 + $0x398] sm:$0xff]
        %v2184 = vld [vmem:[%s440 + $0x3a0] sm:$0xff]
        %v2185 = vld [vmem:[%s440 + $0x3e8] sm:$0xff]
        %v2186 = vld [vmem:[%s440 + $0x3f0] sm:$0xff]
        %v2187 = vld [vmem:[%s440 + $0x438] sm:$0xff]
        %v2188 = vld [vmem:[%s440 + $0x440] sm:$0xff]
        %v2189 = vld [vmem:[%s440 + $0x488] sm:$0xff]
        %v2190 = vld [vmem:[%s440 + $0x490] sm:$0xff]
        %v2191 = vld [vmem:[%s440 + $0x4d8] sm:$0xff]
        %v2192 = vld [vmem:[%s440 + $0x4e0] sm:$0xff]
        %v2193 = vld [vmem:[%s440 + $0x528] sm:$0xff]
        %v2194 = vld [vmem:[%s440 + $0x530] sm:$0xff]
        %v2195 = vld [vmem:[%s440 + $0x578] sm:$0xff]
        %v2196 = vld [vmem:[%s440 + $0x580] sm:$0xff]
        %v2197 = vld [vmem:[%s440 + $0x5c8] sm:$0xff]
        %v2198 = vld [vmem:[%s440 + $0x5d0] sm:$0xff]
        %v2199 = vld [vmem:[%s440 + $0x618] sm:$0xff]
        %v2200 = vld [vmem:[%s440 + $0x620] sm:$0xff]
        %v2201 = vld [vmem:[%s440 + $0x668] sm:$0xff]
        %v2202 = vld [vmem:[%s440 + $0x670] sm:$0xff]
        %v2203 = vld [vmem:[%s440 + $0x6b8] sm:$0xff]
        %v2204 = vld [vmem:[%s440 + $0x6c0] sm:$0xff]
        %v2205 = vld [vmem:[%s440 + $0x708] sm:$0xff]
        %v2206 = vld [vmem:[%s440 + $0x710] sm:$0xff]
        %v2207 = vld [vmem:[%s440 + $0x758] sm:$0xff]
        %v2208 = vld [vmem:[%s440 + $0x760] sm:$0xff]
        %v2209 = vld [vmem:[%s440 + $0x7a8] sm:$0xff]
        %v2210 = vld [vmem:[%s440 + $0x7b0] sm:$0xff]
        %v2211 = vld [vmem:[%s440 + $0x7f8] sm:$0xff]
        %v2212 = vld [vmem:[%s440 + $0x800] sm:$0xff]
        %v2213 = vld [vmem:[%s440 + $0x848] sm:$0xff]
        %v2214 = vld [vmem:[%s440 + $0x850] sm:$0xff]
        %v2215 = vld [vmem:[%s440 + $0x898] sm:$0xff]
        %v2216 = vld [vmem:[%s440 + $0x8a0] sm:$0xff]
        %v2217 = vld [vmem:[%s440 + $0x8e8] sm:$0xff]
        %v2218 = vld [vmem:[%s440 + $0x8f0] sm:$0xff]
        %v2219 = vld [vmem:[%s440 + $0x938] sm:$0xff]
        %v2220 = vld [vmem:[%s440 + $0x940] sm:$0xff]
        %v2221 = vld [vmem:[%s440 + $0x988] sm:$0xff]
        %v2222 = vld [vmem:[%s440 + $0x990] sm:$0xff]
        %v2223 = vld [vmem:[%s440 + $0x9d8] sm:$0xff]
        %v2224 = vld [vmem:[%s440 + $0x9e0] sm:$0xff]
        %v2225 = vld [vmem:[%s458 + $0xe] sm:$0xf]
        %v2227 = vlaneseq
        %v2228 = vshrl.u32 %v2227, 7
        %v2229 = vsub.s32 0, %v2228
        %v2230 = vrot.slane %v2225, %v2229
        %v2231 = vlaneseq
        %v2232 = vshrl.u32 %v2231, 7
        %v2233 = vsub.s32 1, %v2232
        %v2234 = vrot.slane %v2225, %v2233
        %v2235 = vlaneseq
        %v2236 = vshrl.u32 %v2235, 7
        %v2237 = vsub.s32 2, %v2236
        %v2238 = vrot.slane %v2225, %v2237
        %v2239 = vlaneseq
        %v2240 = vshrl.u32 %v2239, 7
        %v2241 = vsub.s32 3, %v2240
        %v2242 = vrot.slane %v2225, %v2241
        %v2311 = vunpack.c.l.b16 %v2161
        %v2312 = vunpack.c.h.b16 %v2161
        %v2313 = vunpack.c.l.b16 %v2162
        %v2314 = vunpack.c.h.b16 %v2162
        %v2315 = vunpack.c.l.b16 %v2163
        %v2316 = vunpack.c.h.b16 %v2163
        %v2317 = vunpack.c.l.b16 %v2164
        %v2318 = vunpack.c.h.b16 %v2164
        %v2319 = vunpack.c.l.b16 %v2165
        %v2320 = vunpack.c.h.b16 %v2165
        %v2321 = vunpack.c.l.b16 %v2166
        %v2322 = vunpack.c.h.b16 %v2166
        %v2323 = vunpack.c.l.b16 %v2167
        %v2324 = vunpack.c.h.b16 %v2167
        %v2325 = vunpack.c.l.b16 %v2168
        %v2326 = vunpack.c.h.b16 %v2168
        %v2327 = vunpack.c.l.b16 %v2169
        %v2328 = vunpack.c.h.b16 %v2169
        %v2329 = vunpack.c.l.b16 %v2170
        %v2330 = vunpack.c.h.b16 %v2170
        %v2331 = vunpack.c.l.b16 %v2171
        %v2332 = vunpack.c.h.b16 %v2171
        %v2333 = vunpack.c.l.b16 %v2172
        %v2334 = vunpack.c.h.b16 %v2172
        %v2335 = vunpack.c.l.b16 %v2173
        %v2336 = vunpack.c.h.b16 %v2173
        %v2337 = vunpack.c.l.b16 %v2174
        %v2338 = vunpack.c.h.b16 %v2174
        %v2339 = vunpack.c.l.b16 %v2175
        %v2340 = vunpack.c.h.b16 %v2175
        %v2341 = vunpack.c.l.b16 %v2176
        %v2342 = vunpack.c.h.b16 %v2176
        %v2343 = vunpack.c.l.b16 %v2177
        %v2344 = vunpack.c.h.b16 %v2177
        %v2345 = vunpack.c.l.b16 %v2178
        %v2346 = vunpack.c.h.b16 %v2178
        %v2347 = vunpack.c.l.b16 %v2179
        %v2348 = vunpack.c.h.b16 %v2179
        %v2349 = vunpack.c.l.b16 %v2180
        %v2350 = vunpack.c.h.b16 %v2180
        %v2351 = vunpack.c.l.b16 %v2181
        %v2352 = vunpack.c.h.b16 %v2181
        %v2353 = vunpack.c.l.b16 %v2182
        %v2354 = vunpack.c.h.b16 %v2182
        %v2355 = vunpack.c.l.b16 %v2183
        %v2356 = vunpack.c.h.b16 %v2183
        %v2357 = vunpack.c.l.b16 %v2184
        %v2358 = vunpack.c.h.b16 %v2184
        %v2359 = vunpack.c.l.b16 %v2185
        %v2360 = vunpack.c.h.b16 %v2185
        %v2361 = vunpack.c.l.b16 %v2186
        %v2362 = vunpack.c.h.b16 %v2186
        %v2363 = vunpack.c.l.b16 %v2187
        %v2364 = vunpack.c.h.b16 %v2187
        %v2365 = vunpack.c.l.b16 %v2188
        %v2366 = vunpack.c.h.b16 %v2188
        %v2367 = vunpack.c.l.b16 %v2189
        %v2368 = vunpack.c.h.b16 %v2189
        %v2369 = vunpack.c.l.b16 %v2190
        %v2370 = vunpack.c.h.b16 %v2190
        %v2371 = vunpack.c.l.b16 %v2191
        %v2372 = vunpack.c.h.b16 %v2191
        %v2373 = vunpack.c.l.b16 %v2192
        %v2374 = vunpack.c.h.b16 %v2192
        %v2375 = vunpack.c.l.b16 %v2193
        %v2376 = vunpack.c.h.b16 %v2193
        %v2377 = vunpack.c.l.b16 %v2194
        %v2378 = vunpack.c.h.b16 %v2194
        %v2379 = vunpack.c.l.b16 %v2195
        %v2380 = vunpack.c.h.b16 %v2195
        %v2381 = vunpack.c.l.b16 %v2196
        %v2382 = vunpack.c.h.b16 %v2196
        %v2383 = vunpack.c.l.b16 %v2197
        %v2384 = vunpack.c.h.b16 %v2197
        %v2385 = vunpack.c.l.b16 %v2198
        %v2386 = vunpack.c.h.b16 %v2198
        %v2387 = vunpack.c.l.b16 %v2199
        %v2388 = vunpack.c.h.b16 %v2199
        %v2389 = vunpack.c.l.b16 %v2200
        %v2390 = vunpack.c.h.b16 %v2200
        %v2391 = vunpack.c.l.b16 %v2201
        %v2392 = vunpack.c.h.b16 %v2201
        %v2393 = vunpack.c.l.b16 %v2202
        %v2394 = vunpack.c.h.b16 %v2202
        %v2395 = vunpack.c.l.b16 %v2203
        %v2396 = vunpack.c.h.b16 %v2203
        %v2397 = vunpack.c.l.b16 %v2204
        %v2398 = vunpack.c.h.b16 %v2204
        %v2399 = vunpack.c.l.b16 %v2205
        %v2400 = vunpack.c.h.b16 %v2205
        %v2401 = vunpack.c.l.b16 %v2206
        %v2402 = vunpack.c.h.b16 %v2206
        %v2403 = vunpack.c.l.b16 %v2207
        %v2404 = vunpack.c.h.b16 %v2207
        %v2405 = vunpack.c.l.b16 %v2208
        %v2406 = vunpack.c.h.b16 %v2208
        %v2407 = vunpack.c.l.b16 %v2209
        %v2408 = vunpack.c.h.b16 %v2209
        %v2409 = vunpack.c.l.b16 %v2210
        %v2410 = vunpack.c.h.b16 %v2210
        %v2411 = vunpack.c.l.b16 %v2211
        %v2412 = vunpack.c.h.b16 %v2211
        %v2413 = vunpack.c.l.b16 %v2212
        %v2414 = vunpack.c.h.b16 %v2212
        %v2415 = vunpack.c.l.b16 %v2213
        %v2416 = vunpack.c.h.b16 %v2213
        %v2417 = vunpack.c.l.b16 %v2214
        %v2418 = vunpack.c.h.b16 %v2214
        %v2419 = vunpack.c.l.b16 %v2215
        %v2420 = vunpack.c.h.b16 %v2215
        %v2421 = vunpack.c.l.b16 %v2216
        %v2422 = vunpack.c.h.b16 %v2216
        %v2423 = vunpack.c.l.b16 %v2217
        %v2424 = vunpack.c.h.b16 %v2217
        %v2425 = vunpack.c.l.b16 %v2218
        %v2426 = vunpack.c.h.b16 %v2218
        %v2427 = vunpack.c.l.b16 %v2219
        %v2428 = vunpack.c.h.b16 %v2219
        %v2429 = vunpack.c.l.b16 %v2220
        %v2430 = vunpack.c.h.b16 %v2220
        %v2431 = vunpack.c.l.b16 %v2221
        %v2432 = vunpack.c.h.b16 %v2221
        %v2433 = vunpack.c.l.b16 %v2222
        %v2434 = vunpack.c.h.b16 %v2222
        %v2435 = vunpack.c.l.b16 %v2223
        %v2436 = vunpack.c.h.b16 %v2223
        %v2437 = vunpack.c.l.b16 %v2224
        %v2438 = vunpack.c.h.b16 %v2224
        %v2439 = vpack.c.b16 %v2315, %v2311
        %v2440 = vpack.c.b16 %v2316, %v2312
        %v2441 = vpack.c.b16 %v2317, %v2313
        %v2442 = vpack.c.b16 %v2318, %v2314
        %v2443 = vpack.c.b16 %v2323, %v2319
        %v2444 = vpack.c.b16 %v2324, %v2320
        %v2445 = vpack.c.b16 %v2325, %v2321
        %v2446 = vpack.c.b16 %v2326, %v2322
        %v2447 = vpack.c.b16 %v2331, %v2327
        %v2448 = vpack.c.b16 %v2332, %v2328
        %v2449 = vpack.c.b16 %v2333, %v2329
        %v2450 = vpack.c.b16 %v2334, %v2330
        %v2451 = vpack.c.b16 %v2339, %v2335
        %v2452 = vpack.c.b16 %v2340, %v2336
        %v2453 = vpack.c.b16 %v2341, %v2337
        %v2454 = vpack.c.b16 %v2342, %v2338
        %v2455 = vpack.c.b16 %v2347, %v2343
        %v2456 = vpack.c.b16 %v2348, %v2344
        %v2457 = vpack.c.b16 %v2349, %v2345
        %v2458 = vpack.c.b16 %v2350, %v2346
        %v2459 = vpack.c.b16 %v2355, %v2351
        %v2460 = vpack.c.b16 %v2356, %v2352
        %v2461 = vpack.c.b16 %v2357, %v2353
        %v2462 = vpack.c.b16 %v2358, %v2354
        %v2463 = vpack.c.b16 %v2363, %v2359
        %v2464 = vpack.c.b16 %v2364, %v2360
        %v2465 = vpack.c.b16 %v2365, %v2361
        %v2466 = vpack.c.b16 %v2366, %v2362
        %v2467 = vpack.c.b16 %v2371, %v2367
        %v2468 = vpack.c.b16 %v2372, %v2368
        %v2469 = vpack.c.b16 %v2373, %v2369
        %v2470 = vpack.c.b16 %v2374, %v2370
        %v2471 = vpack.c.b16 %v2379, %v2375
        %v2472 = vpack.c.b16 %v2380, %v2376
        %v2473 = vpack.c.b16 %v2381, %v2377
        %v2474 = vpack.c.b16 %v2382, %v2378
        %v2475 = vpack.c.b16 %v2387, %v2383
        %v2476 = vpack.c.b16 %v2388, %v2384
        %v2477 = vpack.c.b16 %v2389, %v2385
        %v2478 = vpack.c.b16 %v2390, %v2386
        %v2479 = vpack.c.b16 %v2395, %v2391
        %v2480 = vpack.c.b16 %v2396, %v2392
        %v2481 = vpack.c.b16 %v2397, %v2393
        %v2482 = vpack.c.b16 %v2398, %v2394
        %v2483 = vpack.c.b16 %v2403, %v2399
        %v2484 = vpack.c.b16 %v2404, %v2400
        %v2485 = vpack.c.b16 %v2405, %v2401
        %v2486 = vpack.c.b16 %v2406, %v2402
        %v2487 = vpack.c.b16 %v2411, %v2407
        %v2488 = vpack.c.b16 %v2412, %v2408
        %v2489 = vpack.c.b16 %v2413, %v2409
        %v2490 = vpack.c.b16 %v2414, %v2410
        %v2491 = vpack.c.b16 %v2419, %v2415
        %v2492 = vpack.c.b16 %v2420, %v2416
        %v2493 = vpack.c.b16 %v2421, %v2417
        %v2494 = vpack.c.b16 %v2422, %v2418
        %v2495 = vpack.c.b16 %v2427, %v2423
        %v2496 = vpack.c.b16 %v2428, %v2424
        %v2497 = vpack.c.b16 %v2429, %v2425
        %v2498 = vpack.c.b16 %v2430, %v2426
        %v2499 = vpack.c.b16 %v2435, %v2431
        %v2500 = vpack.c.b16 %v2436, %v2432
        %v2501 = vpack.c.b16 %v2437, %v2433
        %v2502 = vpack.c.b16 %v2438, %v2434
        %2567 = vmatprep.subr.bf16.mxu0 %v2468
        %2568 = vmatpush1.bf16.msra.mxu0 %v2467
        %2569 = vmatprep.subr.bf16.mxu0 %v2464
        %2570 = vmatpush1.bf16.msra.mxu0 %v2463
        %2571 = vmatprep.subr.bf16.mxu0 %v2460
        %2572 = vmatpush1.bf16.msra.mxu0 %v2459
        %2573 = vmatprep.subr.bf16.mxu0 %v2456
        %2574 = vmatpush1.bf16.msra.mxu0 %v2455
        %2575 = vmatprep.subr.bf16.mxu0 %v2452
        %2576 = vmatpush1.bf16.msra.mxu0 %v2451
        %2577 = vmatprep.subr.bf16.mxu0 %v2448
        %2578 = vmatpush1.bf16.msra.mxu0 %v2447
        %2579 = vmatprep.subr.bf16.mxu0 %v2444
        %2580 = vmatpush1.bf16.msra.mxu0 %v2443
        %2581 = vmatprep.subr.bf16.mxu0 %v2440
        %2582 = vmatpush1.bf16.msra.mxu0 %v2439
        %2583 = vmatprep.subr.bf16.mxu0 %v2500
        %2584 = vmatpush2.bf16.msra.mxu0 %v2499
        %2585 = vmatprep.subr.bf16.mxu0 %v2496
        %2586 = vmatpush2.bf16.msra.mxu0 %v2495
        %2587 = vmatprep.subr.bf16.mxu0 %v2492
        %2588 = vmatpush2.bf16.msra.mxu0 %v2491
        %2589 = vmatprep.subr.bf16.mxu0 %v2488
        %2590 = vmatpush2.bf16.msra.mxu0 %v2487
        %2591 = vmatprep.subr.bf16.mxu0 %v2484
        %2592 = vmatpush2.bf16.msra.mxu0 %v2483
        %2593 = vmatprep.subr.bf16.mxu0 %v2480
        %2594 = vmatpush2.bf16.msra.mxu0 %v2479
        %2595 = vmatprep.subr.bf16.mxu0 %v2476
        %2596 = vmatpush2.bf16.msra.mxu0 %v2475
        %2597 = vmatprep.subr.bf16.mxu0 %v2472
        %2598 = vmatpush2.bf16.msra.mxu0 %v2471
        %2599 = vmatprep.mubr.bf16.mxu0 %v2160
        %2600 = vmatmul.mubr.bf16.gmra.mxu0 %v2159
        %v2601 = vpop.f32.mrf.mxu0
        %v2602 = vadd.f32 %v2230, %v2601
        %v2603 = vpop.f32.mrf.mxu0
        %v2604 = vadd.f32 %v2234, %v2603
        %v2605 = vpop.f32.mrf.mxu0
        %v2606 = vadd.f32 %v2230, %v2605
        %v2607 = vpop.f32.mrf.mxu0
        %v2608 = vadd.f32 %v2234, %v2607
        %2609 = vdwg.mxu0
        %2610 = vmatprep.subr.bf16.mxu0 %v2470
        %2611 = vmatpush1.bf16.msra.mxu0 %v2469
        %2612 = vmatprep.subr.bf16.mxu0 %v2466
        %2613 = vmatpush1.bf16.msra.mxu0 %v2465
        %2614 = vmatprep.subr.bf16.mxu0 %v2462
        %2615 = vmatpush1.bf16.msra.mxu0 %v2461
        %2616 = vmatprep.subr.bf16.mxu0 %v2458
        %2617 = vmatpush1.bf16.msra.mxu0 %v2457
        %2618 = vmatprep.subr.bf16.mxu0 %v2454
        %2619 = vmatpush1.bf16.msra.mxu0 %v2453
        %2620 = vmatprep.subr.bf16.mxu0 %v2450
        %2621 = vmatpush1.bf16.msra.mxu0 %v2449
        %2622 = vmatprep.subr.bf16.mxu0 %v2446
        %2623 = vmatpush1.bf16.msra.mxu0 %v2445
        %2624 = vmatprep.subr.bf16.mxu0 %v2442
        %2625 = vmatpush1.bf16.msra.mxu0 %v2441
        %2626 = vmatprep.subr.bf16.mxu0 %v2502
        %2627 = vmatpush2.bf16.msra.mxu0 %v2501
        %2628 = vmatprep.subr.bf16.mxu0 %v2498
        %2629 = vmatpush2.bf16.msra.mxu0 %v2497
        %2630 = vmatprep.subr.bf16.mxu0 %v2494
        %2631 = vmatpush2.bf16.msra.mxu0 %v2493
        %2632 = vmatprep.subr.bf16.mxu0 %v2490
        %2633 = vmatpush2.bf16.msra.mxu0 %v2489
        %2634 = vmatprep.subr.bf16.mxu0 %v2486
        %2635 = vmatpush2.bf16.msra.mxu0 %v2485
        %2636 = vmatprep.subr.bf16.mxu0 %v2482
        %2637 = vmatpush2.bf16.msra.mxu0 %v2481
        %2638 = vmatprep.subr.bf16.mxu0 %v2478
        %2639 = vmatpush2.bf16.msra.mxu0 %v2477
        %2640 = vmatprep.subr.bf16.mxu0 %v2474
        %2641 = vmatpush2.bf16.msra.mxu0 %v2473
        %2642 = vmatprep.mubr.bf16.mxu0 %v2160
        %2643 = vmatmul.mubr.bf16.gmra.mxu0 %v2159
        %v2644 = vpop.f32.mrf.mxu0
        %v2645 = vadd.f32 %v2238, %v2644
        %v2646 = vpop.f32.mrf.mxu0
        %v2647 = vadd.f32 %v2242, %v2646
        %v2648 = vpop.f32.mrf.mxu0
        %v2649 = vadd.f32 %v2238, %v2648
        %v2650 = vpop.f32.mrf.mxu0
        %v2651 = vadd.f32 %v2242, %v2650
        %2652 = vdwg.mxu0
        %v2653 = vld [vmem:[%s4] sm:$0xff]
        %v2654 = vld [vmem:[%s5] sm:$0xff]
        %v2655 = vld [vmem:[%s458 + $0x12] sm:$0x3]
        %2656 = vmatprep.subr.mxu0 0.0
        %2657 = vmatpush1.xpose.msra.mxu0 0.0
        %2658 = vmatprep.subr.mxu0 0.0
        %2659 = vmatpush1.xpose.msra.mxu0 0.0
        %2660 = vmatprep.subr.mxu0 0.0
        %2661 = vmatpush1.xpose.msra.mxu0 0.0
        %2662 = vmatprep.subr.mxu0 0.0
        %2663 = vmatpush1.xpose.msra.mxu0 0.0
        %2664 = vmatprep.subr.mxu0 0.0
        %2665 = vmatpush1.xpose.msra.mxu0 0.0
        %2666 = vmatprep.subr.mxu0 0.0
        %2667 = vmatpush1.xpose.msra.mxu0 0.0
        %2668 = vmatprep.subr.mxu0 0.0
        %2669 = vmatpush1.xpose.msra.mxu0 0.0
        %2670 = vmatprep.subr.mxu0 0.0
        %2671 = vmatpush1.xpose.msra.mxu0 0.0
        %2672 = vmatprep.subr.mxu0 0.0
        %2673 = vmatpush1.xpose.msra.mxu0 0.0
        %2674 = vmatprep.subr.mxu0 0.0
        %2675 = vmatpush1.xpose.msra.mxu0 0.0
        %2676 = vmatprep.subr.mxu0 0.0
        %2677 = vmatpush1.xpose.msra.mxu0 0.0
        %2678 = vmatprep.subr.mxu0 0.0
        %2679 = vmatpush1.xpose.msra.mxu0 0.0
        %2680 = vmatprep.subr.mxu0 0.0
        %2681 = vmatpush1.xpose.msra.mxu0 0.0
        %2682 = vmatprep.subr.mxu0 0.0
        %2683 = vmatpush1.xpose.msra.mxu0 0.0
        %2684 = vmatprep.subr.mxu0 0.0
        %2685 = vmatpush1.xpose.msra.mxu0 %v2606
        %2686 = vmatprep.subr.mxu0 0.0
        %2687 = vmatpush1.xpose.msra.mxu0 %v2602
        %2688 = vmatprep.subr.mxu0 0.0
        %2689 = vmatpush2.xpose.msra.mxu0 0.0
        %2690 = vmatprep.subr.mxu0 0.0
        %2691 = vmatpush2.xpose.msra.mxu0 0.0
        %2692 = vmatprep.subr.mxu0 0.0
        %2693 = vmatpush2.xpose.msra.mxu0 0.0
        %2694 = vmatprep.subr.mxu0 0.0
        %2695 = vmatpush2.xpose.msra.mxu0 0.0
        %2696 = vmatprep.subr.mxu0 0.0
        %2697 = vmatpush2.xpose.msra.mxu0 0.0
        %2698 = vmatprep.subr.mxu0 0.0
        %2699 = vmatpush2.xpose.msra.mxu0 0.0
        %2700 = vmatprep.subr.mxu0 0.0
        %2701 = vmatpush2.xpose.msra.mxu0 0.0
        %2702 = vmatprep.subr.mxu0 0.0
        %2703 = vmatpush2.xpose.msra.mxu0 0.0
        %2704 = vmatprep.subr.mxu0 0.0
        %2705 = vmatpush2.xpose.msra.mxu0 0.0
        %2706 = vmatprep.subr.mxu0 0.0
        %2707 = vmatpush2.xpose.msra.mxu0 0.0
        %2708 = vmatprep.subr.mxu0 0.0
        %2709 = vmatpush2.xpose.msra.mxu0 0.0
        %2710 = vmatprep.subr.mxu0 0.0
        %2711 = vmatpush2.xpose.msra.mxu0 0.0
        %2712 = vmatprep.subr.mxu0 0.0
        %2713 = vmatpush2.xpose.msra.mxu0 0.0
        %2714 = vmatprep.subr.mxu0 0.0
        %2715 = vmatpush2.xpose.msra.mxu0 0.0
        %2716 = vmatprep.subr.mxu0 0.0
        %2717 = vmatpush2.xpose.msra.mxu0 0.0
        %2718 = vmatprep.subr.mxu0 0.0
        %2719 = vmatpush2.xpose.msra.mxu0 0.0
        %2720 = vmatprep.mubr.f32.mxu0 0.0
        %2721 = vmatmul.mubr.f32.gmra.mxu0 %v2149
        %v2722 = vpop.f32.mrf.mxu0
        %v2723 = vadd.f32 0.0, %v2722
        %v2724 = vpop.f32.mrf.mxu0
        %2725 = vdwg.mxu0
        %v2726 = vmul.f32 %v2723, 0.088388346
        %v2727 = vmul.f32 %v2726, %v2653
        %v2728 = vadd.f32 %v2727, %v2654
        %vm2729 = vcmask 130048
        %v2730 = vsel %vm2729, %v2728, -inf
        %2731 = vmax.xlane.f32.xlu0 %v2730
        %v2732 = vpop.xlane.xlu0 %2731
        %v2733 = vsub.f32 %v2728, %v2732
        %v2734 = vmul.f32 %v2733, 1.442695
        %v2735 = vpow.pop %v2734
        %v2736 = vsel %vm2729, %v2735, 0.0
        %2737 = vadd.xlane.f32.xlu0 %v2736
        %v2738 = vpop.xlane.xlu0 %2737
        %v2739 = vrcp.pop %v2738
        %v2740 = vmul.f32 %v2735, %v2739
        %v2742 = vsel %vm2729, %v2740, 0
        %2744 = vmatprep.subr.mxu0 0.0
        %2745 = vmatpush1.msra.mxu0 0.0
        %2746 = vmatprep.subr.mxu0 0.0
        %2747 = vmatpush1.msra.mxu0 0.0
        %2748 = vmatprep.subr.mxu0 0.0
        %2749 = vmatpush1.msra.mxu0 0.0
        %2750 = vmatprep.subr.mxu0 0.0
        %2751 = vmatpush1.msra.mxu0 0.0
        %2752 = vmatprep.subr.mxu0 0.0
        %2753 = vmatpush1.msra.mxu0 0.0
        %2754 = vmatprep.subr.mxu0 0.0
        %2755 = vmatpush1.msra.mxu0 0.0
        %2756 = vmatprep.subr.mxu0 0.0
        %2757 = vmatpush1.msra.mxu0 0.0
        %2758 = vmatprep.subr.mxu0 0.0
        %2759 = vmatpush1.msra.mxu0 0.0
        %2760 = vmatprep.subr.mxu0 0.0
        %2761 = vmatpush1.msra.mxu0 0.0
        %2762 = vmatprep.subr.mxu0 0.0
        %2763 = vmatpush1.msra.mxu0 0.0
        %2764 = vmatprep.subr.mxu0 0.0
        %2765 = vmatpush1.msra.mxu0 0.0
        %2766 = vmatprep.subr.mxu0 0.0
        %2767 = vmatpush1.msra.mxu0 0.0
        %2768 = vmatprep.subr.mxu0 0.0
        %2769 = vmatpush1.msra.mxu0 0.0
        %2770 = vmatprep.subr.mxu0 0.0
        %2771 = vmatpush1.msra.mxu0 0.0
        %2772 = vmatprep.subr.mxu0 0.0
        %2773 = vmatpush1.msra.mxu0 %v2649
        %2774 = vmatprep.subr.mxu0 0.0
        %2775 = vmatpush1.msra.mxu0 %v2645
        %2776 = vmatprep.subr.mxu0 0.0
        %2777 = vmatpush2.msra.mxu0 0.0
        %2778 = vmatprep.subr.mxu0 0.0
        %2779 = vmatpush2.msra.mxu0 0.0
        %2780 = vmatprep.subr.mxu0 0.0
        %2781 = vmatpush2.msra.mxu0 0.0
        %2782 = vmatprep.subr.mxu0 0.0
        %2783 = vmatpush2.msra.mxu0 0.0
        %2784 = vmatprep.subr.mxu0 0.0
        %2785 = vmatpush2.msra.mxu0 0.0
        %2786 = vmatprep.subr.mxu0 0.0
        %2787 = vmatpush2.msra.mxu0 0.0
        %2788 = vmatprep.subr.mxu0 0.0
        %2789 = vmatpush2.msra.mxu0 0.0
        %2790 = vmatprep.subr.mxu0 0.0
        %2791 = vmatpush2.msra.mxu0 0.0
        %2792 = vmatprep.subr.mxu0 0.0
        %2793 = vmatpush2.msra.mxu0 0.0
        %2794 = vmatprep.subr.mxu0 0.0
        %2795 = vmatpush2.msra.mxu0 0.0
        %2796 = vmatprep.subr.mxu0 0.0
        %2797 = vmatpush2.msra.mxu0 0.0
        %2798 = vmatprep.subr.mxu0 0.0
        %2799 = vmatpush2.msra.mxu0 0.0
        %2800 = vmatprep.subr.mxu0 0.0
        %2801 = vmatpush2.msra.mxu0 0.0
        %2802 = vmatprep.subr.mxu0 0.0
        %2803 = vmatpush2.msra.mxu0 0.0
        %2804 = vmatprep.subr.mxu0 0.0
        %2805 = vmatpush2.msra.mxu0 0.0
        %2806 = vmatprep.subr.mxu0 0.0
        %2807 = vmatpush2.msra.mxu0 0.0
        %2808 = vmatprep.mubr.f32.mxu0 0.0
        %2809 = vmatmul.mubr.f32.gmra.mxu0 %v2742
        %v2810 = vpop.f32.mrf.mxu0
        %v2811 = vadd.f32 0.0, %v2810
        %v2812 = vpop.f32.mrf.mxu0
        %2813 = vdwg.mxu0
        %v2814 = vld [vmem:[%s440 + $0x38] sm:$0xff]
        %v2815 = vld [vmem:[%s440 + $0x88] sm:$0xff]
        %v2816 = vld [vmem:[%s440 + $0xd8] sm:$0xff]
        %v2817 = vld [vmem:[%s440 + $0x128] sm:$0xff]
        %v2818 = vld [vmem:[%s440 + $0x178] sm:$0xff]
        %v2819 = vld [vmem:[%s440 + $0x1c8] sm:$0xff]
        %v2820 = vld [vmem:[%s440 + $0x218] sm:$0xff]
        %v2821 = vld [vmem:[%s440 + $0x268] sm:$0xff]
        %v2822 = vld [vmem:[%s440 + $0x2b8] sm:$0xff]
        %v2823 = vld [vmem:[%s440 + $0x308] sm:$0xff]
        %v2824 = vld [vmem:[%s440 + $0x358] sm:$0xff]
        %v2825 = vld [vmem:[%s440 + $0x3a8] sm:$0xff]
        %v2826 = vld [vmem:[%s440 + $0x3f8] sm:$0xff]
        %v2827 = vld [vmem:[%s440 + $0x448] sm:$0xff]
        %v2828 = vld [vmem:[%s440 + $0x498] sm:$0xff]
        %v2829 = vld [vmem:[%s440 + $0x4e8] sm:$0xff]
        %v2830 = vpack.c.bf16 %v2811, %v2811
        %2831 = vmatprep.subr.mxu0 0.0
        %2832 = vmatpush1.xpose.msra.mxu0 0.0
        %2833 = vmatprep.subr.mxu0 0.0
        %2834 = vmatpush1.xpose.msra.mxu0 0.0
        %2835 = vmatprep.subr.mxu0 0.0
        %2836 = vmatpush1.xpose.msra.mxu0 0.0
        %2837 = vmatprep.subr.mxu0 0.0
        %2838 = vmatpush1.xpose.msra.mxu0 0.0
        %2839 = vmatprep.subr.mxu0 0.0
        %2840 = vmatpush1.xpose.msra.mxu0 0.0
        %2841 = vmatprep.subr.mxu0 0.0
        %2842 = vmatpush1.xpose.msra.mxu0 0.0
        %2843 = vmatprep.subr.mxu0 0.0
        %2844 = vmatpush1.xpose.msra.mxu0 0.0
        %2845 = vmatprep.subr.mxu0 0.0
        %2846 = vmatpush1.xpose.msra.mxu0 0.0
        %2847 = vmatprep.subr.mxu0 0.0
        %2848 = vmatpush1.xpose.msra.mxu0 0.0
        %2849 = vmatprep.subr.mxu0 0.0
        %2850 = vmatpush1.xpose.msra.mxu0 0.0
        %2851 = vmatprep.subr.mxu0 0.0
        %2852 = vmatpush1.xpose.msra.mxu0 0.0
        %2853 = vmatprep.subr.mxu0 0.0
        %2854 = vmatpush1.xpose.msra.mxu0 0.0
        %2855 = vmatprep.subr.mxu0 0.0
        %2856 = vmatpush1.xpose.msra.mxu0 0.0
        %2857 = vmatprep.subr.mxu0 0.0
        %2858 = vmatpush1.xpose.msra.mxu0 0.0
        %2859 = vmatprep.subr.mxu0 0.0
        %2860 = vmatpush1.xpose.msra.mxu0 %v2608
        %2861 = vmatprep.subr.mxu0 0.0
        %2862 = vmatpush1.xpose.msra.mxu0 %v2604
        %2863 = vmatprep.subr.mxu0 0.0
        %2864 = vmatpush2.xpose.msra.mxu0 0.0
        %2865 = vmatprep.subr.mxu0 0.0
        %2866 = vmatpush2.xpose.msra.mxu0 0.0
        %2867 = vmatprep.subr.mxu0 0.0
        %2868 = vmatpush2.xpose.msra.mxu0 0.0
        %2869 = vmatprep.subr.mxu0 0.0
        %2870 = vmatpush2.xpose.msra.mxu0 0.0
        %2871 = vmatprep.subr.mxu0 0.0
        %2872 = vmatpush2.xpose.msra.mxu0 0.0
        %2873 = vmatprep.subr.mxu0 0.0
        %2874 = vmatpush2.xpose.msra.mxu0 0.0
        %2875 = vmatprep.subr.mxu0 0.0
        %2876 = vmatpush2.xpose.msra.mxu0 0.0
        %2877 = vmatprep.subr.mxu0 0.0
        %2878 = vmatpush2.xpose.msra.mxu0 0.0
        %2879 = vmatprep.subr.mxu0 0.0
        %2880 = vmatpush2.xpose.msra.mxu0 0.0
        %2881 = vmatprep.subr.mxu0 0.0
        %2882 = vmatpush2.xpose.msra.mxu0 0.0
        %2883 = vmatprep.subr.mxu0 0.0
        %2884 = vmatpush2.xpose.msra.mxu0 0.0
        %2885 = vmatprep.subr.mxu0 0.0
        %2886 = vmatpush2.xpose.msra.mxu0 0.0
        %2887 = vmatprep.subr.mxu0 0.0
        %2888 = vmatpush2.xpose.msra.mxu0 0.0
        %2889 = vmatprep.subr.mxu0 0.0
        %2890 = vmatpush2.xpose.msra.mxu0 0.0
        %2891 = vmatprep.subr.mxu0 0.0
        %2892 = vmatpush2.xpose.msra.mxu0 0.0
        %2893 = vmatprep.subr.mxu0 0.0
        %2894 = vmatpush2.xpose.msra.mxu0 0.0
        %2895 = vmatprep.mubr.f32.mxu0 0.0
        %2896 = vmatmul.mubr.f32.gmra.mxu0 %v2151
        %v2897 = vpop.f32.mrf.mxu0
        %v2898 = vadd.f32 0.0, %v2897
        %v2899 = vpop.f32.mrf.mxu0
        %2900 = vdwg.mxu0
        %v2901 = vmul.f32 %v2898, 0.088388346
        %v2902 = vmul.f32 %v2901, %v2653
        %v2903 = vadd.f32 %v2902, %v2654
        %v2904 = vsel %vm2729, %v2903, -inf
        %2905 = vmax.xlane.f32.xlu0 %v2904
        %v2906 = vpop.xlane.xlu0 %2905
        %v2907 = vsub.f32 %v2903, %v2906
        %v2908 = vmul.f32 %v2907, 1.442695
        %v2909 = vpow.pop %v2908
        %v2910 = vsel %vm2729, %v2909, 0.0
        %2911 = vadd.xlane.f32.xlu0 %v2910
        %v2912 = vpop.xlane.xlu0 %2911
        %v2913 = vrcp.pop %v2912
        %v2914 = vmul.f32 %v2909, %v2913
        %v2916 = vsel %vm2729, %v2914, 0
        %2918 = vmatprep.subr.mxu0 0.0
        %2919 = vmatpush1.msra.mxu0 0.0
        %2920 = vmatprep.subr.mxu0 0.0
        %2921 = vmatpush1.msra.mxu0 0.0
        %2922 = vmatprep.subr.mxu0 0.0
        %2923 = vmatpush1.msra.mxu0 0.0
        %2924 = vmatprep.subr.mxu0 0.0
        %2925 = vmatpush1.msra.mxu0 0.0
        %2926 = vmatprep.subr.mxu0 0.0
        %2927 = vmatpush1.msra.mxu0 0.0
        %2928 = vmatprep.subr.mxu0 0.0
        %2929 = vmatpush1.msra.mxu0 0.0
        %2930 = vmatprep.subr.mxu0 0.0
        %2931 = vmatpush1.msra.mxu0 0.0
        %2932 = vmatprep.subr.mxu0 0.0
        %2933 = vmatpush1.msra.mxu0 0.0
        %2934 = vmatprep.subr.mxu0 0.0
        %2935 = vmatpush1.msra.mxu0 0.0
        %2936 = vmatprep.subr.mxu0 0.0
        %2937 = vmatpush1.msra.mxu0 0.0
        %2938 = vmatprep.subr.mxu0 0.0
        %2939 = vmatpush1.msra.mxu0 0.0
        %2940 = vmatprep.subr.mxu0 0.0
        %2941 = vmatpush1.msra.mxu0 0.0
        %2942 = vmatprep.subr.mxu0 0.0
        %2943 = vmatpush1.msra.mxu0 0.0
        %2944 = vmatprep.subr.mxu0 0.0
        %2945 = vmatpush1.msra.mxu0 0.0
        %2946 = vmatprep.subr.mxu0 0.0
        %2947 = vmatpush1.msra.mxu0 %v2651
        %2948 = vmatprep.subr.mxu0 0.0
        %2949 = vmatpush1.msra.mxu0 %v2647
        %2950 = vmatprep.subr.mxu0 0.0
        %2951 = vmatpush2.msra.mxu0 0.0
        %2952 = vmatprep.subr.mxu0 0.0
        %2953 = vmatpush2.msra.mxu0 0.0
        %2954 = vmatprep.subr.mxu0 0.0
        %2955 = vmatpush2.msra.mxu0 0.0
        %2956 = vmatprep.subr.mxu0 0.0
        %2957 = vmatpush2.msra.mxu0 0.0
        %2958 = vmatprep.subr.mxu0 0.0
        %2959 = vmatpush2.msra.mxu0 0.0
        %2960 = vmatprep.subr.mxu0 0.0
        %2961 = vmatpush2.msra.mxu0 0.0
        %2962 = vmatprep.subr.mxu0 0.0
        %2963 = vmatpush2.msra.mxu0 0.0
        %2964 = vmatprep.subr.mxu0 0.0
        %2965 = vmatpush2.msra.mxu0 0.0
        %2966 = vmatprep.subr.mxu0 0.0
        %2967 = vmatpush2.msra.mxu0 0.0
        %2968 = vmatprep.subr.mxu0 0.0
        %2969 = vmatpush2.msra.mxu0 0.0
        %2970 = vmatprep.subr.mxu0 0.0
        %2971 = vmatpush2.msra.mxu0 0.0
        %2972 = vmatprep.subr.mxu0 0.0
        %2973 = vmatpush2.msra.mxu0 0.0
        %2974 = vmatprep.subr.mxu0 0.0
        %2975 = vmatpush2.msra.mxu0 0.0
        %2976 = vmatprep.subr.mxu0 0.0
        %2977 = vmatpush2.msra.mxu0 0.0
        %2978 = vmatprep.subr.mxu0 0.0
        %2979 = vmatpush2.msra.mxu0 0.0
        %2980 = vmatprep.subr.mxu0 0.0
        %2981 = vmatpush2.msra.mxu0 0.0
        %2982 = vmatprep.mubr.f32.mxu0 0.0
        %2983 = vmatmul.mubr.f32.gmra.mxu0 %v2916
        %v2984 = vpop.f32.mrf.mxu0
        %v2985 = vadd.f32 0.0, %v2984
        %v2986 = vpop.f32.mrf.mxu0
        %2987 = vdwg.mxu0
        %v2988 = vld [vmem:[%s440 + $0x538] sm:$0xff]
        %v2989 = vld [vmem:[%s440 + $0x588] sm:$0xff]
        %v2990 = vld [vmem:[%s440 + $0x5d8] sm:$0xff]
        %v2991 = vld [vmem:[%s440 + $0x628] sm:$0xff]
        %v2992 = vld [vmem:[%s440 + $0x678] sm:$0xff]
        %v2993 = vld [vmem:[%s440 + $0x6c8] sm:$0xff]
        %v2994 = vld [vmem:[%s440 + $0x718] sm:$0xff]
        %v2995 = vld [vmem:[%s440 + $0x768] sm:$0xff]
        %v2996 = vld [vmem:[%s440 + $0x7b8] sm:$0xff]
        %v2997 = vld [vmem:[%s440 + $0x808] sm:$0xff]
        %v2998 = vld [vmem:[%s440 + $0x858] sm:$0xff]
        %v2999 = vld [vmem:[%s440 + $0x8a8] sm:$0xff]
        %v3000 = vld [vmem:[%s440 + $0x8f8] sm:$0xff]
        %v3001 = vld [vmem:[%s440 + $0x948] sm:$0xff]
        %v3002 = vld [vmem:[%s440 + $0x998] sm:$0xff]
        %v3003 = vld [vmem:[%s440 + $0x9e8] sm:$0xff]
        %v3004 = vpack.c.bf16 %v2985, %v2985
        %v3021 = vunpack.c.l.b16 %v2988
        %v3022 = vunpack.c.h.b16 %v2988
        %v3023 = vunpack.c.l.b16 %v2989
        %v3024 = vunpack.c.h.b16 %v2989
        %v3025 = vunpack.c.l.b16 %v2990
        %v3026 = vunpack.c.h.b16 %v2990
        %v3027 = vunpack.c.l.b16 %v2991
        %v3028 = vunpack.c.h.b16 %v2991
        %v3029 = vunpack.c.l.b16 %v2992
        %v3030 = vunpack.c.h.b16 %v2992
        %v3031 = vunpack.c.l.b16 %v2993
        %v3032 = vunpack.c.h.b16 %v2993
        %v3033 = vunpack.c.l.b16 %v2994
        %v3034 = vunpack.c.h.b16 %v2994
        %v3035 = vunpack.c.l.b16 %v2995
        %v3036 = vunpack.c.h.b16 %v2995
        %v3037 = vunpack.c.l.b16 %v2996
        %v3038 = vunpack.c.h.b16 %v2996
        %v3039 = vunpack.c.l.b16 %v2997
        %v3040 = vunpack.c.h.b16 %v2997
        %v3041 = vunpack.c.l.b16 %v2998
        %v3042 = vunpack.c.h.b16 %v2998
        %v3043 = vunpack.c.l.b16 %v2999
        %v3044 = vunpack.c.h.b16 %v2999
        %v3045 = vunpack.c.l.b16 %v3000
        %v3046 = vunpack.c.h.b16 %v3000
        %v3047 = vunpack.c.l.b16 %v3001
        %v3048 = vunpack.c.h.b16 %v3001
        %v3049 = vunpack.c.l.b16 %v3002
        %v3050 = vunpack.c.h.b16 %v3002
        %v3051 = vunpack.c.l.b16 %v3003
        %v3052 = vunpack.c.h.b16 %v3003
        %v3053 = vpack.c.b16 %v3023, %v3021
        %v3054 = vpack.c.b16 %v3024, %v3022
        %v3055 = vpack.c.b16 %v3027, %v3025
        %v3056 = vpack.c.b16 %v3028, %v3026
        %v3057 = vpack.c.b16 %v3031, %v3029
        %v3058 = vpack.c.b16 %v3032, %v3030
        %v3059 = vpack.c.b16 %v3035, %v3033
        %v3060 = vpack.c.b16 %v3036, %v3034
        %v3061 = vpack.c.b16 %v3039, %v3037
        %v3062 = vpack.c.b16 %v3040, %v3038
        %v3063 = vpack.c.b16 %v3043, %v3041
        %v3064 = vpack.c.b16 %v3044, %v3042
        %v3065 = vpack.c.b16 %v3047, %v3045
        %v3066 = vpack.c.b16 %v3048, %v3046
        %v3067 = vpack.c.b16 %v3051, %v3049
        %v3068 = vpack.c.b16 %v3052, %v3050
        %3085 = vmatprep.subr.bf16.mxu0 %v3068
        %3086 = vmatpush1.bf16.msra.mxu0 %v3067
        %3087 = vmatprep.subr.bf16.mxu0 %v3066
        %3088 = vmatpush1.bf16.msra.mxu0 %v3065
        %3089 = vmatprep.subr.bf16.mxu0 %v3064
        %3090 = vmatpush1.bf16.msra.mxu0 %v3063
        %3091 = vmatprep.subr.bf16.mxu0 %v3062
        %3092 = vmatpush1.bf16.msra.mxu0 %v3061
        %3093 = vmatprep.subr.bf16.mxu0 %v3060
        %3094 = vmatpush1.bf16.msra.mxu0 %v3059
        %3095 = vmatprep.subr.bf16.mxu0 %v3058
        %3096 = vmatpush1.bf16.msra.mxu0 %v3057
        %3097 = vmatprep.subr.bf16.mxu0 %v3056
        %3098 = vmatpush1.bf16.msra.mxu0 %v3055
        %3099 = vmatprep.subr.bf16.mxu0 %v3054
        %3100 = vmatpush1.bf16.msra.mxu0 %v3053
        %3101 = vmatprep.subr.bf16.mxu0 0
        %3102 = vmatpush2.bf16.msra.mxu0 0
        %3103 = vmatprep.subr.bf16.mxu0 0
        %3104 = vmatpush2.bf16.msra.mxu0 0
        %3105 = vmatprep.subr.bf16.mxu0 0
        %3106 = vmatpush2.bf16.msra.mxu0 0
        %3107 = vmatprep.subr.bf16.mxu0 0
        %3108 = vmatpush2.bf16.msra.mxu0 0
        %3109 = vmatprep.subr.bf16.mxu0 0
        %3110 = vmatpush2.bf16.msra.mxu0 0
        %3111 = vmatprep.subr.bf16.mxu0 0
        %3112 = vmatpush2.bf16.msra.mxu0 0
        %3113 = vmatprep.subr.bf16.mxu0 0
        %3114 = vmatpush2.bf16.msra.mxu0 0
        %3115 = vmatprep.subr.bf16.mxu0 0
        %3116 = vmatpush2.bf16.msra.mxu0 0
        %3117 = vmatprep.mubr.bf16.mxu0 0
        %3118 = vmatmul.mubr.bf16.gmra.mxu0 %v3004
        %v3119 = vpop.f32.mrf.mxu0
        %v3120 = vadd.f32 0.0, %v3119
        %v3121 = vpop.f32.mrf.mxu0
        %v3122 = vadd.f32 0.0, %v3121
        %v3123 = vpop.f32.mrf.mxu0
        %v3124 = vpop.f32.mrf.mxu0
        %3125 = vdwg.mxu0
        %v3142 = vunpack.c.l.b16 %v2814
        %v3143 = vunpack.c.h.b16 %v2814
        %v3144 = vunpack.c.l.b16 %v2815
        %v3145 = vunpack.c.h.b16 %v2815
        %v3146 = vunpack.c.l.b16 %v2816
        %v3147 = vunpack.c.h.b16 %v2816
        %v3148 = vunpack.c.l.b16 %v2817
        %v3149 = vunpack.c.h.b16 %v2817
        %v3150 = vunpack.c.l.b16 %v2818
        %v3151 = vunpack.c.h.b16 %v2818
        %v3152 = vunpack.c.l.b16 %v2819
        %v3153 = vunpack.c.h.b16 %v2819
        %v3154 = vunpack.c.l.b16 %v2820
        %v3155 = vunpack.c.h.b16 %v2820
        %v3156 = vunpack.c.l.b16 %v2821
        %v3157 = vunpack.c.h.b16 %v2821
        %v3158 = vunpack.c.l.b16 %v2822
        %v3159 = vunpack.c.h.b16 %v2822
        %v3160 = vunpack.c.l.b16 %v2823
        %v3161 = vunpack.c.h.b16 %v2823
        %v3162 = vunpack.c.l.b16 %v2824
        %v3163 = vunpack.c.h.b16 %v2824
        %v3164 = vunpack.c.l.b16 %v2825
        %v3165 = vunpack.c.h.b16 %v2825
        %v3166 = vunpack.c.l.b16 %v2826
        %v3167 = vunpack.c.h.b16 %v2826
        %v3168 = vunpack.c.l.b16 %v2827
        %v3169 = vunpack.c.h.b16 %v2827
        %v3170 = vunpack.c.l.b16 %v2828
        %v3171 = vunpack.c.h.b16 %v2828
        %v3172 = vunpack.c.l.b16 %v2829
        %v3173 = vunpack.c.h.b16 %v2829
        %v3174 = vpack.c.b16 %v3144, %v3142
        %v3175 = vpack.c.b16 %v3145, %v3143
        %v3176 = vpack.c.b16 %v3148, %v3146
        %v3177 = vpack.c.b16 %v3149, %v3147
        %v3178 = vpack.c.b16 %v3152, %v3150
        %v3179 = vpack.c.b16 %v3153, %v3151
        %v3180 = vpack.c.b16 %v3156, %v3154
        %v3181 = vpack.c.b16 %v3157, %v3155
        %v3182 = vpack.c.b16 %v3160, %v3158
        %v3183 = vpack.c.b16 %v3161, %v3159
        %v3184 = vpack.c.b16 %v3164, %v3162
        %v3185 = vpack.c.b16 %v3165, %v3163
        %v3186 = vpack.c.b16 %v3168, %v3166
        %v3187 = vpack.c.b16 %v3169, %v3167
        %v3188 = vpack.c.b16 %v3172, %v3170
        %v3189 = vpack.c.b16 %v3173, %v3171
        %3206 = vmatprep.subr.bf16.mxu0 %v3189
        %3207 = vmatpush1.bf16.msra.mxu0 %v3188
        %3208 = vmatprep.subr.bf16.mxu0 %v3187
        %3209 = vmatpush1.bf16.msra.mxu0 %v3186
        %3210 = vmatprep.subr.bf16.mxu0 %v3185
        %3211 = vmatpush1.bf16.msra.mxu0 %v3184
        %3212 = vmatprep.subr.bf16.mxu0 %v3183
        %3213 = vmatpush1.bf16.msra.mxu0 %v3182
        %3214 = vmatprep.subr.bf16.mxu0 %v3181
        %3215 = vmatpush1.bf16.msra.mxu0 %v3180
        %3216 = vmatprep.subr.bf16.mxu0 %v3179
        %3217 = vmatpush1.bf16.msra.mxu0 %v3178
        %3218 = vmatprep.subr.bf16.mxu0 %v3177
        %3219 = vmatpush1.bf16.msra.mxu0 %v3176
        %3220 = vmatprep.subr.bf16.mxu0 %v3175
        %3221 = vmatpush1.bf16.msra.mxu0 %v3174
        %3222 = vmatprep.subr.bf16.mxu0 0
        %3223 = vmatpush2.bf16.msra.mxu0 0
        %3224 = vmatprep.subr.bf16.mxu0 0
        %3225 = vmatpush2.bf16.msra.mxu0 0
        %3226 = vmatprep.subr.bf16.mxu0 0
        %3227 = vmatpush2.bf16.msra.mxu0 0
        %3228 = vmatprep.subr.bf16.mxu0 0
        %3229 = vmatpush2.bf16.msra.mxu0 0
        %3230 = vmatprep.subr.bf16.mxu0 0
        %3231 = vmatpush2.bf16.msra.mxu0 0
        %3232 = vmatprep.subr.bf16.mxu0 0
        %3233 = vmatpush2.bf16.msra.mxu0 0
        %3234 = vmatprep.subr.bf16.mxu0 0
        %3235 = vmatpush2.bf16.msra.mxu0 0
        %3236 = vmatprep.subr.bf16.mxu0 0
        %3237 = vmatpush2.bf16.msra.mxu0 0
        %3238 = vmatprep.mubr.bf16.mxu0 0
        %3239 = vmatmul.mubr.bf16.gmra.mxu0 %v2830
        %v3240 = vpop.f32.mrf.mxu0
        %v3241 = vadd.f32 %v3120, %v3240
        %v3242 = vpop.f32.mrf.mxu0
        %v3243 = vadd.f32 %v3122, %v3242
        %v3244 = vpop.f32.mrf.mxu0
        %v3245 = vpop.f32.mrf.mxu0
        %3246 = vdwg.mxu0
        %v3248 = vlaneseq
        %v3249 = vshrl.u32 %v3248, 7
        %v3250 = vsub.s32 0, %v3249
        %v3251 = vrot.slane %v2655, %v3250
        %v3252 = vlaneseq
        %v3253 = vshrl.u32 %v3252, 7
        %v3254 = vsub.s32 1, %v3253
        %v3255 = vrot.slane %v2655, %v3254
        %v3258 = vadd.f32 %v3241, %v3251
        %v3259 = vadd.f32 %v3243, %v3255
        %v3260 = vadd.f32 %v1906, %v3258
        %v3261 = vadd.f32 %v1907, %v3259
        %v3262 = vld [vmem:[%s458 + $0x14] sm:$0x3]
        %v3263 = vld [vmem:[%s458 + $0x16] sm:$0x3]
        %v3264 = vadd.f32 %v3260, %v3261
        %3265 = vadd.xlane.f32.xlu0 %v3264
        %v3266 = vpop.xlane.xlu0 %3265
        %v3267 = vmul.f32 %v3266, %v1868
        %v3268 = vsub.f32 %v3260, %v3267
        %v3269 = vsub.f32 %v3261, %v3267
        %v3270 = vmul.f32 %v3268, %v3268
        %v3271 = vmul.f32 %v3269, %v3269
        %v3272 = vadd.f32 %v3270, %v3271
        %3273 = vadd.xlane.f32.xlu0 %v3272
        %v3274 = vpop.xlane.xlu0 %3273
        %v3275 = vmul.f32 %v3274, %v1868
        %v3276 = vadd.f32 %v3275, 1e-05
        %v3277 = vrsqrt.pop %v3276
        %v3278 = vmul.f32 %v3268, %v3277
        %v3279 = vmul.f32 %v3269, %v3277
        %v3281 = vlaneseq
        %v3282 = vshrl.u32 %v3281, 7
        %v3283 = vsub.s32 0, %v3282
        %v3284 = vrot.slane %v3262, %v3283
        %v3285 = vlaneseq
        %v3286 = vshrl.u32 %v3285, 7
        %v3287 = vsub.s32 1, %v3286
        %v3288 = vrot.slane %v3262, %v3287
        %v3291 = vmul.f32 %v3278, %v3284
        %v3292 = vmul.f32 %v3279, %v3288
        %v3294 = vlaneseq
        %v3295 = vshrl.u32 %v3294, 7
        %v3296 = vsub.s32 0, %v3295
        %v3297 = vrot.slane %v3263, %v3296
        %v3298 = vlaneseq
        %v3299 = vshrl.u32 %v3298, 7
        %v3300 = vsub.s32 1, %v3299
        %v3301 = vrot.slane %v3263, %v3300
        %v3304 = vadd.f32 %v3291, %v3297
        %v3305 = vadd.f32 %v3292, %v3301
        %v3306 = vpack.c.bf16 %v3304, %v3304
        %v3307 = vpack.c.bf16 %v3305, %v3305
        %v3308 = vld [vmem:[%s440 + $0x40] sm:$0xff]
        %v3309 = vld [vmem:[%s440 + $0x48] sm:$0xff]
        %v3310 = vld [vmem:[%s440 + $0x90] sm:$0xff]
        %v3311 = vld [vmem:[%s440 + $0x98] sm:$0xff]
        %v3312 = vld [vmem:[%s440 + $0xe0] sm:$0xff]
        %v3313 = vld [vmem:[%s440 + $0xe8] sm:$0xff]
        %v3314 = vld [vmem:[%s440 + $0x130] sm:$0xff]
        %v3315 = vld [vmem:[%s440 + $0x138] sm:$0xff]
        %v3316 = vld [vmem:[%s440 + $0x180] sm:$0xff]
        %v3317 = vld [vmem:[%s440 + $0x188] sm:$0xff]
        %v3318 = vld [vmem:[%s440 + $0x1d0] sm:$0xff]
        %v3319 = vld [vmem:[%s440 + $0x1d8] sm:$0xff]
        %v3320 = vld [vmem:[%s440 + $0x220] sm:$0xff]
        %v3321 = vld [vmem:[%s440 + $0x228] sm:$0xff]
        %v3322 = vld [vmem:[%s440 + $0x270] sm:$0xff]
        %v3323 = vld [vmem:[%s440 + $0x278] sm:$0xff]
        %v3324 = vld [vmem:[%s440 + $0x2c0] sm:$0xff]
        %v3325 = vld [vmem:[%s440 + $0x2c8] sm:$0xff]
        %v3326 = vld [vmem:[%s440 + $0x310] sm:$0xff]
        %v3327 = vld [vmem:[%s440 + $0x318] sm:$0xff]
        %v3328 = vld [vmem:[%s440 + $0x360] sm:$0xff]
        %v3329 = vld [vmem:[%s440 + $0x368] sm:$0xff]
        %v3330 = vld [vmem:[%s440 + $0x3b0] sm:$0xff]
        %v3331 = vld [vmem:[%s440 + $0x3b8] sm:$0xff]
        %v3332 = vld [vmem:[%s440 + $0x400] sm:$0xff]
        %v3333 = vld [vmem:[%s440 + $0x408] sm:$0xff]
        %v3334 = vld [vmem:[%s440 + $0x450] sm:$0xff]
        %v3335 = vld [vmem:[%s440 + $0x458] sm:$0xff]
        %v3336 = vld [vmem:[%s440 + $0x4a0] sm:$0xff]
        %v3337 = vld [vmem:[%s440 + $0x4a8] sm:$0xff]
        %v3338 = vld [vmem:[%s440 + $0x4f0] sm:$0xff]
        %v3339 = vld [vmem:[%s440 + $0x4f8] sm:$0xff]
        %v3340 = vld [vmem:[%s440 + $0x540] sm:$0xff]
        %v3341 = vld [vmem:[%s440 + $0x548] sm:$0xff]
        %v3342 = vld [vmem:[%s440 + $0x590] sm:$0xff]
        %v3343 = vld [vmem:[%s440 + $0x598] sm:$0xff]
        %v3344 = vld [vmem:[%s440 + $0x5e0] sm:$0xff]
        %v3345 = vld [vmem:[%s440 + $0x5e8] sm:$0xff]
        %v3346 = vld [vmem:[%s440 + $0x630] sm:$0xff]
        %v3347 = vld [vmem:[%s440 + $0x638] sm:$0xff]
        %v3348 = vld [vmem:[%s440 + $0x680] sm:$0xff]
        %v3349 = vld [vmem:[%s440 + $0x688] sm:$0xff]
        %v3350 = vld [vmem:[%s440 + $0x6d0] sm:$0xff]
        %v3351 = vld [vmem:[%s440 + $0x6d8] sm:$0xff]
        %v3352 = vld [vmem:[%s440 + $0x720] sm:$0xff]
        %v3353 = vld [vmem:[%s440 + $0x728] sm:$0xff]
        %v3354 = vld [vmem:[%s440 + $0x770] sm:$0xff]
        %v3355 = vld [vmem:[%s440 + $0x778] sm:$0xff]
        %v3356 = vld [vmem:[%s440 + $0x7c0] sm:$0xff]
        %v3357 = vld [vmem:[%s440 + $0x7c8] sm:$0xff]
        %v3358 = vld [vmem:[%s440 + $0x810] sm:$0xff]
        %v3359 = vld [vmem:[%s440 + $0x818] sm:$0xff]
        %v3360 = vld [vmem:[%s440 + $0x860] sm:$0xff]
        %v3361 = vld [vmem:[%s440 + $0x868] sm:$0xff]
        %v3362 = vld [vmem:[%s440 + $0x8b0] sm:$0xff]
        %v3363 = vld [vmem:[%s440 + $0x8b8] sm:$0xff]
        %v3364 = vld [vmem:[%s440 + $0x900] sm:$0xff]
        %v3365 = vld [vmem:[%s440 + $0x908] sm:$0xff]
        %v3366 = vld [vmem:[%s440 + $0x950] sm:$0xff]
        %v3367 = vld [vmem:[%s440 + $0x958] sm:$0xff]
        %v3368 = vld [vmem:[%s440 + $0x9a0] sm:$0xff]
        %v3369 = vld [vmem:[%s440 + $0x9a8] sm:$0xff]
        %v3370 = vld [vmem:[%s440 + $0x9f0] sm:$0xff]
        %v3371 = vld [vmem:[%s440 + $0x9f8] sm:$0xff]
        %v3372 = vld [vmem:[%s458 + $0x18] sm:$0xf]
        %v3374 = vlaneseq
        %v3375 = vshrl.u32 %v3374, 7
        %v3376 = vsub.s32 0, %v3375
        %v3377 = vrot.slane %v3372, %v3376
        %v3378 = vlaneseq
        %v3379 = vshrl.u32 %v3378, 7
        %v3380 = vsub.s32 1, %v3379
        %v3381 = vrot.slane %v3372, %v3380
        %v3382 = vlaneseq
        %v3383 = vshrl.u32 %v3382, 7
        %v3384 = vsub.s32 2, %v3383
        %v3385 = vrot.slane %v3372, %v3384
        %v3386 = vlaneseq
        %v3387 = vshrl.u32 %v3386, 7
        %v3388 = vsub.s32 3, %v3387
        %v3389 = vrot.slane %v3372, %v3388
        %v3458 = vunpack.c.l.b16 %v3308
        %v3459 = vunpack.c.h.b16 %v3308
        %v3460 = vunpack.c.l.b16 %v3309
        %v3461 = vunpack.c.h.b16 %v3309
        %v3462 = vunpack.c.l.b16 %v3310
        %v3463 = vunpack.c.h.b16 %v3310
        %v3464 = vunpack.c.l.b16 %v3311
        %v3465 = vunpack.c.h.b16 %v3311
        %v3466 = vunpack.c.l.b16 %v3312
        %v3467 = vunpack.c.h.b16 %v3312
        %v3468 = vunpack.c.l.b16 %v3313
        %v3469 = vunpack.c.h.b16 %v3313
        %v3470 = vunpack.c.l.b16 %v3314
        %v3471 = vunpack.c.h.b16 %v3314
        %v3472 = vunpack.c.l.b16 %v3315
        %v3473 = vunpack.c.h.b16 %v3315
        %v3474 = vunpack.c.l.b16 %v3316
        %v3475 = vunpack.c.h.b16 %v3316
        %v3476 = vunpack.c.l.b16 %v3317
        %v3477 = vunpack.c.h.b16 %v3317
        %v3478 = vunpack.c.l.b16 %v3318
        %v3479 = vunpack.c.h.b16 %v3318
        %v3480 = vunpack.c.l.b16 %v3319
        %v3481 = vunpack.c.h.b16 %v3319
        %v3482 = vunpack.c.l.b16 %v3320
        %v3483 = vunpack.c.h.b16 %v3320
        %v3484 = vunpack.c.l.b16 %v3321
        %v3485 = vunpack.c.h.b16 %v3321
        %v3486 = vunpack.c.l.b16 %v3322
        %v3487 = vunpack.c.h.b16 %v3322
        %v3488 = vunpack.c.l.b16 %v3323
        %v3489 = vunpack.c.h.b16 %v3323
        %v3490 = vunpack.c.l.b16 %v3324
        %v3491 = vunpack.c.h.b16 %v3324
        %v3492 = vunpack.c.l.b16 %v3325
        %v3493 = vunpack.c.h.b16 %v3325
        %v3494 = vunpack.c.l.b16 %v3326
        %v3495 = vunpack.c.h.b16 %v3326
        %v3496 = vunpack.c.l.b16 %v3327
        %v3497 = vunpack.c.h.b16 %v3327
        %v3498 = vunpack.c.l.b16 %v3328
        %v3499 = vunpack.c.h.b16 %v3328
        %v3500 = vunpack.c.l.b16 %v3329
        %v3501 = vunpack.c.h.b16 %v3329
        %v3502 = vunpack.c.l.b16 %v3330
        %v3503 = vunpack.c.h.b16 %v3330
        %v3504 = vunpack.c.l.b16 %v3331
        %v3505 = vunpack.c.h.b16 %v3331
        %v3506 = vunpack.c.l.b16 %v3332
        %v3507 = vunpack.c.h.b16 %v3332
        %v3508 = vunpack.c.l.b16 %v3333
        %v3509 = vunpack.c.h.b16 %v3333
        %v3510 = vunpack.c.l.b16 %v3334
        %v3511 = vunpack.c.h.b16 %v3334
        %v3512 = vunpack.c.l.b16 %v3335
        %v3513 = vunpack.c.h.b16 %v3335
        %v3514 = vunpack.c.l.b16 %v3336
        %v3515 = vunpack.c.h.b16 %v3336
        %v3516 = vunpack.c.l.b16 %v3337
        %v3517 = vunpack.c.h.b16 %v3337
        %v3518 = vunpack.c.l.b16 %v3338
        %v3519 = vunpack.c.h.b16 %v3338
        %v3520 = vunpack.c.l.b16 %v3339
        %v3521 = vunpack.c.h.b16 %v3339
        %v3522 = vunpack.c.l.b16 %v3340
        %v3523 = vunpack.c.h.b16 %v3340
        %v3524 = vunpack.c.l.b16 %v3341
        %v3525 = vunpack.c.h.b16 %v3341
        %v3526 = vunpack.c.l.b16 %v3342
        %v3527 = vunpack.c.h.b16 %v3342
        %v3528 = vunpack.c.l.b16 %v3343
        %v3529 = vunpack.c.h.b16 %v3343
        %v3530 = vunpack.c.l.b16 %v3344
        %v3531 = vunpack.c.h.b16 %v3344
        %v3532 = vunpack.c.l.b16 %v3345
        %v3533 = vunpack.c.h.b16 %v3345
        %v3534 = vunpack.c.l.b16 %v3346
        %v3535 = vunpack.c.h.b16 %v3346
        %v3536 = vunpack.c.l.b16 %v3347
        %v3537 = vunpack.c.h.b16 %v3347
        %v3538 = vunpack.c.l.b16 %v3348
        %v3539 = vunpack.c.h.b16 %v3348
        %v3540 = vunpack.c.l.b16 %v3349
        %v3541 = vunpack.c.h.b16 %v3349
        %v3542 = vunpack.c.l.b16 %v3350
        %v3543 = vunpack.c.h.b16 %v3350
        %v3544 = vunpack.c.l.b16 %v3351
        %v3545 = vunpack.c.h.b16 %v3351
        %v3546 = vunpack.c.l.b16 %v3352
        %v3547 = vunpack.c.h.b16 %v3352
        %v3548 = vunpack.c.l.b16 %v3353
        %v3549 = vunpack.c.h.b16 %v3353
        %v3550 = vunpack.c.l.b16 %v3354
        %v3551 = vunpack.c.h.b16 %v3354
        %v3552 = vunpack.c.l.b16 %v3355
        %v3553 = vunpack.c.h.b16 %v3355
        %v3554 = vunpack.c.l.b16 %v3356
        %v3555 = vunpack.c.h.b16 %v3356
        %v3556 = vunpack.c.l.b16 %v3357
        %v3557 = vunpack.c.h.b16 %v3357
        %v3558 = vunpack.c.l.b16 %v3358
        %v3559 = vunpack.c.h.b16 %v3358
        %v3560 = vunpack.c.l.b16 %v3359
        %v3561 = vunpack.c.h.b16 %v3359
        %v3562 = vunpack.c.l.b16 %v3360
        %v3563 = vunpack.c.h.b16 %v3360
        %v3564 = vunpack.c.l.b16 %v3361
        %v3565 = vunpack.c.h.b16 %v3361
        %v3566 = vunpack.c.l.b16 %v3362
        %v3567 = vunpack.c.h.b16 %v3362
        %v3568 = vunpack.c.l.b16 %v3363
        %v3569 = vunpack.c.h.b16 %v3363
        %v3570 = vunpack.c.l.b16 %v3364
        %v3571 = vunpack.c.h.b16 %v3364
        %v3572 = vunpack.c.l.b16 %v3365
        %v3573 = vunpack.c.h.b16 %v3365
        %v3574 = vunpack.c.l.b16 %v3366
        %v3575 = vunpack.c.h.b16 %v3366
        %v3576 = vunpack.c.l.b16 %v3367
        %v3577 = vunpack.c.h.b16 %v3367
        %v3578 = vunpack.c.l.b16 %v3368
        %v3579 = vunpack.c.h.b16 %v3368
        %v3580 = vunpack.c.l.b16 %v3369
        %v3581 = vunpack.c.h.b16 %v3369
        %v3582 = vunpack.c.l.b16 %v3370
        %v3583 = vunpack.c.h.b16 %v3370
        %v3584 = vunpack.c.l.b16 %v3371
        %v3585 = vunpack.c.h.b16 %v3371
        %v3586 = vpack.c.b16 %v3462, %v3458
        %v3587 = vpack.c.b16 %v3463, %v3459
        %v3588 = vpack.c.b16 %v3464, %v3460
        %v3589 = vpack.c.b16 %v3465, %v3461
        %v3590 = vpack.c.b16 %v3470, %v3466
        %v3591 = vpack.c.b16 %v3471, %v3467
        %v3592 = vpack.c.b16 %v3472, %v3468
        %v3593 = vpack.c.b16 %v3473, %v3469
        %v3594 = vpack.c.b16 %v3478, %v3474
        %v3595 = vpack.c.b16 %v3479, %v3475
        %v3596 = vpack.c.b16 %v3480, %v3476
        %v3597 = vpack.c.b16 %v3481, %v3477
        %v3598 = vpack.c.b16 %v3486, %v3482
        %v3599 = vpack.c.b16 %v3487, %v3483
        %v3600 = vpack.c.b16 %v3488, %v3484
        %v3601 = vpack.c.b16 %v3489, %v3485
        %v3602 = vpack.c.b16 %v3494, %v3490
        %v3603 = vpack.c.b16 %v3495, %v3491
        %v3604 = vpack.c.b16 %v3496, %v3492
        %v3605 = vpack.c.b16 %v3497, %v3493
        %v3606 = vpack.c.b16 %v3502, %v3498
        %v3607 = vpack.c.b16 %v3503, %v3499
        %v3608 = vpack.c.b16 %v3504, %v3500
        %v3609 = vpack.c.b16 %v3505, %v3501
        %v3610 = vpack.c.b16 %v3510, %v3506
        %v3611 = vpack.c.b16 %v3511, %v3507
        %v3612 = vpack.c.b16 %v3512, %v3508
        %v3613 = vpack.c.b16 %v3513, %v3509
        %v3614 = vpack.c.b16 %v3518, %v3514
        %v3615 = vpack.c.b16 %v3519, %v3515
        %v3616 = vpack.c.b16 %v3520, %v3516
        %v3617 = vpack.c.b16 %v3521, %v3517
        %v3618 = vpack.c.b16 %v3526, %v3522
        %v3619 = vpack.c.b16 %v3527, %v3523
        %v3620 = vpack.c.b16 %v3528, %v3524
        %v3621 = vpack.c.b16 %v3529, %v3525
        %v3622 = vpack.c.b16 %v3534, %v3530
        %v3623 = vpack.c.b16 %v3535, %v3531
        %v3624 = vpack.c.b16 %v3536, %v3532
        %v3625 = vpack.c.b16 %v3537, %v3533
        %v3626 = vpack.c.b16 %v3542, %v3538
        %v3627 = vpack.c.b16 %v3543, %v3539
        %v3628 = vpack.c.b16 %v3544, %v3540
        %v3629 = vpack.c.b16 %v3545, %v3541
        %v3630 = vpack.c.b16 %v3550, %v3546
        %v3631 = vpack.c.b16 %v3551, %v3547
        %v3632 = vpack.c.b16 %v3552, %v3548
        %v3633 = vpack.c.b16 %v3553, %v3549
        %v3634 = vpack.c.b16 %v3558, %v3554
        %v3635 = vpack.c.b16 %v3559, %v3555
        %v3636 = vpack.c.b16 %v3560, %v3556
        %v3637 = vpack.c.b16 %v3561, %v3557
        %v3638 = vpack.c.b16 %v3566, %v3562
        %v3639 = vpack.c.b16 %v3567, %v3563
        %v3640 = vpack.c.b16 %v3568, %v3564
        %v3641 = vpack.c.b16 %v3569, %v3565
        %v3642 = vpack.c.b16 %v3574, %v3570
        %v3643 = vpack.c.b16 %v3575, %v3571
        %v3644 = vpack.c.b16 %v3576, %v3572
        %v3645 = vpack.c.b16 %v3577, %v3573
        %v3646 = vpack.c.b16 %v3582, %v3578
        %v3647 = vpack.c.b16 %v3583, %v3579
        %v3648 = vpack.c.b16 %v3584, %v3580
        %v3649 = vpack.c.b16 %v3585, %v3581
        %3714 = vmatprep.subr.bf16.mxu0 %v3615
        %3715 = vmatpush1.bf16.msra.mxu0 %v3614
        %3716 = vmatprep.subr.bf16.mxu0 %v3611
        %3717 = vmatpush1.bf16.msra.mxu0 %v3610
        %3718 = vmatprep.subr.bf16.mxu0 %v3607
        %3719 = vmatpush1.bf16.msra.mxu0 %v3606
        %3720 = vmatprep.subr.bf16.mxu0 %v3603
        %3721 = vmatpush1.bf16.msra.mxu0 %v3602
        %3722 = vmatprep.subr.bf16.mxu0 %v3599
        %3723 = vmatpush1.bf16.msra.mxu0 %v3598
        %3724 = vmatprep.subr.bf16.mxu0 %v3595
        %3725 = vmatpush1.bf16.msra.mxu0 %v3594
        %3726 = vmatprep.subr.bf16.mxu0 %v3591
        %3727 = vmatpush1.bf16.msra.mxu0 %v3590
        %3728 = vmatprep.subr.bf16.mxu0 %v3587
        %3729 = vmatpush1.bf16.msra.mxu0 %v3586
        %3730 = vmatprep.subr.bf16.mxu0 %v3647
        %3731 = vmatpush2.bf16.msra.mxu0 %v3646
        %3732 = vmatprep.subr.bf16.mxu0 %v3643
        %3733 = vmatpush2.bf16.msra.mxu0 %v3642
        %3734 = vmatprep.subr.bf16.mxu0 %v3639
        %3735 = vmatpush2.bf16.msra.mxu0 %v3638
        %3736 = vmatprep.subr.bf16.mxu0 %v3635
        %3737 = vmatpush2.bf16.msra.mxu0 %v3634
        %3738 = vmatprep.subr.bf16.mxu0 %v3631
        %3739 = vmatpush2.bf16.msra.mxu0 %v3630
        %3740 = vmatprep.subr.bf16.mxu0 %v3627
        %3741 = vmatpush2.bf16.msra.mxu0 %v3626
        %3742 = vmatprep.subr.bf16.mxu0 %v3623
        %3743 = vmatpush2.bf16.msra.mxu0 %v3622
        %3744 = vmatprep.subr.bf16.mxu0 %v3619
        %3745 = vmatpush2.bf16.msra.mxu0 %v3618
        %3746 = vmatprep.mubr.bf16.mxu0 %v3307
        %3747 = vmatmul.mubr.bf16.gmra.mxu0 %v3306
        %v3748 = vpop.f32.mrf.mxu0
        %v3749 = vadd.f32 %v3377, %v3748
        %v3750 = vpop.f32.mrf.mxu0
        %v3751 = vadd.f32 %v3381, %v3750
        %v3752 = vpop.f32.mrf.mxu0
        %v3753 = vpop.f32.mrf.mxu0
        %3754 = vdwg.mxu0
        %3755 = vmatprep.subr.bf16.mxu0 %v3617
        %3756 = vmatpush1.bf16.msra.mxu0 %v3616
        %3757 = vmatprep.subr.bf16.mxu0 %v3613
        %3758 = vmatpush1.bf16.msra.mxu0 %v3612
        %3759 = vmatprep.subr.bf16.mxu0 %v3609
        %3760 = vmatpush1.bf16.msra.mxu0 %v3608
        %3761 = vmatprep.subr.bf16.mxu0 %v3605
        %3762 = vmatpush1.bf16.msra.mxu0 %v3604
        %3763 = vmatprep.subr.bf16.mxu0 %v3601
        %3764 = vmatpush1.bf16.msra.mxu0 %v3600
        %3765 = vmatprep.subr.bf16.mxu0 %v3597
        %3766 = vmatpush1.bf16.msra.mxu0 %v3596
        %3767 = vmatprep.subr.bf16.mxu0 %v3593
        %3768 = vmatpush1.bf16.msra.mxu0 %v3592
        %3769 = vmatprep.subr.bf16.mxu0 %v3589
        %3770 = vmatpush1.bf16.msra.mxu0 %v3588
        %3771 = vmatprep.subr.bf16.mxu0 %v3649
        %3772 = vmatpush2.bf16.msra.mxu0 %v3648
        %3773 = vmatprep.subr.bf16.mxu0 %v3645
        %3774 = vmatpush2.bf16.msra.mxu0 %v3644
        %3775 = vmatprep.subr.bf16.mxu0 %v3641
        %3776 = vmatpush2.bf16.msra.mxu0 %v3640
        %3777 = vmatprep.subr.bf16.mxu0 %v3637
        %3778 = vmatpush2.bf16.msra.mxu0 %v3636
        %3779 = vmatprep.subr.bf16.mxu0 %v3633
        %3780 = vmatpush2.bf16.msra.mxu0 %v3632
        %3781 = vmatprep.subr.bf16.mxu0 %v3629
        %3782 = vmatpush2.bf16.msra.mxu0 %v3628
        %3783 = vmatprep.subr.bf16.mxu0 %v3625
        %3784 = vmatpush2.bf16.msra.mxu0 %v3624
        %3785 = vmatprep.subr.bf16.mxu0 %v3621
        %3786 = vmatpush2.bf16.msra.mxu0 %v3620
        %3787 = vmatprep.mubr.bf16.mxu0 %v3307
        %3788 = vmatmul.mubr.bf16.gmra.mxu0 %v3306
        %v3789 = vpop.f32.mrf.mxu0
        %v3790 = vadd.f32 %v3385, %v3789
        %v3791 = vpop.f32.mrf.mxu0
        %v3792 = vadd.f32 %v3389, %v3791
        %v3793 = vpop.f32.mrf.mxu0
        %v3794 = vpop.f32.mrf.mxu0
        %3795 = vdwg.mxu0
        %v3796 = vmax.f32 %v3749, 0.0
        %v3797 = vmax.f32 %v3751, 0.0
        %v3798 = vmax.f32 %v3790, 0.0
        %v3799 = vmax.f32 %v3792, 0.0
        %v3800 = vpack.c.bf16 %v3796, %v3796
        %v3801 = vpack.c.bf16 %v3797, %v3797
        %v3802 = vpack.c.bf16 %v3798, %v3798
        %v3803 = vpack.c.bf16 %v3799, %v3799
        %v3804 = vld [vmem:[%s449] sm:$0xff]
        %v3805 = vld [vmem:[%s449 + $0x8] sm:$0xff]
        %v3806 = vld [vmem:[%s449 + $0x10] sm:$0xff]
        %v3807 = vld [vmem:[%s449 + $0x18] sm:$0xff]
        %v3808 = vld [vmem:[%s449 + $0x20] sm:$0xff]
        %v3809 = vld [vmem:[%s449 + $0x28] sm:$0xff]
        %v3810 = vld [vmem:[%s449 + $0x30] sm:$0xff]
        %v3811 = vld [vmem:[%s449 + $0x38] sm:$0xff]
        %v3812 = vld [vmem:[%s449 + $0x40] sm:$0xff]
        %v3813 = vld [vmem:[%s449 + $0x48] sm:$0xff]
        %v3814 = vld [vmem:[%s449 + $0x50] sm:$0xff]
        %v3815 = vld [vmem:[%s449 + $0x58] sm:$0xff]
        %v3816 = vld [vmem:[%s449 + $0x60] sm:$0xff]
        %v3817 = vld [vmem:[%s449 + $0x68] sm:$0xff]
        %v3818 = vld [vmem:[%s449 + $0x70] sm:$0xff]
        %v3819 = vld [vmem:[%s449 + $0x78] sm:$0xff]
        %v3820 = vld [vmem:[%s449 + $0x80] sm:$0xff]
        %v3821 = vld [vmem:[%s449 + $0x88] sm:$0xff]
        %v3822 = vld [vmem:[%s449 + $0x90] sm:$0xff]
        %v3823 = vld [vmem:[%s449 + $0x98] sm:$0xff]
        %v3824 = vld [vmem:[%s449 + $0xa0] sm:$0xff]
        %v3825 = vld [vmem:[%s449 + $0xa8] sm:$0xff]
        %v3826 = vld [vmem:[%s449 + $0xb0] sm:$0xff]
        %v3827 = vld [vmem:[%s449 + $0xb8] sm:$0xff]
        %v3828 = vld [vmem:[%s449 + $0xc0] sm:$0xff]
        %v3829 = vld [vmem:[%s449 + $0xc8] sm:$0xff]
        %v3830 = vld [vmem:[%s449 + $0xd0] sm:$0xff]
        %v3831 = vld [vmem:[%s449 + $0xd8] sm:$0xff]
        %v3832 = vld [vmem:[%s449 + $0xe0] sm:$0xff]
        %v3833 = vld [vmem:[%s449 + $0xe8] sm:$0xff]
        %v3834 = vld [vmem:[%s449 + $0xf0] sm:$0xff]
        %v3835 = vld [vmem:[%s449 + $0xf8] sm:$0xff]
        %v3836 = vld [vmem:[%s449 + $0x100] sm:$0xff]
        %v3837 = vld [vmem:[%s449 + $0x108] sm:$0xff]
        %v3838 = vld [vmem:[%s449 + $0x110] sm:$0xff]
        %v3839 = vld [vmem:[%s449 + $0x118] sm:$0xff]
        %v3840 = vld [vmem:[%s449 + $0x120] sm:$0xff]
        %v3841 = vld [vmem:[%s449 + $0x128] sm:$0xff]
        %v3842 = vld [vmem:[%s449 + $0x130] sm:$0xff]
        %v3843 = vld [vmem:[%s449 + $0x138] sm:$0xff]
        %v3844 = vld [vmem:[%s449 + $0x140] sm:$0xff]
        %v3845 = vld [vmem:[%s449 + $0x148] sm:$0xff]
        %v3846 = vld [vmem:[%s449 + $0x150] sm:$0xff]
        %v3847 = vld [vmem:[%s449 + $0x158] sm:$0xff]
        %v3848 = vld [vmem:[%s449 + $0x160] sm:$0xff]
        %v3849 = vld [vmem:[%s449 + $0x168] sm:$0xff]
        %v3850 = vld [vmem:[%s449 + $0x170] sm:$0xff]
        %v3851 = vld [vmem:[%s449 + $0x178] sm:$0xff]
        %v3852 = vld [vmem:[%s449 + $0x180] sm:$0xff]
        %v3853 = vld [vmem:[%s449 + $0x188] sm:$0xff]
        %v3854 = vld [vmem:[%s449 + $0x190] sm:$0xff]
        %v3855 = vld [vmem:[%s449 + $0x198] sm:$0xff]
        %v3856 = vld [vmem:[%s449 + $0x1a0] sm:$0xff]
        %v3857 = vld [vmem:[%s449 + $0x1a8] sm:$0xff]
        %v3858 = vld [vmem:[%s449 + $0x1b0] sm:$0xff]
        %v3859 = vld [vmem:[%s449 + $0x1b8] sm:$0xff]
        %v3860 = vld [vmem:[%s449 + $0x1c0] sm:$0xff]
        %v3861 = vld [vmem:[%s449 + $0x1c8] sm:$0xff]
        %v3862 = vld [vmem:[%s449 + $0x1d0] sm:$0xff]
        %v3863 = vld [vmem:[%s449 + $0x1d8] sm:$0xff]
        %v3864 = vld [vmem:[%s449 + $0x1e0] sm:$0xff]
        %v3865 = vld [vmem:[%s449 + $0x1e8] sm:$0xff]
        %v3866 = vld [vmem:[%s449 + $0x1f0] sm:$0xff]
        %v3867 = vld [vmem:[%s449 + $0x1f8] sm:$0xff]
        %v3868 = vld [vmem:[%s458 + $0x1c] sm:$0x3]
        %v3870 = vlaneseq
        %v3871 = vshrl.u32 %v3870, 7
        %v3872 = vsub.s32 0, %v3871
        %v3873 = vrot.slane %v3868, %v3872
        %v3874 = vlaneseq
        %v3875 = vshrl.u32 %v3874, 7
        %v3876 = vsub.s32 1, %v3875
        %v3877 = vrot.slane %v3868, %v3876
        %v3944 = vunpack.c.l.b16 %v3804
        %v3945 = vunpack.c.h.b16 %v3804
        %v3946 = vunpack.c.l.b16 %v3805
        %v3947 = vunpack.c.h.b16 %v3805
        %v3948 = vunpack.c.l.b16 %v3806
        %v3949 = vunpack.c.h.b16 %v3806
        %v3950 = vunpack.c.l.b16 %v3807
        %v3951 = vunpack.c.h.b16 %v3807
        %v3952 = vunpack.c.l.b16 %v3808
        %v3953 = vunpack.c.h.b16 %v3808
        %v3954 = vunpack.c.l.b16 %v3809
        %v3955 = vunpack.c.h.b16 %v3809
        %v3956 = vunpack.c.l.b16 %v3810
        %v3957 = vunpack.c.h.b16 %v3810
        %v3958 = vunpack.c.l.b16 %v3811
        %v3959 = vunpack.c.h.b16 %v3811
        %v3960 = vunpack.c.l.b16 %v3812
        %v3961 = vunpack.c.h.b16 %v3812
        %v3962 = vunpack.c.l.b16 %v3813
        %v3963 = vunpack.c.h.b16 %v3813
        %v3964 = vunpack.c.l.b16 %v3814
        %v3965 = vunpack.c.h.b16 %v3814
        %v3966 = vunpack.c.l.b16 %v3815
        %v3967 = vunpack.c.h.b16 %v3815
        %v3968 = vunpack.c.l.b16 %v3816
        %v3969 = vunpack.c.h.b16 %v3816
        %v3970 = vunpack.c.l.b16 %v3817
        %v3971 = vunpack.c.h.b16 %v3817
        %v3972 = vunpack.c.l.b16 %v3818
        %v3973 = vunpack.c.h.b16 %v3818
        %v3974 = vunpack.c.l.b16 %v3819
        %v3975 = vunpack.c.h.b16 %v3819
        %v3976 = vunpack.c.l.b16 %v3820
        %v3977 = vunpack.c.h.b16 %v3820
        %v3978 = vunpack.c.l.b16 %v3821
        %v3979 = vunpack.c.h.b16 %v3821
        %v3980 = vunpack.c.l.b16 %v3822
        %v3981 = vunpack.c.h.b16 %v3822
        %v3982 = vunpack.c.l.b16 %v3823
        %v3983 = vunpack.c.h.b16 %v3823
        %v3984 = vunpack.c.l.b16 %v3824
        %v3985 = vunpack.c.h.b16 %v3824
        %v3986 = vunpack.c.l.b16 %v3825
        %v3987 = vunpack.c.h.b16 %v3825
        %v3988 = vunpack.c.l.b16 %v3826
        %v3989 = vunpack.c.h.b16 %v3826
        %v3990 = vunpack.c.l.b16 %v3827
        %v3991 = vunpack.c.h.b16 %v3827
        %v3992 = vunpack.c.l.b16 %v3828
        %v3993 = vunpack.c.h.b16 %v3828
        %v3994 = vunpack.c.l.b16 %v3829
        %v3995 = vunpack.c.h.b16 %v3829
        %v3996 = vunpack.c.l.b16 %v3830
        %v3997 = vunpack.c.h.b16 %v3830
        %v3998 = vunpack.c.l.b16 %v3831
        %v3999 = vunpack.c.h.b16 %v3831
        %v4000 = vunpack.c.l.b16 %v3832
        %v4001 = vunpack.c.h.b16 %v3832
        %v4002 = vunpack.c.l.b16 %v3833
        %v4003 = vunpack.c.h.b16 %v3833
        %v4004 = vunpack.c.l.b16 %v3834
        %v4005 = vunpack.c.h.b16 %v3834
        %v4006 = vunpack.c.l.b16 %v3835
        %v4007 = vunpack.c.h.b16 %v3835
        %v4008 = vunpack.c.l.b16 %v3836
        %v4009 = vunpack.c.h.b16 %v3836
        %v4010 = vunpack.c.l.b16 %v3837
        %v4011 = vunpack.c.h.b16 %v3837
        %v4012 = vunpack.c.l.b16 %v3838
        %v4013 = vunpack.c.h.b16 %v3838
        %v4014 = vunpack.c.l.b16 %v3839
        %v4015 = vunpack.c.h.b16 %v3839
        %v4016 = vunpack.c.l.b16 %v3840
        %v4017 = vunpack.c.h.b16 %v3840
        %v4018 = vunpack.c.l.b16 %v3841
        %v4019 = vunpack.c.h.b16 %v3841
        %v4020 = vunpack.c.l.b16 %v3842
        %v4021 = vunpack.c.h.b16 %v3842
        %v4022 = vunpack.c.l.b16 %v3843
        %v4023 = vunpack.c.h.b16 %v3843
        %v4024 = vunpack.c.l.b16 %v3844
        %v4025 = vunpack.c.h.b16 %v3844
        %v4026 = vunpack.c.l.b16 %v3845
        %v4027 = vunpack.c.h.b16 %v3845
        %v4028 = vunpack.c.l.b16 %v3846
        %v4029 = vunpack.c.h.b16 %v3846
        %v4030 = vunpack.c.l.b16 %v3847
        %v4031 = vunpack.c.h.b16 %v3847
        %v4032 = vunpack.c.l.b16 %v3848
        %v4033 = vunpack.c.h.b16 %v3848
        %v4034 = vunpack.c.l.b16 %v3849
        %v4035 = vunpack.c.h.b16 %v3849
        %v4036 = vunpack.c.l.b16 %v3850
        %v4037 = vunpack.c.h.b16 %v3850
        %v4038 = vunpack.c.l.b16 %v3851
        %v4039 = vunpack.c.h.b16 %v3851
        %v4040 = vunpack.c.l.b16 %v3852
        %v4041 = vunpack.c.h.b16 %v3852
        %v4042 = vunpack.c.l.b16 %v3853
        %v4043 = vunpack.c.h.b16 %v3853
        %v4044 = vunpack.c.l.b16 %v3854
        %v4045 = vunpack.c.h.b16 %v3854
        %v4046 = vunpack.c.l.b16 %v3855
        %v4047 = vunpack.c.h.b16 %v3855
        %v4048 = vunpack.c.l.b16 %v3856
        %v4049 = vunpack.c.h.b16 %v3856
        %v4050 = vunpack.c.l.b16 %v3857
        %v4051 = vunpack.c.h.b16 %v3857
        %v4052 = vunpack.c.l.b16 %v3858
        %v4053 = vunpack.c.h.b16 %v3858
        %v4054 = vunpack.c.l.b16 %v3859
        %v4055 = vunpack.c.h.b16 %v3859
        %v4056 = vunpack.c.l.b16 %v3860
        %v4057 = vunpack.c.h.b16 %v3860
        %v4058 = vunpack.c.l.b16 %v3861
        %v4059 = vunpack.c.h.b16 %v3861
        %v4060 = vunpack.c.l.b16 %v3862
        %v4061 = vunpack.c.h.b16 %v3862
        %v4062 = vunpack.c.l.b16 %v3863
        %v4063 = vunpack.c.h.b16 %v3863
        %v4064 = vunpack.c.l.b16 %v3864
        %v4065 = vunpack.c.h.b16 %v3864
        %v4066 = vunpack.c.l.b16 %v3865
        %v4067 = vunpack.c.h.b16 %v3865
        %v4068 = vunpack.c.l.b16 %v3866
        %v4069 = vunpack.c.h.b16 %v3866
        %v4070 = vunpack.c.l.b16 %v3867
        %v4071 = vunpack.c.h.b16 %v3867
        %v4072 = vpack.c.b16 %v3946, %v3944
        %v4073 = vpack.c.b16 %v3947, %v3945
        %v4074 = vpack.c.b16 %v3950, %v3948
        %v4075 = vpack.c.b16 %v3951, %v3949
        %v4076 = vpack.c.b16 %v3954, %v3952
        %v4077 = vpack.c.b16 %v3955, %v3953
        %v4078 = vpack.c.b16 %v3958, %v3956
        %v4079 = vpack.c.b16 %v3959, %v3957
        %v4080 = vpack.c.b16 %v3962, %v3960
        %v4081 = vpack.c.b16 %v3963, %v3961
        %v4082 = vpack.c.b16 %v3966, %v3964
        %v4083 = vpack.c.b16 %v3967, %v3965
        %v4084 = vpack.c.b16 %v3970, %v3968
        %v4085 = vpack.c.b16 %v3971, %v3969
        %v4086 = vpack.c.b16 %v3974, %v3972
        %v4087 = vpack.c.b16 %v3975, %v3973
        %v4088 = vpack.c.b16 %v3978, %v3976
        %v4089 = vpack.c.b16 %v3979, %v3977
        %v4090 = vpack.c.b16 %v3982, %v3980
        %v4091 = vpack.c.b16 %v3983, %v3981
        %v4092 = vpack.c.b16 %v3986, %v3984
        %v4093 = vpack.c.b16 %v3987, %v3985
        %v4094 = vpack.c.b16 %v3990, %v3988
        %v4095 = vpack.c.b16 %v3991, %v3989
        %v4096 = vpack.c.b16 %v3994, %v3992
        %v4097 = vpack.c.b16 %v3995, %v3993
        %v4098 = vpack.c.b16 %v3998, %v3996
        %v4099 = vpack.c.b16 %v3999, %v3997
        %v4100 = vpack.c.b16 %v4002, %v4000
        %v4101 = vpack.c.b16 %v4003, %v4001
        %v4102 = vpack.c.b16 %v4006, %v4004
        %v4103 = vpack.c.b16 %v4007, %v4005
        %v4104 = vpack.c.b16 %v4010, %v4008
        %v4105 = vpack.c.b16 %v4011, %v4009
        %v4106 = vpack.c.b16 %v4014, %v4012
        %v4107 = vpack.c.b16 %v4015, %v4013
        %v4108 = vpack.c.b16 %v4018, %v4016
        %v4109 = vpack.c.b16 %v4019, %v4017
        %v4110 = vpack.c.b16 %v4022, %v4020
        %v4111 = vpack.c.b16 %v4023, %v4021
        %v4112 = vpack.c.b16 %v4026, %v4024
        %v4113 = vpack.c.b16 %v4027, %v4025
        %v4114 = vpack.c.b16 %v4030, %v4028
        %v4115 = vpack.c.b16 %v4031, %v4029
        %v4116 = vpack.c.b16 %v4034, %v4032
        %v4117 = vpack.c.b16 %v4035, %v4033
        %v4118 = vpack.c.b16 %v4038, %v4036
        %v4119 = vpack.c.b16 %v4039, %v4037
        %v4120 = vpack.c.b16 %v4042, %v4040
        %v4121 = vpack.c.b16 %v4043, %v4041
        %v4122 = vpack.c.b16 %v4046, %v4044
        %v4123 = vpack.c.b16 %v4047, %v4045
        %v4124 = vpack.c.b16 %v4050, %v4048
        %v4125 = vpack.c.b16 %v4051, %v4049
        %v4126 = vpack.c.b16 %v4054, %v4052
        %v4127 = vpack.c.b16 %v4055, %v4053
        %v4128 = vpack.c.b16 %v4058, %v4056
        %v4129 = vpack.c.b16 %v4059, %v4057
        %v4130 = vpack.c.b16 %v4062, %v4060
        %v4131 = vpack.c.b16 %v4063, %v4061
        %v4132 = vpack.c.b16 %v4066, %v4064
        %v4133 = vpack.c.b16 %v4067, %v4065
        %v4134 = vpack.c.b16 %v4070, %v4068
        %v4135 = vpack.c.b16 %v4071, %v4069
        %4200 = vmatprep.subr.bf16.mxu0 %v4087
        %4201 = vmatpush1.bf16.msra.mxu0 %v4086
        %4202 = vmatprep.subr.bf16.mxu0 %v4085
        %4203 = vmatpush1.bf16.msra.mxu0 %v4084
        %4204 = vmatprep.subr.bf16.mxu0 %v4083
        %4205 = vmatpush1.bf16.msra.mxu0 %v4082
        %4206 = vmatprep.subr.bf16.mxu0 %v4081
        %4207 = vmatpush1.bf16.msra.mxu0 %v4080
        %4208 = vmatprep.subr.bf16.mxu0 %v4079
        %4209 = vmatpush1.bf16.msra.mxu0 %v4078
        %4210 = vmatprep.subr.bf16.mxu0 %v4077
        %4211 = vmatpush1.bf16.msra.mxu0 %v4076
        %4212 = vmatprep.subr.bf16.mxu0 %v4075
        %4213 = vmatpush1.bf16.msra.mxu0 %v4074
        %4214 = vmatprep.subr.bf16.mxu0 %v4073
        %4215 = vmatpush1.bf16.msra.mxu0 %v4072
        %4216 = vmatprep.subr.bf16.mxu0 %v4103
        %4217 = vmatpush2.bf16.msra.mxu0 %v4102
        %4218 = vmatprep.subr.bf16.mxu0 %v4101
        %4219 = vmatpush2.bf16.msra.mxu0 %v4100
        %4220 = vmatprep.subr.bf16.mxu0 %v4099
        %4221 = vmatpush2.bf16.msra.mxu0 %v4098
        %4222 = vmatprep.subr.bf16.mxu0 %v4097
        %4223 = vmatpush2.bf16.msra.mxu0 %v4096
        %4224 = vmatprep.subr.bf16.mxu0 %v4095
        %4225 = vmatpush2.bf16.msra.mxu0 %v4094
        %4226 = vmatprep.subr.bf16.mxu0 %v4093
        %4227 = vmatpush2.bf16.msra.mxu0 %v4092
        %4228 = vmatprep.subr.bf16.mxu0 %v4091
        %4229 = vmatpush2.bf16.msra.mxu0 %v4090
        %4230 = vmatprep.subr.bf16.mxu0 %v4089
        %4231 = vmatpush2.bf16.msra.mxu0 %v4088
        %4232 = vmatprep.mubr.bf16.mxu0 %v3801
        %4233 = vmatmul.mubr.bf16.gmra.mxu0 %v3800
        %v4234 = vpop.f32.mrf.mxu0
        %v4235 = vadd.f32 %v3873, %v4234
        %v4236 = vpop.f32.mrf.mxu0
        %v4237 = vadd.f32 %v3877, %v4236
        %v4238 = vpop.f32.mrf.mxu0
        %v4239 = vpop.f32.mrf.mxu0
        %4240 = vdwg.mxu0
        %4241 = vmatprep.subr.bf16.mxu0 %v4119
        %4242 = vmatpush1.bf16.msra.mxu0 %v4118
        %4243 = vmatprep.subr.bf16.mxu0 %v4117
        %4244 = vmatpush1.bf16.msra.mxu0 %v4116
        %4245 = vmatprep.subr.bf16.mxu0 %v4115
        %4246 = vmatpush1.bf16.msra.mxu0 %v4114
        %4247 = vmatprep.subr.bf16.mxu0 %v4113
        %4248 = vmatpush1.bf16.msra.mxu0 %v4112
        %4249 = vmatprep.subr.bf16.mxu0 %v4111
        %4250 = vmatpush1.bf16.msra.mxu0 %v4110
        %4251 = vmatprep.subr.bf16.mxu0 %v4109
        %4252 = vmatpush1.bf16.msra.mxu0 %v4108
        %4253 = vmatprep.subr.bf16.mxu0 %v4107
        %4254 = vmatpush1.bf16.msra.mxu0 %v4106
        %4255 = vmatprep.subr.bf16.mxu0 %v4105
        %4256 = vmatpush1.bf16.msra.mxu0 %v4104
        %4257 = vmatprep.subr.bf16.mxu0 %v4135
        %4258 = vmatpush2.bf16.msra.mxu0 %v4134
        %4259 = vmatprep.subr.bf16.mxu0 %v4133
        %4260 = vmatpush2.bf16.msra.mxu0 %v4132
        %4261 = vmatprep.subr.bf16.mxu0 %v4131
        %4262 = vmatpush2.bf16.msra.mxu0 %v4130
        %4263 = vmatprep.subr.bf16.mxu0 %v4129
        %4264 = vmatpush2.bf16.msra.mxu0 %v4128
        %4265 = vmatprep.subr.bf16.mxu0 %v4127
        %4266 = vmatpush2.bf16.msra.mxu0 %v4126
        %4267 = vmatprep.subr.bf16.mxu0 %v4125
        %4268 = vmatpush2.bf16.msra.mxu0 %v4124
        %4269 = vmatprep.subr.bf16.mxu0 %v4123
        %4270 = vmatpush2.bf16.msra.mxu0 %v4122
        %4271 = vmatprep.subr.bf16.mxu0 %v4121
        %4272 = vmatpush2.bf16.msra.mxu0 %v4120
        %4273 = vmatprep.mubr.bf16.mxu0 %v3803
        %4274 = vmatmul.mubr.bf16.gmra.mxu0 %v3802
        %v4275 = vpop.f32.mrf.mxu0
        %v4276 = vadd.f32 %v4235, %v4275
        %v4277 = vpop.f32.mrf.mxu0
        %v4278 = vadd.f32 %v4237, %v4277
        %v4279 = vpop.f32.mrf.mxu0
        %v4280 = vpop.f32.mrf.mxu0
        %4281 = vdwg.mxu0
        %v4282 = vadd.f32 %v3304, %v4276
        %v4283 = vadd.f32 %v3305, %v4278
        %v4284 = vld [vmem:[%s458 + $0x1e] sm:$0x3]
        %v4285 = vld [vmem:[%s458 + $0x20] sm:$0x3]
        %v4286 = vadd.f32 %v4282, %v4283
        %4287 = vadd.xlane.f32.xlu0 %v4286
        %v4288 = vpop.xlane.xlu0 %4287
        %v4289 = vmul.f32 %v4288, %v1868
        %v4290 = vsub.f32 %v4282, %v4289
        %v4291 = vsub.f32 %v4283, %v4289
        %v4292 = vmul.f32 %v4290, %v4290
        %v4293 = vmul.f32 %v4291, %v4291
        %v4294 = vadd.f32 %v4292, %v4293
        %4295 = vadd.xlane.f32.xlu0 %v4294
        %v4296 = vpop.xlane.xlu0 %4295
        %v4297 = vmul.f32 %v4296, %v1868
        %v4298 = vadd.f32 %v4297, 1e-05
        %v4299 = vrsqrt.pop %v4298
        %v4300 = vmul.f32 %v4290, %v4299
        %v4301 = vmul.f32 %v4291, %v4299
        %v4303 = vlaneseq
        %v4304 = vshrl.u32 %v4303, 7
        %v4305 = vsub.s32 0, %v4304
        %v4306 = vrot.slane %v4284, %v4305
        %v4307 = vlaneseq
        %v4308 = vshrl.u32 %v4307, 7
        %v4309 = vsub.s32 1, %v4308
        %v4310 = vrot.slane %v4284, %v4309
        %v4313 = vmul.f32 %v4300, %v4306
        %v4314 = vmul.f32 %v4301, %v4310
        %v4316 = vlaneseq
        %v4317 = vshrl.u32 %v4316, 7
        %v4318 = vsub.s32 0, %v4317
        %v4319 = vrot.slane %v4285, %v4318
        %v4320 = vlaneseq
        %v4321 = vshrl.u32 %v4320, 7
        %v4322 = vsub.s32 1, %v4321
        %v4323 = vrot.slane %v4285, %v4322
        %v4326 = vadd.f32 %v4313, %v4319
        %v4327 = vadd.f32 %v4314, %v4323
        %4328 = vst [vmem:[#allocation2] sm:$0xff] %v4326
        %4329 = vst [vmem:[#allocation2 + $0x8] sm:$0xff] %v4327
        %p4330 = scmp.eq.s32.totalorder %s31, 4
        // Predicated region
        $region93: #{decoder_forward.1} parent=63 // pred_check
          %p4331 = pneg %p4330
        $region94: #{decoder_forward.1} parent=63 // pred_check_branch
          %4333 = sbr.rel (%p4331) target = $region96
        $region95: #{decoder_forward.1} parent=63 // pred_region
          %v4334 = vpack.c.bf16 %v4326, %v4326
          %v4335 = vpack.c.bf16 %v4327, %v4327
          %v4336 = vld [vmem:[#allocation11] sm:$0xff]
          %v4337 = vld [vmem:[#allocation11 + $0x8] sm:$0xff]
          %v4338 = vld [vmem:[#allocation11 + $0x10] sm:$0xff]
          %v4339 = vld [vmem:[#allocation11 + $0x18] sm:$0xff]
          %v4340 = vld [vmem:[#allocation11 + $0x20] sm:$0xff]
          %v4341 = vld [vmem:[#allocation11 + $0x28] sm:$0xff]
          %v4342 = vld [vmem:[#allocation11 + $0x30] sm:$0xff]
          %v4343 = vld [vmem:[#allocation11 + $0x38] sm:$0xff]
          %v4344 = vld [vmem:[#allocation11 + $0x40] sm:$0xff]
          %v4345 = vld [vmem:[#allocation11 + $0x48] sm:$0xff]
          %v4346 = vld [vmem:[#allocation11 + $0x50] sm:$0xff]
          %v4347 = vld [vmem:[#allocation11 + $0x58] sm:$0xff]
          %v4348 = vld [vmem:[#allocation11 + $0x60] sm:$0xff]
          %v4349 = vld [vmem:[#allocation11 + $0x68] sm:$0xff]
          %v4350 = vld [vmem:[#allocation11 + $0x70] sm:$0xff]
          %v4351 = vld [vmem:[#allocation11 + $0x78] sm:$0xff]
          %v4352 = vld [vmem:[#allocation11 + $0x80] sm:$0xff]
          %v4353 = vld [vmem:[#allocation11 + $0x88] sm:$0xff]
          %v4354 = vld [vmem:[#allocation11 + $0x90] sm:$0xff]
          %v4355 = vld [vmem:[#allocation11 + $0x98] sm:$0xff]
          %v4356 = vld [vmem:[#allocation11 + $0xa0] sm:$0xff]
          %v4357 = vld [vmem:[#allocation11 + $0xa8] sm:$0xff]
          %v4358 = vld [vmem:[#allocation11 + $0xb0] sm:$0xff]
          %v4359 = vld [vmem:[#allocation11 + $0xb8] sm:$0xff]
          %v4360 = vld [vmem:[#allocation11 + $0xc0] sm:$0xff]
          %v4361 = vld [vmem:[#allocation11 + $0xc8] sm:$0xff]
          %v4362 = vld [vmem:[#allocation11 + $0xd0] sm:$0xff]
          %v4363 = vld [vmem:[#allocation11 + $0xd8] sm:$0xff]
          %v4364 = vld [vmem:[#allocation11 + $0xe0] sm:$0xff]
          %v4365 = vld [vmem:[#allocation11 + $0xe8] sm:$0xff]
          %v4366 = vld [vmem:[#allocation11 + $0xf0] sm:$0xff]
          %v4367 = vld [vmem:[#allocation11 + $0xf8] sm:$0xff]
          %v4368 = vld [vmem:[#allocation11 + $0x100] sm:$0xff]
          %v4369 = vld [vmem:[#allocation11 + $0x108] sm:$0xff]
          %v4370 = vld [vmem:[#allocation11 + $0x110] sm:$0xff]
          %v4371 = vld [vmem:[#allocation11 + $0x118] sm:$0xff]
          %v4372 = vld [vmem:[#allocation11 + $0x120] sm:$0xff]
          %v4373 = vld [vmem:[#allocation11 + $0x128] sm:$0xff]
          %v4374 = vld [vmem:[#allocation11 + $0x130] sm:$0xff]
          %v4375 = vld [vmem:[#allocation11 + $0x138] sm:$0xff]
          %v4376 = vld [vmem:[#allocation11 + $0x140] sm:$0xff]
          %v4377 = vld [vmem:[#allocation11 + $0x148] sm:$0xff]
          %v4378 = vld [vmem:[#allocation11 + $0x150] sm:$0xff]
          %v4379 = vld [vmem:[#allocation11 + $0x158] sm:$0xff]
          %v4380 = vld [vmem:[#allocation11 + $0x160] sm:$0xff]
          %v4381 = vld [vmem:[#allocation11 + $0x168] sm:$0xff]
          %v4382 = vld [vmem:[#allocation11 + $0x170] sm:$0xff]
          %v4383 = vld [vmem:[#allocation11 + $0x178] sm:$0xff]
          %v4384 = vld [vmem:[#allocation11 + $0x180] sm:$0xff]
          %v4385 = vld [vmem:[#allocation11 + $0x188] sm:$0xff]
          %v4386 = vld [vmem:[#allocation11 + $0x190] sm:$0xff]
          %v4387 = vld [vmem:[#allocation11 + $0x198] sm:$0xff]
          %v4388 = vld [vmem:[#allocation11 + $0x1a0] sm:$0xff]
          %v4389 = vld [vmem:[#allocation11 + $0x1a8] sm:$0xff]
          %v4390 = vld [vmem:[#allocation11 + $0x1b0] sm:$0xff]
          %v4391 = vld [vmem:[#allocation11 + $0x1b8] sm:$0xff]
          %v4392 = vld [vmem:[#allocation11 + $0x1c0] sm:$0xff]
          %v4393 = vld [vmem:[#allocation11 + $0x1c8] sm:$0xff]
          %v4394 = vld [vmem:[#allocation11 + $0x1d0] sm:$0xff]
          %v4395 = vld [vmem:[#allocation11 + $0x1d8] sm:$0xff]
          %v4396 = vld [vmem:[#allocation11 + $0x1e0] sm:$0xff]
          %v4397 = vld [vmem:[#allocation11 + $0x1e8] sm:$0xff]
          %v4398 = vld [vmem:[#allocation11 + $0x1f0] sm:$0xff]
          %v4399 = vld [vmem:[#allocation11 + $0x1f8] sm:$0xff]
          %v4400 = vld [vmem:[#allocation12] sm:$0xf]
          %v4402 = vshrl.u32 %v4334, 16
          %v4404 = vrot.slane %v4402, 3
          %v4406 = vshrl.u32 %v4335, 16
          %v4408 = vrot.slane %v4406, 3
          %v4475 = vunpack.c.l.b16 %v4336
          %v4476 = vunpack.c.h.b16 %v4336
          %v4477 = vunpack.c.l.b16 %v4337
          %v4478 = vunpack.c.h.b16 %v4337
          %v4479 = vunpack.c.l.b16 %v4338
          %v4480 = vunpack.c.h.b16 %v4338
          %v4481 = vunpack.c.l.b16 %v4339
          %v4482 = vunpack.c.h.b16 %v4339
          %v4483 = vunpack.c.l.b16 %v4340
          %v4484 = vunpack.c.h.b16 %v4340
          %v4485 = vunpack.c.l.b16 %v4341
          %v4486 = vunpack.c.h.b16 %v4341
          %v4487 = vunpack.c.l.b16 %v4342
          %v4488 = vunpack.c.h.b16 %v4342
          %v4489 = vunpack.c.l.b16 %v4343
          %v4490 = vunpack.c.h.b16 %v4343
          %v4491 = vunpack.c.l.b16 %v4344
          %v4492 = vunpack.c.h.b16 %v4344
          %v4493 = vunpack.c.l.b16 %v4345
          %v4494 = vunpack.c.h.b16 %v4345
          %v4495 = vunpack.c.l.b16 %v4346
          %v4496 = vunpack.c.h.b16 %v4346
          %v4497 = vunpack.c.l.b16 %v4347
          %v4498 = vunpack.c.h.b16 %v4347
          %v4499 = vunpack.c.l.b16 %v4348
          %v4500 = vunpack.c.h.b16 %v4348
          %v4501 = vunpack.c.l.b16 %v4349
          %v4502 = vunpack.c.h.b16 %v4349
          %v4503 = vunpack.c.l.b16 %v4350
          %v4504 = vunpack.c.h.b16 %v4350
          %v4505 = vunpack.c.l.b16 %v4351
          %v4506 = vunpack.c.h.b16 %v4351
          %v4507 = vunpack.c.l.b16 %v4352
          %v4508 = vunpack.c.h.b16 %v4352
          %v4509 = vunpack.c.l.b16 %v4353
          %v4510 = vunpack.c.h.b16 %v4353
          %v4511 = vunpack.c.l.b16 %v4354
          %v4512 = vunpack.c.h.b16 %v4354
          %v4513 = vunpack.c.l.b16 %v4355
          %v4514 = vunpack.c.h.b16 %v4355
          %v4515 = vunpack.c.l.b16 %v4356
          %v4516 = vunpack.c.h.b16 %v4356
          %v4517 = vunpack.c.l.b16 %v4357
          %v4518 = vunpack.c.h.b16 %v4357
          %v4519 = vunpack.c.l.b16 %v4358
          %v4520 = vunpack.c.h.b16 %v4358
          %v4521 = vunpack.c.l.b16 %v4359
          %v4522 = vunpack.c.h.b16 %v4359
          %v4523 = vunpack.c.l.b16 %v4360
          %v4524 = vunpack.c.h.b16 %v4360
          %v4525 = vunpack.c.l.b16 %v4361
          %v4526 = vunpack.c.h.b16 %v4361
          %v4527 = vunpack.c.l.b16 %v4362
          %v4528 = vunpack.c.h.b16 %v4362
          %v4529 = vunpack.c.l.b16 %v4363
          %v4530 = vunpack.c.h.b16 %v4363
          %v4531 = vunpack.c.l.b16 %v4364
          %v4532 = vunpack.c.h.b16 %v4364
          %v4533 = vunpack.c.l.b16 %v4365
          %v4534 = vunpack.c.h.b16 %v4365
          %v4535 = vunpack.c.l.b16 %v4366
          %v4536 = vunpack.c.h.b16 %v4366
          %v4537 = vunpack.c.l.b16 %v4367
          %v4538 = vunpack.c.h.b16 %v4367
          %v4539 = vunpack.c.l.b16 %v4368
          %v4540 = vunpack.c.h.b16 %v4368
          %v4541 = vunpack.c.l.b16 %v4369
          %v4542 = vunpack.c.h.b16 %v4369
          %v4543 = vunpack.c.l.b16 %v4370
          %v4544 = vunpack.c.h.b16 %v4370
          %v4545 = vunpack.c.l.b16 %v4371
          %v4546 = vunpack.c.h.b16 %v4371
          %v4547 = vunpack.c.l.b16 %v4372
          %v4548 = vunpack.c.h.b16 %v4372
          %v4549 = vunpack.c.l.b16 %v4373
          %v4550 = vunpack.c.h.b16 %v4373
          %v4551 = vunpack.c.l.b16 %v4374
          %v4552 = vunpack.c.h.b16 %v4374
          %v4553 = vunpack.c.l.b16 %v4375
          %v4554 = vunpack.c.h.b16 %v4375
          %v4555 = vunpack.c.l.b16 %v4376
          %v4556 = vunpack.c.h.b16 %v4376
          %v4557 = vunpack.c.l.b16 %v4377
          %v4558 = vunpack.c.h.b16 %v4377
          %v4559 = vunpack.c.l.b16 %v4378
          %v4560 = vunpack.c.h.b16 %v4378
          %v4561 = vunpack.c.l.b16 %v4379
          %v4562 = vunpack.c.h.b16 %v4379
          %v4563 = vunpack.c.l.b16 %v4380
          %v4564 = vunpack.c.h.b16 %v4380
          %v4565 = vunpack.c.l.b16 %v4381
          %v4566 = vunpack.c.h.b16 %v4381
          %v4567 = vunpack.c.l.b16 %v4382
          %v4568 = vunpack.c.h.b16 %v4382
          %v4569 = vunpack.c.l.b16 %v4383
          %v4570 = vunpack.c.h.b16 %v4383
          %v4571 = vunpack.c.l.b16 %v4384
          %v4572 = vunpack.c.h.b16 %v4384
          %v4573 = vunpack.c.l.b16 %v4385
          %v4574 = vunpack.c.h.b16 %v4385
          %v4575 = vunpack.c.l.b16 %v4386
          %v4576 = vunpack.c.h.b16 %v4386
          %v4577 = vunpack.c.l.b16 %v4387
          %v4578 = vunpack.c.h.b16 %v4387
          %v4579 = vunpack.c.l.b16 %v4388
          %v4580 = vunpack.c.h.b16 %v4388
          %v4581 = vunpack.c.l.b16 %v4389
          %v4582 = vunpack.c.h.b16 %v4389
          %v4583 = vunpack.c.l.b16 %v4390
          %v4584 = vunpack.c.h.b16 %v4390
          %v4585 = vunpack.c.l.b16 %v4391
          %v4586 = vunpack.c.h.b16 %v4391
          %v4587 = vunpack.c.l.b16 %v4392
          %v4588 = vunpack.c.h.b16 %v4392
          %v4589 = vunpack.c.l.b16 %v4393
          %v4590 = vunpack.c.h.b16 %v4393
          %v4591 = vunpack.c.l.b16 %v4394
          %v4592 = vunpack.c.h.b16 %v4394
          %v4593 = vunpack.c.l.b16 %v4395
          %v4594 = vunpack.c.h.b16 %v4395
          %v4595 = vunpack.c.l.b16 %v4396
          %v4596 = vunpack.c.h.b16 %v4396
          %v4597 = vunpack.c.l.b16 %v4397
          %v4598 = vunpack.c.h.b16 %v4397
          %v4599 = vunpack.c.l.b16 %v4398
          %v4600 = vunpack.c.h.b16 %v4398
          %v4601 = vunpack.c.l.b16 %v4399
          %v4602 = vunpack.c.h.b16 %v4399
          %v4603 = vpack.c.b16 %v4479, %v4475
          %v4604 = vpack.c.b16 %v4480, %v4476
          %v4605 = vpack.c.b16 %v4481, %v4477
          %v4606 = vpack.c.b16 %v4482, %v4478
          %v4607 = vpack.c.b16 %v4487, %v4483
          %v4608 = vpack.c.b16 %v4488, %v4484
          %v4609 = vpack.c.b16 %v4489, %v4485
          %v4610 = vpack.c.b16 %v4490, %v4486
          %v4611 = vpack.c.b16 %v4495, %v4491
          %v4612 = vpack.c.b16 %v4496, %v4492
          %v4613 = vpack.c.b16 %v4497, %v4493
          %v4614 = vpack.c.b16 %v4498, %v4494
          %v4615 = vpack.c.b16 %v4503, %v4499
          %v4616 = vpack.c.b16 %v4504, %v4500
          %v4617 = vpack.c.b16 %v4505, %v4501
          %v4618 = vpack.c.b16 %v4506, %v4502
          %v4619 = vpack.c.b16 %v4511, %v4507
          %v4620 = vpack.c.b16 %v4512, %v4508
          %v4621 = vpack.c.b16 %v4513, %v4509
          %v4622 = vpack.c.b16 %v4514, %v4510
          %v4623 = vpack.c.b16 %v4519, %v4515
          %v4624 = vpack.c.b16 %v4520, %v4516
          %v4625 = vpack.c.b16 %v4521, %v4517
          %v4626 = vpack.c.b16 %v4522, %v4518
          %v4627 = vpack.c.b16 %v4527, %v4523
          %v4628 = vpack.c.b16 %v4528, %v4524
          %v4629 = vpack.c.b16 %v4529, %v4525
          %v4630 = vpack.c.b16 %v4530, %v4526
          %v4631 = vpack.c.b16 %v4535, %v4531
          %v4632 = vpack.c.b16 %v4536, %v4532
          %v4633 = vpack.c.b16 %v4537, %v4533
          %v4634 = vpack.c.b16 %v4538, %v4534
          %v4635 = vpack.c.b16 %v4543, %v4539
          %v4636 = vpack.c.b16 %v4544, %v4540
          %v4637 = vpack.c.b16 %v4545, %v4541
          %v4638 = vpack.c.b16 %v4546, %v4542
          %v4639 = vpack.c.b16 %v4551, %v4547
          %v4640 = vpack.c.b16 %v4552, %v4548
          %v4641 = vpack.c.b16 %v4553, %v4549
          %v4642 = vpack.c.b16 %v4554, %v4550
          %v4643 = vpack.c.b16 %v4559, %v4555
          %v4644 = vpack.c.b16 %v4560, %v4556
          %v4645 = vpack.c.b16 %v4561, %v4557
          %v4646 = vpack.c.b16 %v4562, %v4558
          %v4647 = vpack.c.b16 %v4567, %v4563
          %v4648 = vpack.c.b16 %v4568, %v4564
          %v4649 = vpack.c.b16 %v4569, %v4565
          %v4650 = vpack.c.b16 %v4570, %v4566
          %v4651 = vpack.c.b16 %v4575, %v4571
          %v4652 = vpack.c.b16 %v4576, %v4572
          %v4653 = vpack.c.b16 %v4577, %v4573
          %v4654 = vpack.c.b16 %v4578, %v4574
          %v4655 = vpack.c.b16 %v4583, %v4579
          %v4656 = vpack.c.b16 %v4584, %v4580
          %v4657 = vpack.c.b16 %v4585, %v4581
          %v4658 = vpack.c.b16 %v4586, %v4582
          %v4659 = vpack.c.b16 %v4591, %v4587
          %v4660 = vpack.c.b16 %v4592, %v4588
          %v4661 = vpack.c.b16 %v4593, %v4589
          %v4662 = vpack.c.b16 %v4594, %v4590
          %v4663 = vpack.c.b16 %v4599, %v4595
          %v4664 = vpack.c.b16 %v4600, %v4596
          %v4665 = vpack.c.b16 %v4601, %v4597
          %v4666 = vpack.c.b16 %v4602, %v4598
          %v4732 = vlaneseq
          %v4733 = vshrl.u32 %v4732, 7
          %v4734 = vsub.s32 0, %v4733
          %v4735 = vrot.slane %v4400, %v4734
          %v4736 = vlaneseq
          %v4737 = vshrl.u32 %v4736, 7
          %v4738 = vsub.s32 1, %v4737
          %v4739 = vrot.slane %v4400, %v4738
          %v4740 = vlaneseq
          %v4741 = vshrl.u32 %v4740, 7
          %v4742 = vsub.s32 2, %v4741
          %v4743 = vrot.slane %v4400, %v4742
          %v4744 = vlaneseq
          %v4745 = vshrl.u32 %v4744, 7
          %v4746 = vsub.s32 3, %v4745
          %v4747 = vrot.slane %v4400, %v4746
          %4752 = vmatprep.subr.bf16.mxu0 %v4632
          %4753 = vmatpush1.bf16.msra.mxu0 %v4631
          %4754 = vmatprep.subr.bf16.mxu0 %v4628
          %4755 = vmatpush1.bf16.msra.mxu0 %v4627
          %4756 = vmatprep.subr.bf16.mxu0 %v4624
          %4757 = vmatpush1.bf16.msra.mxu0 %v4623
          %4758 = vmatprep.subr.bf16.mxu0 %v4620
          %4759 = vmatpush1.bf16.msra.mxu0 %v4619
          %4760 = vmatprep.subr.bf16.mxu0 %v4616
          %4761 = vmatpush1.bf16.msra.mxu0 %v4615
          %4762 = vmatprep.subr.bf16.mxu0 %v4612
          %4763 = vmatpush1.bf16.msra.mxu0 %v4611
          %4764 = vmatprep.subr.bf16.mxu0 %v4608
          %4765 = vmatpush1.bf16.msra.mxu0 %v4607
          %4766 = vmatprep.subr.bf16.mxu0 %v4604
          %4767 = vmatpush1.bf16.msra.mxu0 %v4603
          %4768 = vmatprep.subr.bf16.mxu0 %v4664
          %4769 = vmatpush2.bf16.msra.mxu0 %v4663
          %4770 = vmatprep.subr.bf16.mxu0 %v4660
          %4771 = vmatpush2.bf16.msra.mxu0 %v4659
          %4772 = vmatprep.subr.bf16.mxu0 %v4656
          %4773 = vmatpush2.bf16.msra.mxu0 %v4655
          %4774 = vmatprep.subr.bf16.mxu0 %v4652
          %4775 = vmatpush2.bf16.msra.mxu0 %v4651
          %4776 = vmatprep.subr.bf16.mxu0 %v4648
          %4777 = vmatpush2.bf16.msra.mxu0 %v4647
          %4778 = vmatprep.subr.bf16.mxu0 %v4644
          %4779 = vmatpush2.bf16.msra.mxu0 %v4643
          %4780 = vmatprep.subr.bf16.mxu0 %v4640
          %4781 = vmatpush2.bf16.msra.mxu0 %v4639
          %4782 = vmatprep.subr.bf16.mxu0 %v4636
          %4783 = vmatpush2.bf16.msra.mxu0 %v4635
          %4784 = vmatprep.mubr.bf16.mxu0 %v4408
          %4785 = vmatmul.mubr.bf16.gmra.mxu0 %v4404
          %v4786 = vpop.f32.mrf.mxu0
          %v4787 = vadd.f32 %v4735, %v4786
          %v4788 = vpop.f32.mrf.mxu0
          %v4789 = vadd.f32 %v4739, %v4788
          %v4790 = vpop.f32.mrf.mxu0
          %v4791 = vpop.f32.mrf.mxu0
          %4792 = vdwg.mxu0
          %4793 = vmatprep.subr.bf16.mxu0 %v4634
          %4794 = vmatpush1.bf16.msra.mxu0 %v4633
          %4795 = vmatprep.subr.bf16.mxu0 %v4630
          %4796 = vmatpush1.bf16.msra.mxu0 %v4629
          %4797 = vmatprep.subr.bf16.mxu0 %v4626
          %4798 = vmatpush1.bf16.msra.mxu0 %v4625
          %4799 = vmatprep.subr.bf16.mxu0 %v4622
          %4800 = vmatpush1.bf16.msra.mxu0 %v4621
          %4801 = vmatprep.subr.bf16.mxu0 %v4618
          %4802 = vmatpush1.bf16.msra.mxu0 %v4617
          %4803 = vmatprep.subr.bf16.mxu0 %v4614
          %4804 = vmatpush1.bf16.msra.mxu0 %v4613
          %4805 = vmatprep.subr.bf16.mxu0 %v4610
          %4806 = vmatpush1.bf16.msra.mxu0 %v4609
          %4807 = vmatprep.subr.bf16.mxu0 %v4606
          %4808 = vmatpush1.bf16.msra.mxu0 %v4605
          %4809 = vmatprep.subr.bf16.mxu0 %v4666
          %4810 = vmatpush2.bf16.msra.mxu0 %v4665
          %4811 = vmatprep.subr.bf16.mxu0 %v4662
          %4812 = vmatpush2.bf16.msra.mxu0 %v4661
          %4813 = vmatprep.subr.bf16.mxu0 %v4658
          %4814 = vmatpush2.bf16.msra.mxu0 %v4657
          %4815 = vmatprep.subr.bf16.mxu0 %v4654
          %4816 = vmatpush2.bf16.msra.mxu0 %v4653
          %4817 = vmatprep.subr.bf16.mxu0 %v4650
          %4818 = vmatpush2.bf16.msra.mxu0 %v4649
          %4819 = vmatprep.subr.bf16.mxu0 %v4646
          %4820 = vmatpush2.bf16.msra.mxu0 %v4645
          %4821 = vmatprep.subr.bf16.mxu0 %v4642
          %4822 = vmatpush2.bf16.msra.mxu0 %v4641
          %4823 = vmatprep.subr.bf16.mxu0 %v4638
          %4824 = vmatpush2.bf16.msra.mxu0 %v4637
          %4825 = vmatprep.mubr.bf16.mxu0 %v4408
          %4826 = vmatmul.mubr.bf16.gmra.mxu0 %v4404
          %v4827 = vpop.f32.mrf.mxu0
          %v4828 = vadd.f32 %v4743, %v4827
          %v4829 = vpop.f32.mrf.mxu0
          %v4830 = vadd.f32 %v4747, %v4829
          %v4831 = vpop.f32.mrf.mxu0
          %v4832 = vpop.f32.mrf.mxu0
          %4833 = vdwg.mxu0
          %vm4834 = vcmask 1040384
          %v4835 = vsel %vm4834, %v4787, -inf
          %v4836 = vsel %vm4834, %v4789, -inf
          %v4837 = vsel %vm4834, %v4828, -inf
          %v4838 = vsel %vm4834, %v4830, -inf
          %v4839 = vmax.f32 %v4835, %v4836
          %v4840 = vmax.f32 %v4837, %v4838
          %v4841 = vmax.f32 %v4839, %v4840
          %4842 = vmax.xlane.f32.xlu0 %v4841
          %v4843 = vpop.xlane.xlu0 %4842
          %v4844 = vsub.f32 %v4787, %v4843
          %v4845 = vsub.f32 %v4789, %v4843
          %v4846 = vsub.f32 %v4828, %v4843
          %v4847 = vsub.f32 %v4830, %v4843
          %v4848 = vmul.f32 %v4844, 1.442695
          %v4849 = vpow.pop %v4848
          %v4850 = vmul.f32 %v4845, 1.442695
          %v4851 = vpow.pop %v4850
          %v4852 = vmul.f32 %v4846, 1.442695
          %v4853 = vpow.pop %v4852
          %v4854 = vmul.f32 %v4847, 1.442695
          %v4855 = vpow.pop %v4854
          %v4856 = vsel %vm4834, %v4849, 0.0
          %v4857 = vsel %vm4834, %v4851, 0.0
          %v4858 = vadd.f32 %v4856, %v4857
          %v4859 = vsel %vm4834, %v4853, 0.0
          %v4860 = vadd.f32 %v4858, %v4859
          %v4861 = vsel %vm4834, %v4855, 0.0
          %v4862 = vadd.f32 %v4860, %v4861
          %4863 = vadd.xlane.f32.xlu0 %v4862
          %v4864 = vpop.xlane.xlu0 %4863
          %v4865 = vlog2.pop %v4864
          %v4866 = vmul.f32 %v4865, 0.6931472
          %v4867 = vadd.f32 %v4866, %v4843
          %v4868 = vsub.f32 %v4787, %v4867
          %v4869 = vsub.f32 %v4789, %v4867
          %v4870 = vsub.f32 %v4828, %v4867
          %v4871 = vsub.f32 %v4830, %v4867
          %v4876 = vcombine.low %v4868, %v4869
          %v4877 = vcombine.low %v4870, %v4871
          %v4879 = vunpack.c.l.s4 1966171168
          %v4880 = vunpack.c.0.s8 %v4879
          %v4881 = vlaneseq
          %v4882 = vshrl.u32 %v4881, 7
          %v4883 = vsub.s32 %v4880, %v4882
          %v4884 = vrot.slane %v4876, %v4883
          %v4886 = vunpack.c.l.s4 1966171168
          %v4887 = vunpack.c.0.s8 %v4886
          %v4888 = vlaneseq
          %v4889 = vshrl.u32 %v4888, 7
          %v4890 = vsub.s32 %v4887, %v4889
          %v4891 = vrot.slane %v4877, %v4890
          %v4892 = vcombine.low %v4884, %v4891
          %v4894 = vunpack.c.l.s4 1966171168
          %v4895 = vunpack.c.0.s8 %v4894
          %v4896 = vlaneseq
          %v4897 = vshrl.u32 %v4896, 7
          %v4898 = vsub.s32 %v4895, %v4897
          %v4899 = vrot.slane %v4892, %v4898
          %v4901 = vlaneseq
          %vm4902 = vcmp.ge.s32.totalorder %v4901, 0
          %vm4903 = vcmp.lt.s32.totalorder %v4901, 512
          %vm4904 = vmand %vm4902, %vm4903
          %4905 = vst.msk [vmem:[#allocation14] sm:$0xf] %vm4904, %v4899
        $region96: #{decoder_forward.1} parent=63 // pred_fallthru
          _
        // Predicated region
        $region97: #{decoder_forward.1} parent=63 // pred_check
          %p4906 = pneg %p290
        $region98: #{decoder_forward.1} parent=63 // pred_check_branch
          %4908 = sbr.rel (%p4906) target = $region100
        $region99: #{decoder_forward.1} parent=63 // pred_region
          %s4910 = ssub.s32 64, 64
          %4911 = vsyncadd [#allocation5], %s4910
          %s4913 = sshll.u32 [#allocation14], 4
          %s4914 = int_to_ptr.vmem [resolvable:$true] %s4913
          %4916 = dma.vmem_to_hbm [thread:$0]  %s4914, 64, %s11, [#allocation5]
        $region100: #{decoder_forward.1} parent=63 // pred_fallthru
          _
        // Predicated region
        $region101: #{decoder_forward.1} parent=63 // pred_check
          %p4917 = pneg %p290
        $region102: #{decoder_forward.1} parent=63 // pred_check_branch
          %4919 = sbr.rel (%p4917) target = $region104
        $region103: #{decoder_forward.1} parent=63 // pred_region
          %4920 = dma.done [#allocation5], 64
        $region104: #{decoder_forward.1} parent=63 // pred_fallthru
          _
      $region64: #{decoder_forward.1} parent=5 // pred_fallthru
        _
      %p4921 = scmp.le.s32.totalorder 2, %s26
      // Predicated region
      $region105: #{decoder_forward.1} parent=5 // pred_check
        %p4922 = pneg %p4921
      $region106: #{decoder_forward.1} parent=5 // pred_check_branch
        %4924 = sbr.rel (%p4922) target = $region108
      $region107: #{decoder_forward.1} parent=5 // pred_region
        %s4925 = ssub.s32 %s26, 2
      $region108: #{decoder_forward.1} parent=5 // pred_fallthru
        _
    $region6: #{decoder_forward.1} parent=1 // loop_footer
      %s30 = sadd.s32 1, %s26
    $region7: #{decoder_forward.1} parent=1 // loop_footer_branch
      %25 = sbr.rel target = $region3
    $region8: #{decoder_forward.1} parent=1 // loop_exit
      _
    %4926 = vsyncpa [#allocation4], 1
    %s4927 = scalar_lea.sflag [#allocation4], 1
    %4928 = vsyncpa %s4927, 1
    %4929 = vsyncpa [#allocation7], 1
    %s4930 = scalar_lea.sflag [#allocation7], 1
    %4931 = vsyncpa %s4930, 1
    %4932 = vsyncpa [#allocation10], 1
    %s4933 = scalar_lea.sflag [#allocation10], 1
    %4934 = vsyncpa %s4933, 1
    %4935 = vsyncpa [#allocation13], 1
    %4936 = vsyncpa [#allocation5], 1
    %s4937 = scalar_lea.sflag [#allocation5], 1
    %4938 = vsyncpa %s4937, 1

// kernel: decoder_forward.1
$region0: #{decoder_forward.1}
  #allocation0 [shape = 'u32[]', space=smem, size = 0x4, offset = 0x4, fixed_abs, tag = 'smem constant byte address 0x4 - core index']
  #allocation1 [shape = 'u32[144,128]{1,0:T(1,128)}', space=vmem, size = 0x12000, scoped, tag = 'internal scratch']
  #allocation2 [shape = 'f32[8,256]{1,0:T(8,128)}', space=vmem, size = 0x2000, scoped, tag = 'scratch operand']
  %s0 = inlined_call_operand.vmem [shape: f32[8,256], index: 0, kind: input, shape index: {}]
  %s1 = inlined_call_operand.hbm [shape: f32[16,256], index: 1, kind: input, shape index: {}]
  %s2 = inlined_call_operand.vmem [shape: f32[8,8], index: 2, kind: input, shape index: {}]
  %s3 = inlined_call_operand.vmem [shape: f32[8,8], index: 3, kind: input, shape index: {}]
  %s4 = inlined_call_operand.vmem [shape: f32[8,16], index: 4, kind: input, shape index: {}]
  %s5 = inlined_call_operand.vmem [shape: f32[8,16], index: 5, kind: input, shape index: {}]
  %s6 = inlined_call_operand.hbm [shape: bf16[5,256,2560], index: 6, kind: input, shape index: {}]
  %s7 = inlined_call_operand.hbm [shape: bf16[5,512,256], index: 7, kind: input, shape index: {}]
  %s8 = inlined_call_operand.hbm [shape: f32[5,1,4352], index: 8, kind: input, shape index: {}]
  %s9 = inlined_call_operand.hbm [shape: bf16[256,512], index: 9, kind: input, shape index: {}]
  %s10 = inlined_call_operand.hbm [shape: f32[1,512], index: 10, kind: input, shape index: {}]
  %s11 = inlined_call_operand.hbm [shape: f32[1,512], index: 11, kind: output, shape index: {}]
  %s12 = sld [smem:[#allocation0]]
  $region109: #{decoder_forward.1} parent=0
    _
  %s14 = ssub.s32 1, %s12
  %s15 = scalar_select 0, %s14, %s12
  $region1: #{decoder_forward.1} parent=0
    #allocation3 [shape = 'u8[16384]{0}', space=vmem, size = 0x4000, scoped, tag = 'input window, operand 1, single buffered']
    #allocation4 [shape = 's32[2]{0}', space=sflag, size = 0x8, scoped, tag = 'scoped memory for decoder_forward.1']
    #allocation5 [shape = 's32[2]{0}', space=sflag, size = 0x8, scoped, tag = 'scoped memory for decoder_forward.1']
    #allocation6 [shape = 'u8[2621440]{0}', space=vmem, size = 0x280000, scoped, tag = 'input window, operand 6']
    #allocation7 [shape = 's32[2]{0}', space=sflag, size = 0x8, scoped, tag = 'scoped memory for decoder_forward.1']
    #allocation8 [shape = 'u8[524288]{0}', space=vmem, size = 0x80000, scoped, tag = 'input window, operand 7']
    #allocation9 [shape = 'u8[34816]{0}', space=vmem, size = 0x8800, scoped, tag = 'input window, operand 8']
    #allocation10 [shape = 's32[2]{0}', space=sflag, size = 0x8, scoped, tag = 'scoped memory for decoder_forward.1']
    #allocation11 [shape = 'u8[262144]{0}', space=vmem, size = 0x40000, scoped, tag = 'input window, operand 9, single buffered']
    #allocation12 [shape = 'u8[2048]{0}', space=vmem, size = 0x800, scoped, tag = 'input window, operand 10, single buffered']
    #allocation13 [shape = 's32[1]{0}', space=sflag, size = 0x4, scoped, tag = 'scoped memory for decoder_forward.1']
    #allocation14 [shape = 'u8[2048]{0}', space=vmem, size = 0x800, scoped, tag = 'output window, operand 0, single buffered']
    %16 = vsyncpa [#allocation4], 0
    %17 = vsyncpa [#allocation7], 0
    %s18 = scalar_lea.sflag [#allocation7], 1
    %19 = vsyncpa %s18, 0
    %20 = vsyncpa [#allocation10], 0
    %s21 = scalar_lea.sflag [#allocation10], 1
    %22 = vsyncpa %s21, 0
    %23 = vsyncpa [#allocation13], 0
    %24 = vsyncpa [#allocation5], 0
    loop: start=0, step=1, limit=7
    $region2: #{decoder_forward.1} parent=1 // loop_pre_header
      _
    $region3: #{decoder_forward.1} parent=1 // loop_header
      %s26 = sphi 0, %s30
      %p27 = scmp.ge.s32.totalorder %s26, 7
      %s34 = sphi 0, %s34
      %s36 = sphi 0, %s34
      %s37 = sphi 0, %s36
      %s51 = sphi 0, %s37
      %s55 = sphi 0, %s55
      %s57 = sphi 0, %s55
      %s58 = sphi 0, %s57
      %s72 = sphi 0, %s58
      %s76 = sphi 0, %s76
      %s78 = sphi 0, %s76
      %s79 = sphi 0, %s78
      %s93 = sphi 0, %s79
      %s97 = sphi 0, %s97
      %s99 = sphi 0, %s97
      %s100 = sphi 0, %s99
      %s114 = sphi 0, %s100
      %s118 = sphi 0, %s118
      %s120 = sphi 0, %s118
      %s121 = sphi 0, %s120
      %s135 = sphi 0, %s121
      %s139 = sphi 0, %s139
      %s141 = sphi 0, %s139
      %s142 = sphi 0, %s141
      %s156 = sphi 0, %s142
      %s162 = sphi 0, %s164
      %s165 = sphi 0, %s162
      %s166 = sphi 0, %s165
      %s182 = sphi 0, %s166
      %s188 = sphi 0, %s190
      %s191 = sphi 0, %s188
      %s192 = sphi 0, %s191
      %s208 = sphi 0, %s192
      %s214 = sphi 0, %s216
      %s217 = sphi 0, %s214
      %s218 = sphi 0, %s217
      %s234 = sphi 0, %s218
      %s238 = sphi 0, %s238
      %s240 = sphi 0, %s238
      %s241 = sphi 0, %s240
      %s255 = sphi 0, %s241
      %s259 = sphi 0, %s259
      %s261 = sphi 0, %s259
      %s262 = sphi 0, %s261
      %s276 = sphi 0, %s262
      %s280 = sphi 0, %s280
      %s282 = sphi 0, %s280
      %s283 = sphi 0, %s282
      %s297 = sphi 0, %s283
    $region4: #{decoder_forward.1} parent=1 // loop_header_branch
      %29 = sbr.rel (%p27) target = $region8
    $region5: #{decoder_forward.1} parent=1 // loop_body
      %s31 = ssub.s32 %s26, 1
      %s32 = ssub.s32 %s26, 2
      %s33 = sadd.s32 %s26, 1
      %s35 = sadd.s32 %s34, 1
      %p38 = scmp.eq.s32.totalorder %s26, 4
      %p39 = scmp.ne.s32.totalorder %s34, %s36
      %p40 = scmp.eq.s32.totalorder %s26, 0
      %p41 = por %p39, %p40
      %p42 = scmp.ne.s32.totalorder %s34, %s36
      %p43 = scmp.eq.s32.totalorder %s31, 4
      %p44 = por %p42, %p43
      %p45 = scmp.ne.s32.totalorder %s36, %s37
      %p46 = scmp.eq.s32.totalorder %s31, 0
      %p47 = por %p45, %p46
      %p48 = scmp.ne.s32.totalorder %s36, %s37
      %p49 = scmp.eq.s32.totalorder %s32, 4
      %p50 = por %p48, %p49
      %p52 = scmp.ne.s32.totalorder %s37, %s51
      %p53 = scmp.eq.s32.totalorder %s32, 0
      %p54 = por %p52, %p53
      %s56 = sadd.s32 %s55, 1
      %p59 = scmp.eq.s32.totalorder %s26, 4
      %p60 = scmp.ne.s32.totalorder %s55, %s57
      %p61 = scmp.eq.s32.totalorder %s26, 0
      %p62 = por %p60, %p61
      %p63 = scmp.ne.s32.totalorder %s55, %s57
      %p64 = scmp.eq.s32.totalorder %s31, 4
      %p65 = por %p63, %p64
      %p66 = scmp.ne.s32.totalorder %s57, %s58
      %p67 = scmp.eq.s32.totalorder %s31, 0
      %p68 = por %p66, %p67
      %p69 = scmp.ne.s32.totalorder %s57, %s58
      %p70 = scmp.eq.s32.totalorder %s32, 4
      %p71 = por %p69, %p70
      %p73 = scmp.ne.s32.totalorder %s58, %s72
      %p74 = scmp.eq.s32.totalorder %s32, 0
      %p75 = por %p73, %p74
      %s77 = sadd.s32 %s76, 1
      %p80 = scmp.eq.s32.totalorder %s26, 4
      %p81 = scmp.ne.s32.totalorder %s76, %s78
      %p82 = scmp.eq.s32.totalorder %s26, 0
      %p83 = por %p81, %p82
      %p84 = scmp.ne.s32.totalorder %s76, %s78
      %p85 = scmp.eq.s32.totalorder %s31, 4
      %p86 = por %p84, %p85
      %p87 = scmp.ne.s32.totalorder %s78, %s79
      %p88 = scmp.eq.s32.totalorder %s31, 0
      %p89 = por %p87, %p88
      %p90 = scmp.ne.s32.totalorder %s78, %s79
      %p91 = scmp.eq.s32.totalorder %s32, 4
      %p92 = por %p90, %p91
      %p94 = scmp.ne.s32.totalorder %s79, %s93
      %p95 = scmp.eq.s32.totalorder %s32, 0
      %p96 = por %p94, %p95
      %s98 = sadd.s32 %s97, 1
      %p101 = scmp.eq.s32.totalorder %s26, 4
      %p102 = scmp.ne.s32.totalorder %s97, %s99
      %p103 = scmp.eq.s32.totalorder %s26, 0
      %p104 = por %p102, %p103
      %p105 = scmp.ne.s32.totalorder %s97, %s99
      %p106 = scmp.eq.s32.totalorder %s31, 4
      %p107 = por %p105, %p106
      %p108 = scmp.ne.s32.totalorder %s99, %s100
      %p109 = scmp.eq.s32.totalorder %s31, 0
      %p110 = por %p108, %p109
      %p111 = scmp.ne.s32.totalorder %s99, %s100
      %p112 = scmp.eq.s32.totalorder %s32, 4
      %p113 = por %p111, %p112
      %p115 = scmp.ne.s32.totalorder %s100, %s114
      %p116 = scmp.eq.s32.totalorder %s32, 0
      %p117 = por %p115, %p116
      %s119 = sadd.s32 %s118, 1
      %p122 = scmp.eq.s32.totalorder %s26, 4
      %p123 = scmp.ne.s32.totalorder %s118, %s120
      %p124 = scmp.eq.s32.totalorder %s26, 0
      %p125 = por %p123, %p124
      %p126 = scmp.ne.s32.totalorder %s118, %s120
      %p127 = scmp.eq.s32.totalorder %s31, 4
      %p128 = por %p126, %p127
      %p129 = scmp.ne.s32.totalorder %s120, %s121
      %p130 = scmp.eq.s32.totalorder %s31, 0
      %p131 = por %p129, %p130
      %p132 = scmp.ne.s32.totalorder %s120, %s121
      %p133 = scmp.eq.s32.totalorder %s32, 4
      %p134 = por %p132, %p133
      %p136 = scmp.ne.s32.totalorder %s121, %s135
      %p137 = scmp.eq.s32.totalorder %s32, 0
      %p138 = por %p136, %p137
      %s140 = sadd.s32 %s139, 1
      %p143 = scmp.eq.s32.totalorder %s26, 4
      %p144 = scmp.ne.s32.totalorder %s139, %s141
      %p145 = scmp.eq.s32.totalorder %s26, 0
      %p146 = por %p144, %p145
      %p147 = scmp.ne.s32.totalorder %s139, %s141
      %p148 = scmp.eq.s32.totalorder %s31, 4
      %p149 = por %p147, %p148
      %p150 = scmp.ne.s32.totalorder %s141, %s142
      %p151 = scmp.eq.s32.totalorder %s31, 0
      %p152 = por %p150, %p151
      %p153 = scmp.ne.s32.totalorder %s141, %s142
      %p154 = scmp.eq.s32.totalorder %s32, 4
      %p155 = por %p153, %p154
      %p157 = scmp.ne.s32.totalorder %s142, %s156
      %p158 = scmp.eq.s32.totalorder %s32, 0
      %p159 = por %p157, %p158
      %s160 = ssub.s32 %s26, %s33
      %p161 = scmp.eq.s32.totalorder %s160, 0
      %s163 = sadd.s32 %s162, 1
      %s164 = scalar_select %p161, %s162, %s163
      %p167 = pneg %p161
      %p168 = scmp.eq.s32.totalorder %s26, 4
      %p169 = por %p167, %p168
      %p170 = scmp.ne.s32.totalorder %s162, %s165
      %p171 = scmp.eq.s32.totalorder %s26, 0
      %p172 = por %p170, %p171
      %p173 = scmp.ne.s32.totalorder %s162, %s165
      %p174 = scmp.eq.s32.totalorder %s31, 4
      %p175 = por %p173, %p174
      %p176 = scmp.ne.s32.totalorder %s165, %s166
      %p177 = scmp.eq.s32.totalorder %s31, 0
      %p178 = por %p176, %p177
      %p179 = scmp.ne.s32.totalorder %s165, %s166
      %p180 = scmp.eq.s32.totalorder %s32, 4
      %p181 = por %p179, %p180
      %p183 = scmp.ne.s32.totalorder %s166, %s182
      %p184 = scmp.eq.s32.totalorder %s32, 0
      %p185 = por %p183, %p184
      %s186 = ssub.s32 %s26, %s33
      %p187 = scmp.eq.s32.totalorder %s186, 0
      %s189 = sadd.s32 %s188, 1
      %s190 = scalar_select %p187, %s188, %s189
      %p193 = pneg %p187
      %p194 = scmp.eq.s32.totalorder %s26, 4
      %p195 = por %p193, %p194
      %p196 = scmp.ne.s32.totalorder %s188, %s191
      %p197 = scmp.eq.s32.totalorder %s26, 0
      %p198 = por %p196, %p197
      %p199 = scmp.ne.s32.totalorder %s188, %s191
      %p200 = scmp.eq.s32.totalorder %s31, 4
      %p201 = por %p199, %p200
      %p202 = scmp.ne.s32.totalorder %s191, %s192
      %p203 = scmp.eq.s32.totalorder %s31, 0
      %p204 = por %p202, %p203
      %p205 = scmp.ne.s32.totalorder %s191, %s192
      %p206 = scmp.eq.s32.totalorder %s32, 4
      %p207 = por %p205, %p206
      %p209 = scmp.ne.s32.totalorder %s192, %s208
      %p210 = scmp.eq.s32.totalorder %s32, 0
      %p211 = por %p209, %p210
      %s212 = ssub.s32 %s26, %s33
      %p213 = scmp.eq.s32.totalorder %s212, 0
      %s215 = sadd.s32 %s214, 1
      %s216 = scalar_select %p213, %s214, %s215
      %p219 = pneg %p213
      %p220 = scmp.eq.s32.totalorder %s26, 4
      %p221 = por %p219, %p220
      %p222 = scmp.ne.s32.totalorder %s214, %s217
      %p223 = scmp.eq.s32.totalorder %s26, 0
      %p224 = por %p222, %p223
      %p225 = scmp.ne.s32.totalorder %s214, %s217
      %p226 = scmp.eq.s32.totalorder %s31, 4
      %p227 = por %p225, %p226
      %p228 = scmp.ne.s32.totalorder %s217, %s218
      %p229 = scmp.eq.s32.totalorder %s31, 0
      %p230 = por %p228, %p229
      %p231 = scmp.ne.s32.totalorder %s217, %s218
      %p232 = scmp.eq.s32.totalorder %s32, 4
      %p233 = por %p231, %p232
      %p235 = scmp.ne.s32.totalorder %s218, %s234
      %p236 = scmp.eq.s32.totalorder %s32, 0
      %p237 = por %p235, %p236
      %s239 = sadd.s32 %s238, 1
      %p242 = scmp.eq.s32.totalorder %s26, 4
      %p243 = scmp.ne.s32.totalorder %s238, %s240
      %p244 = scmp.eq.s32.totalorder %s26, 0
      %p245 = por %p243, %p244
      %p246 = scmp.ne.s32.totalorder %s238, %s240
      %p247 = scmp.eq.s32.totalorder %s31, 4
      %p248 = por %p246, %p247
      %p249 = scmp.ne.s32.totalorder %s240, %s241
      %p250 = scmp.eq.s32.totalorder %s31, 0
      %p251 = por %p249, %p250
      %p252 = scmp.ne.s32.totalorder %s240, %s241
      %p253 = scmp.eq.s32.totalorder %s32, 4
      %p254 = por %p252, %p253
      %p256 = scmp.ne.s32.totalorder %s241, %s255
      %p257 = scmp.eq.s32.totalorder %s32, 0
      %p258 = por %p256, %p257
      %s260 = sadd.s32 %s259, 1
      %p263 = scmp.eq.s32.totalorder %s26, 4
      %p264 = scmp.ne.s32.totalorder %s259, %s261
      %p265 = scmp.eq.s32.totalorder %s26, 0
      %p266 = por %p264, %p265
      %p267 = scmp.ne.s32.totalorder %s259, %s261
      %p268 = scmp.eq.s32.totalorder %s31, 4
      %p269 = por %p267, %p268
      %p270 = scmp.ne.s32.totalorder %s261, %s262
      %p271 = scmp.eq.s32.totalorder %s31, 0
      %p272 = por %p270, %p271
      %p273 = scmp.ne.s32.totalorder %s261, %s262
      %p274 = scmp.eq.s32.totalorder %s32, 4
      %p275 = por %p273, %p274
      %p277 = scmp.ne.s32.totalorder %s262, %s276
      %p278 = scmp.eq.s32.totalorder %s32, 0
      %p279 = por %p277, %p278
      %s281 = sadd.s32 %s280, 1
      %p284 = scmp.eq.s32.totalorder %s26, 4
      %p285 = scmp.ne.s32.totalorder %s280, %s282
      %p286 = scmp.eq.s32.totalorder %s26, 0
      %p287 = por %p285, %p286
      %p288 = scmp.ne.s32.totalorder %s280, %s282
      %p289 = scmp.eq.s32.totalorder %s31, 4
      %p290 = por %p288, %p289
      %p291 = scmp.ne.s32.totalorder %s282, %s283
      %p292 = scmp.eq.s32.totalorder %s31, 0
      %p293 = por %p291, %p292
      %p294 = scmp.ne.s32.totalorder %s282, %s283
      %p295 = scmp.eq.s32.totalorder %s32, 4
      %p296 = por %p294, %p295
      %p298 = scmp.ne.s32.totalorder %s283, %s297
      %p299 = scmp.eq.s32.totalorder %s32, 0
      %p300 = por %p298, %p299
      %p301 = scmp.le.s32.totalorder 1, %s26
      %p302 = scmp.lt.s32.totalorder %s26, 6
      %p303 = pnand %p301, %p302
      %p304 = pneg %p303
      // Predicated region
      $region9: #{decoder_forward.1} parent=5 // pred_check
        _
      $region10: #{decoder_forward.1} parent=5 // pred_check_branch
        %306 = sbr.rel (%p303) target = $region12
      $region11: #{decoder_forward.1} parent=5 // pred_region
        %s307 = ssub.s32 %s26, 1
        // Predicated region
        $region13: #{decoder_forward.1} parent=11 // pred_check
          %p308 = pneg %p47
        $region14: #{decoder_forward.1} parent=11 // pred_check_branch
          %310 = sbr.rel (%p308) target = $region16
        $region15: #{decoder_forward.1} parent=11 // pred_region
          _
        $region16: #{decoder_forward.1} parent=11 // pred_fallthru
          _
        // Predicated region
        $region17: #{decoder_forward.1} parent=11 // pred_check
          %p311 = pneg %p68
        $region18: #{decoder_forward.1} parent=11 // pred_check_branch
          %313 = sbr.rel (%p311) target = $region20
        $region19: #{decoder_forward.1} parent=11 // pred_region
          %s315 = ssub.s32 512, 512
          %316 = vsyncadd [#allocation4], %s315
          %s317 = sshll.u32 [#allocation3], 4
          %s318 = int_to_ptr.vmem [resolvable:$true] %s317
          %323 = dma.hbm_to_vmem [thread:$0]  %s1, 512, %s318, [#allocation4], 256, 256, 16
        $region20: #{decoder_forward.1} parent=11 // pred_fallthru
          _
        // Predicated region
        $region21: #{decoder_forward.1} parent=11 // pred_check
          %p324 = pneg %p89
        $region22: #{decoder_forward.1} parent=11 // pred_check_branch
          %326 = sbr.rel (%p324) target = $region24
        $region23: #{decoder_forward.1} parent=11 // pred_region
          _
        $region24: #{decoder_forward.1} parent=11 // pred_fallthru
          _
        // Predicated region
        $region25: #{decoder_forward.1} parent=11 // pred_check
          %p327 = pneg %p110
        $region26: #{decoder_forward.1} parent=11 // pred_check_branch
          %329 = sbr.rel (%p327) target = $region28
        $region27: #{decoder_forward.1} parent=11 // pred_region
          _
        $region28: #{decoder_forward.1} parent=11 // pred_fallthru
          _
        // Predicated region
        $region29: #{decoder_forward.1} parent=11 // pred_check
          %p330 = pneg %p131
        $region30: #{decoder_forward.1} parent=11 // pred_check_branch
          %332 = sbr.rel (%p330) target = $region32
        $region31: #{decoder_forward.1} parent=11 // pred_region
          _
        $region32: #{decoder_forward.1} parent=11 // pred_fallthru
          _
        // Predicated region
        $region33: #{decoder_forward.1} parent=11 // pred_check
          %p333 = pneg %p152
        $region34: #{decoder_forward.1} parent=11 // pred_check_branch
          %335 = sbr.rel (%p333) target = $region36
        $region35: #{decoder_forward.1} parent=11 // pred_region
          _
        $region36: #{decoder_forward.1} parent=11 // pred_fallthru
          _
        // Predicated region
        $region37: #{decoder_forward.1} parent=11 // pred_check
          %p336 = pneg %p251
        $region38: #{decoder_forward.1} parent=11 // pred_check_branch
          %338 = sbr.rel (%p336) target = $region40
        $region39: #{decoder_forward.1} parent=11 // pred_region
          %s340 = ssub.s32 8192, 8192
          %341 = vsyncadd [#allocation10], %s340
          %s342 = sshll.u32 [#allocation11], 4
          %s343 = int_to_ptr.vmem [resolvable:$true] %s342
          %348 = dma.hbm_to_vmem [thread:$0]  %s9, 8192, %s343, [#allocation10], 256, 256, 16
        $region40: #{decoder_forward.1} parent=11 // pred_fallthru
          _
        // Predicated region
        $region41: #{decoder_forward.1} parent=11 // pred_check
          %p349 = pneg %p272
        $region42: #{decoder_forward.1} parent=11 // pred_check_branch
          %351 = sbr.rel (%p349) target = $region44
        $region43: #{decoder_forward.1} parent=11 // pred_region
          %s353 = ssub.s32 64, 64
          %354 = vsyncadd [#allocation13], %s353
          %s356 = sshll.u32 [#allocation12], 4
          %s357 = int_to_ptr.vmem [resolvable:$true] %s356
          %359 = dma.hbm_to_vmem [thread:$0]  %s10, 64, %s357, [#allocation13]
        $region44: #{decoder_forward.1} parent=11 // pred_fallthru
          _
      $region12: #{decoder_forward.1} parent=5 // pred_fallthru
        _
      %p360 = scmp.lt.s32.totalorder %s26, 5
      // Predicated region
      $region45: #{decoder_forward.1} parent=5 // pred_check
        %p361 = pneg %p360
      $region46: #{decoder_forward.1} parent=5 // pred_check_branch
        %363 = sbr.rel (%p361) target = $region48
      $region47: #{decoder_forward.1} parent=5 // pred_region
        // Predicated region
        $region49: #{decoder_forward.1} parent=47 // pred_check
          %p364 = pneg %p172
        $region50: #{decoder_forward.1} parent=47 // pred_check_branch
          %366 = sbr.rel (%p364) target = $region52
        $region51: #{decoder_forward.1} parent=47 // pred_region
          %s367 = sand.u32 %s26, 1
          %s368 = scalar_lea.sflag [#allocation7], %s367
          %s369 = sand.u32 %s162, 1
          %s370 = smul.addr %s369, 2560
          %s371 = scalar_lea.vmem [#allocation6], %s370
          %s373 = ssub.s32 40960, 40960
          %374 = vsyncadd %s368, %s373
          %s375 = smul.addr %s26, 640
          %s376 = smul.addr %s375, 64
          %s377 = scalar_lea.hbm %s6, %s376
          %s378 = sshll.u32 %s371, 4
          %s379 = int_to_ptr.vmem [resolvable:$true] %s378
          %384 = dma.hbm_to_vmem [thread:$0]  %s377, 40960, %s379, %s368, 1280, 1280, 80
        $region52: #{decoder_forward.1} parent=47 // pred_fallthru
          _
        // Predicated region
        $region53: #{decoder_forward.1} parent=47 // pred_check
          %p385 = pneg %p198
        $region54: #{decoder_forward.1} parent=47 // pred_check_branch
          %387 = sbr.rel (%p385) target = $region56
        $region55: #{decoder_forward.1} parent=47 // pred_region
          %s388 = sand.u32 %s26, 1
          %s389 = scalar_lea.sflag [#allocation7], %s388
          %s390 = sand.u32 %s188, 1
          %s391 = smul.addr %s390, 512
          %s392 = scalar_lea.vmem [#allocation8], %s391
          %s394 = ssub.s32 8192, 8192
          %395 = vsyncadd %s389, %s394
          %s396 = smul.addr %s26, 128
          %s397 = smul.addr %s396, 64
          %s398 = scalar_lea.hbm %s7, %s397
          %s399 = sshll.u32 %s392, 4
          %s400 = int_to_ptr.vmem [resolvable:$true] %s399
          %405 = dma.hbm_to_vmem [thread:$0]  %s398, 8192, %s400, %s389, 128, 128, 8
        $region56: #{decoder_forward.1} parent=47 // pred_fallthru
          _
        // Predicated region
        $region57: #{decoder_forward.1} parent=47 // pred_check
          %p406 = pneg %p224
        $region58: #{decoder_forward.1} parent=47 // pred_check_branch
          %408 = sbr.rel (%p406) target = $region60
        $region59: #{decoder_forward.1} parent=47 // pred_region
          %s409 = sand.u32 %s26, 1
          %s410 = scalar_lea.sflag [#allocation10], %s409
          %s411 = sand.u32 %s214, 1
          %s412 = smul.addr %s411, 34
          %s413 = scalar_lea.vmem [#allocation9], %s412
          %s415 = ssub.s32 544, 544
          %416 = vsyncadd %s410, %s415
          %s417 = smul.addr %s26, 34
          %s418 = smul.addr %s417, 16
          %s419 = scalar_lea.hbm %s8, %s418
          %s421 = sshll.u32 %s413, 4
          %s422 = int_to_ptr.vmem [resolvable:$true] %s421
          %424 = dma.hbm_to_vmem [thread:$0]  %s419, 544, %s422, %s410
        $region60: #{decoder_forward.1} parent=47 // pred_fallthru
          _
      $region48: #{decoder_forward.1} parent=5 // pred_fallthru
        _
      %p425 = scmp.le.s32.totalorder 1, %s26
      %p426 = scmp.lt.s32.totalorder %s26, 6
      %p427 = pnand %p425, %p426
      %p428 = pneg %p427
      // Predicated region
      $region61: #{decoder_forward.1} parent=5 // pred_check
        _
      $region62: #{decoder_forward.1} parent=5 // pred_check_branch
        %430 = sbr.rel (%p427) target = $region64
      $region63: #{decoder_forward.1} parent=5 // pred_region
        %s431 = ssub.s32 %s26, 1
        // Predicated region
        $region65: #{decoder_forward.1} parent=63 // pred_check
          %p432 = pneg %p68
        $region66: #{decoder_forward.1} parent=63 // pred_check_branch
          %434 = sbr.rel (%p432) target = $region68
        $region67: #{decoder_forward.1} parent=63 // pred_region
          %435 = dma.done [#allocation4], 512
        $region68: #{decoder_forward.1} parent=63 // pred_fallthru
          _
        %s436 = sand.u32 %s31, 1
        %s437 = scalar_lea.sflag [#allocation7], %s436
        %s438 = sand.u32 %s165, 1
        %s439 = smul.addr %s438, 2560
        %s440 = scalar_lea.vmem [#allocation6], %s439
        // Predicated region
        $region69: #{decoder_forward.1} parent=63 // pred_check
          %p441 = pneg %p178
        $region70: #{decoder_forward.1} parent=63 // pred_check_branch
          %443 = sbr.rel (%p441) target = $region72
        $region71: #{decoder_forward.1} parent=63 // pred_region
          %444 = dma.done %s437, 40960
        $region72: #{decoder_forward.1} parent=63 // pred_fallthru
          _
        %s445 = sand.u32 %s31, 1
        %s446 = scalar_lea.sflag [#allocation7], %s445
        %s447 = sand.u32 %s191, 1
        %s448 = smul.addr %s447, 512
        %s449 = scalar_lea.vmem [#allocation8], %s448
        // Predicated region
        $region73: #{decoder_forward.1} parent=63 // pred_check
          %p450 = pneg %p204
        $region74: #{decoder_forward.1} parent=63 // pred_check_branch
          %452 = sbr.rel (%p450) target = $region76
        $region75: #{decoder_forward.1} parent=63 // pred_region
          %453 = dma.done %s446, 8192
        $region76: #{decoder_forward.1} parent=63 // pred_fallthru
          _
        %s454 = sand.u32 %s31, 1
        %s455 = scalar_lea.sflag [#allocation10], %s454
        %s456 = sand.u32 %s217, 1
        %s457 = smul.addr %s456, 34
        %s458 = scalar_lea.vmem [#allocation9], %s457
        // Predicated region
        $region77: #{decoder_forward.1} parent=63 // pred_check
          %p459 = pneg %p230
        $region78: #{decoder_forward.1} parent=63 // pred_check_branch
          %461 = sbr.rel (%p459) target = $region80
        $region79: #{decoder_forward.1} parent=63 // pred_region
          %462 = dma.done %s455, 544
        $region80: #{decoder_forward.1} parent=63 // pred_fallthru
          _
        // Predicated region
        $region81: #{decoder_forward.1} parent=63 // pred_check
          %p463 = pneg %p251
        $region82: #{decoder_forward.1} parent=63 // pred_check_branch
          %465 = sbr.rel (%p463) target = $region84
        $region83: #{decoder_forward.1} parent=63 // pred_region
          %466 = dma.done [#allocation10], 8192
        $region84: #{decoder_forward.1} parent=63 // pred_fallthru
          _
        // Predicated region
        $region85: #{decoder_forward.1} parent=63 // pred_check
          %p467 = pneg %p272
        $region86: #{decoder_forward.1} parent=63 // pred_check_branch
          %469 = sbr.rel (%p467) target = $region88
        $region87: #{decoder_forward.1} parent=63 // pred_region
          %470 = dma.done [#allocation13], 64
        $region88: #{decoder_forward.1} parent=63 // pred_fallthru
          _
        %p471 = pneg %p47
        %p472 = pneg %p44
        %p473 = pneg %p68
        %p474 = pneg %p65
        %p475 = pneg %p89
        %p476 = pneg %p86
        %p477 = pneg %p110
        %p478 = pneg %p107
        %p479 = pneg %p131
        %p480 = pneg %p128
        %p481 = pneg %p152
        %p482 = pneg %p149
        %s483 = sand.u32 %s31, 1
        %s484 = scalar_lea.sflag [#allocation7], %s483
        %s485 = sand.u32 %s165, 1
        %s486 = smul.addr %s485, 2560
        %s487 = scalar_lea.vmem [#allocation6], %s486
        %p488 = pneg %p178
        %p489 = pneg %p175
        %s490 = sand.u32 %s31, 1
        %s491 = scalar_lea.sflag [#allocation7], %s490
        %s492 = sand.u32 %s191, 1
        %s493 = smul.addr %s492, 512
        %s494 = scalar_lea.vmem [#allocation8], %s493
        %p495 = pneg %p204
        %p496 = pneg %p201
        %s497 = sand.u32 %s31, 1
        %s498 = scalar_lea.sflag [#allocation10], %s497
        %s499 = sand.u32 %s217, 1
        %s500 = smul.addr %s499, 34
        %s501 = scalar_lea.vmem [#allocation9], %s500
        %p502 = pneg %p230
        %p503 = pneg %p227
        %p504 = pneg %p251
        %p505 = pneg %p248
        %p506 = pneg %p272
        %p507 = pneg %p269
        %p508 = pneg %p293
        %p509 = pneg %p290
        %p511 = scmp.eq.s32.totalorder %s31, 0
        // Predicated region
        $region89: #{decoder_forward.1} parent=63 // pred_check
          %p512 = pneg %p511
        $region90: #{decoder_forward.1} parent=63 // pred_check_branch
          %514 = sbr.rel (%p512) target = $region92
        $region91: #{decoder_forward.1} parent=63 // pred_region
          %v515 = vld [vmem:[%s0] sm:$0xff]
          %v516 = vld [vmem:[%s0 + $0x8] sm:$0xff]
          %517 = vst [vmem:[#allocation2] sm:$0xff] %v515
          %518 = vst [vmem:[#allocation2 + $0x8] sm:$0xff] %v516
        $region92: #{decoder_forward.1} parent=63 // pred_fallthru
          _
        %v519 = vld [vmem:[#allocation2] sm:$0xff]
        %v520 = vld [vmem:[#allocation2 + $0x8] sm:$0xff]
        %v521 = vpack.c.bf16 %v519, %v519
        %v522 = vpack.c.bf16 %v520, %v520
        %v523 = vld [vmem:[%s440] sm:$0xff]
        %v524 = vld [vmem:[%s440 + $0x8] sm:$0xff]
        %v525 = vld [vmem:[%s440 + $0x10] sm:$0xff]
        %v526 = vld [vmem:[%s440 + $0x50] sm:$0xff]
        %v527 = vld [vmem:[%s440 + $0x58] sm:$0xff]
        %v528 = vld [vmem:[%s440 + $0x60] sm:$0xff]
        %v529 = vld [vmem:[%s440 + $0xa0] sm:$0xff]
        %v530 = vld [vmem:[%s440 + $0xa8] sm:$0xff]
        %v531 = vld [vmem:[%s440 + $0xb0] sm:$0xff]
        %v532 = vld [vmem:[%s440 + $0xf0] sm:$0xff]
        %v533 = vld [vmem:[%s440 + $0xf8] sm:$0xff]
        %v534 = vld [vmem:[%s440 + $0x100] sm:$0xff]
        %v535 = vld [vmem:[%s440 + $0x140] sm:$0xff]
        %v536 = vld [vmem:[%s440 + $0x148] sm:$0xff]
        %v537 = vld [vmem:[%s440 + $0x150] sm:$0xff]
        %v538 = vld [vmem:[%s440 + $0x190] sm:$0xff]
        %v539 = vld [vmem:[%s440 + $0x198] sm:$0xff]
        %v540 = vld [vmem:[%s440 + $0x1a0] sm:$0xff]
        %v541 = vld [vmem:[%s440 + $0x1e0] sm:$0xff]
        %v542 = vld [vmem:[%s440 + $0x1e8] sm:$0xff]
        %v543 = vld [vmem:[%s440 + $0x1f0] sm:$0xff]
        %v544 = vld [vmem:[%s440 + $0x230] sm:$0xff]
        %v545 = vld [vmem:[%s440 + $0x238] sm:$0xff]
        %v546 = vld [vmem:[%s440 + $0x240] sm:$0xff]
        %v547 = vld [vmem:[%s440 + $0x280] sm:$0xff]
        %v548 = vld [vmem:[%s440 + $0x288] sm:$0xff]
        %v549 = vld [vmem:[%s440 + $0x290] sm:$0xff]
        %v550 = vld [vmem:[%s440 + $0x2d0] sm:$0xff]
        %v551 = vld [vmem:[%s440 + $0x2d8] sm:$0xff]
        %v552 = vld [vmem:[%s440 + $0x2e0] sm:$0xff]
        %v553 = vld [vmem:[%s440 + $0x320] sm:$0xff]
        %v554 = vld [vmem:[%s440 + $0x328] sm:$0xff]
        %v555 = vld [vmem:[%s440 + $0x330] sm:$0xff]
        %v556 = vld [vmem:[%s440 + $0x370] sm:$0xff]
        %v557 = vld [vmem:[%s440 + $0x378] sm:$0xff]
        %v558 = vld [vmem:[%s440 + $0x380] sm:$0xff]
        %v559 = vld [vmem:[%s440 + $0x3c0] sm:$0xff]
        %v560 = vld [vmem:[%s440 + $0x3c8] sm:$0xff]
        %v561 = vld [vmem:[%s440 + $0x3d0] sm:$0xff]
        %v562 = vld [vmem:[%s440 + $0x410] sm:$0xff]
        %v563 = vld [vmem:[%s440 + $0x418] sm:$0xff]
        %v564 = vld [vmem:[%s440 + $0x420] sm:$0xff]
        %v565 = vld [vmem:[%s440 + $0x460] sm:$0xff]
        %v566 = vld [vmem:[%s440 + $0x468] sm:$0xff]
        %v567 = vld [vmem:[%s440 + $0x470] sm:$0xff]
        %v568 = vld [vmem:[%s440 + $0x4b0] sm:$0xff]
        %v569 = vld [vmem:[%s440 + $0x4b8] sm:$0xff]
        %v570 = vld [vmem:[%s440 + $0x4c0] sm:$0xff]
        %v571 = vld [vmem:[%s440 + $0x500] sm:$0xff]
        %v572 = vld [vmem:[%s440 + $0x508] sm:$0xff]
        %v573 = vld [vmem:[%s440 + $0x510] sm:$0xff]
        %v574 = vld [vmem:[%s440 + $0x550] sm:$0xff]
        %v575 = vld [vmem:[%s440 + $0x558] sm:$0xff]
        %v576 = vld [vmem:[%s440 + $0x560] sm:$0xff]
        %v577 = vld [vmem:[%s440 + $0x5a0] sm:$0xff]
        %v578 = vld [vmem:[%s440 + $0x5a8] sm:$0xff]
        %v579 = vld [vmem:[%s440 + $0x5b0] sm:$0xff]
        %v580 = vld [vmem:[%s440 + $0x5f0] sm:$0xff]
        %v581 = vld [vmem:[%s440 + $0x5f8] sm:$0xff]
        %v582 = vld [vmem:[%s440 + $0x600] sm:$0xff]
        %v583 = vld [vmem:[%s440 + $0x640] sm:$0xff]
        %v584 = vld [vmem:[%s440 + $0x648] sm:$0xff]
        %v585 = vld [vmem:[%s440 + $0x650] sm:$0xff]
        %v586 = vld [vmem:[%s440 + $0x690] sm:$0xff]
        %v587 = vld [vmem:[%s440 + $0x698] sm:$0xff]
        %v588 = vld [vmem:[%s440 + $0x6a0] sm:$0xff]
        %v589 = vld [vmem:[%s440 + $0x6e0] sm:$0xff]
        %v590 = vld [vmem:[%s440 + $0x6e8] sm:$0xff]
        %v591 = vld [vmem:[%s440 + $0x6f0] sm:$0xff]
        %v592 = vld [vmem:[%s440 + $0x730] sm:$0xff]
        %v593 = vld [vmem:[%s440 + $0x738] sm:$0xff]
        %v594 = vld [vmem:[%s440 + $0x740] sm:$0xff]
        %v595 = vld [vmem:[%s440 + $0x780] sm:$0xff]
        %v596 = vld [vmem:[%s440 + $0x788] sm:$0xff]
        %v597 = vld [vmem:[%s440 + $0x790] sm:$0xff]
        %v598 = vld [vmem:[%s440 + $0x7d0] sm:$0xff]
        %v599 = vld [vmem:[%s440 + $0x7d8] sm:$0xff]
        %v600 = vld [vmem:[%s440 + $0x7e0] sm:$0xff]
        %v601 = vld [vmem:[%s440 + $0x820] sm:$0xff]
        %v602 = vld [vmem:[%s440 + $0x828] sm:$0xff]
        %v603 = vld [vmem:[%s440 + $0x830] sm:$0xff]
        %v604 = vld [vmem:[%s440 + $0x870] sm:$0xff]
        %v605 = vld [vmem:[%s440 + $0x878] sm:$0xff]
        %v606 = vld [vmem:[%s440 + $0x880] sm:$0xff]
        %v607 = vld [vmem:[%s440 + $0x8c0] sm:$0xff]
        %v608 = vld [vmem:[%s440 + $0x8c8] sm:$0xff]
        %v609 = vld [vmem:[%s440 + $0x8d0] sm:$0xff]
        %v610 = vld [vmem:[%s440 + $0x910] sm:$0xff]
        %v611 = vld [vmem:[%s440 + $0x918] sm:$0xff]
        %v612 = vld [vmem:[%s440 + $0x920] sm:$0xff]
        %v613 = vld [vmem:[%s440 + $0x960] sm:$0xff]
        %v614 = vld [vmem:[%s440 + $0x968] sm:$0xff]
        %v615 = vld [vmem:[%s440 + $0x970] sm:$0xff]
        %v616 = vld [vmem:[%s440 + $0x9b0] sm:$0xff]
        %v617 = vld [vmem:[%s440 + $0x9b8] sm:$0xff]
        %v618 = vld [vmem:[%s440 + $0x9c0] sm:$0xff]
        %v619 = vld [vmem:[%s458] sm:$0x3f]
        %v621 = vlaneseq
        %v622 = vshrl.u32 %v621, 7
        %v623 = vsub.s32 0, %v622
        %v624 = vrot.slane %v619, %v623
        %v625 = vlaneseq
        %v626 = vshrl.u32 %v625, 7
        %v627 = vsub.s32 1, %v626
        %v628 = vrot.slane %v619, %v627
        %v629 = vlaneseq
        %v630 = vshrl.u32 %v629, 7
        %v631 = vsub.s32 2, %v630
        %v632 = vrot.slane %v619, %v631
        %v633 = vlaneseq
        %v634 = vshrl.u32 %v633, 7
        %v635 = vsub.s32 3, %v634
        %v636 = vrot.slane %v619, %v635
        %v637 = vlaneseq
        %v638 = vshrl.u32 %v637, 7
        %v639 = vsub.s32 4, %v638
        %v640 = vrot.slane %v619, %v639
        %v641 = vlaneseq
        %v642 = vshrl.u32 %v641, 7
        %v643 = vsub.s32 5, %v642
        %v644 = vrot.slane %v619, %v643
        %v747 = vunpack.c.l.b16 %v523
        %v748 = vunpack.c.h.b16 %v523
        %v749 = vunpack.c.l.b16 %v524
        %v750 = vunpack.c.h.b16 %v524
        %v751 = vunpack.c.l.b16 %v525
        %v752 = vunpack.c.h.b16 %v525
        %v753 = vunpack.c.l.b16 %v526
        %v754 = vunpack.c.h.b16 %v526
        %v755 = vunpack.c.l.b16 %v527
        %v756 = vunpack.c.h.b16 %v527
        %v757 = vunpack.c.l.b16 %v528
        %v758 = vunpack.c.h.b16 %v528
        %v759 = vunpack.c.l.b16 %v529
        %v760 = vunpack.c.h.b16 %v529
        %v761 = vunpack.c.l.b16 %v530
        %v762 = vunpack.c.h.b16 %v530
        %v763 = vunpack.c.l.b16 %v531
        %v764 = vunpack.c.h.b16 %v531
        %v765 = vunpack.c.l.b16 %v532
        %v766 = vunpack.c.h.b16 %v532
        %v767 = vunpack.c.l.b16 %v533
        %v768 = vunpack.c.h.b16 %v533
        %v769 = vunpack.c.l.b16 %v534
        %v770 = vunpack.c.h.b16 %v534
        %v771 = vunpack.c.l.b16 %v535
        %v772 = vunpack.c.h.b16 %v535
        %v773 = vunpack.c.l.b16 %v536
        %v774 = vunpack.c.h.b16 %v536
        %v775 = vunpack.c.l.b16 %v537
        %v776 = vunpack.c.h.b16 %v537
        %v777 = vunpack.c.l.b16 %v538
        %v778 = vunpack.c.h.b16 %v538
        %v779 = vunpack.c.l.b16 %v539
        %v780 = vunpack.c.h.b16 %v539
        %v781 = vunpack.c.l.b16 %v540
        %v782 = vunpack.c.h.b16 %v540
        %v783 = vunpack.c.l.b16 %v541
        %v784 = vunpack.c.h.b16 %v541
        %v785 = vunpack.c.l.b16 %v542
        %v786 = vunpack.c.h.b16 %v542
        %v787 = vunpack.c.l.b16 %v543
        %v788 = vunpack.c.h.b16 %v543
        %v789 = vunpack.c.l.b16 %v544
        %v790 = vunpack.c.h.b16 %v544
        %v791 = vunpack.c.l.b16 %v545
        %v792 = vunpack.c.h.b16 %v545
        %v793 = vunpack.c.l.b16 %v546
        %v794 = vunpack.c.h.b16 %v546
        %v795 = vunpack.c.l.b16 %v547
        %v796 = vunpack.c.h.b16 %v547
        %v797 = vunpack.c.l.b16 %v548
        %v798 = vunpack.c.h.b16 %v548
        %v799 = vunpack.c.l.b16 %v549
        %v800 = vunpack.c.h.b16 %v549
        %v801 = vunpack.c.l.b16 %v550
        %v802 = vunpack.c.h.b16 %v550
        %v803 = vunpack.c.l.b16 %v551
        %v804 = vunpack.c.h.b16 %v551
        %v805 = vunpack.c.l.b16 %v552
        %v806 = vunpack.c.h.b16 %v552
        %v807 = vunpack.c.l.b16 %v553
        %v808 = vunpack.c.h.b16 %v553
        %v809 = vunpack.c.l.b16 %v554
        %v810 = vunpack.c.h.b16 %v554
        %v811 = vunpack.c.l.b16 %v555
        %v812 = vunpack.c.h.b16 %v555
        %v813 = vunpack.c.l.b16 %v556
        %v814 = vunpack.c.h.b16 %v556
        %v815 = vunpack.c.l.b16 %v557
        %v816 = vunpack.c.h.b16 %v557
        %v817 = vunpack.c.l.b16 %v558
        %v818 = vunpack.c.h.b16 %v558
        %v819 = vunpack.c.l.b16 %v559
        %v820 = vunpack.c.h.b16 %v559
        %v821 = vunpack.c.l.b16 %v560
        %v822 = vunpack.c.h.b16 %v560
        %v823 = vunpack.c.l.b16 %v561
        %v824 = vunpack.c.h.b16 %v561
        %v825 = vunpack.c.l.b16 %v562
        %v826 = vunpack.c.h.b16 %v562
        %v827 = vunpack.c.l.b16 %v563
        %v828 = vunpack.c.h.b16 %v563
        %v829 = vunpack.c.l.b16 %v564
        %v830 = vunpack.c.h.b16 %v564
        %v831 = vunpack.c.l.b16 %v565
        %v832 = vunpack.c.h.b16 %v565
        %v833 = vunpack.c.l.b16 %v566
        %v834 = vunpack.c.h.b16 %v566
        %v835 = vunpack.c.l.b16 %v567
        %v836 = vunpack.c.h.b16 %v567
        %v837 = vunpack.c.l.b16 %v568
        %v838 = vunpack.c.h.b16 %v568
        %v839 = vunpack.c.l.b16 %v569
        %v840 = vunpack.c.h.b16 %v569
        %v841 = vunpack.c.l.b16 %v570
        %v842 = vunpack.c.h.b16 %v570
        %v843 = vunpack.c.l.b16 %v571
        %v844 = vunpack.c.h.b16 %v571
        %v845 = vunpack.c.l.b16 %v572
        %v846 = vunpack.c.h.b16 %v572
        %v847 = vunpack.c.l.b16 %v573
        %v848 = vunpack.c.h.b16 %v573
        %v849 = vunpack.c.l.b16 %v574
        %v850 = vunpack.c.h.b16 %v574
        %v851 = vunpack.c.l.b16 %v575
        %v852 = vunpack.c.h.b16 %v575
        %v853 = vunpack.c.l.b16 %v576
        %v854 = vunpack.c.h.b16 %v576
        %v855 = vunpack.c.l.b16 %v577
        %v856 = vunpack.c.h.b16 %v577
        %v857 = vunpack.c.l.b16 %v578
        %v858 = vunpack.c.h.b16 %v578
        %v859 = vunpack.c.l.b16 %v579
        %v860 = vunpack.c.h.b16 %v579
        %v861 = vunpack.c.l.b16 %v580
        %v862 = vunpack.c.h.b16 %v580
        %v863 = vunpack.c.l.b16 %v581
        %v864 = vunpack.c.h.b16 %v581
        %v865 = vunpack.c.l.b16 %v582
        %v866 = vunpack.c.h.b16 %v582
        %v867 = vunpack.c.l.b16 %v583
        %v868 = vunpack.c.h.b16 %v583
        %v869 = vunpack.c.l.b16 %v584
        %v870 = vunpack.c.h.b16 %v584
        %v871 = vunpack.c.l.b16 %v585
        %v872 = vunpack.c.h.b16 %v585
        %v873 = vunpack.c.l.b16 %v586
        %v874 = vunpack.c.h.b16 %v586
        %v875 = vunpack.c.l.b16 %v587
        %v876 = vunpack.c.h.b16 %v587
        %v877 = vunpack.c.l.b16 %v588
        %v878 = vunpack.c.h.b16 %v588
        %v879 = vunpack.c.l.b16 %v589
        %v880 = vunpack.c.h.b16 %v589
        %v881 = vunpack.c.l.b16 %v590
        %v882 = vunpack.c.h.b16 %v590
        %v883 = vunpack.c.l.b16 %v591
        %v884 = vunpack.c.h.b16 %v591
        %v885 = vunpack.c.l.b16 %v592
        %v886 = vunpack.c.h.b16 %v592
        %v887 = vunpack.c.l.b16 %v593
        %v888 = vunpack.c.h.b16 %v593
        %v889 = vunpack.c.l.b16 %v594
        %v890 = vunpack.c.h.b16 %v594
        %v891 = vunpack.c.l.b16 %v595
        %v892 = vunpack.c.h.b16 %v595
        %v893 = vunpack.c.l.b16 %v596
        %v894 = vunpack.c.h.b16 %v596
        %v895 = vunpack.c.l.b16 %v597
        %v896 = vunpack.c.h.b16 %v597
        %v897 = vunpack.c.l.b16 %v598
        %v898 = vunpack.c.h.b16 %v598
        %v899 = vunpack.c.l.b16 %v599
        %v900 = vunpack.c.h.b16 %v599
        %v901 = vunpack.c.l.b16 %v600
        %v902 = vunpack.c.h.b16 %v600
        %v903 = vunpack.c.l.b16 %v601
        %v904 = vunpack.c.h.b16 %v601
        %v905 = vunpack.c.l.b16 %v602
        %v906 = vunpack.c.h.b16 %v602
        %v907 = vunpack.c.l.b16 %v603
        %v908 = vunpack.c.h.b16 %v603
        %v909 = vunpack.c.l.b16 %v604
        %v910 = vunpack.c.h.b16 %v604
        %v911 = vunpack.c.l.b16 %v605
        %v912 = vunpack.c.h.b16 %v605
        %v913 = vunpack.c.l.b16 %v606
        %v914 = vunpack.c.h.b16 %v606
        %v915 = vunpack.c.l.b16 %v607
        %v916 = vunpack.c.h.b16 %v607
        %v917 = vunpack.c.l.b16 %v608
        %v918 = vunpack.c.h.b16 %v608
        %v919 = vunpack.c.l.b16 %v609
        %v920 = vunpack.c.h.b16 %v609
        %v921 = vunpack.c.l.b16 %v610
        %v922 = vunpack.c.h.b16 %v610
        %v923 = vunpack.c.l.b16 %v611
        %v924 = vunpack.c.h.b16 %v611
        %v925 = vunpack.c.l.b16 %v612
        %v926 = vunpack.c.h.b16 %v612
        %v927 = vunpack.c.l.b16 %v613
        %v928 = vunpack.c.h.b16 %v613
        %v929 = vunpack.c.l.b16 %v614
        %v930 = vunpack.c.h.b16 %v614
        %v931 = vunpack.c.l.b16 %v615
        %v932 = vunpack.c.h.b16 %v615
        %v933 = vunpack.c.l.b16 %v616
        %v934 = vunpack.c.h.b16 %v616
        %v935 = vunpack.c.l.b16 %v617
        %v936 = vunpack.c.h.b16 %v617
        %v937 = vunpack.c.l.b16 %v618
        %v938 = vunpack.c.h.b16 %v618
        %v939 = vpack.c.b16 %v753, %v747
        %v940 = vpack.c.b16 %v754, %v748
        %v941 = vpack.c.b16 %v755, %v749
        %v942 = vpack.c.b16 %v756, %v750
        %v943 = vpack.c.b16 %v757, %v751
        %v944 = vpack.c.b16 %v758, %v752
        %v945 = vpack.c.b16 %v765, %v759
        %v946 = vpack.c.b16 %v766, %v760
        %v947 = vpack.c.b16 %v767, %v761
        %v948 = vpack.c.b16 %v768, %v762
        %v949 = vpack.c.b16 %v769, %v763
        %v950 = vpack.c.b16 %v770, %v764
        %v951 = vpack.c.b16 %v777, %v771
        %v952 = vpack.c.b16 %v778, %v772
        %v953 = vpack.c.b16 %v779, %v773
        %v954 = vpack.c.b16 %v780, %v774
        %v955 = vpack.c.b16 %v781, %v775
        %v956 = vpack.c.b16 %v782, %v776
        %v957 = vpack.c.b16 %v789, %v783
        %v958 = vpack.c.b16 %v790, %v784
        %v959 = vpack.c.b16 %v791, %v785
        %v960 = vpack.c.b16 %v792, %v786
        %v961 = vpack.c.b16 %v793, %v787
        %v962 = vpack.c.b16 %v794, %v788
        %v963 = vpack.c.b16 %v801, %v795
        %v964 = vpack.c.b16 %v802, %v796
        %v965 = vpack.c.b16 %v803, %v797
        %v966 = vpack.c.b16 %v804, %v798
        %v967 = vpack.c.b16 %v805, %v799
        %v968 = vpack.c.b16 %v806, %v800
        %v969 = vpack.c.b16 %v813, %v807
        %v970 = vpack.c.b16 %v814, %v808
        %v971 = vpack.c.b16 %v815, %v809
        %v972 = vpack.c.b16 %v816, %v810
        %v973 = vpack.c.b16 %v817, %v811
        %v974 = vpack.c.b16 %v818, %v812
        %v975 = vpack.c.b16 %v825, %v819
        %v976 = vpack.c.b16 %v826, %v820
        %v977 = vpack.c.b16 %v827, %v821
        %v978 = vpack.c.b16 %v828, %v822
        %v979 = vpack.c.b16 %v829, %v823
        %v980 = vpack.c.b16 %v830, %v824
        %v981 = vpack.c.b16 %v837, %v831
        %v982 = vpack.c.b16 %v838, %v832
        %v983 = vpack.c.b16 %v839, %v833
        %v984 = vpack.c.b16 %v840, %v834
        %v985 = vpack.c.b16 %v841, %v835
        %v986 = vpack.c.b16 %v842, %v836
        %v987 = vpack.c.b16 %v849, %v843
        %v988 = vpack.c.b16 %v850, %v844
        %v989 = vpack.c.b16 %v851, %v845
        %v990 = vpack.c.b16 %v852, %v846
        %v991 = vpack.c.b16 %v853, %v847
        %v992 = vpack.c.b16 %v854, %v848
        %v993 = vpack.c.b16 %v861, %v855
        %v994 = vpack.c.b16 %v862, %v856
        %v995 = vpack.c.b16 %v863, %v857
        %v996 = vpack.c.b16 %v864, %v858
        %v997 = vpack.c.b16 %v865, %v859
        %v998 = vpack.c.b16 %v866, %v860
        %v999 = vpack.c.b16 %v873, %v867
        %v1000 = vpack.c.b16 %v874, %v868
        %v1001 = vpack.c.b16 %v875, %v869
        %v1002 = vpack.c.b16 %v876, %v870
        %v1003 = vpack.c.b16 %v877, %v871
        %v1004 = vpack.c.b16 %v878, %v872
        %v1005 = vpack.c.b16 %v885, %v879
        %v1006 = vpack.c.b16 %v886, %v880
        %v1007 = vpack.c.b16 %v887, %v881
        %v1008 = vpack.c.b16 %v888, %v882
        %v1009 = vpack.c.b16 %v889, %v883
        %v1010 = vpack.c.b16 %v890, %v884
        %v1011 = vpack.c.b16 %v897, %v891
        %v1012 = vpack.c.b16 %v898, %v892
        %v1013 = vpack.c.b16 %v899, %v893
        %v1014 = vpack.c.b16 %v900, %v894
        %v1015 = vpack.c.b16 %v901, %v895
        %v1016 = vpack.c.b16 %v902, %v896
        %v1017 = vpack.c.b16 %v909, %v903
        %v1018 = vpack.c.b16 %v910, %v904
        %v1019 = vpack.c.b16 %v911, %v905
        %v1020 = vpack.c.b16 %v912, %v906
        %v1021 = vpack.c.b16 %v913, %v907
        %v1022 = vpack.c.b16 %v914, %v908
        %v1023 = vpack.c.b16 %v921, %v915
        %v1024 = vpack.c.b16 %v922, %v916
        %v1025 = vpack.c.b16 %v923, %v917
        %v1026 = vpack.c.b16 %v924, %v918
        %v1027 = vpack.c.b16 %v925, %v919
        %v1028 = vpack.c.b16 %v926, %v920
        %v1029 = vpack.c.b16 %v933, %v927
        %v1030 = vpack.c.b16 %v934, %v928
        %v1031 = vpack.c.b16 %v935, %v929
        %v1032 = vpack.c.b16 %v936, %v930
        %v1033 = vpack.c.b16 %v937, %v931
        %v1034 = vpack.c.b16 %v938, %v932
        %1131 = vmatprep.subr.bf16.mxu0 %v982
        %1132 = vmatpush1.bf16.msra.mxu0 %v981
        %1133 = vmatprep.subr.bf16.mxu0 %v976
        %1134 = vmatpush1.bf16.msra.mxu0 %v975
        %1135 = vmatprep.subr.bf16.mxu0 %v970
        %1136 = vmatpush1.bf16.msra.mxu0 %v969
        %1137 = vmatprep.subr.bf16.mxu0 %v964
        %1138 = vmatpush1.bf16.msra.mxu0 %v963
        %1139 = vmatprep.subr.bf16.mxu0 %v958
        %1140 = vmatpush1.bf16.msra.mxu0 %v957
        %1141 = vmatprep.subr.bf16.mxu0 %v952
        %1142 = vmatpush1.bf16.msra.mxu0 %v951
        %1143 = vmatprep.subr.bf16.mxu0 %v946
        %1144 = vmatpush1.bf16.msra.mxu0 %v945
        %1145 = vmatprep.subr.bf16.mxu0 %v940
        %1146 = vmatpush1.bf16.msra.mxu0 %v939
        %1147 = vmatprep.subr.bf16.mxu0 %v1030
        %1148 = vmatpush2.bf16.msra.mxu0 %v1029
        %1149 = vmatprep.subr.bf16.mxu0 %v1024
        %1150 = vmatpush2.bf16.msra.mxu0 %v1023
        %1151 = vmatprep.subr.bf16.mxu0 %v1018
        %1152 = vmatpush2.bf16.msra.mxu0 %v1017
        %1153 = vmatprep.subr.bf16.mxu0 %v1012
        %1154 = vmatpush2.bf16.msra.mxu0 %v1011
        %1155 = vmatprep.subr.bf16.mxu0 %v1006
        %1156 = vmatpush2.bf16.msra.mxu0 %v1005
        %1157 = vmatprep.subr.bf16.mxu0 %v1000
        %1158 = vmatpush2.bf16.msra.mxu0 %v999
        %1159 = vmatprep.subr.bf16.mxu0 %v994
        %1160 = vmatpush2.bf16.msra.mxu0 %v993
        %1161 = vmatprep.subr.bf16.mxu0 %v988
        %1162 = vmatpush2.bf16.msra.mxu0 %v987
        %1163 = vmatprep.mubr.bf16.mxu0 %v522
        %1164 = vmatmul.mubr.bf16.gmra.mxu0 %v521
        %v1165 = vpop.f32.mrf.mxu0
        %v1166 = vadd.f32 %v624, %v1165
        %v1167 = vpop.f32.mrf.mxu0
        %v1168 = vadd.f32 %v628, %v1167
        %v1169 = vpop.f32.mrf.mxu0
        %v1170 = vpop.f32.mrf.mxu0
        %1171 = vdwg.mxu0
        %1172 = vmatprep.subr.bf16.mxu0 %v984
        %1173 = vmatpush1.bf16.msra.mxu0 %v983
        %1174 = vmatprep.subr.bf16.mxu0 %v978
        %1175 = vmatpush1.bf16.msra.mxu0 %v977
        %1176 = vmatprep.subr.bf16.mxu0 %v972
        %1177 = vmatpush1.bf16.msra.mxu0 %v971
        %1178 = vmatprep.subr.bf16.mxu0 %v966
        %1179 = vmatpush1.bf16.msra.mxu0 %v965
        %1180 = vmatprep.subr.bf16.mxu0 %v960
        %1181 = vmatpush1.bf16.msra.mxu0 %v959
        %1182 = vmatprep.subr.bf16.mxu0 %v954
        %1183 = vmatpush1.bf16.msra.mxu0 %v953
        %1184 = vmatprep.subr.bf16.mxu0 %v948
        %1185 = vmatpush1.bf16.msra.mxu0 %v947
        %1186 = vmatprep.subr.bf16.mxu0 %v942
        %1187 = vmatpush1.bf16.msra.mxu0 %v941
        %1188 = vmatprep.subr.bf16.mxu0 %v1032
        %1189 = vmatpush2.bf16.msra.mxu0 %v1031
        %1190 = vmatprep.subr.bf16.mxu0 %v1026
        %1191 = vmatpush2.bf16.msra.mxu0 %v1025
        %1192 = vmatprep.subr.bf16.mxu0 %v1020
        %1193 = vmatpush2.bf16.msra.mxu0 %v1019
        %1194 = vmatprep.subr.bf16.mxu0 %v1014
        %1195 = vmatpush2.bf16.msra.mxu0 %v1013
        %1196 = vmatprep.subr.bf16.mxu0 %v1008
        %1197 = vmatpush2.bf16.msra.mxu0 %v1007
        %1198 = vmatprep.subr.bf16.mxu0 %v1002
        %1199 = vmatpush2.bf16.msra.mxu0 %v1001
        %1200 = vmatprep.subr.bf16.mxu0 %v996
        %1201 = vmatpush2.bf16.msra.mxu0 %v995
        %1202 = vmatprep.subr.bf16.mxu0 %v990
        %1203 = vmatpush2.bf16.msra.mxu0 %v989
        %1204 = vmatprep.mubr.bf16.mxu0 %v522
        %1205 = vmatmul.mubr.bf16.gmra.mxu0 %v521
        %v1206 = vpop.f32.mrf.mxu0
        %v1207 = vadd.f32 %v632, %v1206
        %v1208 = vpop.f32.mrf.mxu0
        %v1209 = vadd.f32 %v636, %v1208
        %v1210 = vpop.f32.mrf.mxu0
        %v1211 = vpop.f32.mrf.mxu0
        %1212 = vdwg.mxu0
        %1213 = vmatprep.subr.bf16.mxu0 %v986
        %1214 = vmatpush1.bf16.msra.mxu0 %v985
        %1215 = vmatprep.subr.bf16.mxu0 %v980
        %1216 = vmatpush1.bf16.msra.mxu0 %v979
        %1217 = vmatprep.subr.bf16.mxu0 %v974
        %1218 = vmatpush1.bf16.msra.mxu0 %v973
        %1219 = vmatprep.subr.bf16.mxu0 %v968
        %1220 = vmatpush1.bf16.msra.mxu0 %v967
        %1221 = vmatprep.subr.bf16.mxu0 %v962
        %1222 = vmatpush1.bf16.msra.mxu0 %v961
        %1223 = vmatprep.subr.bf16.mxu0 %v956
        %1224 = vmatpush1.bf16.msra.mxu0 %v955
        %1225 = vmatprep.subr.bf16.mxu0 %v950
        %1226 = vmatpush1.bf16.msra.mxu0 %v949
        %1227 = vmatprep.subr.bf16.mxu0 %v944
        %1228 = vmatpush1.bf16.msra.mxu0 %v943
        %1229 = vmatprep.subr.bf16.mxu0 %v1034
        %1230 = vmatpush2.bf16.msra.mxu0 %v1033
        %1231 = vmatprep.subr.bf16.mxu0 %v1028
        %1232 = vmatpush2.bf16.msra.mxu0 %v1027
        %1233 = vmatprep.subr.bf16.mxu0 %v1022
        %1234 = vmatpush2.bf16.msra.mxu0 %v1021
        %1235 = vmatprep.subr.bf16.mxu0 %v1016
        %1236 = vmatpush2.bf16.msra.mxu0 %v1015
        %1237 = vmatprep.subr.bf16.mxu0 %v1010
        %1238 = vmatpush2.bf16.msra.mxu0 %v1009
        %1239 = vmatprep.subr.bf16.mxu0 %v1004
        %1240 = vmatpush2.bf16.msra.mxu0 %v1003
        %1241 = vmatprep.subr.bf16.mxu0 %v998
        %1242 = vmatpush2.bf16.msra.mxu0 %v997
        %1243 = vmatprep.subr.bf16.mxu0 %v992
        %1244 = vmatpush2.bf16.msra.mxu0 %v991
        %1245 = vmatprep.mubr.bf16.mxu0 %v522
        %1246 = vmatmul.mubr.bf16.gmra.mxu0 %v521
        %v1247 = vpop.f32.mrf.mxu0
        %v1248 = vadd.f32 %v640, %v1247
        %v1249 = vpop.f32.mrf.mxu0
        %v1250 = vadd.f32 %v644, %v1249
        %v1251 = vpop.f32.mrf.mxu0
        %v1252 = vpop.f32.mrf.mxu0
        %1253 = vdwg.mxu0
        %v1254 = vld [vmem:[%s2] sm:$0xff]
        %v1255 = vld [vmem:[%s3] sm:$0xff]
        %v1256 = vld [vmem:[%s458 + $0x6] sm:$0x3]
        %1257 = vmatprep.subr.mxu0 0.0
        %1258 = vmatpush1.xpose.msra.mxu0 0.0
        %1259 = vmatprep.subr.mxu0 0.0
        %1260 = vmatpush1.xpose.msra.mxu0 0.0
        %1261 = vmatprep.subr.mxu0 0.0
        %1262 = vmatpush1.xpose.msra.mxu0 0.0
        %1263 = vmatprep.subr.mxu0 0.0
        %1264 = vmatpush1.xpose.msra.mxu0 0.0
        %1265 = vmatprep.subr.mxu0 0.0
        %1266 = vmatpush1.xpose.msra.mxu0 0.0
        %1267 = vmatprep.subr.mxu0 0.0
        %1268 = vmatpush1.xpose.msra.mxu0 0.0
        %1269 = vmatprep.subr.mxu0 0.0
        %1270 = vmatpush1.xpose.msra.mxu0 0.0
        %1271 = vmatprep.subr.mxu0 0.0
        %1272 = vmatpush1.xpose.msra.mxu0 0.0
        %1273 = vmatprep.subr.mxu0 0.0
        %1274 = vmatpush1.xpose.msra.mxu0 0.0
        %1275 = vmatprep.subr.mxu0 0.0
        %1276 = vmatpush1.xpose.msra.mxu0 0.0
        %1277 = vmatprep.subr.mxu0 0.0
        %1278 = vmatpush1.xpose.msra.mxu0 0.0
        %1279 = vmatprep.subr.mxu0 0.0
        %1280 = vmatpush1.xpose.msra.mxu0 0.0
        %1281 = vmatprep.subr.mxu0 0.0
        %1282 = vmatpush1.xpose.msra.mxu0 0.0
        %1283 = vmatprep.subr.mxu0 0.0
        %1284 = vmatpush1.xpose.msra.mxu0 0.0
        %1285 = vmatprep.subr.mxu0 0.0
        %1286 = vmatpush1.xpose.msra.mxu0 0.0
        %1287 = vmatprep.subr.mxu0 0.0
        %1288 = vmatpush1.xpose.msra.mxu0 %v1207
        %1289 = vmatprep.subr.mxu0 0.0
        %1290 = vmatpush2.xpose.msra.mxu0 0.0
        %1291 = vmatprep.subr.mxu0 0.0
        %1292 = vmatpush2.xpose.msra.mxu0 0.0
        %1293 = vmatprep.subr.mxu0 0.0
        %1294 = vmatpush2.xpose.msra.mxu0 0.0
        %1295 = vmatprep.subr.mxu0 0.0
        %1296 = vmatpush2.xpose.msra.mxu0 0.0
        %1297 = vmatprep.subr.mxu0 0.0
        %1298 = vmatpush2.xpose.msra.mxu0 0.0
        %1299 = vmatprep.subr.mxu0 0.0
        %1300 = vmatpush2.xpose.msra.mxu0 0.0
        %1301 = vmatprep.subr.mxu0 0.0
        %1302 = vmatpush2.xpose.msra.mxu0 0.0
        %1303 = vmatprep.subr.mxu0 0.0
        %1304 = vmatpush2.xpose.msra.mxu0 0.0
        %1305 = vmatprep.subr.mxu0 0.0
        %1306 = vmatpush2.xpose.msra.mxu0 0.0
        %1307 = vmatprep.subr.mxu0 0.0
        %1308 = vmatpush2.xpose.msra.mxu0 0.0
        %1309 = vmatprep.subr.mxu0 0.0
        %1310 = vmatpush2.xpose.msra.mxu0 0.0
        %1311 = vmatprep.subr.mxu0 0.0
        %1312 = vmatpush2.xpose.msra.mxu0 0.0
        %1313 = vmatprep.subr.mxu0 0.0
        %1314 = vmatpush2.xpose.msra.mxu0 0.0
        %1315 = vmatprep.subr.mxu0 0.0
        %1316 = vmatpush2.xpose.msra.mxu0 0.0
        %1317 = vmatprep.subr.mxu0 0.0
        %1318 = vmatpush2.xpose.msra.mxu0 0.0
        %1319 = vmatprep.subr.mxu0 0.0
        %1320 = vmatpush2.xpose.msra.mxu0 0.0
        %1321 = vmatprep.mubr.f32.mxu0 0.0
        %1322 = vmatmul.mubr.f32.gmra.mxu0 %v1166
        %v1323 = vpop.f32.mrf.mxu0
        %v1324 = vadd.f32 0.0, %v1323
        %v1325 = vpop.f32.mrf.mxu0
        %1326 = vdwg.mxu0
        %v1327 = vmul.f32 %v1324, 0.088388346
        %v1328 = vmul.f32 %v1327, %v1254
        %v1329 = vadd.f32 %v1328, %v1255
        %vm1330 = vcmask 64512
        %v1331 = vsel %vm1330, %v1329, -inf
        %1332 = vmax.xlane.f32.xlu0 %v1331
        %v1333 = vpop.xlane.xlu0 %1332
        %v1334 = vsub.f32 %v1329, %v1333
        %v1335 = vmul.f32 %v1334, 1.442695
        %v1336 = vpow.pop %v1335
        %v1337 = vsel %vm1330, %v1336, 0.0
        %1338 = vadd.xlane.f32.xlu0 %v1337
        %v1339 = vpop.xlane.xlu0 %1338
        %v1340 = vrcp.pop %v1339
        %v1341 = vmul.f32 %v1336, %v1340
        %v1343 = vsel %vm1330, %v1341, 0
        %1345 = vmatprep.subr.mxu0 0.0
        %1346 = vmatpush1.msra.mxu0 0.0
        %1347 = vmatprep.subr.mxu0 0.0
        %1348 = vmatpush1.msra.mxu0 0.0
        %1349 = vmatprep.subr.mxu0 0.0
        %1350 = vmatpush1.msra.mxu0 0.0
        %1351 = vmatprep.subr.mxu0 0.0
        %1352 = vmatpush1.msra.mxu0 0.0
        %1353 = vmatprep.subr.mxu0 0.0
        %1354 = vmatpush1.msra.mxu0 0.0
        %1355 = vmatprep.subr.mxu0 0.0
        %1356 = vmatpush1.msra.mxu0 0.0
        %1357 = vmatprep.subr.mxu0 0.0
        %1358 = vmatpush1.msra.mxu0 0.0
        %1359 = vmatprep.subr.mxu0 0.0
        %1360 = vmatpush1.msra.mxu0 0.0
        %1361 = vmatprep.subr.mxu0 0.0
        %1362 = vmatpush1.msra.mxu0 0.0
        %1363 = vmatprep.subr.mxu0 0.0
        %1364 = vmatpush1.msra.mxu0 0.0
        %1365 = vmatprep.subr.mxu0 0.0
        %1366 = vmatpush1.msra.mxu0 0.0
        %1367 = vmatprep.subr.mxu0 0.0
        %1368 = vmatpush1.msra.mxu0 0.0
        %1369 = vmatprep.subr.mxu0 0.0
        %1370 = vmatpush1.msra.mxu0 0.0
        %1371 = vmatprep.subr.mxu0 0.0
        %1372 = vmatpush1.msra.mxu0 0.0
        %1373 = vmatprep.subr.mxu0 0.0
        %1374 = vmatpush1.msra.mxu0 0.0
        %1375 = vmatprep.subr.mxu0 0.0
        %1376 = vmatpush1.msra.mxu0 %v1248
        %1377 = vmatprep.subr.mxu0 0.0
        %1378 = vmatpush2.msra.mxu0 0.0
        %1379 = vmatprep.subr.mxu0 0.0
        %1380 = vmatpush2.msra.mxu0 0.0
        %1381 = vmatprep.subr.mxu0 0.0
        %1382 = vmatpush2.msra.mxu0 0.0
        %1383 = vmatprep.subr.mxu0 0.0
        %1384 = vmatpush2.msra.mxu0 0.0
        %1385 = vmatprep.subr.mxu0 0.0
        %1386 = vmatpush2.msra.mxu0 0.0
        %1387 = vmatprep.subr.mxu0 0.0
        %1388 = vmatpush2.msra.mxu0 0.0
        %1389 = vmatprep.subr.mxu0 0.0
        %1390 = vmatpush2.msra.mxu0 0.0
        %1391 = vmatprep.subr.mxu0 0.0
        %1392 = vmatpush2.msra.mxu0 0.0
        %1393 = vmatprep.subr.mxu0 0.0
        %1394 = vmatpush2.msra.mxu0 0.0
        %1395 = vmatprep.subr.mxu0 0.0
        %1396 = vmatpush2.msra.mxu0 0.0
        %1397 = vmatprep.subr.mxu0 0.0
        %1398 = vmatpush2.msra.mxu0 0.0
        %1399 = vmatprep.subr.mxu0 0.0
        %1400 = vmatpush2.msra.mxu0 0.0
        %1401 = vmatprep.subr.mxu0 0.0
        %1402 = vmatpush2.msra.mxu0 0.0
        %1403 = vmatprep.subr.mxu0 0.0
        %1404 = vmatpush2.msra.mxu0 0.0
        %1405 = vmatprep.subr.mxu0 0.0
        %1406 = vmatpush2.msra.mxu0 0.0
        %1407 = vmatprep.subr.mxu0 0.0
        %1408 = vmatpush2.msra.mxu0 0.0
        %1409 = vmatprep.mubr.f32.mxu0 0.0
        %1410 = vmatmul.mubr.f32.gmra.mxu0 %v1343
        %v1411 = vpop.f32.mrf.mxu0
        %v1412 = vadd.f32 0.0, %v1411
        %v1413 = vpop.f32.mrf.mxu0
        %1414 = vdwg.mxu0
        %v1415 = vld [vmem:[%s440 + $0x18] sm:$0xff]
        %v1416 = vld [vmem:[%s440 + $0x68] sm:$0xff]
        %v1417 = vld [vmem:[%s440 + $0xb8] sm:$0xff]
        %v1418 = vld [vmem:[%s440 + $0x108] sm:$0xff]
        %v1419 = vld [vmem:[%s440 + $0x158] sm:$0xff]
        %v1420 = vld [vmem:[%s440 + $0x1a8] sm:$0xff]
        %v1421 = vld [vmem:[%s440 + $0x1f8] sm:$0xff]
        %v1422 = vld [vmem:[%s440 + $0x248] sm:$0xff]
        %v1423 = vld [vmem:[%s440 + $0x298] sm:$0xff]
        %v1424 = vld [vmem:[%s440 + $0x2e8] sm:$0xff]
        %v1425 = vld [vmem:[%s440 + $0x338] sm:$0xff]
        %v1426 = vld [vmem:[%s440 + $0x388] sm:$0xff]
        %v1427 = vld [vmem:[%s440 + $0x3d8] sm:$0xff]
        %v1428 = vld [vmem:[%s440 + $0x428] sm:$0xff]
        %v1429 = vld [vmem:[%s440 + $0x478] sm:$0xff]
        %v1430 = vld [vmem:[%s440 + $0x4c8] sm:$0xff]
        %v1431 = vpack.c.bf16 %v1412, %v1412
        %1432 = vmatprep.subr.mxu0 0.0
        %1433 = vmatpush1.xpose.msra.mxu0 0.0
        %1434 = vmatprep.subr.mxu0 0.0
        %1435 = vmatpush1.xpose.msra.mxu0 0.0
        %1436 = vmatprep.subr.mxu0 0.0
        %1437 = vmatpush1.xpose.msra.mxu0 0.0
        %1438 = vmatprep.subr.mxu0 0.0
        %1439 = vmatpush1.xpose.msra.mxu0 0.0
        %1440 = vmatprep.subr.mxu0 0.0
        %1441 = vmatpush1.xpose.msra.mxu0 0.0
        %1442 = vmatprep.subr.mxu0 0.0
        %1443 = vmatpush1.xpose.msra.mxu0 0.0
        %1444 = vmatprep.subr.mxu0 0.0
        %1445 = vmatpush1.xpose.msra.mxu0 0.0
        %1446 = vmatprep.subr.mxu0 0.0
        %1447 = vmatpush1.xpose.msra.mxu0 0.0
        %1448 = vmatprep.subr.mxu0 0.0
        %1449 = vmatpush1.xpose.msra.mxu0 0.0
        %1450 = vmatprep.subr.mxu0 0.0
        %1451 = vmatpush1.xpose.msra.mxu0 0.0
        %1452 = vmatprep.subr.mxu0 0.0
        %1453 = vmatpush1.xpose.msra.mxu0 0.0
        %1454 = vmatprep.subr.mxu0 0.0
        %1455 = vmatpush1.xpose.msra.mxu0 0.0
        %1456 = vmatprep.subr.mxu0 0.0
        %1457 = vmatpush1.xpose.msra.mxu0 0.0
        %1458 = vmatprep.subr.mxu0 0.0
        %1459 = vmatpush1.xpose.msra.mxu0 0.0
        %1460 = vmatprep.subr.mxu0 0.0
        %1461 = vmatpush1.xpose.msra.mxu0 0.0
        %1462 = vmatprep.subr.mxu0 0.0
        %1463 = vmatpush1.xpose.msra.mxu0 %v1209
        %1464 = vmatprep.subr.mxu0 0.0
        %1465 = vmatpush2.xpose.msra.mxu0 0.0
        %1466 = vmatprep.subr.mxu0 0.0
        %1467 = vmatpush2.xpose.msra.mxu0 0.0
        %1468 = vmatprep.subr.mxu0 0.0
        %1469 = vmatpush2.xpose.msra.mxu0 0.0
        %1470 = vmatprep.subr.mxu0 0.0
        %1471 = vmatpush2.xpose.msra.mxu0 0.0
        %1472 = vmatprep.subr.mxu0 0.0
        %1473 = vmatpush2.xpose.msra.mxu0 0.0
        %1474 = vmatprep.subr.mxu0 0.0
        %1475 = vmatpush2.xpose.msra.mxu0 0.0
        %1476 = vmatprep.subr.mxu0 0.0
        %1477 = vmatpush2.xpose.msra.mxu0 0.0
        %1478 = vmatprep.subr.mxu0 0.0
        %1479 = vmatpush2.xpose.msra.mxu0 0.0
        %1480 = vmatprep.subr.mxu0 0.0
        %1481 = vmatpush2.xpose.msra.mxu0 0.0
        %1482 = vmatprep.subr.mxu0 0.0
        %1483 = vmatpush2.xpose.msra.mxu0 0.0
        %1484 = vmatprep.subr.mxu0 0.0
        %1485 = vmatpush2.xpose.msra.mxu0 0.0
        %1486 = vmatprep.subr.mxu0 0.0
        %1487 = vmatpush2.xpose.msra.mxu0 0.0
        %1488 = vmatprep.subr.mxu0 0.0
        %1489 = vmatpush2.xpose.msra.mxu0 0.0
        %1490 = vmatprep.subr.mxu0 0.0
        %1491 = vmatpush2.xpose.msra.mxu0 0.0
        %1492 = vmatprep.subr.mxu0 0.0
        %1493 = vmatpush2.xpose.msra.mxu0 0.0
        %1494 = vmatprep.subr.mxu0 0.0
        %1495 = vmatpush2.xpose.msra.mxu0 0.0
        %1496 = vmatprep.mubr.f32.mxu0 0.0
        %1497 = vmatmul.mubr.f32.gmra.mxu0 %v1168
        %v1498 = vpop.f32.mrf.mxu0
        %v1499 = vadd.f32 0.0, %v1498
        %v1500 = vpop.f32.mrf.mxu0
        %1501 = vdwg.mxu0
        %v1502 = vmul.f32 %v1499, 0.088388346
        %v1503 = vmul.f32 %v1502, %v1254
        %v1504 = vadd.f32 %v1503, %v1255
        %v1505 = vsel %vm1330, %v1504, -inf
        %1506 = vmax.xlane.f32.xlu0 %v1505
        %v1507 = vpop.xlane.xlu0 %1506
        %v1508 = vsub.f32 %v1504, %v1507
        %v1509 = vmul.f32 %v1508, 1.442695
        %v1510 = vpow.pop %v1509
        %v1511 = vsel %vm1330, %v1510, 0.0
        %1512 = vadd.xlane.f32.xlu0 %v1511
        %v1513 = vpop.xlane.xlu0 %1512
        %v1514 = vrcp.pop %v1513
        %v1515 = vmul.f32 %v1510, %v1514
        %v1517 = vsel %vm1330, %v1515, 0
        %1519 = vmatprep.subr.mxu0 0.0
        %1520 = vmatpush1.msra.mxu0 0.0
        %1521 = vmatprep.subr.mxu0 0.0
        %1522 = vmatpush1.msra.mxu0 0.0
        %1523 = vmatprep.subr.mxu0 0.0
        %1524 = vmatpush1.msra.mxu0 0.0
        %1525 = vmatprep.subr.mxu0 0.0
        %1526 = vmatpush1.msra.mxu0 0.0
        %1527 = vmatprep.subr.mxu0 0.0
        %1528 = vmatpush1.msra.mxu0 0.0
        %1529 = vmatprep.subr.mxu0 0.0
        %1530 = vmatpush1.msra.mxu0 0.0
        %1531 = vmatprep.subr.mxu0 0.0
        %1532 = vmatpush1.msra.mxu0 0.0
        %1533 = vmatprep.subr.mxu0 0.0
        %1534 = vmatpush1.msra.mxu0 0.0
        %1535 = vmatprep.subr.mxu0 0.0
        %1536 = vmatpush1.msra.mxu0 0.0
        %1537 = vmatprep.subr.mxu0 0.0
        %1538 = vmatpush1.msra.mxu0 0.0
        %1539 = vmatprep.subr.mxu0 0.0
        %1540 = vmatpush1.msra.mxu0 0.0
        %1541 = vmatprep.subr.mxu0 0.0
        %1542 = vmatpush1.msra.mxu0 0.0
        %1543 = vmatprep.subr.mxu0 0.0
        %1544 = vmatpush1.msra.mxu0 0.0
        %1545 = vmatprep.subr.mxu0 0.0
        %1546 = vmatpush1.msra.mxu0 0.0
        %1547 = vmatprep.subr.mxu0 0.0
        %1548 = vmatpush1.msra.mxu0 0.0
        %1549 = vmatprep.subr.mxu0 0.0
        %1550 = vmatpush1.msra.mxu0 %v1250
        %1551 = vmatprep.subr.mxu0 0.0
        %1552 = vmatpush2.msra.mxu0 0.0
        %1553 = vmatprep.subr.mxu0 0.0
        %1554 = vmatpush2.msra.mxu0 0.0
        %1555 = vmatprep.subr.mxu0 0.0
        %1556 = vmatpush2.msra.mxu0 0.0
        %1557 = vmatprep.subr.mxu0 0.0
        %1558 = vmatpush2.msra.mxu0 0.0
        %1559 = vmatprep.subr.mxu0 0.0
        %1560 = vmatpush2.msra.mxu0 0.0
        %1561 = vmatprep.subr.mxu0 0.0
        %1562 = vmatpush2.msra.mxu0 0.0
        %1563 = vmatprep.subr.mxu0 0.0
        %1564 = vmatpush2.msra.mxu0 0.0
        %1565 = vmatprep.subr.mxu0 0.0
        %1566 = vmatpush2.msra.mxu0 0.0
        %1567 = vmatprep.subr.mxu0 0.0
        %1568 = vmatpush2.msra.mxu0 0.0
        %1569 = vmatprep.subr.mxu0 0.0
        %1570 = vmatpush2.msra.mxu0 0.0
        %1571 = vmatprep.subr.mxu0 0.0
        %1572 = vmatpush2.msra.mxu0 0.0
        %1573 = vmatprep.subr.mxu0 0.0
        %1574 = vmatpush2.msra.mxu0 0.0
        %1575 = vmatprep.subr.mxu0 0.0
        %1576 = vmatpush2.msra.mxu0 0.0
        %1577 = vmatprep.subr.mxu0 0.0
        %1578 = vmatpush2.msra.mxu0 0.0
        %1579 = vmatprep.subr.mxu0 0.0
        %1580 = vmatpush2.msra.mxu0 0.0
        %1581 = vmatprep.subr.mxu0 0.0
        %1582 = vmatpush2.msra.mxu0 0.0
        %1583 = vmatprep.mubr.f32.mxu0 0.0
        %1584 = vmatmul.mubr.f32.gmra.mxu0 %v1517
        %v1585 = vpop.f32.mrf.mxu0
        %v1586 = vadd.f32 0.0, %v1585
        %v1587 = vpop.f32.mrf.mxu0
        %1588 = vdwg.mxu0
        %v1589 = vld [vmem:[%s440 + $0x518] sm:$0xff]
        %v1590 = vld [vmem:[%s440 + $0x568] sm:$0xff]
        %v1591 = vld [vmem:[%s440 + $0x5b8] sm:$0xff]
        %v1592 = vld [vmem:[%s440 + $0x608] sm:$0xff]
        %v1593 = vld [vmem:[%s440 + $0x658] sm:$0xff]
        %v1594 = vld [vmem:[%s440 + $0x6a8] sm:$0xff]
        %v1595 = vld [vmem:[%s440 + $0x6f8] sm:$0xff]
        %v1596 = vld [vmem:[%s440 + $0x748] sm:$0xff]
        %v1597 = vld [vmem:[%s440 + $0x798] sm:$0xff]
        %v1598 = vld [vmem:[%s440 + $0x7e8] sm:$0xff]
        %v1599 = vld [vmem:[%s440 + $0x838] sm:$0xff]
        %v1600 = vld [vmem:[%s440 + $0x888] sm:$0xff]
        %v1601 = vld [vmem:[%s440 + $0x8d8] sm:$0xff]
        %v1602 = vld [vmem:[%s440 + $0x928] sm:$0xff]
        %v1603 = vld [vmem:[%s440 + $0x978] sm:$0xff]
        %v1604 = vld [vmem:[%s440 + $0x9c8] sm:$0xff]
        %v1605 = vpack.c.bf16 %v1586, %v1586
        %v1622 = vunpack.c.l.b16 %v1589
        %v1623 = vunpack.c.h.b16 %v1589
        %v1624 = vunpack.c.l.b16 %v1590
        %v1625 = vunpack.c.h.b16 %v1590
        %v1626 = vunpack.c.l.b16 %v1591
        %v1627 = vunpack.c.h.b16 %v1591
        %v1628 = vunpack.c.l.b16 %v1592
        %v1629 = vunpack.c.h.b16 %v1592
        %v1630 = vunpack.c.l.b16 %v1593
        %v1631 = vunpack.c.h.b16 %v1593
        %v1632 = vunpack.c.l.b16 %v1594
        %v1633 = vunpack.c.h.b16 %v1594
        %v1634 = vunpack.c.l.b16 %v1595
        %v1635 = vunpack.c.h.b16 %v1595
        %v1636 = vunpack.c.l.b16 %v1596
        %v1637 = vunpack.c.h.b16 %v1596
        %v1638 = vunpack.c.l.b16 %v1597
        %v1639 = vunpack.c.h.b16 %v1597
        %v1640 = vunpack.c.l.b16 %v1598
        %v1641 = vunpack.c.h.b16 %v1598
        %v1642 = vunpack.c.l.b16 %v1599
        %v1643 = vunpack.c.h.b16 %v1599
        %v1644 = vunpack.c.l.b16 %v1600
        %v1645 = vunpack.c.h.b16 %v1600
        %v1646 = vunpack.c.l.b16 %v1601
        %v1647 = vunpack.c.h.b16 %v1601
        %v1648 = vunpack.c.l.b16 %v1602
        %v1649 = vunpack.c.h.b16 %v1602
        %v1650 = vunpack.c.l.b16 %v1603
        %v1651 = vunpack.c.h.b16 %v1603
        %v1652 = vunpack.c.l.b16 %v1604
        %v1653 = vunpack.c.h.b16 %v1604
        %v1654 = vpack.c.b16 %v1624, %v1622
        %v1655 = vpack.c.b16 %v1625, %v1623
        %v1656 = vpack.c.b16 %v1628, %v1626
        %v1657 = vpack.c.b16 %v1629, %v1627
        %v1658 = vpack.c.b16 %v1632, %v1630
        %v1659 = vpack.c.b16 %v1633, %v1631
        %v1660 = vpack.c.b16 %v1636, %v1634
        %v1661 = vpack.c.b16 %v1637, %v1635
        %v1662 = vpack.c.b16 %v1640, %v1638
        %v1663 = vpack.c.b16 %v1641, %v1639
        %v1664 = vpack.c.b16 %v1644, %v1642
        %v1665 = vpack.c.b16 %v1645, %v1643
        %v1666 = vpack.c.b16 %v1648, %v1646
        %v1667 = vpack.c.b16 %v1649, %v1647
        %v1668 = vpack.c.b16 %v1652, %v1650
        %v1669 = vpack.c.b16 %v1653, %v1651
        %1686 = vmatprep.subr.bf16.mxu0 %v1669
        %1687 = vmatpush1.bf16.msra.mxu0 %v1668
        %1688 = vmatprep.subr.bf16.mxu0 %v1667
        %1689 = vmatpush1.bf16.msra.mxu0 %v1666
        %1690 = vmatprep.subr.bf16.mxu0 %v1665
        %1691 = vmatpush1.bf16.msra.mxu0 %v1664
        %1692 = vmatprep.subr.bf16.mxu0 %v1663
        %1693 = vmatpush1.bf16.msra.mxu0 %v1662
        %1694 = vmatprep.subr.bf16.mxu0 %v1661
        %1695 = vmatpush1.bf16.msra.mxu0 %v1660
        %1696 = vmatprep.subr.bf16.mxu0 %v1659
        %1697 = vmatpush1.bf16.msra.mxu0 %v1658
        %1698 = vmatprep.subr.bf16.mxu0 %v1657
        %1699 = vmatpush1.bf16.msra.mxu0 %v1656
        %1700 = vmatprep.subr.bf16.mxu0 %v1655
        %1701 = vmatpush1.bf16.msra.mxu0 %v1654
        %1702 = vmatprep.subr.bf16.mxu0 0
        %1703 = vmatpush2.bf16.msra.mxu0 0
        %1704 = vmatprep.subr.bf16.mxu0 0
        %1705 = vmatpush2.bf16.msra.mxu0 0
        %1706 = vmatprep.subr.bf16.mxu0 0
        %1707 = vmatpush2.bf16.msra.mxu0 0
        %1708 = vmatprep.subr.bf16.mxu0 0
        %1709 = vmatpush2.bf16.msra.mxu0 0
        %1710 = vmatprep.subr.bf16.mxu0 0
        %1711 = vmatpush2.bf16.msra.mxu0 0
        %1712 = vmatprep.subr.bf16.mxu0 0
        %1713 = vmatpush2.bf16.msra.mxu0 0
        %1714 = vmatprep.subr.bf16.mxu0 0
        %1715 = vmatpush2.bf16.msra.mxu0 0
        %1716 = vmatprep.subr.bf16.mxu0 0
        %1717 = vmatpush2.bf16.msra.mxu0 0
        %1718 = vmatprep.mubr.bf16.mxu0 0
        %1719 = vmatmul.mubr.bf16.gmra.mxu0 %v1605
        %v1720 = vpop.f32.mrf.mxu0
        %v1721 = vadd.f32 0.0, %v1720
        %v1722 = vpop.f32.mrf.mxu0
        %v1723 = vadd.f32 0.0, %v1722
        %v1724 = vpop.f32.mrf.mxu0
        %v1725 = vpop.f32.mrf.mxu0
        %1726 = vdwg.mxu0
        %v1743 = vunpack.c.l.b16 %v1415
        %v1744 = vunpack.c.h.b16 %v1415
        %v1745 = vunpack.c.l.b16 %v1416
        %v1746 = vunpack.c.h.b16 %v1416
        %v1747 = vunpack.c.l.b16 %v1417
        %v1748 = vunpack.c.h.b16 %v1417
        %v1749 = vunpack.c.l.b16 %v1418
        %v1750 = vunpack.c.h.b16 %v1418
        %v1751 = vunpack.c.l.b16 %v1419
        %v1752 = vunpack.c.h.b16 %v1419
        %v1753 = vunpack.c.l.b16 %v1420
        %v1754 = vunpack.c.h.b16 %v1420
        %v1755 = vunpack.c.l.b16 %v1421
        %v1756 = vunpack.c.h.b16 %v1421
        %v1757 = vunpack.c.l.b16 %v1422
        %v1758 = vunpack.c.h.b16 %v1422
        %v1759 = vunpack.c.l.b16 %v1423
        %v1760 = vunpack.c.h.b16 %v1423
        %v1761 = vunpack.c.l.b16 %v1424
        %v1762 = vunpack.c.h.b16 %v1424
        %v1763 = vunpack.c.l.b16 %v1425
        %v1764 = vunpack.c.h.b16 %v1425
        %v1765 = vunpack.c.l.b16 %v1426
        %v1766 = vunpack.c.h.b16 %v1426
        %v1767 = vunpack.c.l.b16 %v1427
        %v1768 = vunpack.c.h.b16 %v1427
        %v1769 = vunpack.c.l.b16 %v1428
        %v1770 = vunpack.c.h.b16 %v1428
        %v1771 = vunpack.c.l.b16 %v1429
        %v1772 = vunpack.c.h.b16 %v1429
        %v1773 = vunpack.c.l.b16 %v1430
        %v1774 = vunpack.c.h.b16 %v1430
        %v1775 = vpack.c.b16 %v1745, %v1743
        %v1776 = vpack.c.b16 %v1746, %v1744
        %v1777 = vpack.c.b16 %v1749, %v1747
        %v1778 = vpack.c.b16 %v1750, %v1748
        %v1779 = vpack.c.b16 %v1753, %v1751
        %v1780 = vpack.c.b16 %v1754, %v1752
        %v1781 = vpack.c.b16 %v1757, %v1755
        %v1782 = vpack.c.b16 %v1758, %v1756
        %v1783 = vpack.c.b16 %v1761, %v1759
        %v1784 = vpack.c.b16 %v1762, %v1760
        %v1785 = vpack.c.b16 %v1765, %v1763
        %v1786 = vpack.c.b16 %v1766, %v1764
        %v1787 = vpack.c.b16 %v1769, %v1767
        %v1788 = vpack.c.b16 %v1770, %v1768
        %v1789 = vpack.c.b16 %v1773, %v1771
        %v1790 = vpack.c.b16 %v1774, %v1772
        %1807 = vmatprep.subr.bf16.mxu0 %v1790
        %1808 = vmatpush1.bf16.msra.mxu0 %v1789
        %1809 = vmatprep.subr.bf16.mxu0 %v1788
        %1810 = vmatpush1.bf16.msra.mxu0 %v1787
        %1811 = vmatprep.subr.bf16.mxu0 %v1786
        %1812 = vmatpush1.bf16.msra.mxu0 %v1785
        %1813 = vmatprep.subr.bf16.mxu0 %v1784
        %1814 = vmatpush1.bf16.msra.mxu0 %v1783
        %1815 = vmatprep.subr.bf16.mxu0 %v1782
        %1816 = vmatpush1.bf16.msra.mxu0 %v1781
        %1817 = vmatprep.subr.bf16.mxu0 %v1780
        %1818 = vmatpush1.bf16.msra.mxu0 %v1779
        %1819 = vmatprep.subr.bf16.mxu0 %v1778
        %1820 = vmatpush1.bf16.msra.mxu0 %v1777
        %1821 = vmatprep.subr.bf16.mxu0 %v1776
        %1822 = vmatpush1.bf16.msra.mxu0 %v1775
        %1823 = vmatprep.subr.bf16.mxu0 0
        %1824 = vmatpush2.bf16.msra.mxu0 0
        %1825 = vmatprep.subr.bf16.mxu0 0
        %1826 = vmatpush2.bf16.msra.mxu0 0
        %1827 = vmatprep.subr.bf16.mxu0 0
        %1828 = vmatpush2.bf16.msra.mxu0 0
        %1829 = vmatprep.subr.bf16.mxu0 0
        %1830 = vmatpush2.bf16.msra.mxu0 0
        %1831 = vmatprep.subr.bf16.mxu0 0
        %1832 = vmatpush2.bf16.msra.mxu0 0
        %1833 = vmatprep.subr.bf16.mxu0 0
        %1834 = vmatpush2.bf16.msra.mxu0 0
        %1835 = vmatprep.subr.bf16.mxu0 0
        %1836 = vmatpush2.bf16.msra.mxu0 0
        %1837 = vmatprep.subr.bf16.mxu0 0
        %1838 = vmatpush2.bf16.msra.mxu0 0
        %1839 = vmatprep.mubr.bf16.mxu0 0
        %1840 = vmatmul.mubr.bf16.gmra.mxu0 %v1431
        %v1841 = vpop.f32.mrf.mxu0
        %v1842 = vadd.f32 %v1721, %v1841
        %v1843 = vpop.f32.mrf.mxu0
        %v1844 = vadd.f32 %v1723, %v1843
        %v1845 = vpop.f32.mrf.mxu0
        %v1846 = vpop.f32.mrf.mxu0
        %1847 = vdwg.mxu0
        %v1849 = vlaneseq
        %v1850 = vshrl.u32 %v1849, 7
        %v1851 = vsub.s32 0, %v1850
        %v1852 = vrot.slane %v1256, %v1851
        %v1853 = vlaneseq
        %v1854 = vshrl.u32 %v1853, 7
        %v1855 = vsub.s32 1, %v1854
        %v1856 = vrot.slane %v1256, %v1855
        %v1859 = vadd.f32 %v1842, %v1852
        %v1860 = vadd.f32 %v1844, %v1856
        %v1861 = vadd.f32 %v519, %v1859
        %v1862 = vadd.f32 %v520, %v1860
        %v1863 = vld [vmem:[%s458 + $0x8] sm:$0x3]
        %v1864 = vld [vmem:[%s458 + $0xa] sm:$0x3]
        %v1865 = vadd.f32 %v1861, %v1862
        %1866 = vadd.xlane.f32.xlu0 %v1865
        %v1867 = vpop.xlane.xlu0 %1866
        %v1868 = vrcp.pop 256.0
        %v1869 = vmul.f32 %v1867, %v1868
        %v1870 = vsub.f32 %v1861, %v1869
        %v1871 = vsub.f32 %v1862, %v1869
        %v1872 = vmul.f32 %v1870, %v1870
        %v1873 = vmul.f32 %v1871, %v1871
        %v1874 = vadd.f32 %v1872, %v1873
        %1875 = vadd.xlane.f32.xlu0 %v1874
        %v1876 = vpop.xlane.xlu0 %1875
        %v1877 = vmul.f32 %v1876, %v1868
        %v1878 = vadd.f32 %v1877, 1e-05
        %v1879 = vrsqrt.pop %v1878
        %v1880 = vmul.f32 %v1870, %v1879
        %v1881 = vmul.f32 %v1871, %v1879
        %v1883 = vlaneseq
        %v1884 = vshrl.u32 %v1883, 7
        %v1885 = vsub.s32 0, %v1884
        %v1886 = vrot.slane %v1863, %v1885
        %v1887 = vlaneseq
        %v1888 = vshrl.u32 %v1887, 7
        %v1889 = vsub.s32 1, %v1888
        %v1890 = vrot.slane %v1863, %v1889
        %v1893 = vmul.f32 %v1880, %v1886
        %v1894 = vmul.f32 %v1881, %v1890
        %v1896 = vlaneseq
        %v1897 = vshrl.u32 %v1896, 7
        %v1898 = vsub.s32 0, %v1897
        %v1899 = vrot.slane %v1864, %v1898
        %v1900 = vlaneseq
        %v1901 = vshrl.u32 %v1900, 7
        %v1902 = vsub.s32 1, %v1901
        %v1903 = vrot.slane %v1864, %v1902
        %v1906 = vadd.f32 %v1893, %v1899
        %v1907 = vadd.f32 %v1894, %v1903
        %v1908 = vpack.c.bf16 %v1906, %v1906
        %v1909 = vpack.c.bf16 %v1907, %v1907
        %v1910 = vld [vmem:[%s440 + $0x20] sm:$0xff]
        %v1911 = vld [vmem:[%s440 + $0x70] sm:$0xff]
        %v1912 = vld [vmem:[%s440 + $0xc0] sm:$0xff]
        %v1913 = vld [vmem:[%s440 + $0x110] sm:$0xff]
        %v1914 = vld [vmem:[%s440 + $0x160] sm:$0xff]
        %v1915 = vld [vmem:[%s440 + $0x1b0] sm:$0xff]
        %v1916 = vld [vmem:[%s440 + $0x200] sm:$0xff]
        %v1917 = vld [vmem:[%s440 + $0x250] sm:$0xff]
        %v1918 = vld [vmem:[%s440 + $0x2a0] sm:$0xff]
        %v1919 = vld [vmem:[%s440 + $0x2f0] sm:$0xff]
        %v1920 = vld [vmem:[%s440 + $0x340] sm:$0xff]
        %v1921 = vld [vmem:[%s440 + $0x390] sm:$0xff]
        %v1922 = vld [vmem:[%s440 + $0x3e0] sm:$0xff]
        %v1923 = vld [vmem:[%s440 + $0x430] sm:$0xff]
        %v1924 = vld [vmem:[%s440 + $0x480] sm:$0xff]
        %v1925 = vld [vmem:[%s440 + $0x4d0] sm:$0xff]
        %v1926 = vld [vmem:[%s440 + $0x520] sm:$0xff]
        %v1927 = vld [vmem:[%s440 + $0x570] sm:$0xff]
        %v1928 = vld [vmem:[%s440 + $0x5c0] sm:$0xff]
        %v1929 = vld [vmem:[%s440 + $0x610] sm:$0xff]
        %v1930 = vld [vmem:[%s440 + $0x660] sm:$0xff]
        %v1931 = vld [vmem:[%s440 + $0x6b0] sm:$0xff]
        %v1932 = vld [vmem:[%s440 + $0x700] sm:$0xff]
        %v1933 = vld [vmem:[%s440 + $0x750] sm:$0xff]
        %v1934 = vld [vmem:[%s440 + $0x7a0] sm:$0xff]
        %v1935 = vld [vmem:[%s440 + $0x7f0] sm:$0xff]
        %v1936 = vld [vmem:[%s440 + $0x840] sm:$0xff]
        %v1937 = vld [vmem:[%s440 + $0x890] sm:$0xff]
        %v1938 = vld [vmem:[%s440 + $0x8e0] sm:$0xff]
        %v1939 = vld [vmem:[%s440 + $0x930] sm:$0xff]
        %v1940 = vld [vmem:[%s440 + $0x980] sm:$0xff]
        %v1941 = vld [vmem:[%s440 + $0x9d0] sm:$0xff]
        %v1942 = vld [vmem:[%s458 + $0xc] sm:$0x3]
        %v1944 = vlaneseq
        %v1945 = vshrl.u32 %v1944, 7
        %v1946 = vsub.s32 0, %v1945
        %v1947 = vrot.slane %v1942, %v1946
        %v1948 = vlaneseq
        %v1949 = vshrl.u32 %v1948, 7
        %v1950 = vsub.s32 1, %v1949
        %v1951 = vrot.slane %v1942, %v1950
        %v1986 = vunpack.c.l.b16 %v1910
        %v1987 = vunpack.c.h.b16 %v1910
        %v1988 = vunpack.c.l.b16 %v1911
        %v1989 = vunpack.c.h.b16 %v1911
        %v1990 = vunpack.c.l.b16 %v1912
        %v1991 = vunpack.c.h.b16 %v1912
        %v1992 = vunpack.c.l.b16 %v1913
        %v1993 = vunpack.c.h.b16 %v1913
        %v1994 = vunpack.c.l.b16 %v1914
        %v1995 = vunpack.c.h.b16 %v1914
        %v1996 = vunpack.c.l.b16 %v1915
        %v1997 = vunpack.c.h.b16 %v1915
        %v1998 = vunpack.c.l.b16 %v1916
        %v1999 = vunpack.c.h.b16 %v1916
        %v2000 = vunpack.c.l.b16 %v1917
        %v2001 = vunpack.c.h.b16 %v1917
        %v2002 = vunpack.c.l.b16 %v1918
        %v2003 = vunpack.c.h.b16 %v1918
        %v2004 = vunpack.c.l.b16 %v1919
        %v2005 = vunpack.c.h.b16 %v1919
        %v2006 = vunpack.c.l.b16 %v1920
        %v2007 = vunpack.c.h.b16 %v1920
        %v2008 = vunpack.c.l.b16 %v1921
        %v2009 = vunpack.c.h.b16 %v1921
        %v2010 = vunpack.c.l.b16 %v1922
        %v2011 = vunpack.c.h.b16 %v1922
        %v2012 = vunpack.c.l.b16 %v1923
        %v2013 = vunpack.c.h.b16 %v1923
        %v2014 = vunpack.c.l.b16 %v1924
        %v2015 = vunpack.c.h.b16 %v1924
        %v2016 = vunpack.c.l.b16 %v1925
        %v2017 = vunpack.c.h.b16 %v1925
        %v2018 = vunpack.c.l.b16 %v1926
        %v2019 = vunpack.c.h.b16 %v1926
        %v2020 = vunpack.c.l.b16 %v1927
        %v2021 = vunpack.c.h.b16 %v1927
        %v2022 = vunpack.c.l.b16 %v1928
        %v2023 = vunpack.c.h.b16 %v1928
        %v2024 = vunpack.c.l.b16 %v1929
        %v2025 = vunpack.c.h.b16 %v1929
        %v2026 = vunpack.c.l.b16 %v1930
        %v2027 = vunpack.c.h.b16 %v1930
        %v2028 = vunpack.c.l.b16 %v1931
        %v2029 = vunpack.c.h.b16 %v1931
        %v2030 = vunpack.c.l.b16 %v1932
        %v2031 = vunpack.c.h.b16 %v1932
        %v2032 = vunpack.c.l.b16 %v1933
        %v2033 = vunpack.c.h.b16 %v1933
        %v2034 = vunpack.c.l.b16 %v1934
        %v2035 = vunpack.c.h.b16 %v1934
        %v2036 = vunpack.c.l.b16 %v1935
        %v2037 = vunpack.c.h.b16 %v1935
        %v2038 = vunpack.c.l.b16 %v1936
        %v2039 = vunpack.c.h.b16 %v1936
        %v2040 = vunpack.c.l.b16 %v1937
        %v2041 = vunpack.c.h.b16 %v1937
        %v2042 = vunpack.c.l.b16 %v1938
        %v2043 = vunpack.c.h.b16 %v1938
        %v2044 = vunpack.c.l.b16 %v1939
        %v2045 = vunpack.c.h.b16 %v1939
        %v2046 = vunpack.c.l.b16 %v1940
        %v2047 = vunpack.c.h.b16 %v1940
        %v2048 = vunpack.c.l.b16 %v1941
        %v2049 = vunpack.c.h.b16 %v1941
        %v2050 = vpack.c.b16 %v1988, %v1986
        %v2051 = vpack.c.b16 %v1989, %v1987
        %v2052 = vpack.c.b16 %v1992, %v1990
        %v2053 = vpack.c.b16 %v1993, %v1991
        %v2054 = vpack.c.b16 %v1996, %v1994
        %v2055 = vpack.c.b16 %v1997, %v1995
        %v2056 = vpack.c.b16 %v2000, %v1998
        %v2057 = vpack.c.b16 %v2001, %v1999
        %v2058 = vpack.c.b16 %v2004, %v2002
        %v2059 = vpack.c.b16 %v2005, %v2003
        %v2060 = vpack.c.b16 %v2008, %v2006
        %v2061 = vpack.c.b16 %v2009, %v2007
        %v2062 = vpack.c.b16 %v2012, %v2010
        %v2063 = vpack.c.b16 %v2013, %v2011
        %v2064 = vpack.c.b16 %v2016, %v2014
        %v2065 = vpack.c.b16 %v2017, %v2015
        %v2066 = vpack.c.b16 %v2020, %v2018
        %v2067 = vpack.c.b16 %v2021, %v2019
        %v2068 = vpack.c.b16 %v2024, %v2022
        %v2069 = vpack.c.b16 %v2025, %v2023
        %v2070 = vpack.c.b16 %v2028, %v2026
        %v2071 = vpack.c.b16 %v2029, %v2027
        %v2072 = vpack.c.b16 %v2032, %v2030
        %v2073 = vpack.c.b16 %v2033, %v2031
        %v2074 = vpack.c.b16 %v2036, %v2034
        %v2075 = vpack.c.b16 %v2037, %v2035
        %v2076 = vpack.c.b16 %v2040, %v2038
        %v2077 = vpack.c.b16 %v2041, %v2039
        %v2078 = vpack.c.b16 %v2044, %v2042
        %v2079 = vpack.c.b16 %v2045, %v2043
        %v2080 = vpack.c.b16 %v2048, %v2046
        %v2081 = vpack.c.b16 %v2049, %v2047
        %2114 = vmatprep.subr.bf16.mxu0 %v2065
        %2115 = vmatpush1.bf16.msra.mxu0 %v2064
        %2116 = vmatprep.subr.bf16.mxu0 %v2063
        %2117 = vmatpush1.bf16.msra.mxu0 %v2062
        %2118 = vmatprep.subr.bf16.mxu0 %v2061
        %2119 = vmatpush1.bf16.msra.mxu0 %v2060
        %2120 = vmatprep.subr.bf16.mxu0 %v2059
        %2121 = vmatpush1.bf16.msra.mxu0 %v2058
        %2122 = vmatprep.subr.bf16.mxu0 %v2057
        %2123 = vmatpush1.bf16.msra.mxu0 %v2056
        %2124 = vmatprep.subr.bf16.mxu0 %v2055
        %2125 = vmatpush1.bf16.msra.mxu0 %v2054
        %2126 = vmatprep.subr.bf16.mxu0 %v2053
        %2127 = vmatpush1.bf16.msra.mxu0 %v2052
        %2128 = vmatprep.subr.bf16.mxu0 %v2051
        %2129 = vmatpush1.bf16.msra.mxu0 %v2050
        %2130 = vmatprep.subr.bf16.mxu0 %v2081
        %2131 = vmatpush2.bf16.msra.mxu0 %v2080
        %2132 = vmatprep.subr.bf16.mxu0 %v2079
        %2133 = vmatpush2.bf16.msra.mxu0 %v2078
        %2134 = vmatprep.subr.bf16.mxu0 %v2077
        %2135 = vmatpush2.bf16.msra.mxu0 %v2076
        %2136 = vmatprep.subr.bf16.mxu0 %v2075
        %2137 = vmatpush2.bf16.msra.mxu0 %v2074
        %2138 = vmatprep.subr.bf16.mxu0 %v2073
        %2139 = vmatpush2.bf16.msra.mxu0 %v2072
        %2140 = vmatprep.subr.bf16.mxu0 %v2071
        %2141 = vmatpush2.bf16.msra.mxu0 %v2070
        %2142 = vmatprep.subr.bf16.mxu0 %v2069
        %2143 = vmatpush2.bf16.msra.mxu0 %v2068
        %2144 = vmatprep.subr.bf16.mxu0 %v2067
        %2145 = vmatpush2.bf16.msra.mxu0 %v2066
        %2146 = vmatprep.mubr.bf16.mxu0 %v1909
        %2147 = vmatmul.mubr.bf16.gmra.mxu0 %v1908
        %v2148 = vpop.f32.mrf.mxu0
        %v2149 = vadd.f32 %v1947, %v2148
        %v2150 = vpop.f32.mrf.mxu0
        %v2151 = vadd.f32 %v1951, %v2150
        %v2152 = vpop.f32.mrf.mxu0
        %v2153 = vpop.f32.mrf.mxu0
        %2154 = vdwg.mxu0
        %v2155 = vld [vmem:[#allocation3] sm:$0xff]
        %v2156 = vld [vmem:[#allocation3 + $0x8] sm:$0xff]
        %v2157 = vld [vmem:[#allocation3 + $0x10] sm:$0xff]
        %v2158 = vld [vmem:[#allocation3 + $0x18] sm:$0xff]
        %v2159 = vpack.c.bf16 %v2157, %v2155
        %v2160 = vpack.c.bf16 %v2158, %v2156
        %v2161 = vld [vmem:[%s440 + $0x28] sm:$0xff]
        %v2162 = vld [vmem:[%s440 + $0x30] sm:$0xff]
        %v2163 = vld [vmem:[%s440 + $0x78] sm:$0xff]
        %v2164 = vld [vmem:[%s440 + $0x80] sm:$0xff]
        %v2165 = vld [vmem:[%s440 + $0xc8] sm:$0xff]
        %v2166 = vld [vmem:[%s440 + $0xd0] sm:$0xff]
        %v2167 = vld [vmem:[%s440 + $0x118] sm:$0xff]
        %v2168 = vld [vmem:[%s440 + $0x120] sm:$0xff]
        %v2169 = vld [vmem:[%s440 + $0x168] sm:$0xff]
        %v2170 = vld [vmem:[%s440 + $0x170] sm:$0xff]
        %v2171 = vld [vmem:[%s440 + $0x1b8] sm:$0xff]
        %v2172 = vld [vmem:[%s440 + $0x1c0] sm:$0xff]
        %v2173 = vld [vmem:[%s440 + $0x208] sm:$0xff]
        %v2174 = vld [vmem:[%s440 + $0x210] sm:$0xff]
        %v2175 = vld [vmem:[%s440 + $0x258] sm:$0xff]
        %v2176 = vld [vmem:[%s440 + $0x260] sm:$0xff]
        %v2177 = vld [vmem:[%s440 + $0x2a8] sm:$0xff]
        %v2178 = vld [vmem:[%s440 + $0x2b0] sm:$0xff]
        %v2179 = vld [vmem:[%s440 + $0x2f8] sm:$0xff]
        %v2180 = vld [vmem:[%s440 + $0x300] sm:$0xff]
        %v2181 = vld [vmem:[%s440 + $0x348] sm:$0xff]
        %v2182 = vld [vmem:[%s440 + $0x350] sm:$0xff]
        %v2183 = vld [vmem:[%s440 + $0x398] sm:$0xff]
        %v2184 = vld [vmem:[%s440 + $0x3a0] sm:$0xff]
        %v2185 = vld [vmem:[%s440 + $0x3e8] sm:$0xff]
        %v2186 = vld [vmem:[%s440 + $0x3f0] sm:$0xff]
        %v2187 = vld [vmem:[%s440 + $0x438] sm:$0xff]
        %v2188 = vld [vmem:[%s440 + $0x440] sm:$0xff]
        %v2189 = vld [vmem:[%s440 + $0x488] sm:$0xff]
        %v2190 = vld [vmem:[%s440 + $0x490] sm:$0xff]
        %v2191 = vld [vmem:[%s440 + $0x4d8] sm:$0xff]
        %v2192 = vld [vmem:[%s440 + $0x4e0] sm:$0xff]
        %v2193 = vld [vmem:[%s440 + $0x528] sm:$0xff]
        %v2194 = vld [vmem:[%s440 + $0x530] sm:$0xff]
        %v2195 = vld [vmem:[%s440 + $0x578] sm:$0xff]
        %v2196 = vld [vmem:[%s440 + $0x580] sm:$0xff]
        %v2197 = vld [vmem:[%s440 + $0x5c8] sm:$0xff]
        %v2198 = vld [vmem:[%s440 + $0x5d0] sm:$0xff]
        %v2199 = vld [vmem:[%s440 + $0x618] sm:$0xff]
        %v2200 = vld [vmem:[%s440 + $0x620] sm:$0xff]
        %v2201 = vld [vmem:[%s440 + $0x668] sm:$0xff]
        %v2202 = vld [vmem:[%s440 + $0x670] sm:$0xff]
        %v2203 = vld [vmem:[%s440 + $0x6b8] sm:$0xff]
        %v2204 = vld [vmem:[%s440 + $0x6c0] sm:$0xff]
        %v2205 = vld [vmem:[%s440 + $0x708] sm:$0xff]
        %v2206 = vld [vmem:[%s440 + $0x710] sm:$0xff]
        %v2207 = vld [vmem:[%s440 + $0x758] sm:$0xff]
        %v2208 = vld [vmem:[%s440 + $0x760] sm:$0xff]
        %v2209 = vld [vmem:[%s440 + $0x7a8] sm:$0xff]
        %v2210 = vld [vmem:[%s440 + $0x7b0] sm:$0xff]
        %v2211 = vld [vmem:[%s440 + $0x7f8] sm:$0xff]
        %v2212 = vld [vmem:[%s440 + $0x800] sm:$0xff]
        %v2213 = vld [vmem:[%s440 + $0x848] sm:$0xff]
        %v2214 = vld [vmem:[%s440 + $0x850] sm:$0xff]
        %v2215 = vld [vmem:[%s440 + $0x898] sm:$0xff]
        %v2216 = vld [vmem:[%s440 + $0x8a0] sm:$0xff]
        %v2217 = vld [vmem:[%s440 + $0x8e8] sm:$0xff]
        %v2218 = vld [vmem:[%s440 + $0x8f0] sm:$0xff]
        %v2219 = vld [vmem:[%s440 + $0x938] sm:$0xff]
        %v2220 = vld [vmem:[%s440 + $0x940] sm:$0xff]
        %v2221 = vld [vmem:[%s440 + $0x988] sm:$0xff]
        %v2222 = vld [vmem:[%s440 + $0x990] sm:$0xff]
        %v2223 = vld [vmem:[%s440 + $0x9d8] sm:$0xff]
        %v2224 = vld [vmem:[%s440 + $0x9e0] sm:$0xff]
        %v2225 = vld [vmem:[%s458 + $0xe] sm:$0xf]
        %v2227 = vlaneseq
        %v2228 = vshrl.u32 %v2227, 7
        %v2229 = vsub.s32 0, %v2228
        %v2230 = vrot.slane %v2225, %v2229
        %v2231 = vlaneseq
        %v2232 = vshrl.u32 %v2231, 7
        %v2233 = vsub.s32 1, %v2232
        %v2234 = vrot.slane %v2225, %v2233
        %v2235 = vlaneseq
        %v2236 = vshrl.u32 %v2235, 7
        %v2237 = vsub.s32 2, %v2236
        %v2238 = vrot.slane %v2225, %v2237
        %v2239 = vlaneseq
        %v2240 = vshrl.u32 %v2239, 7
        %v2241 = vsub.s32 3, %v2240
        %v2242 = vrot.slane %v2225, %v2241
        %v2311 = vunpack.c.l.b16 %v2161
        %v2312 = vunpack.c.h.b16 %v2161
        %v2313 = vunpack.c.l.b16 %v2162
        %v2314 = vunpack.c.h.b16 %v2162
        %v2315 = vunpack.c.l.b16 %v2163
        %v2316 = vunpack.c.h.b16 %v2163
        %v2317 = vunpack.c.l.b16 %v2164
        %v2318 = vunpack.c.h.b16 %v2164
        %v2319 = vunpack.c.l.b16 %v2165
        %v2320 = vunpack.c.h.b16 %v2165
        %v2321 = vunpack.c.l.b16 %v2166
        %v2322 = vunpack.c.h.b16 %v2166
        %v2323 = vunpack.c.l.b16 %v2167
        %v2324 = vunpack.c.h.b16 %v2167
        %v2325 = vunpack.c.l.b16 %v2168
        %v2326 = vunpack.c.h.b16 %v2168
        %v2327 = vunpack.c.l.b16 %v2169
        %v2328 = vunpack.c.h.b16 %v2169
        %v2329 = vunpack.c.l.b16 %v2170
        %v2330 = vunpack.c.h.b16 %v2170
        %v2331 = vunpack.c.l.b16 %v2171
        %v2332 = vunpack.c.h.b16 %v2171
        %v2333 = vunpack.c.l.b16 %v2172
        %v2334 = vunpack.c.h.b16 %v2172
        %v2335 = vunpack.c.l.b16 %v2173
        %v2336 = vunpack.c.h.b16 %v2173
        %v2337 = vunpack.c.l.b16 %v2174
        %v2338 = vunpack.c.h.b16 %v2174
        %v2339 = vunpack.c.l.b16 %v2175
        %v2340 = vunpack.c.h.b16 %v2175
        %v2341 = vunpack.c.l.b16 %v2176
        %v2342 = vunpack.c.h.b16 %v2176
        %v2343 = vunpack.c.l.b16 %v2177
        %v2344 = vunpack.c.h.b16 %v2177
        %v2345 = vunpack.c.l.b16 %v2178
        %v2346 = vunpack.c.h.b16 %v2178
        %v2347 = vunpack.c.l.b16 %v2179
        %v2348 = vunpack.c.h.b16 %v2179
        %v2349 = vunpack.c.l.b16 %v2180
        %v2350 = vunpack.c.h.b16 %v2180
        %v2351 = vunpack.c.l.b16 %v2181
        %v2352 = vunpack.c.h.b16 %v2181
        %v2353 = vunpack.c.l.b16 %v2182
        %v2354 = vunpack.c.h.b16 %v2182
        %v2355 = vunpack.c.l.b16 %v2183
        %v2356 = vunpack.c.h.b16 %v2183
        %v2357 = vunpack.c.l.b16 %v2184
        %v2358 = vunpack.c.h.b16 %v2184
        %v2359 = vunpack.c.l.b16 %v2185
        %v2360 = vunpack.c.h.b16 %v2185
        %v2361 = vunpack.c.l.b16 %v2186
        %v2362 = vunpack.c.h.b16 %v2186
        %v2363 = vunpack.c.l.b16 %v2187
        %v2364 = vunpack.c.h.b16 %v2187
        %v2365 = vunpack.c.l.b16 %v2188
        %v2366 = vunpack.c.h.b16 %v2188
        %v2367 = vunpack.c.l.b16 %v2189
        %v2368 = vunpack.c.h.b16 %v2189
        %v2369 = vunpack.c.l.b16 %v2190
        %v2370 = vunpack.c.h.b16 %v2190
        %v2371 = vunpack.c.l.b16 %v2191
        %v2372 = vunpack.c.h.b16 %v2191
        %v2373 = vunpack.c.l.b16 %v2192
        %v2374 = vunpack.c.h.b16 %v2192
        %v2375 = vunpack.c.l.b16 %v2193
        %v2376 = vunpack.c.h.b16 %v2193
        %v2377 = vunpack.c.l.b16 %v2194
        %v2378 = vunpack.c.h.b16 %v2194
        %v2379 = vunpack.c.l.b16 %v2195
        %v2380 = vunpack.c.h.b16 %v2195
        %v2381 = vunpack.c.l.b16 %v2196
        %v2382 = vunpack.c.h.b16 %v2196
        %v2383 = vunpack.c.l.b16 %v2197
        %v2384 = vunpack.c.h.b16 %v2197
        %v2385 = vunpack.c.l.b16 %v2198
        %v2386 = vunpack.c.h.b16 %v2198
        %v2387 = vunpack.c.l.b16 %v2199
        %v2388 = vunpack.c.h.b16 %v2199
        %v2389 = vunpack.c.l.b16 %v2200
        %v2390 = vunpack.c.h.b16 %v2200
        %v2391 = vunpack.c.l.b16 %v2201
        %v2392 = vunpack.c.h.b16 %v2201
        %v2393 = vunpack.c.l.b16 %v2202
        %v2394 = vunpack.c.h.b16 %v2202
        %v2395 = vunpack.c.l.b16 %v2203
        %v2396 = vunpack.c.h.b16 %v2203
        %v2397 = vunpack.c.l.b16 %v2204
        %v2398 = vunpack.c.h.b16 %v2204
        %v2399 = vunpack.c.l.b16 %v2205
        %v2400 = vunpack.c.h.b16 %v2205
        %v2401 = vunpack.c.l.b16 %v2206
        %v2402 = vunpack.c.h.b16 %v2206
        %v2403 = vunpack.c.l.b16 %v2207
        %v2404 = vunpack.c.h.b16 %v2207
        %v2405 = vunpack.c.l.b16 %v2208
        %v2406 = vunpack.c.h.b16 %v2208
        %v2407 = vunpack.c.l.b16 %v2209
        %v2408 = vunpack.c.h.b16 %v2209
        %v2409 = vunpack.c.l.b16 %v2210
        %v2410 = vunpack.c.h.b16 %v2210
        %v2411 = vunpack.c.l.b16 %v2211
        %v2412 = vunpack.c.h.b16 %v2211
        %v2413 = vunpack.c.l.b16 %v2212
        %v2414 = vunpack.c.h.b16 %v2212
        %v2415 = vunpack.c.l.b16 %v2213
        %v2416 = vunpack.c.h.b16 %v2213
        %v2417 = vunpack.c.l.b16 %v2214
        %v2418 = vunpack.c.h.b16 %v2214
        %v2419 = vunpack.c.l.b16 %v2215
        %v2420 = vunpack.c.h.b16 %v2215
        %v2421 = vunpack.c.l.b16 %v2216
        %v2422 = vunpack.c.h.b16 %v2216
        %v2423 = vunpack.c.l.b16 %v2217
        %v2424 = vunpack.c.h.b16 %v2217
        %v2425 = vunpack.c.l.b16 %v2218
        %v2426 = vunpack.c.h.b16 %v2218
        %v2427 = vunpack.c.l.b16 %v2219
        %v2428 = vunpack.c.h.b16 %v2219
        %v2429 = vunpack.c.l.b16 %v2220
        %v2430 = vunpack.c.h.b16 %v2220
        %v2431 = vunpack.c.l.b16 %v2221
        %v2432 = vunpack.c.h.b16 %v2221
        %v2433 = vunpack.c.l.b16 %v2222
        %v2434 = vunpack.c.h.b16 %v2222
        %v2435 = vunpack.c.l.b16 %v2223
        %v2436 = vunpack.c.h.b16 %v2223
        %v2437 = vunpack.c.l.b16 %v2224
        %v2438 = vunpack.c.h.b16 %v2224
        %v2439 = vpack.c.b16 %v2315, %v2311
        %v2440 = vpack.c.b16 %v2316, %v2312
        %v2441 = vpack.c.b16 %v2317, %v2313
        %v2442 = vpack.c.b16 %v2318, %v2314
        %v2443 = vpack.c.b16 %v2323, %v2319
        %v2444 = vpack.c.b16 %v2324, %v2320
        %v2445 = vpack.c.b16 %v2325, %v2321
        %v2446 = vpack.c.b16 %v2326, %v2322
        %v2447 = vpack.c.b16 %v2331, %v2327
        %v2448 = vpack.c.b16 %v2332, %v2328
        %v2449 = vpack.c.b16 %v2333, %v2329
        %v2450 = vpack.c.b16 %v2334, %v2330
        %v2451 = vpack.c.b16 %v2339, %v2335
        %v2452 = vpack.c.b16 %v2340, %v2336
        %v2453 = vpack.c.b16 %v2341, %v2337
        %v2454 = vpack.c.b16 %v2342, %v2338
        %v2455 = vpack.c.b16 %v2347, %v2343
        %v2456 = vpack.c.b16 %v2348, %v2344
        %v2457 = vpack.c.b16 %v2349, %v2345
        %v2458 = vpack.c.b16 %v2350, %v2346
        %v2459 = vpack.c.b16 %v2355, %v2351
        %v2460 = vpack.c.b16 %v2356, %v2352
        %v2461 = vpack.c.b16 %v2357, %v2353
        %v2462 = vpack.c.b16 %v2358, %v2354
        %v2463 = vpack.c.b16 %v2363, %v2359
        %v2464 = vpack.c.b16 %v2364, %v2360
        %v2465 = vpack.c.b16 %v2365, %v2361
        %v2466 = vpack.c.b16 %v2366, %v2362
        %v2467 = vpack.c.b16 %v2371, %v2367
        %v2468 = vpack.c.b16 %v2372, %v2368
        %v2469 = vpack.c.b16 %v2373, %v2369
        %v2470 = vpack.c.b16 %v2374, %v2370
        %v2471 = vpack.c.b16 %v2379, %v2375
        %v2472 = vpack.c.b16 %v2380, %v2376
        %v2473 = vpack.c.b16 %v2381, %v2377
        %v2474 = vpack.c.b16 %v2382, %v2378
        %v2475 = vpack.c.b16 %v2387, %v2383
        %v2476 = vpack.c.b16 %v2388, %v2384
        %v2477 = vpack.c.b16 %v2389, %v2385
        %v2478 = vpack.c.b16 %v2390, %v2386
        %v2479 = vpack.c.b16 %v2395, %v2391
        %v2480 = vpack.c.b16 %v2396, %v2392
        %v2481 = vpack.c.b16 %v2397, %v2393
        %v2482 = vpack.c.b16 %v2398, %v2394
        %v2483 = vpack.c.b16 %v2403, %v2399
        %v2484 = vpack.c.b16 %v2404, %v2400
        %v2485 = vpack.c.b16 %v2405, %v2401
        %v2486 = vpack.c.b16 %v2406, %v2402
        %v2487 = vpack.c.b16 %v2411, %v2407
        %v2488 = vpack.c.b16 %v2412, %v2408
        %v2489 = vpack.c.b16 %v2413, %v2409
        %v2490 = vpack.c.b16 %v2414, %v2410
        %v2491 = vpack.c.b16 %v2419, %v2415
        %v2492 = vpack.c.b16 %v2420, %v2416
        %v2493 = vpack.c.b16 %v2421, %v2417
        %v2494 = vpack.c.b16 %v2422, %v2418
        %v2495 = vpack.c.b16 %v2427, %v2423
        %v2496 = vpack.c.b16 %v2428, %v2424
        %v2497 = vpack.c.b16 %v2429, %v2425
        %v2498 = vpack.c.b16 %v2430, %v2426
        %v2499 = vpack.c.b16 %v2435, %v2431
        %v2500 = vpack.c.b16 %v2436, %v2432
        %v2501 = vpack.c.b16 %v2437, %v2433
        %v2502 = vpack.c.b16 %v2438, %v2434
        %2567 = vmatprep.subr.bf16.mxu0 %v2468
        %2568 = vmatpush1.bf16.msra.mxu0 %v2467
        %2569 = vmatprep.subr.bf16.mxu0 %v2464
        %2570 = vmatpush1.bf16.msra.mxu0 %v2463
        %2571 = vmatprep.subr.bf16.mxu0 %v2460
        %2572 = vmatpush1.bf16.msra.mxu0 %v2459
        %2573 = vmatprep.subr.bf16.mxu0 %v2456
        %2574 = vmatpush1.bf16.msra.mxu0 %v2455
        %2575 = vmatprep.subr.bf16.mxu0 %v2452
        %2576 = vmatpush1.bf16.msra.mxu0 %v2451
        %2577 = vmatprep.subr.bf16.mxu0 %v2448
        %2578 = vmatpush1.bf16.msra.mxu0 %v2447
        %2579 = vmatprep.subr.bf16.mxu0 %v2444
        %2580 = vmatpush1.bf16.msra.mxu0 %v2443
        %2581 = vmatprep.subr.bf16.mxu0 %v2440
        %2582 = vmatpush1.bf16.msra.mxu0 %v2439
        %2583 = vmatprep.subr.bf16.mxu0 %v2500
        %2584 = vmatpush2.bf16.msra.mxu0 %v2499
        %2585 = vmatprep.subr.bf16.mxu0 %v2496
        %2586 = vmatpush2.bf16.msra.mxu0 %v2495
        %2587 = vmatprep.subr.bf16.mxu0 %v2492
        %2588 = vmatpush2.bf16.msra.mxu0 %v2491
        %2589 = vmatprep.subr.bf16.mxu0 %v2488
        %2590 = vmatpush2.bf16.msra.mxu0 %v2487
        %2591 = vmatprep.subr.bf16.mxu0 %v2484
        %2592 = vmatpush2.bf16.msra.mxu0 %v2483
        %2593 = vmatprep.subr.bf16.mxu0 %v2480
        %2594 = vmatpush2.bf16.msra.mxu0 %v2479
        %2595 = vmatprep.subr.bf16.mxu0 %v2476
        %2596 = vmatpush2.bf16.msra.mxu0 %v2475
        %2597 = vmatprep.subr.bf16.mxu0 %v2472
        %2598 = vmatpush2.bf16.msra.mxu0 %v2471
        %2599 = vmatprep.mubr.bf16.mxu0 %v2160
        %2600 = vmatmul.mubr.bf16.gmra.mxu0 %v2159
        %v2601 = vpop.f32.mrf.mxu0
        %v2602 = vadd.f32 %v2230, %v2601
        %v2603 = vpop.f32.mrf.mxu0
        %v2604 = vadd.f32 %v2234, %v2603
        %v2605 = vpop.f32.mrf.mxu0
        %v2606 = vadd.f32 %v2230, %v2605
        %v2607 = vpop.f32.mrf.mxu0
        %v2608 = vadd.f32 %v2234, %v2607
        %2609 = vdwg.mxu0
        %2610 = vmatprep.subr.bf16.mxu0 %v2470
        %2611 = vmatpush1.bf16.msra.mxu0 %v2469
        %2612 = vmatprep.subr.bf16.mxu0 %v2466
        %2613 = vmatpush1.bf16.msra.mxu0 %v2465
        %2614 = vmatprep.subr.bf16.mxu0 %v2462
        %2615 = vmatpush1.bf16.msra.mxu0 %v2461
        %2616 = vmatprep.subr.bf16.mxu0 %v2458
        %2617 = vmatpush1.bf16.msra.mxu0 %v2457
        %2618 = vmatprep.subr.bf16.mxu0 %v2454
        %2619 = vmatpush1.bf16.msra.mxu0 %v2453
        %2620 = vmatprep.subr.bf16.mxu0 %v2450
        %2621 = vmatpush1.bf16.msra.mxu0 %v2449
        %2622 = vmatprep.subr.bf16.mxu0 %v2446
        %2623 = vmatpush1.bf16.msra.mxu0 %v2445
        %2624 = vmatprep.subr.bf16.mxu0 %v2442
        %2625 = vmatpush1.bf16.msra.mxu0 %v2441
        %2626 = vmatprep.subr.bf16.mxu0 %v2502
        %2627 = vmatpush2.bf16.msra.mxu0 %v2501
        %2628 = vmatprep.subr.bf16.mxu0 %v2498
        %2629 = vmatpush2.bf16.msra.mxu0 %v2497
        %2630 = vmatprep.subr.bf16.mxu0 %v2494
        %2631 = vmatpush2.bf16.msra.mxu0 %v2493
        %2632 = vmatprep.subr.bf16.mxu0 %v2490
        %2633 = vmatpush2.bf16.msra.mxu0 %v2489
        %2634 = vmatprep.subr.bf16.mxu0 %v2486
        %2635 = vmatpush2.bf16.msra.mxu0 %v2485
        %2636 = vmatprep.subr.bf16.mxu0 %v2482
        %2637 = vmatpush2.bf16.msra.mxu0 %v2481
        %2638 = vmatprep.subr.bf16.mxu0 %v2478
        %2639 = vmatpush2.bf16.msra.mxu0 %v2477
        %2640 = vmatprep.subr.bf16.mxu0 %v2474
        %2641 = vmatpush2.bf16.msra.mxu0 %v2473
        %2642 = vmatprep.mubr.bf16.mxu0 %v2160
        %2643 = vmatmul.mubr.bf16.gmra.mxu0 %v2159
        %v2644 = vpop.f32.mrf.mxu0
        %v2645 = vadd.f32 %v2238, %v2644
        %v2646 = vpop.f32.mrf.mxu0
        %v2647 = vadd.f32 %v2242, %v2646
        %v2648 = vpop.f32.mrf.mxu0
        %v2649 = vadd.f32 %v2238, %v2648
        %v2650 = vpop.f32.mrf.mxu0
        %v2651 = vadd.f32 %v2242, %v2650
        %2652 = vdwg.mxu0
        %v2653 = vld [vmem:[%s4] sm:$0xff]
        %v2654 = vld [vmem:[%s5] sm:$0xff]
        %v2655 = vld [vmem:[%s458 + $0x12] sm:$0x3]
        %2656 = vmatprep.subr.mxu0 0.0
        %2657 = vmatpush1.xpose.msra.mxu0 0.0
        %2658 = vmatprep.subr.mxu0 0.0
        %2659 = vmatpush1.xpose.msra.mxu0 0.0
        %2660 = vmatprep.subr.mxu0 0.0
        %2661 = vmatpush1.xpose.msra.mxu0 0.0
        %2662 = vmatprep.subr.mxu0 0.0
        %2663 = vmatpush1.xpose.msra.mxu0 0.0
        %2664 = vmatprep.subr.mxu0 0.0
        %2665 = vmatpush1.xpose.msra.mxu0 0.0
        %2666 = vmatprep.subr.mxu0 0.0
        %2667 = vmatpush1.xpose.msra.mxu0 0.0
        %2668 = vmatprep.subr.mxu0 0.0
        %2669 = vmatpush1.xpose.msra.mxu0 0.0
        %2670 = vmatprep.subr.mxu0 0.0
        %2671 = vmatpush1.xpose.msra.mxu0 0.0
        %2672 = vmatprep.subr.mxu0 0.0
        %2673 = vmatpush1.xpose.msra.mxu0 0.0
        %2674 = vmatprep.subr.mxu0 0.0
        %2675 = vmatpush1.xpose.msra.mxu0 0.0
        %2676 = vmatprep.subr.mxu0 0.0
        %2677 = vmatpush1.xpose.msra.mxu0 0.0
        %2678 = vmatprep.subr.mxu0 0.0
        %2679 = vmatpush1.xpose.msra.mxu0 0.0
        %2680 = vmatprep.subr.mxu0 0.0
        %2681 = vmatpush1.xpose.msra.mxu0 0.0
        %2682 = vmatprep.subr.mxu0 0.0
        %2683 = vmatpush1.xpose.msra.mxu0 0.0
        %2684 = vmatprep.subr.mxu0 0.0
        %2685 = vmatpush1.xpose.msra.mxu0 %v2606
        %2686 = vmatprep.subr.mxu0 0.0
        %2687 = vmatpush1.xpose.msra.mxu0 %v2602
        %2688 = vmatprep.subr.mxu0 0.0
        %2689 = vmatpush2.xpose.msra.mxu0 0.0
        %2690 = vmatprep.subr.mxu0 0.0
        %2691 = vmatpush2.xpose.msra.mxu0 0.0
        %2692 = vmatprep.subr.mxu0 0.0
        %2693 = vmatpush2.xpose.msra.mxu0 0.0
        %2694 = vmatprep.subr.mxu0 0.0
        %2695 = vmatpush2.xpose.msra.mxu0 0.0
        %2696 = vmatprep.subr.mxu0 0.0
        %2697 = vmatpush2.xpose.msra.mxu0 0.0
        %2698 = vmatprep.subr.mxu0 0.0
        %2699 = vmatpush2.xpose.msra.mxu0 0.0
        %2700 = vmatprep.subr.mxu0 0.0
        %2701 = vmatpush2.xpose.msra.mxu0 0.0
        %2702 = vmatprep.subr.mxu0 0.0
        %2703 = vmatpush2.xpose.msra.mxu0 0.0
        %2704 = vmatprep.subr.mxu0 0.0
        %2705 = vmatpush2.xpose.msra.mxu0 0.0
        %2706 = vmatprep.subr.mxu0 0.0
        %2707 = vmatpush2.xpose.msra.mxu0 0.0
        %2708 = vmatprep.subr.mxu0 0.0
        %2709 = vmatpush2.xpose.msra.mxu0 0.0
        %2710 = vmatprep.subr.mxu0 0.0
        %2711 = vmatpush2.xpose.msra.mxu0 0.0
        %2712 = vmatprep.subr.mxu0 0.0
        %2713 = vmatpush2.xpose.msra.mxu0 0.0
        %2714 = vmatprep.subr.mxu0 0.0
        %2715 = vmatpush2.xpose.msra.mxu0 0.0
        %2716 = vmatprep.subr.mxu0 0.0
        %2717 = vmatpush2.xpose.msra.mxu0 0.0
        %2718 = vmatprep.subr.mxu0 0.0
        %2719 = vmatpush2.xpose.msra.mxu0 0.0
        %2720 = vmatprep.mubr.f32.mxu0 0.0
        %2721 = vmatmul.mubr.f32.gmra.mxu0 %v2149
        %v2722 = vpop.f32.mrf.mxu0
        %v2723 = vadd.f32 0.0, %v2722
        %v2724 = vpop.f32.mrf.mxu0
        %2725 = vdwg.mxu0
        %v2726 = vmul.f32 %v2723, 0.088388346
        %v2727 = vmul.f32 %v2726, %v2653
        %v2728 = vadd.f32 %v2727, %v2654
        %vm2729 = vcmask 130048
        %v2730 = vsel %vm2729, %v2728, -inf
        %2731 = vmax.xlane.f32.xlu0 %v2730
        %v2732 = vpop.xlane.xlu0 %2731
        %v2733 = vsub.f32 %v2728, %v2732
        %v2734 = vmul.f32 %v2733, 1.442695
        %v2735 = vpow.pop %v2734
        %v2736 = vsel %vm2729, %v2735, 0.0
        %2737 = vadd.xlane.f32.xlu0 %v2736
        %v2738 = vpop.xlane.xlu0 %2737
        %v2739 = vrcp.pop %v2738
        %v2740 = vmul.f32 %v2735, %v2739
        %v2742 = vsel %vm2729, %v2740, 0
        %2744 = vmatprep.subr.mxu0 0.0
        %2745 = vmatpush1.msra.mxu0 0.0
        %2746 = vmatprep.subr.mxu0 0.0
        %2747 = vmatpush1.msra.mxu0 0.0
        %2748 = vmatprep.subr.mxu0 0.0
        %2749 = vmatpush1.msra.mxu0 0.0
        %2750 = vmatprep.subr.mxu0 0.0
        %2751 = vmatpush1.msra.mxu0 0.0
        %2752 = vmatprep.subr.mxu0 0.0
        %2753 = vmatpush1.msra.mxu0 0.0
        %2754 = vmatprep.subr.mxu0 0.0
        %2755 = vmatpush1.msra.mxu0 0.0
        %2756 = vmatprep.subr.mxu0 0.0
        %2757 = vmatpush1.msra.mxu0 0.0
        %2758 = vmatprep.subr.mxu0 0.0
        %2759 = vmatpush1.msra.mxu0 0.0
        %2760 = vmatprep.subr.mxu0 0.0
        %2761 = vmatpush1.msra.mxu0 0.0
        %2762 = vmatprep.subr.mxu0 0.0
        %2763 = vmatpush1.msra.mxu0 0.0
        %2764 = vmatprep.subr.mxu0 0.0
        %2765 = vmatpush1.msra.mxu0 0.0
        %2766 = vmatprep.subr.mxu0 0.0
        %2767 = vmatpush1.msra.mxu0 0.0
        %2768 = vmatprep.subr.mxu0 0.0
        %2769 = vmatpush1.msra.mxu0 0.0
        %2770 = vmatprep.subr.mxu0 0.0
        %2771 = vmatpush1.msra.mxu0 0.0
        %2772 = vmatprep.subr.mxu0 0.0
        %2773 = vmatpush1.msra.mxu0 %v2649
        %2774 = vmatprep.subr.mxu0 0.0
        %2775 = vmatpush1.msra.mxu0 %v2645
        %2776 = vmatprep.subr.mxu0 0.0
        %2777 = vmatpush2.msra.mxu0 0.0
        %2778 = vmatprep.subr.mxu0 0.0
        %2779 = vmatpush2.msra.mxu0 0.0
        %2780 = vmatprep.subr.mxu0 0.0
        %2781 = vmatpush2.msra.mxu0 0.0
        %2782 = vmatprep.subr.mxu0 0.0
        %2783 = vmatpush2.msra.mxu0 0.0
        %2784 = vmatprep.subr.mxu0 0.0
        %2785 = vmatpush2.msra.mxu0 0.0
        %2786 = vmatprep.subr.mxu0 0.0
        %2787 = vmatpush2.msra.mxu0 0.0
        %2788 = vmatprep.subr.mxu0 0.0
        %2789 = vmatpush2.msra.mxu0 0.0
        %2790 = vmatprep.subr.mxu0 0.0
        %2791 = vmatpush2.msra.mxu0 0.0
        %2792 = vmatprep.subr.mxu0 0.0
        %2793 = vmatpush2.msra.mxu0 0.0
        %2794 = vmatprep.subr.mxu0 0.0
        %2795 = vmatpush2.msra.mxu0 0.0
        %2796 = vmatprep.subr.mxu0 0.0
        %2797 = vmatpush2.msra.mxu0 0.0
        %2798 = vmatprep.subr.mxu0 0.0
        %2799 = vmatpush2.msra.mxu0 0.0
        %2800 = vmatprep.subr.mxu0 0.0
        %2801 = vmatpush2.msra.mxu0 0.0
        %2802 = vmatprep.subr.mxu0 0.0
        %2803 = vmatpush2.msra.mxu0 0.0
        %2804 = vmatprep.subr.mxu0 0.0
        %2805 = vmatpush2.msra.mxu0 0.0
        %2806 = vmatprep.subr.mxu0 0.0
        %2807 = vmatpush2.msra.mxu0 0.0
        %2808 = vmatprep.mubr.f32.mxu0 0.0
        %2809 = vmatmul.mubr.f32.gmra.mxu0 %v2742
        %v2810 = vpop.f32.mrf.mxu0
        %v2811 = vadd.f32 0.0, %v2810
        %v2812 = vpop.f32.mrf.mxu0
        %2813 = vdwg.mxu0
        %v2814 = vld [vmem:[%s440 + $0x38] sm:$0xff]
        %v2815 = vld [vmem:[%s440 + $0x88] sm:$0xff]
        %v2816 = vld [vmem:[%s440 + $0xd8] sm:$0xff]
        %v2817 = vld [vmem:[%s440 + $0x128] sm:$0xff]
        %v2818 = vld [vmem:[%s440 + $0x178] sm:$0xff]
        %v2819 = vld [vmem:[%s440 + $0x1c8] sm:$0xff]
        %v2820 = vld [vmem:[%s440 + $0x218] sm:$0xff]
        %v2821 = vld [vmem:[%s440 + $0x268] sm:$0xff]
        %v2822 = vld [vmem:[%s440 + $0x2b8] sm:$0xff]
        %v2823 = vld [vmem:[%s440 + $0x308] sm:$0xff]
        %v2824 = vld [vmem:[%s440 + $0x358] sm:$0xff]
        %v2825 = vld [vmem:[%s440 + $0x3a8] sm:$0xff]
        %v2826 = vld [vmem:[%s440 + $0x3f8] sm:$0xff]
        %v2827 = vld [vmem:[%s440 + $0x448] sm:$0xff]
        %v2828 = vld [vmem:[%s440 + $0x498] sm:$0xff]
        %v2829 = vld [vmem:[%s440 + $0x4e8] sm:$0xff]
        %v2830 = vpack.c.bf16 %v2811, %v2811
        %2831 = vmatprep.subr.mxu0 0.0
        %2832 = vmatpush1.xpose.msra.mxu0 0.0
        %2833 = vmatprep.subr.mxu0 0.0
        %2834 = vmatpush1.xpose.msra.mxu0 0.0
        %2835 = vmatprep.subr.mxu0 0.0
        %2836 = vmatpush1.xpose.msra.mxu0 0.0
        %2837 = vmatprep.subr.mxu0 0.0
        %2838 = vmatpush1.xpose.msra.mxu0 0.0
        %2839 = vmatprep.subr.mxu0 0.0
        %2840 = vmatpush1.xpose.msra.mxu0 0.0
        %2841 = vmatprep.subr.mxu0 0.0
        %2842 = vmatpush1.xpose.msra.mxu0 0.0
        %2843 = vmatprep.subr.mxu0 0.0
        %2844 = vmatpush1.xpose.msra.mxu0 0.0
        %2845 = vmatprep.subr.mxu0 0.0
        %2846 = vmatpush1.xpose.msra.mxu0 0.0
        %2847 = vmatprep.subr.mxu0 0.0
        %2848 = vmatpush1.xpose.msra.mxu0 0.0
        %2849 = vmatprep.subr.mxu0 0.0
        %2850 = vmatpush1.xpose.msra.mxu0 0.0
        %2851 = vmatprep.subr.mxu0 0.0
        %2852 = vmatpush1.xpose.msra.mxu0 0.0
        %2853 = vmatprep.subr.mxu0 0.0
        %2854 = vmatpush1.xpose.msra.mxu0 0.0
        %2855 = vmatprep.subr.mxu0 0.0
        %2856 = vmatpush1.xpose.msra.mxu0 0.0
        %2857 = vmatprep.subr.mxu0 0.0
        %2858 = vmatpush1.xpose.msra.mxu0 0.0
        %2859 = vmatprep.subr.mxu0 0.0
        %2860 = vmatpush1.xpose.msra.mxu0 %v2608
        %2861 = vmatprep.subr.mxu0 0.0
        %2862 = vmatpush1.xpose.msra.mxu0 %v2604
        %2863 = vmatprep.subr.mxu0 0.0
        %2864 = vmatpush2.xpose.msra.mxu0 0.0
        %2865 = vmatprep.subr.mxu0 0.0
        %2866 = vmatpush2.xpose.msra.mxu0 0.0
        %2867 = vmatprep.subr.mxu0 0.0
        %2868 = vmatpush2.xpose.msra.mxu0 0.0
        %2869 = vmatprep.subr.mxu0 0.0
        %2870 = vmatpush2.xpose.msra.mxu0 0.0
        %2871 = vmatprep.subr.mxu0 0.0
        %2872 = vmatpush2.xpose.msra.mxu0 0.0
        %2873 = vmatprep.subr.mxu0 0.0
        %2874 = vmatpush2.xpose.msra.mxu0 0.0
        %2875 = vmatprep.subr.mxu0 0.0
        %2876 = vmatpush2.xpose.msra.mxu0 0.0
        %2877 = vmatprep.subr.mxu0 0.0
        %2878 = vmatpush2.xpose.msra.mxu0 0.0
        %2879 = vmatprep.subr.mxu0 0.0
        %2880 = vmatpush2.xpose.msra.mxu0 0.0
        %2881 = vmatprep.subr.mxu0 0.0
        %2882 = vmatpush2.xpose.msra.mxu0 0.0
        %2883 = vmatprep.subr.mxu0 0.0
        %2884 = vmatpush2.xpose.msra.mxu0 0.0
        %2885 = vmatprep.subr.mxu0 0.0
        %2886 = vmatpush2.xpose.msra.mxu0 0.0
        %2887 = vmatprep.subr.mxu0 0.0
        %2888 = vmatpush2.xpose.msra.mxu0 0.0
        %2889 = vmatprep.subr.mxu0 0.0
        %2890 = vmatpush2.xpose.msra.mxu0 0.0
        %2891 = vmatprep.subr.mxu0 0.0
        %2892 = vmatpush2.xpose.msra.mxu0 0.0
        %2893 = vmatprep.subr.mxu0 0.0
        %2894 = vmatpush2.xpose.msra.mxu0 0.0
        %2895 = vmatprep.mubr.f32.mxu0 0.0
        %2896 = vmatmul.mubr.f32.gmra.mxu0 %v2151
        %v2897 = vpop.f32.mrf.mxu0
        %v2898 = vadd.f32 0.0, %v2897
        %v2899 = vpop.f32.mrf.mxu0
        %2900 = vdwg.mxu0
        %v2901 = vmul.f32 %v2898, 0.088388346
        %v2902 = vmul.f32 %v2901, %v2653
        %v2903 = vadd.f32 %v2902, %v2654
        %v2904 = vsel %vm2729, %v2903, -inf
        %2905 = vmax.xlane.f32.xlu0 %v2904
        %v2906 = vpop.xlane.xlu0 %2905
        %v2907 = vsub.f32 %v2903, %v2906
        %v2908 = vmul.f32 %v2907, 1.442695
        %v2909 = vpow.pop %v2908
        %v2910 = vsel %vm2729, %v2909, 0.0
        %2911 = vadd.xlane.f32.xlu0 %v2910
        %v2912 = vpop.xlane.xlu0 %2911
        %v2913 = vrcp.pop %v2912
        %v2914 = vmul.f32 %v2909, %v2913
        %v2916 = vsel %vm2729, %v2914, 0
        %2918 = vmatprep.subr.mxu0 0.0
        %2919 = vmatpush1.msra.mxu0 0.0
        %2920 = vmatprep.subr.mxu0 0.0
        %2921 = vmatpush1.msra.mxu0 0.0
        %2922 = vmatprep.subr.mxu0 0.0
        %2923 = vmatpush1.msra.mxu0 0.0
        %2924 = vmatprep.subr.mxu0 0.0
        %2925 = vmatpush1.msra.mxu0 0.0
        %2926 = vmatprep.subr.mxu0 0.0
        %2927 = vmatpush1.msra.mxu0 0.0
        %2928 = vmatprep.subr.mxu0 0.0
        %2929 = vmatpush1.msra.mxu0 0.0
        %2930 = vmatprep.subr.mxu0 0.0
        %2931 = vmatpush1.msra.mxu0 0.0
        %2932 = vmatprep.subr.mxu0 0.0
        %2933 = vmatpush1.msra.mxu0 0.0
        %2934 = vmatprep.subr.mxu0 0.0
        %2935 = vmatpush1.msra.mxu0 0.0
        %2936 = vmatprep.subr.mxu0 0.0
        %2937 = vmatpush1.msra.mxu0 0.0
        %2938 = vmatprep.subr.mxu0 0.0
        %2939 = vmatpush1.msra.mxu0 0.0
        %2940 = vmatprep.subr.mxu0 0.0
        %2941 = vmatpush1.msra.mxu0 0.0
        %2942 = vmatprep.subr.mxu0 0.0
        %2943 = vmatpush1.msra.mxu0 0.0
        %2944 = vmatprep.subr.mxu0 0.0
        %2945 = vmatpush1.msra.mxu0 0.0
        %2946 = vmatprep.subr.mxu0 0.0
        %2947 = vmatpush1.msra.mxu0 %v2651
        %2948 = vmatprep.subr.mxu0 0.0
        %2949 = vmatpush1.msra.mxu0 %v2647
        %2950 = vmatprep.subr.mxu0 0.0
        %2951 = vmatpush2.msra.mxu0 0.0
        %2952 = vmatprep.subr.mxu0 0.0
        %2953 = vmatpush2.msra.mxu0 0.0
        %2954 = vmatprep.subr.mxu0 0.0
        %2955 = vmatpush2.msra.mxu0 0.0
        %2956 = vmatprep.subr.mxu0 0.0
        %2957 = vmatpush2.msra.mxu0 0.0
        %2958 = vmatprep.subr.mxu0 0.0
        %2959 = vmatpush2.msra.mxu0 0.0
        %2960 = vmatprep.subr.mxu0 0.0
        %2961 = vmatpush2.msra.mxu0 0.0
        %2962 = vmatprep.subr.mxu0 0.0
        %2963 = vmatpush2.msra.mxu0 0.0
        %2964 = vmatprep.subr.mxu0 0.0
        %2965 = vmatpush2.msra.mxu0 0.0
        %2966 = vmatprep.subr.mxu0 0.0
        %2967 = vmatpush2.msra.mxu0 0.0
        %2968 = vmatprep.subr.mxu0 0.0
        %2969 = vmatpush2.msra.mxu0 0.0
        %2970 = vmatprep.subr.mxu0 0.0
        %2971 = vmatpush2.msra.mxu0 0.0
        %2972 = vmatprep.subr.mxu0 0.0
        %2973 = vmatpush2.msra.mxu0 0.0
        %2974 = vmatprep.subr.mxu0 0.0
        %2975 = vmatpush2.msra.mxu0 0.0
        %2976 = vmatprep.subr.mxu0 0.0
        %2977 = vmatpush2.msra.mxu0 0.0
        %2978 = vmatprep.subr.mxu0 0.0
        %2979 = vmatpush2.msra.mxu0 0.0
        %2980 = vmatprep.subr.mxu0 0.0
        %2981 = vmatpush2.msra.mxu0 0.0
        %2982 = vmatprep.mubr.f32.mxu0 0.0
        %2983 = vmatmul.mubr.f32.gmra.mxu0 %v2916
        %v2984 = vpop.f32.mrf.mxu0
        %v2985 = vadd.f32 0.0, %v2984
        %v2986 = vpop.f32.mrf.mxu0
        %2987 = vdwg.mxu0
        %v2988 = vld [vmem:[%s440 + $0x538] sm:$0xff]
        %v2989 = vld [vmem:[%s440 + $0x588] sm:$0xff]
        %v2990 = vld [vmem:[%s440 + $0x5d8] sm:$0xff]
        %v2991 = vld [vmem:[%s440 + $0x628] sm:$0xff]
        %v2992 = vld [vmem:[%s440 + $0x678] sm:$0xff]
        %v2993 = vld [vmem:[%s440 + $0x6c8] sm:$0xff]
        %v2994 = vld [vmem:[%s440 + $0x718] sm:$0xff]
        %v2995 = vld [vmem:[%s440 + $0x768] sm:$0xff]
        %v2996 = vld [vmem:[%s440 + $0x7b8] sm:$0xff]
        %v2997 = vld [vmem:[%s440 + $0x808] sm:$0xff]
        %v2998 = vld [vmem:[%s440 + $0x858] sm:$0xff]
        %v2999 = vld [vmem:[%s440 + $0x8a8] sm:$0xff]
        %v3000 = vld [vmem:[%s440 + $0x8f8] sm:$0xff]
        %v3001 = vld [vmem:[%s440 + $0x948] sm:$0xff]
        %v3002 = vld [vmem:[%s440 + $0x998] sm:$0xff]
        %v3003 = vld [vmem:[%s440 + $0x9e8] sm:$0xff]
        %v3004 = vpack.c.bf16 %v2985, %v2985
        %v3021 = vunpack.c.l.b16 %v2988
        %v3022 = vunpack.c.h.b16 %v2988
        %v3023 = vunpack.c.l.b16 %v2989
        %v3024 = vunpack.c.h.b16 %v2989
        %v3025 = vunpack.c.l.b16 %v2990
        %v3026 = vunpack.c.h.b16 %v2990
        %v3027 = vunpack.c.l.b16 %v2991
        %v3028 = vunpack.c.h.b16 %v2991
        %v3029 = vunpack.c.l.b16 %v2992
        %v3030 = vunpack.c.h.b16 %v2992
        %v3031 = vunpack.c.l.b16 %v2993
        %v3032 = vunpack.c.h.b16 %v2993
        %v3033 = vunpack.c.l.b16 %v2994
        %v3034 = vunpack.c.h.b16 %v2994
        %v3035 = vunpack.c.l.b16 %v2995
        %v3036 = vunpack.c.h.b16 %v2995
        %v3037 = vunpack.c.l.b16 %v2996
        %v3038 = vunpack.c.h.b16 %v2996
        %v3039 = vunpack.c.l.b16 %v2997
        %v3040 = vunpack.c.h.b16 %v2997
        %v3041 = vunpack.c.l.b16 %v2998
        %v3042 = vunpack.c.h.b16 %v2998
        %v3043 = vunpack.c.l.b16 %v2999
        %v3044 = vunpack.c.h.b16 %v2999
        %v3045 = vunpack.c.l.b16 %v3000
        %v3046 = vunpack.c.h.b16 %v3000
        %v3047 = vunpack.c.l.b16 %v3001
        %v3048 = vunpack.c.h.b16 %v3001
        %v3049 = vunpack.c.l.b16 %v3002
        %v3050 = vunpack.c.h.b16 %v3002
        %v3051 = vunpack.c.l.b16 %v3003
        %v3052 = vunpack.c.h.b16 %v3003
        %v3053 = vpack.c.b16 %v3023, %v3021
        %v3054 = vpack.c.b16 %v3024, %v3022
        %v3055 = vpack.c.b16 %v3027, %v3025
        %v3056 = vpack.c.b16 %v3028, %v3026
        %v3057 = vpack.c.b16 %v3031, %v3029
        %v3058 = vpack.c.b16 %v3032, %v3030
        %v3059 = vpack.c.b16 %v3035, %v3033
        %v3060 = vpack.c.b16 %v3036, %v3034
        %v3061 = vpack.c.b16 %v3039, %v3037
        %v3062 = vpack.c.b16 %v3040, %v3038
        %v3063 = vpack.c.b16 %v3043, %v3041
        %v3064 = vpack.c.b16 %v3044, %v3042
        %v3065 = vpack.c.b16 %v3047, %v3045
        %v3066 = vpack.c.b16 %v3048, %v3046
        %v3067 = vpack.c.b16 %v3051, %v3049
        %v3068 = vpack.c.b16 %v3052, %v3050
        %3085 = vmatprep.subr.bf16.mxu0 %v3068
        %3086 = vmatpush1.bf16.msra.mxu0 %v3067
        %3087 = vmatprep.subr.bf16.mxu0 %v3066
        %3088 = vmatpush1.bf16.msra.mxu0 %v3065
        %3089 = vmatprep.subr.bf16.mxu0 %v3064
        %3090 = vmatpush1.bf16.msra.mxu0 %v3063
        %3091 = vmatprep.subr.bf16.mxu0 %v3062
        %3092 = vmatpush1.bf16.msra.mxu0 %v3061
        %3093 = vmatprep.subr.bf16.mxu0 %v3060
        %3094 = vmatpush1.bf16.msra.mxu0 %v3059
        %3095 = vmatprep.subr.bf16.mxu0 %v3058
        %3096 = vmatpush1.bf16.msra.mxu0 %v3057
        %3097 = vmatprep.subr.bf16.mxu0 %v3056
        %3098 = vmatpush1.bf16.msra.mxu0 %v3055
        %3099 = vmatprep.subr.bf16.mxu0 %v3054
        %3100 = vmatpush1.bf16.msra.mxu0 %v3053
        %3101 = vmatprep.subr.bf16.mxu0 0
        %3102 = vmatpush2.bf16.msra.mxu0 0
        %3103 = vmatprep.subr.bf16.mxu0 0
        %3104 = vmatpush2.bf16.msra.mxu0 0
        %3105 = vmatprep.subr.bf16.mxu0 0
        %3106 = vmatpush2.bf16.msra.mxu0 0
        %3107 = vmatprep.subr.bf16.mxu0 0
        %3108 = vmatpush2.bf16.msra.mxu0 0
        %3109 = vmatprep.subr.bf16.mxu0 0
        %3110 = vmatpush2.bf16.msra.mxu0 0
        %3111 = vmatprep.subr.bf16.mxu0 0
        %3112 = vmatpush2.bf16.msra.mxu0 0
        %3113 = vmatprep.subr.bf16.mxu0 0
        %3114 = vmatpush2.bf16.msra.mxu0 0
        %3115 = vmatprep.subr.bf16.mxu0 0
        %3116 = vmatpush2.bf16.msra.mxu0 0
        %3117 = vmatprep.mubr.bf16.mxu0 0
        %3118 = vmatmul.mubr.bf16.gmra.mxu0 %v3004
        %v3119 = vpop.f32.mrf.mxu0
        %v3120 = vadd.f32 0.0, %v3119
        %v3121 = vpop.f32.mrf.mxu0
        %v3122 = vadd.f32 0.0, %v3121
        %v3123 = vpop.f32.mrf.mxu0
        %v3124 = vpop.f32.mrf.mxu0
        %3125 = vdwg.mxu0
        %v3142 = vunpack.c.l.b16 %v2814
        %v3143 = vunpack.c.h.b16 %v2814
        %v3144 = vunpack.c.l.b16 %v2815
        %v3145 = vunpack.c.h.b16 %v2815
        %v3146 = vunpack.c.l.b16 %v2816
        %v3147 = vunpack.c.h.b16 %v2816
        %v3148 = vunpack.c.l.b16 %v2817
        %v3149 = vunpack.c.h.b16 %v2817
        %v3150 = vunpack.c.l.b16 %v2818
        %v3151 = vunpack.c.h.b16 %v2818
        %v3152 = vunpack.c.l.b16 %v2819
        %v3153 = vunpack.c.h.b16 %v2819
        %v3154 = vunpack.c.l.b16 %v2820
        %v3155 = vunpack.c.h.b16 %v2820
        %v3156 = vunpack.c.l.b16 %v2821
        %v3157 = vunpack.c.h.b16 %v2821
        %v3158 = vunpack.c.l.b16 %v2822
        %v3159 = vunpack.c.h.b16 %v2822
        %v3160 = vunpack.c.l.b16 %v2823
        %v3161 = vunpack.c.h.b16 %v2823
        %v3162 = vunpack.c.l.b16 %v2824
        %v3163 = vunpack.c.h.b16 %v2824
        %v3164 = vunpack.c.l.b16 %v2825
        %v3165 = vunpack.c.h.b16 %v2825
        %v3166 = vunpack.c.l.b16 %v2826
        %v3167 = vunpack.c.h.b16 %v2826
        %v3168 = vunpack.c.l.b16 %v2827
        %v3169 = vunpack.c.h.b16 %v2827
        %v3170 = vunpack.c.l.b16 %v2828
        %v3171 = vunpack.c.h.b16 %v2828
        %v3172 = vunpack.c.l.b16 %v2829
        %v3173 = vunpack.c.h.b16 %v2829
        %v3174 = vpack.c.b16 %v3144, %v3142
        %v3175 = vpack.c.b16 %v3145, %v3143
        %v3176 = vpack.c.b16 %v3148, %v3146
        %v3177 = vpack.c.b16 %v3149, %v3147
        %v3178 = vpack.c.b16 %v3152, %v3150
        %v3179 = vpack.c.b16 %v3153, %v3151
        %v3180 = vpack.c.b16 %v3156, %v3154
        %v3181 = vpack.c.b16 %v3157, %v3155
        %v3182 = vpack.c.b16 %v3160, %v3158
        %v3183 = vpack.c.b16 %v3161, %v3159
        %v3184 = vpack.c.b16 %v3164, %v3162
        %v3185 = vpack.c.b16 %v3165, %v3163
        %v3186 = vpack.c.b16 %v3168, %v3166
        %v3187 = vpack.c.b16 %v3169, %v3167
        %v3188 = vpack.c.b16 %v3172, %v3170
        %v3189 = vpack.c.b16 %v3173, %v3171
        %3206 = vmatprep.subr.bf16.mxu0 %v3189
        %3207 = vmatpush1.bf16.msra.mxu0 %v3188
        %3208 = vmatprep.subr.bf16.mxu0 %v3187
        %3209 = vmatpush1.bf16.msra.mxu0 %v3186
        %3210 = vmatprep.subr.bf16.mxu0 %v3185
        %3211 = vmatpush1.bf16.msra.mxu0 %v3184
        %3212 = vmatprep.subr.bf16.mxu0 %v3183
        %3213 = vmatpush1.bf16.msra.mxu0 %v3182
        %3214 = vmatprep.subr.bf16.mxu0 %v3181
        %3215 = vmatpush1.bf16.msra.mxu0 %v3180
        %3216 = vmatprep.subr.bf16.mxu0 %v3179
        %3217 = vmatpush1.bf16.msra.mxu0 %v3178
        %3218 = vmatprep.subr.bf16.mxu0 %v3177
        %3219 = vmatpush1.bf16.msra.mxu0 %v3176
        %3220 = vmatprep.subr.bf16.mxu0 %v3175
        %3221 = vmatpush1.bf16.msra.mxu0 %v3174
        %3222 = vmatprep.subr.bf16.mxu0 0
        %3223 = vmatpush2.bf16.msra.mxu0 0
        %3224 = vmatprep.subr.bf16.mxu0 0
        %3225 = vmatpush2.bf16.msra.mxu0 0
        %3226 = vmatprep.subr.bf16.mxu0 0
        %3227 = vmatpush2.bf16.msra.mxu0 0
        %3228 = vmatprep.subr.bf16.mxu0 0
        %3229 = vmatpush2.bf16.msra.mxu0 0
        %3230 = vmatprep.subr.bf16.mxu0 0
        %3231 = vmatpush2.bf16.msra.mxu0 0
        %3232 = vmatprep.subr.bf16.mxu0 0
        %3233 = vmatpush2.bf16.msra.mxu0 0
        %3234 = vmatprep.subr.bf16.mxu0 0
        %3235 = vmatpush2.bf16.msra.mxu0 0
        %3236 = vmatprep.subr.bf16.mxu0 0
        %3237 = vmatpush2.bf16.msra.mxu0 0
        %3238 = vmatprep.mubr.bf16.mxu0 0
        %3239 = vmatmul.mubr.bf16.gmra.mxu0 %v2830
        %v3240 = vpop.f32.mrf.mxu0
        %v3241 = vadd.f32 %v3120, %v3240
        %v3242 = vpop.f32.mrf.mxu0
        %v3243 = vadd.f32 %v3122, %v3242
        %v3244 = vpop.f32.mrf.mxu0
        %v3245 = vpop.f32.mrf.mxu0
        %3246 = vdwg.mxu0
        %v3248 = vlaneseq
        %v3249 = vshrl.u32 %v3248, 7
        %v3250 = vsub.s32 0, %v3249
        %v3251 = vrot.slane %v2655, %v3250
        %v3252 = vlaneseq
        %v3253 = vshrl.u32 %v3252, 7
        %v3254 = vsub.s32 1, %v3253
        %v3255 = vrot.slane %v2655, %v3254
        %v3258 = vadd.f32 %v3241, %v3251
        %v3259 = vadd.f32 %v3243, %v3255
        %v3260 = vadd.f32 %v1906, %v3258
        %v3261 = vadd.f32 %v1907, %v3259
        %v3262 = vld [vmem:[%s458 + $0x14] sm:$0x3]
        %v3263 = vld [vmem:[%s458 + $0x16] sm:$0x3]
        %v3264 = vadd.f32 %v3260, %v3261
        %3265 = vadd.xlane.f32.xlu0 %v3264
        %v3266 = vpop.xlane.xlu0 %3265
        %v3267 = vmul.f32 %v3266, %v1868
        %v3268 = vsub.f32 %v3260, %v3267
        %v3269 = vsub.f32 %v3261, %v3267
        %v3270 = vmul.f32 %v3268, %v3268
        %v3271 = vmul.f32 %v3269, %v3269
        %v3272 = vadd.f32 %v3270, %v3271
        %3273 = vadd.xlane.f32.xlu0 %v3272
        %v3274 = vpop.xlane.xlu0 %3273
        %v3275 = vmul.f32 %v3274, %v1868
        %v3276 = vadd.f32 %v3275, 1e-05
        %v3277 = vrsqrt.pop %v3276
        %v3278 = vmul.f32 %v3268, %v3277
        %v3279 = vmul.f32 %v3269, %v3277
        %v3281 = vlaneseq
        %v3282 = vshrl.u32 %v3281, 7
        %v3283 = vsub.s32 0, %v3282
        %v3284 = vrot.slane %v3262, %v3283
        %v3285 = vlaneseq
        %v3286 = vshrl.u32 %v3285, 7
        %v3287 = vsub.s32 1, %v3286
        %v3288 = vrot.slane %v3262, %v3287
        %v3291 = vmul.f32 %v3278, %v3284
        %v3292 = vmul.f32 %v3279, %v3288
        %v3294 = vlaneseq
        %v3295 = vshrl.u32 %v3294, 7
        %v3296 = vsub.s32 0, %v3295
        %v3297 = vrot.slane %v3263, %v3296
        %v3298 = vlaneseq
        %v3299 = vshrl.u32 %v3298, 7
        %v3300 = vsub.s32 1, %v3299
        %v3301 = vrot.slane %v3263, %v3300
        %v3304 = vadd.f32 %v3291, %v3297
        %v3305 = vadd.f32 %v3292, %v3301
        %v3306 = vpack.c.bf16 %v3304, %v3304
        %v3307 = vpack.c.bf16 %v3305, %v3305
        %v3308 = vld [vmem:[%s440 + $0x40] sm:$0xff]
        %v3309 = vld [vmem:[%s440 + $0x48] sm:$0xff]
        %v3310 = vld [vmem:[%s440 + $0x90] sm:$0xff]
        %v3311 = vld [vmem:[%s440 + $0x98] sm:$0xff]
        %v3312 = vld [vmem:[%s440 + $0xe0] sm:$0xff]
        %v3313 = vld [vmem:[%s440 + $0xe8] sm:$0xff]
        %v3314 = vld [vmem:[%s440 + $0x130] sm:$0xff]
        %v3315 = vld [vmem:[%s440 + $0x138] sm:$0xff]
        %v3316 = vld [vmem:[%s440 + $0x180] sm:$0xff]
        %v3317 = vld [vmem:[%s440 + $0x188] sm:$0xff]
        %v3318 = vld [vmem:[%s440 + $0x1d0] sm:$0xff]
        %v3319 = vld [vmem:[%s440 + $0x1d8] sm:$0xff]
        %v3320 = vld [vmem:[%s440 + $0x220] sm:$0xff]
        %v3321 = vld [vmem:[%s440 + $0x228] sm:$0xff]
        %v3322 = vld [vmem:[%s440 + $0x270] sm:$0xff]
        %v3323 = vld [vmem:[%s440 + $0x278] sm:$0xff]
        %v3324 = vld [vmem:[%s440 + $0x2c0] sm:$0xff]
        %v3325 = vld [vmem:[%s440 + $0x2c8] sm:$0xff]
        %v3326 = vld [vmem:[%s440 + $0x310] sm:$0xff]
        %v3327 = vld [vmem:[%s440 + $0x318] sm:$0xff]
        %v3328 = vld [vmem:[%s440 + $0x360] sm:$0xff]
        %v3329 = vld [vmem:[%s440 + $0x368] sm:$0xff]
        %v3330 = vld [vmem:[%s440 + $0x3b0] sm:$0xff]
        %v3331 = vld [vmem:[%s440 + $0x3b8] sm:$0xff]
        %v3332 = vld [vmem:[%s440 + $0x400] sm:$0xff]
        %v3333 = vld [vmem:[%s440 + $0x408] sm:$0xff]
        %v3334 = vld [vmem:[%s440 + $0x450] sm:$0xff]
        %v3335 = vld [vmem:[%s440 + $0x458] sm:$0xff]
        %v3336 = vld [vmem:[%s440 + $0x4a0] sm:$0xff]
        %v3337 = vld [vmem:[%s440 + $0x4a8] sm:$0xff]
        %v3338 = vld [vmem:[%s440 + $0x4f0] sm:$0xff]
        %v3339 = vld [vmem:[%s440 + $0x4f8] sm:$0xff]
        %v3340 = vld [vmem:[%s440 + $0x540] sm:$0xff]
        %v3341 = vld [vmem:[%s440 + $0x548] sm:$0xff]
        %v3342 = vld [vmem:[%s440 + $0x590] sm:$0xff]
        %v3343 = vld [vmem:[%s440 + $0x598] sm:$0xff]
        %v3344 = vld [vmem:[%s440 + $0x5e0] sm:$0xff]
        %v3345 = vld [vmem:[%s440 + $0x5e8] sm:$0xff]
        %v3346 = vld [vmem:[%s440 + $0x630] sm:$0xff]
        %v3347 = vld [vmem:[%s440 + $0x638] sm:$0xff]
        %v3348 = vld [vmem:[%s440 + $0x680] sm:$0xff]
        %v3349 = vld [vmem:[%s440 + $0x688] sm:$0xff]
        %v3350 = vld [vmem:[%s440 + $0x6d0] sm:$0xff]
        %v3351 = vld [vmem:[%s440 + $0x6d8] sm:$0xff]
        %v3352 = vld [vmem:[%s440 + $0x720] sm:$0xff]
        %v3353 = vld [vmem:[%s440 + $0x728] sm:$0xff]
        %v3354 = vld [vmem:[%s440 + $0x770] sm:$0xff]
        %v3355 = vld [vmem:[%s440 + $0x778] sm:$0xff]
        %v3356 = vld [vmem:[%s440 + $0x7c0] sm:$0xff]
        %v3357 = vld [vmem:[%s440 + $0x7c8] sm:$0xff]
        %v3358 = vld [vmem:[%s440 + $0x810] sm:$0xff]
        %v3359 = vld [vmem:[%s440 + $0x818] sm:$0xff]
        %v3360 = vld [vmem:[%s440 + $0x860] sm:$0xff]
        %v3361 = vld [vmem:[%s440 + $0x868] sm:$0xff]
        %v3362 = vld [vmem:[%s440 + $0x8b0] sm:$0xff]
        %v3363 = vld [vmem:[%s440 + $0x8b8] sm:$0xff]
        %v3364 = vld [vmem:[%s440 + $0x900] sm:$0xff]
        %v3365 = vld [vmem:[%s440 + $0x908] sm:$0xff]
        %v3366 = vld [vmem:[%s440 + $0x950] sm:$0xff]
        %v3367 = vld [vmem:[%s440 + $0x958] sm:$0xff]
        %v3368 = vld [vmem:[%s440 + $0x9a0] sm:$0xff]
        %v3369 = vld [vmem:[%s440 + $0x9a8] sm:$0xff]
        %v3370 = vld [vmem:[%s440 + $0x9f0] sm:$0xff]
        %v3371 = vld [vmem:[%s440 + $0x9f8] sm:$0xff]
        %v3372 = vld [vmem:[%s458 + $0x18] sm:$0xf]
        %v3374 = vlaneseq
        %v3375 = vshrl.u32 %v3374, 7
        %v3376 = vsub.s32 0, %v3375
        %v3377 = vrot.slane %v3372, %v3376
        %v3378 = vlaneseq
        %v3379 = vshrl.u32 %v3378, 7
        %v3380 = vsub.s32 1, %v3379
        %v3381 = vrot.slane %v3372, %v3380
        %v3382 = vlaneseq
        %v3383 = vshrl.u32 %v3382, 7
        %v3384 = vsub.s32 2, %v3383
        %v3385 = vrot.slane %v3372, %v3384
        %v3386 = vlaneseq
        %v3387 = vshrl.u32 %v3386, 7
        %v3388 = vsub.s32 3, %v3387
        %v3389 = vrot.slane %v3372, %v3388
        %v3458 = vunpack.c.l.b16 %v3308
        %v3459 = vunpack.c.h.b16 %v3308
        %v3460 = vunpack.c.l.b16 %v3309
        %v3461 = vunpack.c.h.b16 %v3309
        %v3462 = vunpack.c.l.b16 %v3310
        %v3463 = vunpack.c.h.b16 %v3310
        %v3464 = vunpack.c.l.b16 %v3311
        %v3465 = vunpack.c.h.b16 %v3311
        %v3466 = vunpack.c.l.b16 %v3312
        %v3467 = vunpack.c.h.b16 %v3312
        %v3468 = vunpack.c.l.b16 %v3313
        %v3469 = vunpack.c.h.b16 %v3313
        %v3470 = vunpack.c.l.b16 %v3314
        %v3471 = vunpack.c.h.b16 %v3314
        %v3472 = vunpack.c.l.b16 %v3315
        %v3473 = vunpack.c.h.b16 %v3315
        %v3474 = vunpack.c.l.b16 %v3316
        %v3475 = vunpack.c.h.b16 %v3316
        %v3476 = vunpack.c.l.b16 %v3317
        %v3477 = vunpack.c.h.b16 %v3317
        %v3478 = vunpack.c.l.b16 %v3318
        %v3479 = vunpack.c.h.b16 %v3318
        %v3480 = vunpack.c.l.b16 %v3319
        %v3481 = vunpack.c.h.b16 %v3319
        %v3482 = vunpack.c.l.b16 %v3320
        %v3483 = vunpack.c.h.b16 %v3320
        %v3484 = vunpack.c.l.b16 %v3321
        %v3485 = vunpack.c.h.b16 %v3321
        %v3486 = vunpack.c.l.b16 %v3322
        %v3487 = vunpack.c.h.b16 %v3322
        %v3488 = vunpack.c.l.b16 %v3323
        %v3489 = vunpack.c.h.b16 %v3323
        %v3490 = vunpack.c.l.b16 %v3324
        %v3491 = vunpack.c.h.b16 %v3324
        %v3492 = vunpack.c.l.b16 %v3325
        %v3493 = vunpack.c.h.b16 %v3325
        %v3494 = vunpack.c.l.b16 %v3326
        %v3495 = vunpack.c.h.b16 %v3326
        %v3496 = vunpack.c.l.b16 %v3327
        %v3497 = vunpack.c.h.b16 %v3327
        %v3498 = vunpack.c.l.b16 %v3328
        %v3499 = vunpack.c.h.b16 %v3328
        %v3500 = vunpack.c.l.b16 %v3329
        %v3501 = vunpack.c.h.b16 %v3329
        %v3502 = vunpack.c.l.b16 %v3330
        %v3503 = vunpack.c.h.b16 %v3330
        %v3504 = vunpack.c.l.b16 %v3331
        %v3505 = vunpack.c.h.b16 %v3331
        %v3506 = vunpack.c.l.b16 %v3332
        %v3507 = vunpack.c.h.b16 %v3332
        %v3508 = vunpack.c.l.b16 %v3333
        %v3509 = vunpack.c.h.b16 %v3333
        %v3510 = vunpack.c.l.b16 %v3334
        %v3511 = vunpack.c.h.b16 %v3334
        %v3512 = vunpack.c.l.b16 %v3335
        %v3513 = vunpack.c.h.b16 %v3335
        %v3514 = vunpack.c.l.b16 %v3336
        %v3515 = vunpack.c.h.b16 %v3336
        %v3516 = vunpack.c.l.b16 %v3337
        %v3517 = vunpack.c.h.b16 %v3337
        %v3518 = vunpack.c.l.b16 %v3338
        %v3519 = vunpack.c.h.b16 %v3338
        %v3520 = vunpack.c.l.b16 %v3339
        %v3521 = vunpack.c.h.b16 %v3339
        %v3522 = vunpack.c.l.b16 %v3340
        %v3523 = vunpack.c.h.b16 %v3340
        %v3524 = vunpack.c.l.b16 %v3341
        %v3525 = vunpack.c.h.b16 %v3341
        %v3526 = vunpack.c.l.b16 %v3342
        %v3527 = vunpack.c.h.b16 %v3342
        %v3528 = vunpack.c.l.b16 %v3343
        %v3529 = vunpack.c.h.b16 %v3343
        %v3530 = vunpack.c.l.b16 %v3344
        %v3531 = vunpack.c.h.b16 %v3344
        %v3532 = vunpack.c.l.b16 %v3345
        %v3533 = vunpack.c.h.b16 %v3345
        %v3534 = vunpack.c.l.b16 %v3346
        %v3535 = vunpack.c.h.b16 %v3346
        %v3536 = vunpack.c.l.b16 %v3347
        %v3537 = vunpack.c.h.b16 %v3347
        %v3538 = vunpack.c.l.b16 %v3348
        %v3539 = vunpack.c.h.b16 %v3348
        %v3540 = vunpack.c.l.b16 %v3349
        %v3541 = vunpack.c.h.b16 %v3349
        %v3542 = vunpack.c.l.b16 %v3350
        %v3543 = vunpack.c.h.b16 %v3350
        %v3544 = vunpack.c.l.b16 %v3351
        %v3545 = vunpack.c.h.b16 %v3351
        %v3546 = vunpack.c.l.b16 %v3352
        %v3547 = vunpack.c.h.b16 %v3352
        %v3548 = vunpack.c.l.b16 %v3353
        %v3549 = vunpack.c.h.b16 %v3353
        %v3550 = vunpack.c.l.b16 %v3354
        %v3551 = vunpack.c.h.b16 %v3354
        %v3552 = vunpack.c.l.b16 %v3355
        %v3553 = vunpack.c.h.b16 %v3355
        %v3554 = vunpack.c.l.b16 %v3356
        %v3555 = vunpack.c.h.b16 %v3356
        %v3556 = vunpack.c.l.b16 %v3357
        %v3557 = vunpack.c.h.b16 %v3357
        %v3558 = vunpack.c.l.b16 %v3358
        %v3559 = vunpack.c.h.b16 %v3358
        %v3560 = vunpack.c.l.b16 %v3359
        %v3561 = vunpack.c.h.b16 %v3359
        %v3562 = vunpack.c.l.b16 %v3360
        %v3563 = vunpack.c.h.b16 %v3360
        %v3564 = vunpack.c.l.b16 %v3361
        %v3565 = vunpack.c.h.b16 %v3361
        %v3566 = vunpack.c.l.b16 %v3362
        %v3567 = vunpack.c.h.b16 %v3362
        %v3568 = vunpack.c.l.b16 %v3363
        %v3569 = vunpack.c.h.b16 %v3363
        %v3570 = vunpack.c.l.b16 %v3364
        %v3571 = vunpack.c.h.b16 %v3364
        %v3572 = vunpack.c.l.b16 %v3365
        %v3573 = vunpack.c.h.b16 %v3365
        %v3574 = vunpack.c.l.b16 %v3366
        %v3575 = vunpack.c.h.b16 %v3366
        %v3576 = vunpack.c.l.b16 %v3367
        %v3577 = vunpack.c.h.b16 %v3367
        %v3578 = vunpack.c.l.b16 %v3368
        %v3579 = vunpack.c.h.b16 %v3368
        %v3580 = vunpack.c.l.b16 %v3369
        %v3581 = vunpack.c.h.b16 %v3369
        %v3582 = vunpack.c.l.b16 %v3370
        %v3583 = vunpack.c.h.b16 %v3370
        %v3584 = vunpack.c.l.b16 %v3371
        %v3585 = vunpack.c.h.b16 %v3371
        %v3586 = vpack.c.b16 %v3462, %v3458
        %v3587 = vpack.c.b16 %v3463, %v3459
        %v3588 = vpack.c.b16 %v3464, %v3460
        %v3589 = vpack.c.b16 %v3465, %v3461
        %v3590 = vpack.c.b16 %v3470, %v3466
        %v3591 = vpack.c.b16 %v3471, %v3467
        %v3592 = vpack.c.b16 %v3472, %v3468
        %v3593 = vpack.c.b16 %v3473, %v3469
        %v3594 = vpack.c.b16 %v3478, %v3474
        %v3595 = vpack.c.b16 %v3479, %v3475
        %v3596 = vpack.c.b16 %v3480, %v3476
        %v3597 = vpack.c.b16 %v3481, %v3477
        %v3598 = vpack.c.b16 %v3486, %v3482
        %v3599 = vpack.c.b16 %v3487, %v3483
        %v3600 = vpack.c.b16 %v3488, %v3484
        %v3601 = vpack.c.b16 %v3489, %v3485
        %v3602 = vpack.c.b16 %v3494, %v3490
        %v3603 = vpack.c.b16 %v3495, %v3491
        %v3604 = vpack.c.b16 %v3496, %v3492
        %v3605 = vpack.c.b16 %v3497, %v3493
        %v3606 = vpack.c.b16 %v3502, %v3498
        %v3607 = vpack.c.b16 %v3503, %v3499
        %v3608 = vpack.c.b16 %v3504, %v3500
        %v3609 = vpack.c.b16 %v3505, %v3501
        %v3610 = vpack.c.b16 %v3510, %v3506
        %v3611 = vpack.c.b16 %v3511, %v3507
        %v3612 = vpack.c.b16 %v3512, %v3508
        %v3613 = vpack.c.b16 %v3513, %v3509
        %v3614 = vpack.c.b16 %v3518, %v3514
        %v3615 = vpack.c.b16 %v3519, %v3515
        %v3616 = vpack.c.b16 %v3520, %v3516
        %v3617 = vpack.c.b16 %v3521, %v3517
        %v3618 = vpack.c.b16 %v3526, %v3522
        %v3619 = vpack.c.b16 %v3527, %v3523
        %v3620 = vpack.c.b16 %v3528, %v3524
        %v3621 = vpack.c.b16 %v3529, %v3525
        %v3622 = vpack.c.b16 %v3534, %v3530
        %v3623 = vpack.c.b16 %v3535, %v3531
        %v3624 = vpack.c.b16 %v3536, %v3532
        %v3625 = vpack.c.b16 %v3537, %v3533
        %v3626 = vpack.c.b16 %v3542, %v3538
        %v3627 = vpack.c.b16 %v3543, %v3539
        %v3628 = vpack.c.b16 %v3544, %v3540
        %v3629 = vpack.c.b16 %v3545, %v3541
        %v3630 = vpack.c.b16 %v3550, %v3546
        %v3631 = vpack.c.b16 %v3551, %v3547
        %v3632 = vpack.c.b16 %v3552, %v3548
        %v3633 = vpack.c.b16 %v3553, %v3549
        %v3634 = vpack.c.b16 %v3558, %v3554
        %v3635 = vpack.c.b16 %v3559, %v3555
        %v3636 = vpack.c.b16 %v3560, %v3556
        %v3637 = vpack.c.b16 %v3561, %v3557
        %v3638 = vpack.c.b16 %v3566, %v3562
        %v3639 = vpack.c.b16 %v3567, %v3563
        %v3640 = vpack.c.b16 %v3568, %v3564
        %v3641 = vpack.c.b16 %v3569, %v3565
        %v3642 = vpack.c.b16 %v3574, %v3570
        %v3643 = vpack.c.b16 %v3575, %v3571
        %v3644 = vpack.c.b16 %v3576, %v3572
        %v3645 = vpack.c.b16 %v3577, %v3573
        %v3646 = vpack.c.b16 %v3582, %v3578
        %v3647 = vpack.c.b16 %v3583, %v3579
        %v3648 = vpack.c.b16 %v3584, %v3580
        %v3649 = vpack.c.b16 %v3585, %v3581
        %3714 = vmatprep.subr.bf16.mxu0 %v3615
        %3715 = vmatpush1.bf16.msra.mxu0 %v3614
        %3716 = vmatprep.subr.bf16.mxu0 %v3611
        %3717 = vmatpush1.bf16.msra.mxu0 %v3610
        %3718 = vmatprep.subr.bf16.mxu0 %v3607
        %3719 = vmatpush1.bf16.msra.mxu0 %v3606
        %3720 = vmatprep.subr.bf16.mxu0 %v3603
        %3721 = vmatpush1.bf16.msra.mxu0 %v3602
        %3722 = vmatprep.subr.bf16.mxu0 %v3599
        %3723 = vmatpush1.bf16.msra.mxu0 %v3598
        %3724 = vmatprep.subr.bf16.mxu0 %v3595
        %3725 = vmatpush1.bf16.msra.mxu0 %v3594
        %3726 = vmatprep.subr.bf16.mxu0 %v3591
        %3727 = vmatpush1.bf16.msra.mxu0 %v3590
        %3728 = vmatprep.subr.bf16.mxu0 %v3587
        %3729 = vmatpush1.bf16.msra.mxu0 %v3586
        %3730 = vmatprep.subr.bf16.mxu0 %v3647
        %3731 = vmatpush2.bf16.msra.mxu0 %v3646
        %3732 = vmatprep.subr.bf16.mxu0 %v3643
        %3733 = vmatpush2.bf16.msra.mxu0 %v3642
        %3734 = vmatprep.subr.bf16.mxu0 %v3639
        %3735 = vmatpush2.bf16.msra.mxu0 %v3638
        %3736 = vmatprep.subr.bf16.mxu0 %v3635
        %3737 = vmatpush2.bf16.msra.mxu0 %v3634
        %3738 = vmatprep.subr.bf16.mxu0 %v3631
        %3739 = vmatpush2.bf16.msra.mxu0 %v3630
        %3740 = vmatprep.subr.bf16.mxu0 %v3627
        %3741 = vmatpush2.bf16.msra.mxu0 %v3626
        %3742 = vmatprep.subr.bf16.mxu0 %v3623
        %3743 = vmatpush2.bf16.msra.mxu0 %v3622
        %3744 = vmatprep.subr.bf16.mxu0 %v3619
        %3745 = vmatpush2.bf16.msra.mxu0 %v3618
        %3746 = vmatprep.mubr.bf16.mxu0 %v3307
        %3747 = vmatmul.mubr.bf16.gmra.mxu0 %v3306
        %v3748 = vpop.f32.mrf.mxu0
        %v3749 = vadd.f32 %v3377, %v3748
        %v3750 = vpop.f32.mrf.mxu0
        %v3751 = vadd.f32 %v3381, %v3750
        %v3752 = vpop.f32.mrf.mxu0
        %v3753 = vpop.f32.mrf.mxu0
        %3754 = vdwg.mxu0
        %3755 = vmatprep.subr.bf16.mxu0 %v3617
        %3756 = vmatpush1.bf16.msra.mxu0 %v3616
        %3757 = vmatprep.subr.bf16.mxu0 %v3613
        %3758 = vmatpush1.bf16.msra.mxu0 %v3612
        %3759 = vmatprep.subr.bf16.mxu0 %v3609
        %3760 = vmatpush1.bf16.msra.mxu0 %v3608
        %3761 = vmatprep.subr.bf16.mxu0 %v3605
        %3762 = vmatpush1.bf16.msra.mxu0 %v3604
        %3763 = vmatprep.subr.bf16.mxu0 %v3601
        %3764 = vmatpush1.bf16.msra.mxu0 %v3600
        %3765 = vmatprep.subr.bf16.mxu0 %v3597
        %3766 = vmatpush1.bf16.msra.mxu0 %v3596
        %3767 = vmatprep.subr.bf16.mxu0 %v3593
        %3768 = vmatpush1.bf16.msra.mxu0 %v3592
        %3769 = vmatprep.subr.bf16.mxu0 %v3589
        %3770 = vmatpush1.bf16.msra.mxu0 %v3588
        %3771 = vmatprep.subr.bf16.mxu0 %v3649
        %3772 = vmatpush2.bf16.msra.mxu0 %v3648
        %3773 = vmatprep.subr.bf16.mxu0 %v3645
        %3774 = vmatpush2.bf16.msra.mxu0 %v3644
        %3775 = vmatprep.subr.bf16.mxu0 %v3641
        %3776 = vmatpush2.bf16.msra.mxu0 %v3640
        %3777 = vmatprep.subr.bf16.mxu0 %v3637
        %3778 = vmatpush2.bf16.msra.mxu0 %v3636
        %3779 = vmatprep.subr.bf16.mxu0 %v3633
        %3780 = vmatpush2.bf16.msra.mxu0 %v3632
        %3781 = vmatprep.subr.bf16.mxu0 %v3629
        %3782 = vmatpush2.bf16.msra.mxu0 %v3628
        %3783 = vmatprep.subr.bf16.mxu0 %v3625
        %3784 = vmatpush2.bf16.msra.mxu0 %v3624
        %3785 = vmatprep.subr.bf16.mxu0 %v3621
        %3786 = vmatpush2.bf16.msra.mxu0 %v3620
        %3787 = vmatprep.mubr.bf16.mxu0 %v3307
        %3788 = vmatmul.mubr.bf16.gmra.mxu0 %v3306
        %v3789 = vpop.f32.mrf.mxu0
        %v3790 = vadd.f32 %v3385, %v3789
        %v3791 = vpop.f32.mrf.mxu0
        %v3792 = vadd.f32 %v3389, %v3791
        %v3793 = vpop.f32.mrf.mxu0
        %v3794 = vpop.f32.mrf.mxu0
        %3795 = vdwg.mxu0
        %v3796 = vmax.f32 %v3749, 0.0
        %v3797 = vmax.f32 %v3751, 0.0
        %v3798 = vmax.f32 %v3790, 0.0
        %v3799 = vmax.f32 %v3792, 0.0
        %v3800 = vpack.c.bf16 %v3796, %v3796
        %v3801 = vpack.c.bf16 %v3797, %v3797
        %v3802 = vpack.c.bf16 %v3798, %v3798
        %v3803 = vpack.c.bf16 %v3799, %v3799
        %v3804 = vld [vmem:[%s449] sm:$0xff]
        %v3805 = vld [vmem:[%s449 + $0x8] sm:$0xff]
        %v3806 = vld [vmem:[%s449 + $0x10] sm:$0xff]
        %v3807 = vld [vmem:[%s449 + $0x18] sm:$0xff]
        %v3808 = vld [vmem:[%s449 + $0x20] sm:$0xff]
        %v3809 = vld [vmem:[%s449 + $0x28] sm:$0xff]
        %v3810 = vld [vmem:[%s449 + $0x30] sm:$0xff]
        %v3811 = vld [vmem:[%s449 + $0x38] sm:$0xff]
        %v3812 = vld [vmem:[%s449 + $0x40] sm:$0xff]
        %v3813 = vld [vmem:[%s449 + $0x48] sm:$0xff]
        %v3814 = vld [vmem:[%s449 + $0x50] sm:$0xff]
        %v3815 = vld [vmem:[%s449 + $0x58] sm:$0xff]
        %v3816 = vld [vmem:[%s449 + $0x60] sm:$0xff]
        %v3817 = vld [vmem:[%s449 + $0x68] sm:$0xff]
        %v3818 = vld [vmem:[%s449 + $0x70] sm:$0xff]
        %v3819 = vld [vmem:[%s449 + $0x78] sm:$0xff]
        %v3820 = vld [vmem:[%s449 + $0x80] sm:$0xff]
        %v3821 = vld [vmem:[%s449 + $0x88] sm:$0xff]
        %v3822 = vld [vmem:[%s449 + $0x90] sm:$0xff]
        %v3823 = vld [vmem:[%s449 + $0x98] sm:$0xff]
        %v3824 = vld [vmem:[%s449 + $0xa0] sm:$0xff]
        %v3825 = vld [vmem:[%s449 + $0xa8] sm:$0xff]
        %v3826 = vld [vmem:[%s449 + $0xb0] sm:$0xff]
        %v3827 = vld [vmem:[%s449 + $0xb8] sm:$0xff]
        %v3828 = vld [vmem:[%s449 + $0xc0] sm:$0xff]
        %v3829 = vld [vmem:[%s449 + $0xc8] sm:$0xff]
        %v3830 = vld [vmem:[%s449 + $0xd0] sm:$0xff]
        %v3831 = vld [vmem:[%s449 + $0xd8] sm:$0xff]
        %v3832 = vld [vmem:[%s449 + $0xe0] sm:$0xff]
        %v3833 = vld [vmem:[%s449 + $0xe8] sm:$0xff]
        %v3834 = vld [vmem:[%s449 + $0xf0] sm:$0xff]
        %v3835 = vld [vmem:[%s449 + $0xf8] sm:$0xff]
        %v3836 = vld [vmem:[%s449 + $0x100] sm:$0xff]
        %v3837 = vld [vmem:[%s449 + $0x108] sm:$0xff]
        %v3838 = vld [vmem:[%s449 + $0x110] sm:$0xff]
        %v3839 = vld [vmem:[%s449 + $0x118] sm:$0xff]
        %v3840 = vld [vmem:[%s449 + $0x120] sm:$0xff]
        %v3841 = vld [vmem:[%s449 + $0x128] sm:$0xff]
        %v3842 = vld [vmem:[%s449 + $0x130] sm:$0xff]
        %v3843 = vld [vmem:[%s449 + $0x138] sm:$0xff]
        %v3844 = vld [vmem:[%s449 + $0x140] sm:$0xff]
        %v3845 = vld [vmem:[%s449 + $0x148] sm:$0xff]
        %v3846 = vld [vmem:[%s449 + $0x150] sm:$0xff]
        %v3847 = vld [vmem:[%s449 + $0x158] sm:$0xff]
        %v3848 = vld [vmem:[%s449 + $0x160] sm:$0xff]
        %v3849 = vld [vmem:[%s449 + $0x168] sm:$0xff]
        %v3850 = vld [vmem:[%s449 + $0x170] sm:$0xff]
        %v3851 = vld [vmem:[%s449 + $0x178] sm:$0xff]
        %v3852 = vld [vmem:[%s449 + $0x180] sm:$0xff]
        %v3853 = vld [vmem:[%s449 + $0x188] sm:$0xff]
        %v3854 = vld [vmem:[%s449 + $0x190] sm:$0xff]
        %v3855 = vld [vmem:[%s449 + $0x198] sm:$0xff]
        %v3856 = vld [vmem:[%s449 + $0x1a0] sm:$0xff]
        %v3857 = vld [vmem:[%s449 + $0x1a8] sm:$0xff]
        %v3858 = vld [vmem:[%s449 + $0x1b0] sm:$0xff]
        %v3859 = vld [vmem:[%s449 + $0x1b8] sm:$0xff]
        %v3860 = vld [vmem:[%s449 + $0x1c0] sm:$0xff]
        %v3861 = vld [vmem:[%s449 + $0x1c8] sm:$0xff]
        %v3862 = vld [vmem:[%s449 + $0x1d0] sm:$0xff]
        %v3863 = vld [vmem:[%s449 + $0x1d8] sm:$0xff]
        %v3864 = vld [vmem:[%s449 + $0x1e0] sm:$0xff]
        %v3865 = vld [vmem:[%s449 + $0x1e8] sm:$0xff]
        %v3866 = vld [vmem:[%s449 + $0x1f0] sm:$0xff]
        %v3867 = vld [vmem:[%s449 + $0x1f8] sm:$0xff]
        %v3868 = vld [vmem:[%s458 + $0x1c] sm:$0x3]
        %v3870 = vlaneseq
        %v3871 = vshrl.u32 %v3870, 7
        %v3872 = vsub.s32 0, %v3871
        %v3873 = vrot.slane %v3868, %v3872
        %v3874 = vlaneseq
        %v3875 = vshrl.u32 %v3874, 7
        %v3876 = vsub.s32 1, %v3875
        %v3877 = vrot.slane %v3868, %v3876
        %v3944 = vunpack.c.l.b16 %v3804
        %v3945 = vunpack.c.h.b16 %v3804
        %v3946 = vunpack.c.l.b16 %v3805
        %v3947 = vunpack.c.h.b16 %v3805
        %v3948 = vunpack.c.l.b16 %v3806
        %v3949 = vunpack.c.h.b16 %v3806
        %v3950 = vunpack.c.l.b16 %v3807
        %v3951 = vunpack.c.h.b16 %v3807
        %v3952 = vunpack.c.l.b16 %v3808
        %v3953 = vunpack.c.h.b16 %v3808
        %v3954 = vunpack.c.l.b16 %v3809
        %v3955 = vunpack.c.h.b16 %v3809
        %v3956 = vunpack.c.l.b16 %v3810
        %v3957 = vunpack.c.h.b16 %v3810
        %v3958 = vunpack.c.l.b16 %v3811
        %v3959 = vunpack.c.h.b16 %v3811
        %v3960 = vunpack.c.l.b16 %v3812
        %v3961 = vunpack.c.h.b16 %v3812
        %v3962 = vunpack.c.l.b16 %v3813
        %v3963 = vunpack.c.h.b16 %v3813
        %v3964 = vunpack.c.l.b16 %v3814
        %v3965 = vunpack.c.h.b16 %v3814
        %v3966 = vunpack.c.l.b16 %v3815
        %v3967 = vunpack.c.h.b16 %v3815
        %v3968 = vunpack.c.l.b16 %v3816
        %v3969 = vunpack.c.h.b16 %v3816
        %v3970 = vunpack.c.l.b16 %v3817
        %v3971 = vunpack.c.h.b16 %v3817
        %v3972 = vunpack.c.l.b16 %v3818
        %v3973 = vunpack.c.h.b16 %v3818
        %v3974 = vunpack.c.l.b16 %v3819
        %v3975 = vunpack.c.h.b16 %v3819
        %v3976 = vunpack.c.l.b16 %v3820
        %v3977 = vunpack.c.h.b16 %v3820
        %v3978 = vunpack.c.l.b16 %v3821
        %v3979 = vunpack.c.h.b16 %v3821
        %v3980 = vunpack.c.l.b16 %v3822
        %v3981 = vunpack.c.h.b16 %v3822
        %v3982 = vunpack.c.l.b16 %v3823
        %v3983 = vunpack.c.h.b16 %v3823
        %v3984 = vunpack.c.l.b16 %v3824
        %v3985 = vunpack.c.h.b16 %v3824
        %v3986 = vunpack.c.l.b16 %v3825
        %v3987 = vunpack.c.h.b16 %v3825
        %v3988 = vunpack.c.l.b16 %v3826
        %v3989 = vunpack.c.h.b16 %v3826
        %v3990 = vunpack.c.l.b16 %v3827
        %v3991 = vunpack.c.h.b16 %v3827
        %v3992 = vunpack.c.l.b16 %v3828
        %v3993 = vunpack.c.h.b16 %v3828
        %v3994 = vunpack.c.l.b16 %v3829
        %v3995 = vunpack.c.h.b16 %v3829
        %v3996 = vunpack.c.l.b16 %v3830
        %v3997 = vunpack.c.h.b16 %v3830
        %v3998 = vunpack.c.l.b16 %v3831
        %v3999 = vunpack.c.h.b16 %v3831
        %v4000 = vunpack.c.l.b16 %v3832
        %v4001 = vunpack.c.h.b16 %v3832
        %v4002 = vunpack.c.l.b16 %v3833
        %v4003 = vunpack.c.h.b16 %v3833
        %v4004 = vunpack.c.l.b16 %v3834
        %v4005 = vunpack.c.h.b16 %v3834
        %v4006 = vunpack.c.l.b16 %v3835
        %v4007 = vunpack.c.h.b16 %v3835
        %v4008 = vunpack.c.l.b16 %v3836
        %v4009 = vunpack.c.h.b16 %v3836
        %v4010 = vunpack.c.l.b16 %v3837
        %v4011 = vunpack.c.h.b16 %v3837
        %v4012 = vunpack.c.l.b16 %v3838
        %v4013 = vunpack.c.h.b16 %v3838
        %v4014 = vunpack.c.l.b16 %v3839
        %v4015 = vunpack.c.h.b16 %v3839
        %v4016 = vunpack.c.l.b16 %v3840
        %v4017 = vunpack.c.h.b16 %v3840
        %v4018 = vunpack.c.l.b16 %v3841
        %v4019 = vunpack.c.h.b16 %v3841
        %v4020 = vunpack.c.l.b16 %v3842
        %v4021 = vunpack.c.h.b16 %v3842
        %v4022 = vunpack.c.l.b16 %v3843
        %v4023 = vunpack.c.h.b16 %v3843
        %v4024 = vunpack.c.l.b16 %v3844
        %v4025 = vunpack.c.h.b16 %v3844
        %v4026 = vunpack.c.l.b16 %v3845
        %v4027 = vunpack.c.h.b16 %v3845
        %v4028 = vunpack.c.l.b16 %v3846
        %v4029 = vunpack.c.h.b16 %v3846
        %v4030 = vunpack.c.l.b16 %v3847
        %v4031 = vunpack.c.h.b16 %v3847
        %v4032 = vunpack.c.l.b16 %v3848
        %v4033 = vunpack.c.h.b16 %v3848
        %v4034 = vunpack.c.l.b16 %v3849
        %v4035 = vunpack.c.h.b16 %v3849
        %v4036 = vunpack.c.l.b16 %v3850
        %v4037 = vunpack.c.h.b16 %v3850
        %v4038 = vunpack.c.l.b16 %v3851
        %v4039 = vunpack.c.h.b16 %v3851
        %v4040 = vunpack.c.l.b16 %v3852
        %v4041 = vunpack.c.h.b16 %v3852
        %v4042 = vunpack.c.l.b16 %v3853
        %v4043 = vunpack.c.h.b16 %v3853
        %v4044 = vunpack.c.l.b16 %v3854
        %v4045 = vunpack.c.h.b16 %v3854
        %v4046 = vunpack.c.l.b16 %v3855
        %v4047 = vunpack.c.h.b16 %v3855
        %v4048 = vunpack.c.l.b16 %v3856
        %v4049 = vunpack.c.h.b16 %v3856
        %v4050 = vunpack.c.l.b16 %v3857
        %v4051 = vunpack.c.h.b16 %v3857
        %v4052 = vunpack.c.l.b16 %v3858
        %v4053 = vunpack.c.h.b16 %v3858
        %v4054 = vunpack.c.l.b16 %v3859
        %v4055 = vunpack.c.h.b16 %v3859
        %v4056 = vunpack.c.l.b16 %v3860
        %v4057 = vunpack.c.h.b16 %v3860
        %v4058 = vunpack.c.l.b16 %v3861
        %v4059 = vunpack.c.h.b16 %v3861
        %v4060 = vunpack.c.l.b16 %v3862
        %v4061 = vunpack.c.h.b16 %v3862
        %v4062 = vunpack.c.l.b16 %v3863
        %v4063 = vunpack.c.h.b16 %v3863
        %v4064 = vunpack.c.l.b16 %v3864
        %v4065 = vunpack.c.h.b16 %v3864
        %v4066 = vunpack.c.l.b16 %v3865
        %v4067 = vunpack.c.h.b16 %v3865
        %v4068 = vunpack.c.l.b16 %v3866
        %v4069 = vunpack.c.h.b16 %v3866
        %v4070 = vunpack.c.l.b16 %v3867
        %v4071 = vunpack.c.h.b16 %v3867
        %v4072 = vpack.c.b16 %v3946, %v3944
        %v4073 = vpack.c.b16 %v3947, %v3945
        %v4074 = vpack.c.b16 %v3950, %v3948
        %v4075 = vpack.c.b16 %v3951, %v3949
        %v4076 = vpack.c.b16 %v3954, %v3952
        %v4077 = vpack.c.b16 %v3955, %v3953
        %v4078 = vpack.c.b16 %v3958, %v3956
        %v4079 = vpack.c.b16 %v3959, %v3957
        %v4080 = vpack.c.b16 %v3962, %v3960
        %v4081 = vpack.c.b16 %v3963, %v3961
        %v4082 = vpack.c.b16 %v3966, %v3964
        %v4083 = vpack.c.b16 %v3967, %v3965
        %v4084 = vpack.c.b16 %v3970, %v3968
        %v4085 = vpack.c.b16 %v3971, %v3969
        %v4086 = vpack.c.b16 %v3974, %v3972
        %v4087 = vpack.c.b16 %v3975, %v3973
        %v4088 = vpack.c.b16 %v3978, %v3976
        %v4089 = vpack.c.b16 %v3979, %v3977
        %v4090 = vpack.c.b16 %v3982, %v3980
        %v4091 = vpack.c.b16 %v3983, %v3981
        %v4092 = vpack.c.b16 %v3986, %v3984
        %v4093 = vpack.c.b16 %v3987, %v3985
        %v4094 = vpack.c.b16 %v3990, %v3988
        %v4095 = vpack.c.b16 %v3991, %v3989
        %v4096 = vpack.c.b16 %v3994, %v3992
        %v4097 = vpack.c.b16 %v3995, %v3993
        %v4098 = vpack.c.b16 %v3998, %v3996
        %v4099 = vpack.c.b16 %v3999, %v3997
        %v4100 = vpack.c.b16 %v4002, %v4000
        %v4101 = vpack.c.b16 %v4003, %v4001
        %v4102 = vpack.c.b16 %v4006, %v4004
        %v4103 = vpack.c.b16 %v4007, %v4005
        %v4104 = vpack.c.b16 %v4010, %v4008
        %v4105 = vpack.c.b16 %v4011, %v4009
        %v4106 = vpack.c.b16 %v4014, %v4012
        %v4107 = vpack.c.b16 %v4015, %v4013
        %v4108 = vpack.c.b16 %v4018, %v4016
        %v4109 = vpack.c.b16 %v4019, %v4017
        %v4110 = vpack.c.b16 %v4022, %v4020
        %v4111 = vpack.c.b16 %v4023, %v4021
        %v4112 = vpack.c.b16 %v4026, %v4024
        %v4113 = vpack.c.b16 %v4027, %v4025
        %v4114 = vpack.c.b16 %v4030, %v4028
        %v4115 = vpack.c.b16 %v4031, %v4029
        %v4116 = vpack.c.b16 %v4034, %v4032
        %v4117 = vpack.c.b16 %v4035, %v4033
        %v4118 = vpack.c.b16 %v4038, %v4036
        %v4119 = vpack.c.b16 %v4039, %v4037
        %v4120 = vpack.c.b16 %v4042, %v4040
        %v4121 = vpack.c.b16 %v4043, %v4041
        %v4122 = vpack.c.b16 %v4046, %v4044
        %v4123 = vpack.c.b16 %v4047, %v4045
        %v4124 = vpack.c.b16 %v4050, %v4048
        %v4125 = vpack.c.b16 %v4051, %v4049
        %v4126 = vpack.c.b16 %v4054, %v4052
        %v4127 = vpack.c.b16 %v4055, %v4053
        %v4128 = vpack.c.b16 %v4058, %v4056
        %v4129 = vpack.c.b16 %v4059, %v4057
        %v4130 = vpack.c.b16 %v4062, %v4060
        %v4131 = vpack.c.b16 %v4063, %v4061
        %v4132 = vpack.c.b16 %v4066, %v4064
        %v4133 = vpack.c.b16 %v4067, %v4065
        %v4134 = vpack.c.b16 %v4070, %v4068
        %v4135 = vpack.c.b16 %v4071, %v4069
        %4200 = vmatprep.subr.bf16.mxu0 %v4087
        %4201 = vmatpush1.bf16.msra.mxu0 %v4086
        %4202 = vmatprep.subr.bf16.mxu0 %v4085
        %4203 = vmatpush1.bf16.msra.mxu0 %v4084
        %4204 = vmatprep.subr.bf16.mxu0 %v4083
        %4205 = vmatpush1.bf16.msra.mxu0 %v4082
        %4206 = vmatprep.subr.bf16.mxu0 %v4081
        %4207 = vmatpush1.bf16.msra.mxu0 %v4080
        %4208 = vmatprep.subr.bf16.mxu0 %v4079
        %4209 = vmatpush1.bf16.msra.mxu0 %v4078
        %4210 = vmatprep.subr.bf16.mxu0 %v4077
        %4211 = vmatpush1.bf16.msra.mxu0 %v4076
        %4212 = vmatprep.subr.bf16.mxu0 %v4075
        %4213 = vmatpush1.bf16.msra.mxu0 %v4074
        %4214 = vmatprep.subr.bf16.mxu0 %v4073
        %4215 = vmatpush1.bf16.msra.mxu0 %v4072
        %4216 = vmatprep.subr.bf16.mxu0 %v4103
        %4217 = vmatpush2.bf16.msra.mxu0 %v4102
        %4218 = vmatprep.subr.bf16.mxu0 %v4101
        %4219 = vmatpush2.bf16.msra.mxu0 %v4100
        %4220 = vmatprep.subr.bf16.mxu0 %v4099
        %4221 = vmatpush2.bf16.msra.mxu0 %v4098
        %4222 = vmatprep.subr.bf16.mxu0 %v4097
        %4223 = vmatpush2.bf16.msra.mxu0 %v4096
        %4224 = vmatprep.subr.bf16.mxu0 %v4095
        %4225 = vmatpush2.bf16.msra.mxu0 %v4094
        %4226 = vmatprep.subr.bf16.mxu0 %v4093
        %4227 = vmatpush2.bf16.msra.mxu0 %v4092
        %4228 = vmatprep.subr.bf16.mxu0 %v4091
        %4229 = vmatpush2.bf16.msra.mxu0 %v4090
        %4230 = vmatprep.subr.bf16.mxu0 %v4089
        %4231 = vmatpush2.bf16.msra.mxu0 %v4088
        %4232 = vmatprep.mubr.bf16.mxu0 %v3801
        %4233 = vmatmul.mubr.bf16.gmra.mxu0 %v3800
        %v4234 = vpop.f32.mrf.mxu0
        %v4235 = vadd.f32 %v3873, %v4234
        %v4236 = vpop.f32.mrf.mxu0
        %v4237 = vadd.f32 %v3877, %v4236
        %v4238 = vpop.f32.mrf.mxu0
        %v4239 = vpop.f32.mrf.mxu0
        %4240 = vdwg.mxu0
        %4241 = vmatprep.subr.bf16.mxu0 %v4119
        %4242 = vmatpush1.bf16.msra.mxu0 %v4118
        %4243 = vmatprep.subr.bf16.mxu0 %v4117
        %4244 = vmatpush1.bf16.msra.mxu0 %v4116
        %4245 = vmatprep.subr.bf16.mxu0 %v4115
        %4246 = vmatpush1.bf16.msra.mxu0 %v4114
        %4247 = vmatprep.subr.bf16.mxu0 %v4113
        %4248 = vmatpush1.bf16.msra.mxu0 %v4112
        %4249 = vmatprep.subr.bf16.mxu0 %v4111
        %4250 = vmatpush1.bf16.msra.mxu0 %v4110
        %4251 = vmatprep.subr.bf16.mxu0 %v4109
        %4252 = vmatpush1.bf16.msra.mxu0 %v4108
        %4253 = vmatprep.subr.bf16.mxu0 %v4107
        %4254 = vmatpush1.bf16.msra.mxu0 %v4106
        %4255 = vmatprep.subr.bf16.mxu0 %v4105
        %4256 = vmatpush1.bf16.msra.mxu0 %v4104
        %4257 = vmatprep.subr.bf16.mxu0 %v4135
        %4258 = vmatpush2.bf16.msra.mxu0 %v4134
        %4259 = vmatprep.subr.bf16.mxu0 %v4133
        %4260 = vmatpush2.bf16.msra.mxu0 %v4132
        %4261 = vmatprep.subr.bf16.mxu0 %v4131
        %4262 = vmatpush2.bf16.msra.mxu0 %v4130
        %4263 = vmatprep.subr.bf16.mxu0 %v4129
        %4264 = vmatpush2.bf16.msra.mxu0 %v4128
        %4265 = vmatprep.subr.bf16.mxu0 %v4127
        %4266 = vmatpush2.bf16.msra.mxu0 %v4126
        %4267 = vmatprep.subr.bf16.mxu0 %v4125
        %4268 = vmatpush2.bf16.msra.mxu0 %v4124
        %4269 = vmatprep.subr.bf16.mxu0 %v4123
        %4270 = vmatpush2.bf16.msra.mxu0 %v4122
        %4271 = vmatprep.subr.bf16.mxu0 %v4121
        %4272 = vmatpush2.bf16.msra.mxu0 %v4120
        %4273 = vmatprep.mubr.bf16.mxu0 %v3803
        %4274 = vmatmul.mubr.bf16.gmra.mxu0 %v3802
        %v4275 = vpop.f32.mrf.mxu0
        %v4276 = vadd.f32 %v4235, %v4275
        %v4277 = vpop.f32.mrf.mxu0
        %v4278 = vadd.f32 %v4237, %v4277
        %v4279 = vpop.f32.mrf.mxu0
        %v4280 = vpop.f32.mrf.mxu0
        %4281 = vdwg.mxu0
        %v4282 = vadd.f32 %v3304, %v4276
        %v4283 = vadd.f32 %v3305, %v4278
        %v4284 = vld [vmem:[%s458 + $0x1e] sm:$0x3]
        %v4285 = vld [vmem:[%s458 + $0x20] sm:$0x3]
        %v4286 = vadd.f32 %v4282, %v4283
        %4287 = vadd.xlane.f32.xlu0 %v4286
        %v4288 = vpop.xlane.xlu0 %4287
        %v4289 = vmul.f32 %v4288, %v1868
        %v4290 = vsub.f32 %v4282, %v4289
        %v4291 = vsub.f32 %v4283, %v4289
        %v4292 = vmul.f32 %v4290, %v4290
        %v4293 = vmul.f32 %v4291, %v4291
        %v4294 = vadd.f32 %v4292, %v4293
        %4295 = vadd.xlane.f32.xlu0 %v4294
        %v4296 = vpop.xlane.xlu0 %4295
        %v4297 = vmul.f32 %v4296, %v1868
        %v4298 = vadd.f32 %v4297, 1e-05
        %v4299 = vrsqrt.pop %v4298
        %v4300 = vmul.f32 %v4290, %v4299
        %v4301 = vmul.f32 %v4291, %v4299
        %v4303 = vlaneseq
        %v4304 = vshrl.u32 %v4303, 7
        %v4305 = vsub.s32 0, %v4304
        %v4306 = vrot.slane %v4284, %v4305
        %v4307 = vlaneseq
        %v4308 = vshrl.u32 %v4307, 7
        %v4309 = vsub.s32 1, %v4308
        %v4310 = vrot.slane %v4284, %v4309
        %v4313 = vmul.f32 %v4300, %v4306
        %v4314 = vmul.f32 %v4301, %v4310
        %v4316 = vlaneseq
        %v4317 = vshrl.u32 %v4316, 7
        %v4318 = vsub.s32 0, %v4317
        %v4319 = vrot.slane %v4285, %v4318
        %v4320 = vlaneseq
        %v4321 = vshrl.u32 %v4320, 7
        %v4322 = vsub.s32 1, %v4321
        %v4323 = vrot.slane %v4285, %v4322
        %v4326 = vadd.f32 %v4313, %v4319
        %v4327 = vadd.f32 %v4314, %v4323
        %4328 = vst [vmem:[#allocation2] sm:$0xff] %v4326
        %4329 = vst [vmem:[#allocation2 + $0x8] sm:$0xff] %v4327
        %p4330 = scmp.eq.s32.totalorder %s31, 4
        // Predicated region
        $region93: #{decoder_forward.1} parent=63 // pred_check
          %p4331 = pneg %p4330
        $region94: #{decoder_forward.1} parent=63 // pred_check_branch
          %4333 = sbr.rel (%p4331) target = $region96
        $region95: #{decoder_forward.1} parent=63 // pred_region
          %v4334 = vpack.c.bf16 %v4326, %v4326
          %v4335 = vpack.c.bf16 %v4327, %v4327
          %v4336 = vld [vmem:[#allocation11] sm:$0xff]
          %v4337 = vld [vmem:[#allocation11 + $0x8] sm:$0xff]
          %v4338 = vld [vmem:[#allocation11 + $0x10] sm:$0xff]
          %v4339 = vld [vmem:[#allocation11 + $0x18] sm:$0xff]
          %v4340 = vld [vmem:[#allocation11 + $0x20] sm:$0xff]
          %v4341 = vld [vmem:[#allocation11 + $0x28] sm:$0xff]
          %v4342 = vld [vmem:[#allocation11 + $0x30] sm:$0xff]
          %v4343 = vld [vmem:[#allocation11 + $0x38] sm:$0xff]
          %v4344 = vld [vmem:[#allocation11 + $0x40] sm:$0xff]
          %v4345 = vld [vmem:[#allocation11 + $0x48] sm:$0xff]
          %v4346 = vld [vmem:[#allocation11 + $0x50] sm:$0xff]
          %v4347 = vld [vmem:[#allocation11 + $0x58] sm:$0xff]
          %v4348 = vld [vmem:[#allocation11 + $0x60] sm:$0xff]
          %v4349 = vld [vmem:[#allocation11 + $0x68] sm:$0xff]
          %v4350 = vld [vmem:[#allocation11 + $0x70] sm:$0xff]
          %v4351 = vld [vmem:[#allocation11 + $0x78] sm:$0xff]
          %v4352 = vld [vmem:[#allocation11 + $0x80] sm:$0xff]
          %v4353 = vld [vmem:[#allocation11 + $0x88] sm:$0xff]
          %v4354 = vld [vmem:[#allocation11 + $0x90] sm:$0xff]
          %v4355 = vld [vmem:[#allocation11 + $0x98] sm:$0xff]
          %v4356 = vld [vmem:[#allocation11 + $0xa0] sm:$0xff]
          %v4357 = vld [vmem:[#allocation11 + $0xa8] sm:$0xff]
          %v4358 = vld [vmem:[#allocation11 + $0xb0] sm:$0xff]
          %v4359 = vld [vmem:[#allocation11 + $0xb8] sm:$0xff]
          %v4360 = vld [vmem:[#allocation11 + $0xc0] sm:$0xff]
          %v4361 = vld [vmem:[#allocation11 + $0xc8] sm:$0xff]
          %v4362 = vld [vmem:[#allocation11 + $0xd0] sm:$0xff]
          %v4363 = vld [vmem:[#allocation11 + $0xd8] sm:$0xff]
          %v4364 = vld [vmem:[#allocation11 + $0xe0] sm:$0xff]
          %v4365 = vld [vmem:[#allocation11 + $0xe8] sm:$0xff]
          %v4366 = vld [vmem:[#allocation11 + $0xf0] sm:$0xff]
          %v4367 = vld [vmem:[#allocation11 + $0xf8] sm:$0xff]
          %v4368 = vld [vmem:[#allocation11 + $0x100] sm:$0xff]
          %v4369 = vld [vmem:[#allocation11 + $0x108] sm:$0xff]
          %v4370 = vld [vmem:[#allocation11 + $0x110] sm:$0xff]
          %v4371 = vld [vmem:[#allocation11 + $0x118] sm:$0xff]
          %v4372 = vld [vmem:[#allocation11 + $0x120] sm:$0xff]
          %v4373 = vld [vmem:[#allocation11 + $0x128] sm:$0xff]
          %v4374 = vld [vmem:[#allocation11 + $0x130] sm:$0xff]
          %v4375 = vld [vmem:[#allocation11 + $0x138] sm:$0xff]
          %v4376 = vld [vmem:[#allocation11 + $0x140] sm:$0xff]
          %v4377 = vld [vmem:[#allocation11 + $0x148] sm:$0xff]
          %v4378 = vld [vmem:[#allocation11 + $0x150] sm:$0xff]
          %v4379 = vld [vmem:[#allocation11 + $0x158] sm:$0xff]
          %v4380 = vld [vmem:[#allocation11 + $0x160] sm:$0xff]
          %v4381 = vld [vmem:[#allocation11 + $0x168] sm:$0xff]
          %v4382 = vld [vmem:[#allocation11 + $0x170] sm:$0xff]
          %v4383 = vld [vmem:[#allocation11 + $0x178] sm:$0xff]
          %v4384 = vld [vmem:[#allocation11 + $0x180] sm:$0xff]
          %v4385 = vld [vmem:[#allocation11 + $0x188] sm:$0xff]
          %v4386 = vld [vmem:[#allocation11 + $0x190] sm:$0xff]
          %v4387 = vld [vmem:[#allocation11 + $0x198] sm:$0xff]
          %v4388 = vld [vmem:[#allocation11 + $0x1a0] sm:$0xff]
          %v4389 = vld [vmem:[#allocation11 + $0x1a8] sm:$0xff]
          %v4390 = vld [vmem:[#allocation11 + $0x1b0] sm:$0xff]
          %v4391 = vld [vmem:[#allocation11 + $0x1b8] sm:$0xff]
          %v4392 = vld [vmem:[#allocation11 + $0x1c0] sm:$0xff]
          %v4393 = vld [vmem:[#allocation11 + $0x1c8] sm:$0xff]
          %v4394 = vld [vmem:[#allocation11 + $0x1d0] sm:$0xff]
          %v4395 = vld [vmem:[#allocation11 + $0x1d8] sm:$0xff]
          %v4396 = vld [vmem:[#allocation11 + $0x1e0] sm:$0xff]
          %v4397 = vld [vmem:[#allocation11 + $0x1e8] sm:$0xff]
          %v4398 = vld [vmem:[#allocation11 + $0x1f0] sm:$0xff]
          %v4399 = vld [vmem:[#allocation11 + $0x1f8] sm:$0xff]
          %v4400 = vld [vmem:[#allocation12] sm:$0xf]
          %v4402 = vshrl.u32 %v4334, 16
          %v4404 = vrot.slane %v4402, 3
          %v4406 = vshrl.u32 %v4335, 16
          %v4408 = vrot.slane %v4406, 3
          %v4475 = vunpack.c.l.b16 %v4336
          %v4476 = vunpack.c.h.b16 %v4336
          %v4477 = vunpack.c.l.b16 %v4337
          %v4478 = vunpack.c.h.b16 %v4337
          %v4479 = vunpack.c.l.b16 %v4338
          %v4480 = vunpack.c.h.b16 %v4338
          %v4481 = vunpack.c.l.b16 %v4339
          %v4482 = vunpack.c.h.b16 %v4339
          %v4483 = vunpack.c.l.b16 %v4340
          %v4484 = vunpack.c.h.b16 %v4340
          %v4485 = vunpack.c.l.b16 %v4341
          %v4486 = vunpack.c.h.b16 %v4341
          %v4487 = vunpack.c.l.b16 %v4342
          %v4488 = vunpack.c.h.b16 %v4342
          %v4489 = vunpack.c.l.b16 %v4343
          %v4490 = vunpack.c.h.b16 %v4343
          %v4491 = vunpack.c.l.b16 %v4344
          %v4492 = vunpack.c.h.b16 %v4344
          %v4493 = vunpack.c.l.b16 %v4345
          %v4494 = vunpack.c.h.b16 %v4345
          %v4495 = vunpack.c.l.b16 %v4346
          %v4496 = vunpack.c.h.b16 %v4346
          %v4497 = vunpack.c.l.b16 %v4347
          %v4498 = vunpack.c.h.b16 %v4347
          %v4499 = vunpack.c.l.b16 %v4348
          %v4500 = vunpack.c.h.b16 %v4348
          %v4501 = vunpack.c.l.b16 %v4349
          %v4502 = vunpack.c.h.b16 %v4349
          %v4503 = vunpack.c.l.b16 %v4350
          %v4504 = vunpack.c.h.b16 %v4350
          %v4505 = vunpack.c.l.b16 %v4351
          %v4506 = vunpack.c.h.b16 %v4351
          %v4507 = vunpack.c.l.b16 %v4352
          %v4508 = vunpack.c.h.b16 %v4352
          %v4509 = vunpack.c.l.b16 %v4353
          %v4510 = vunpack.c.h.b16 %v4353
          %v4511 = vunpack.c.l.b16 %v4354
          %v4512 = vunpack.c.h.b16 %v4354
          %v4513 = vunpack.c.l.b16 %v4355
          %v4514 = vunpack.c.h.b16 %v4355
          %v4515 = vunpack.c.l.b16 %v4356
          %v4516 = vunpack.c.h.b16 %v4356
          %v4517 = vunpack.c.l.b16 %v4357
          %v4518 = vunpack.c.h.b16 %v4357
          %v4519 = vunpack.c.l.b16 %v4358
          %v4520 = vunpack.c.h.b16 %v4358
          %v4521 = vunpack.c.l.b16 %v4359
          %v4522 = vunpack.c.h.b16 %v4359
          %v4523 = vunpack.c.l.b16 %v4360
          %v4524 = vunpack.c.h.b16 %v4360
          %v4525 = vunpack.c.l.b16 %v4361
          %v4526 = vunpack.c.h.b16 %v4361
          %v4527 = vunpack.c.l.b16 %v4362
          %v4528 = vunpack.c.h.b16 %v4362
          %v4529 = vunpack.c.l.b16 %v4363
          %v4530 = vunpack.c.h.b16 %v4363
          %v4531 = vunpack.c.l.b16 %v4364
          %v4532 = vunpack.c.h.b16 %v4364
          %v4533 = vunpack.c.l.b16 %v4365
          %v4534 = vunpack.c.h.b16 %v4365
          %v4535 = vunpack.c.l.b16 %v4366
          %v4536 = vunpack.c.h.b16 %v4366
          %v4537 = vunpack.c.l.b16 %v4367
          %v4538 = vunpack.c.h.b16 %v4367
          %v4539 = vunpack.c.l.b16 %v4368
          %v4540 = vunpack.c.h.b16 %v4368
          %v4541 = vunpack.c.l.b16 %v4369
          %v4542 = vunpack.c.h.b16 %v4369
          %v4543 = vunpack.c.l.b16 %v4370
          %v4544 = vunpack.c.h.b16 %v4370
          %v4545 = vunpack.c.l.b16 %v4371
          %v4546 = vunpack.c.h.b16 %v4371
          %v4547 = vunpack.c.l.b16 %v4372
          %v4548 = vunpack.c.h.b16 %v4372
          %v4549 = vunpack.c.l.b16 %v4373
          %v4550 = vunpack.c.h.b16 %v4373
          %v4551 = vunpack.c.l.b16 %v4374
          %v4552 = vunpack.c.h.b16 %v4374
          %v4553 = vunpack.c.l.b16 %v4375
          %v4554 = vunpack.c.h.b16 %v4375
          %v4555 = vunpack.c.l.b16 %v4376
          %v4556 = vunpack.c.h.b16 %v4376
          %v4557 = vunpack.c.l.b16 %v4377
          %v4558 = vunpack.c.h.b16 %v4377
          %v4559 = vunpack.c.l.b16 %v4378
          %v4560 = vunpack.c.h.b16 %v4378
          %v4561 = vunpack.c.l.b16 %v4379
          %v4562 = vunpack.c.h.b16 %v4379
          %v4563 = vunpack.c.l.b16 %v4380
          %v4564 = vunpack.c.h.b16 %v4380
          %v4565 = vunpack.c.l.b16 %v4381
          %v4566 = vunpack.c.h.b16 %v4381
          %v4567 = vunpack.c.l.b16 %v4382
          %v4568 = vunpack.c.h.b16 %v4382
          %v4569 = vunpack.c.l.b16 %v4383
          %v4570 = vunpack.c.h.b16 %v4383
          %v4571 = vunpack.c.l.b16 %v4384
          %v4572 = vunpack.c.h.b16 %v4384
          %v4573 = vunpack.c.l.b16 %v4385
          %v4574 = vunpack.c.h.b16 %v4385
          %v4575 = vunpack.c.l.b16 %v4386
          %v4576 = vunpack.c.h.b16 %v4386
          %v4577 = vunpack.c.l.b16 %v4387
          %v4578 = vunpack.c.h.b16 %v4387
          %v4579 = vunpack.c.l.b16 %v4388
          %v4580 = vunpack.c.h.b16 %v4388
          %v4581 = vunpack.c.l.b16 %v4389
          %v4582 = vunpack.c.h.b16 %v4389
          %v4583 = vunpack.c.l.b16 %v4390
          %v4584 = vunpack.c.h.b16 %v4390
          %v4585 = vunpack.c.l.b16 %v4391
          %v4586 = vunpack.c.h.b16 %v4391
          %v4587 = vunpack.c.l.b16 %v4392
          %v4588 = vunpack.c.h.b16 %v4392
          %v4589 = vunpack.c.l.b16 %v4393
          %v4590 = vunpack.c.h.b16 %v4393
          %v4591 = vunpack.c.l.b16 %v4394
          %v4592 = vunpack.c.h.b16 %v4394
          %v4593 = vunpack.c.l.b16 %v4395
          %v4594 = vunpack.c.h.b16 %v4395
          %v4595 = vunpack.c.l.b16 %v4396
          %v4596 = vunpack.c.h.b16 %v4396
          %v4597 = vunpack.c.l.b16 %v4397
          %v4598 = vunpack.c.h.b16 %v4397
          %v4599 = vunpack.c.l.b16 %v4398
          %v4600 = vunpack.c.h.b16 %v4398
          %v4601 = vunpack.c.l.b16 %v4399
          %v4602 = vunpack.c.h.b16 %v4399
          %v4603 = vpack.c.b16 %v4479, %v4475
          %v4604 = vpack.c.b16 %v4480, %v4476
          %v4605 = vpack.c.b16 %v4481, %v4477
          %v4606 = vpack.c.b16 %v4482, %v4478
          %v4607 = vpack.c.b16 %v4487, %v4483
          %v4608 = vpack.c.b16 %v4488, %v4484
          %v4609 = vpack.c.b16 %v4489, %v4485
          %v4610 = vpack.c.b16 %v4490, %v4486
          %v4611 = vpack.c.b16 %v4495, %v4491
          %v4612 = vpack.c.b16 %v4496, %v4492
          %v4613 = vpack.c.b16 %v4497, %v4493
          %v4614 = vpack.c.b16 %v4498, %v4494
          %v4615 = vpack.c.b16 %v4503, %v4499
          %v4616 = vpack.c.b16 %v4504, %v4500
          %v4617 = vpack.c.b16 %v4505, %v4501
          %v4618 = vpack.c.b16 %v4506, %v4502
          %v4619 = vpack.c.b16 %v4511, %v4507
          %v4620 = vpack.c.b16 %v4512, %v4508
          %v4621 = vpack.c.b16 %v4513, %v4509
          %v4622 = vpack.c.b16 %v4514, %v4510
          %v4623 = vpack.c.b16 %v4519, %v4515
          %v4624 = vpack.c.b16 %v4520, %v4516
          %v4625 = vpack.c.b16 %v4521, %v4517
          %v4626 = vpack.c.b16 %v4522, %v4518
          %v4627 = vpack.c.b16 %v4527, %v4523
          %v4628 = vpack.c.b16 %v4528, %v4524
          %v4629 = vpack.c.b16 %v4529, %v4525
          %v4630 = vpack.c.b16 %v4530, %v4526
          %v4631 = vpack.c.b16 %v4535, %v4531
          %v4632 = vpack.c.b16 %v4536, %v4532
          %v4633 = vpack.c.b16 %v4537, %v4533
          %v4634 = vpack.c.b16 %v4538, %v4534
          %v4635 = vpack.c.b16 %v4543, %v4539
          %v4636 = vpack.c.b16 %v4544, %v4540
          %v4637 = vpack.c.b16 %v4545, %v4541
          %v4638 = vpack.c.b16 %v4546, %v4542
          %v4639 = vpack.c.b16 %v4551, %v4547
          %v4640 = vpack.c.b16 %v4552, %v4548
          %v4641 = vpack.c.b16 %v4553, %v4549
          %v4642 = vpack.c.b16 %v4554, %v4550
          %v4643 = vpack.c.b16 %v4559, %v4555
          %v4644 = vpack.c.b16 %v4560, %v4556
          %v4645 = vpack.c.b16 %v4561, %v4557
          %v4646 = vpack.c.b16 %v4562, %v4558
          %v4647 = vpack.c.b16 %v4567, %v4563
          %v4648 = vpack.c.b16 %v4568, %v4564
          %v4649 = vpack.c.b16 %v4569, %v4565
          %v4650 = vpack.c.b16 %v4570, %v4566
          %v4651 = vpack.c.b16 %v4575, %v4571
          %v4652 = vpack.c.b16 %v4576, %v4572
          %v4653 = vpack.c.b16 %v4577, %v4573
          %v4654 = vpack.c.b16 %v4578, %v4574
          %v4655 = vpack.c.b16 %v4583, %v4579
          %v4656 = vpack.c.b16 %v4584, %v4580
          %v4657 = vpack.c.b16 %v4585, %v4581
          %v4658 = vpack.c.b16 %v4586, %v4582
          %v4659 = vpack.c.b16 %v4591, %v4587
          %v4660 = vpack.c.b16 %v4592, %v4588
          %v4661 = vpack.c.b16 %v4593, %v4589
          %v4662 = vpack.c.b16 %v4594, %v4590
          %v4663 = vpack.c.b16 %v4599, %v4595
          %v4664 = vpack.c.b16 %v4600, %v4596
          %v4665 = vpack.c.b16 %v4601, %v4597
          %v4666 = vpack.c.b16 %v4602, %v4598
          %v4732 = vlaneseq
          %v4733 = vshrl.u32 %v4732, 7
          %v4734 = vsub.s32 0, %v4733
          %v4735 = vrot.slane %v4400, %v4734
          %v4736 = vlaneseq
          %v4737 = vshrl.u32 %v4736, 7
          %v4738 = vsub.s32 1, %v4737
          %v4739 = vrot.slane %v4400, %v4738
          %v4740 = vlaneseq
          %v4741 = vshrl.u32 %v4740, 7
          %v4742 = vsub.s32 2, %v4741
          %v4743 = vrot.slane %v4400, %v4742
          %v4744 = vlaneseq
          %v4745 = vshrl.u32 %v4744, 7
          %v4746 = vsub.s32 3, %v4745
          %v4747 = vrot.slane %v4400, %v4746
          %4752 = vmatprep.subr.bf16.mxu0 %v4632
          %4753 = vmatpush1.bf16.msra.mxu0 %v4631
          %4754 = vmatprep.subr.bf16.mxu0 %v4628
          %4755 = vmatpush1.bf16.msra.mxu0 %v4627
          %4756 = vmatprep.subr.bf16.mxu0 %v4624
          %4757 = vmatpush1.bf16.msra.mxu0 %v4623
          %4758 = vmatprep.subr.bf16.mxu0 %v4620
          %4759 = vmatpush1.bf16.msra.mxu0 %v4619
          %4760 = vmatprep.subr.bf16.mxu0 %v4616
          %4761 = vmatpush1.bf16.msra.mxu0 %v4615
          %4762 = vmatprep.subr.bf16.mxu0 %v4612
          %4763 = vmatpush1.bf16.msra.mxu0 %v4611
          %4764 = vmatprep.subr.bf16.mxu0 %v4608
          %4765 = vmatpush1.bf16.msra.mxu0 %v4607
          %4766 = vmatprep.subr.bf16.mxu0 %v4604
          %4767 = vmatpush1.bf16.msra.mxu0 %v4603
          %4768 = vmatprep.subr.bf16.mxu0 %v4664
          %4769 = vmatpush2.bf16.msra.mxu0 %v4663
          %4770 = vmatprep.subr.bf16.mxu0 %v4660
          %4771 = vmatpush2.bf16.msra.mxu0 %v4659
          %4772 = vmatprep.subr.bf16.mxu0 %v4656
          %4773 = vmatpush2.bf16.msra.mxu0 %v4655
          %4774 = vmatprep.subr.bf16.mxu0 %v4652
          %4775 = vmatpush2.bf16.msra.mxu0 %v4651
          %4776 = vmatprep.subr.bf16.mxu0 %v4648
          %4777 = vmatpush2.bf16.msra.mxu0 %v4647
          %4778 = vmatprep.subr.bf16.mxu0 %v4644
          %4779 = vmatpush2.bf16.msra.mxu0 %v4643
          %4780 = vmatprep.subr.bf16.mxu0 %v4640
          %4781 = vmatpush2.bf16.msra.mxu0 %v4639
          %4782 = vmatprep.subr.bf16.mxu0 %v4636
          %4783 = vmatpush2.bf16.msra.mxu0 %v4635
          %4784 = vmatprep.mubr.bf16.mxu0 %v4408
          %4785 = vmatmul.mubr.bf16.gmra.mxu0 %v4404
          %v4786 = vpop.f32.mrf.mxu0
          %v4787 = vadd.f32 %v4735, %v4786
          %v4788 = vpop.f32.mrf.mxu0
          %v4789 = vadd.f32 %v4739, %v4788
          %v4790 = vpop.f32.mrf.mxu0
          %v4791 = vpop.f32.mrf.mxu0
          %4792 = vdwg.mxu0
          %4793 = vmatprep.subr.bf16.mxu0 %v4634
          %4794 = vmatpush1.bf16.msra.mxu0 %v4633
          %4795 = vmatprep.subr.bf16.mxu0 %v4630
          %4796 = vmatpush1.bf16.msra.mxu0 %v4629
          %4797 = vmatprep.subr.bf16.mxu0 %v4626
          %4798 = vmatpush1.bf16.msra.mxu0 %v4625
          %4799 = vmatprep.subr.bf16.mxu0 %v4622
          %4800 = vmatpush1.bf16.msra.mxu0 %v4621
          %4801 = vmatprep.subr.bf16.mxu0 %v4618
          %4802 = vmatpush1.bf16.msra.mxu0 %v4617
          %4803 = vmatprep.subr.bf16.mxu0 %v4614
          %4804 = vmatpush1.bf16.msra.mxu0 %v4613
          %4805 = vmatprep.subr.bf16.mxu0 %v4610
          %4806 = vmatpush1.bf16.msra.mxu0 %v4609
          %4807 = vmatprep.subr.bf16.mxu0 %v4606
          %4808 = vmatpush1.bf16.msra.mxu0 %v4605
          %4809 = vmatprep.subr.bf16.mxu0 %v4666
          %4810 = vmatpush2.bf16.msra.mxu0 %v4665
          %4811 = vmatprep.subr.bf16.mxu0 %v4662
          %4812 = vmatpush2.bf16.msra.mxu0 %v4661
          %4813 = vmatprep.subr.bf16.mxu0 %v4658
          %4814 = vmatpush2.bf16.msra.mxu0 %v4657
          %4815 = vmatprep.subr.bf16.mxu0 %v4654
          %4816 = vmatpush2.bf16.msra.mxu0 %v4653
          %4817 = vmatprep.subr.bf16.mxu0 %v4650
          %4818 = vmatpush2.bf16.msra.mxu0 %v4649
          %4819 = vmatprep.subr.bf16.mxu0 %v4646
          %4820 = vmatpush2.bf16.msra.mxu0 %v4645
          %4821 = vmatprep.subr.bf16.mxu0 %v4642
          %4822 = vmatpush2.bf16.msra.mxu0 %v4641
          %4823 = vmatprep.subr.bf16.mxu0 %v4638
          %4824 = vmatpush2.bf16.msra.mxu0 %v4637
          %4825 = vmatprep.mubr.bf16.mxu0 %v4408
          %4826 = vmatmul.mubr.bf16.gmra.mxu0 %v4404
          %v4827 = vpop.f32.mrf.mxu0
          %v4828 = vadd.f32 %v4743, %v4827
          %v4829 = vpop.f32.mrf.mxu0
          %v4830 = vadd.f32 %v4747, %v4829
          %v4831 = vpop.f32.mrf.mxu0
          %v4832 = vpop.f32.mrf.mxu0
          %4833 = vdwg.mxu0
          %vm4834 = vcmask 1040384
          %v4835 = vsel %vm4834, %v4787, -inf
          %v4836 = vsel %vm4834, %v4789, -inf
          %v4837 = vsel %vm4834, %v4828, -inf
          %v4838 = vsel %vm4834, %v4830, -inf
          %v4839 = vmax.f32 %v4835, %v4836
          %v4840 = vmax.f32 %v4837, %v4838
          %v4841 = vmax.f32 %v4839, %v4840
          %4842 = vmax.xlane.f32.xlu0 %v4841
          %v4843 = vpop.xlane.xlu0 %4842
          %v4844 = vsub.f32 %v4787, %v4843
          %v4845 = vsub.f32 %v4789, %v4843
          %v4846 = vsub.f32 %v4828, %v4843
          %v4847 = vsub.f32 %v4830, %v4843
          %v4848 = vmul.f32 %v4844, 1.442695
          %v4849 = vpow.pop %v4848
          %v4850 = vmul.f32 %v4845, 1.442695
          %v4851 = vpow.pop %v4850
          %v4852 = vmul.f32 %v4846, 1.442695
          %v4853 = vpow.pop %v4852
          %v4854 = vmul.f32 %v4847, 1.442695
          %v4855 = vpow.pop %v4854
          %v4856 = vsel %vm4834, %v4849, 0.0
          %v4857 = vsel %vm4834, %v4851, 0.0
          %v4858 = vadd.f32 %v4856, %v4857
          %v4859 = vsel %vm4834, %v4853, 0.0
          %v4860 = vadd.f32 %v4858, %v4859
          %v4861 = vsel %vm4834, %v4855, 0.0
          %v4862 = vadd.f32 %v4860, %v4861
          %4863 = vadd.xlane.f32.xlu0 %v4862
          %v4864 = vpop.xlane.xlu0 %4863
          %v4865 = vlog2.pop %v4864
          %v4866 = vmul.f32 %v4865, 0.6931472
          %v4867 = vadd.f32 %v4866, %v4843
          %v4868 = vsub.f32 %v4787, %v4867
          %v4869 = vsub.f32 %v4789, %v4867
          %v4870 = vsub.f32 %v4828, %v4867
          %v4871 = vsub.f32 %v4830, %v4867
          %v4876 = vcombine.low %v4868, %v4869
          %v4877 = vcombine.low %v4870, %v4871
          %v4879 = vunpack.c.l.s4 1966171168
          %v4880 = vunpack.c.0.s8 %v4879
          %v4881 = vlaneseq
          %v4882 = vshrl.u32 %v4881, 7
          %v4883 = vsub.s32 %v4880, %v4882
          %v4884 = vrot.slane %v4876, %v4883
          %v4886 = vunpack.c.l.s4 1966171168
          %v4887 = vunpack.c.0.s8 %v4886
          %v4888 = vlaneseq
          %v4889 = vshrl.u32 %v4888, 7
          %v4890 = vsub.s32 %v4887, %v4889
          %v4891 = vrot.slane %v4877, %v4890
          %v4892 = vcombine.low %v4884, %v4891
          %v4894 = vunpack.c.l.s4 1966171168
          %v4895 = vunpack.c.0.s8 %v4894
          %v4896 = vlaneseq
          %v4897 = vshrl.u32 %v4896, 7
          %v4898 = vsub.s32 %v4895, %v4897
          %v4899 = vrot.slane %v4892, %v4898
          %v4901 = vlaneseq
          %vm4902 = vcmp.ge.s32.totalorder %v4901, 0
          %vm4903 = vcmp.lt.s32.totalorder %v4901, 512
          %vm4904 = vmand %vm4902, %vm4903
          %4905 = vst.msk [vmem:[#allocation14] sm:$0xf] %vm4904, %v4899
        $region96: #{decoder_forward.1} parent=63 // pred_fallthru
          _
        // Predicated region
        $region97: #{decoder_forward.1} parent=63 // pred_check
          %p4906 = pneg %p290
        $region98: #{decoder_forward.1} parent=63 // pred_check_branch
          %4908 = sbr.rel (%p4906) target = $region100
        $region99: #{decoder_forward.1} parent=63 // pred_region
          %s4910 = ssub.s32 64, 64
          %4911 = vsyncadd [#allocation5], %s4910
          %s4913 = sshll.u32 [#allocation14], 4
          %s4914 = int_to_ptr.vmem [resolvable:$true] %s4913
          %4916 = dma.vmem_to_hbm [thread:$0]  %s4914, 64, %s11, [#allocation5]
        $region100: #{decoder_forward.1} parent=63 // pred_fallthru
          _
        // Predicated region
        $region101: #{decoder_forward.1} parent=63 // pred_check
          %p4917 = pneg %p290
        $region102: #{decoder_forward.1} parent=63 // pred_check_branch
          %4919 = sbr.rel (%p4917) target = $region104
        $region103: #{decoder_forward.1} parent=63 // pred_region
          %4920 = dma.done [#allocation5], 64
        $region104: #{decoder_forward.1} parent=63 // pred_fallthru
          _
      $region64: #{decoder_forward.1} parent=5 // pred_fallthru
        _
      %p4921 = scmp.le.s32.totalorder 2, %s26
      // Predicated region
      $region105: #{decoder_forward.1} parent=5 // pred_check
        %p4922 = pneg %p4921
      $region106: #{decoder_forward.1} parent=5 // pred_check_branch
        %4924 = sbr.rel (%p4922) target = $region108
      $region107: #{decoder_forward.1} parent=5 // pred_region
        %s4925 = ssub.s32 %s26, 2
      $region108: #{decoder_forward.1} parent=5 // pred_fallthru
        _
    $region6: #{decoder_forward.1} parent=1 // loop_footer
      %s30 = sadd.s32 1, %s26
    $region7: #{decoder_forward.1} parent=1 // loop_footer_branch
      %25 = sbr.rel target = $region3
    $region8: #{decoder_forward.1} parent=1 // loop_exit
      _
    %4926 = vsyncpa [#allocation4], 1
    %s4927 = scalar_lea.sflag [#allocation4], 1
    %4928 = vsyncpa %s4927, 1
    %4929 = vsyncpa [#allocation7], 1
    %s4930 = scalar_lea.sflag [#allocation7], 1
    %4931 = vsyncpa %s4930, 1
    %4932 = vsyncpa [#allocation10], 1
    %s4933 = scalar_lea.sflag [#allocation10], 1
    %4934 = vsyncpa %s4933, 1
    %4935 = vsyncpa [#allocation13], 1
    %4936 = vsyncpa [#allocation5], 1
    %s4937 = scalar_lea.sflag [#allocation5], 1
    %4938 = vsyncpa %s4937, 1

</llo_original>
